<compile_context>
chip_gen: v5e
topology: v5e:2x2
jax: 0.10.0
libtpu: 0.0.40
codegen_flags: <defaults>
</compile_context>

<pallas_src>
import functools

import jax
import jax.numpy as jnp
from jax.experimental import pallas as pl
from jax.experimental.pallas import tpu as pltpu

EPS = 1e-5
LANE = 128


def _round_up(x, m):
    return (x + m - 1) // m * m


def _vmem_limit_bytes():
    cap = 64 * 1024 * 1024
    try:
        cap = int(pltpu.get_tpu_info().vmem_capacity_bytes)
    except Exception:
        pass
    # Leave headroom below the physical capacity of the generation.
    return max(32 * 1024 * 1024, min(cap * 3 // 4, 100 * 1024 * 1024))


_VMEM_LIMIT = _vmem_limit_bytes()


def _pick_conv_row_tile(H, W, Cin, Cout, budget):
    """Largest row tile (divisor of H) whose per-step VMEM estimate fits."""
    Wp = W + 2
    best = 1
    for th in range(1, H + 1):
        if H % th:
            continue
        est = (2 * th * Wp * Cin * 2          # double-buffered body input
               + 4 * Wp * Cin * 2             # halo rows (double-buffered)
               + 2 * 9 * Cin * Cout * 2       # weights (double-buffered)
               + 2 * th * Wp * Cout * 2       # double-buffered conv output
               + 2 * 2 * Cout * 4             # stats blocks
               + (th + 2) * Wp * Cin * 2      # halo-window scratch
               + th * W * 3 * Cin * 2         # per-ky im2col band (bf16)
               + 2 * th * W * Cout * 4)       # f32 accumulator + headroom
        if est <= budget:
            best = th
    return best


def _pick_bnrelu_row_tile(H, W, C, budget):
    Wp = W + 2
    best = 1
    for th in range(1, H + 1):
        if H % th:
            continue
        est = 2 * th * Wp * C * 2 + 2 * th * W * C * 2 + 2 * th * W * C * 4
        if est <= budget:
            best = th
    return best


# ---------------------------------------------------------------------------
# Fused conv stage: [apply previous BN (scale, shift) + ReLU] -> 3x3 conv as
# three accumulated MXU matmuls (K = 3*Cin_pad) -> raw conv output (W-padded)
# + per-tile BN sum/sumsq partials.
# Grid: (N, H // TH), both axes "parallel" (per-tile stats, no carried state).
# ---------------------------------------------------------------------------
def _conv_bn_stats_kernel(*refs, TH, W, Wp, Cin, Cout, apply_affine):
    if apply_affine:
        (scale_ref, shift_ref, top_ref, body_ref, bot_ref, w_ref,
         y_ref, st_ref, xw_ref) = refs
    else:
        (top_ref, body_ref, bot_ref, w_ref, y_ref, st_ref, xw_ref) = refs
        scale_ref = shift_ref = None

    h = pl.program_id(1)
    nh = pl.num_programs(1)

    def prep(rows):  # previous stage's folded BN (+ReLU), f32 math, bf16 out
        if not apply_affine:
            return rows
        v = rows.astype(jnp.float32) * scale_ref[...] + shift_ref[...]
        return jnp.maximum(v, 0.0).astype(jnp.bfloat16)

    # ---- assemble the (TH+2, Wp, Cin) halo window in VMEM scratch ----------
    xw_ref[pl.ds(1, TH), :, :] = prep(body_ref[0])

    @pl.when(h > 0)
    def _():
        xw_ref[pl.ds(0, 1), :, :] = prep(top_ref[0])

    @pl.when(h == 0)
    def _():  # image top: conv zero padding (must be written -> no stale VMEM)
        xw_ref[pl.ds(0, 1), :, :] = jnp.zeros((1, Wp, Cin), jnp.bfloat16)

    @pl.when(h < nh - 1)
    def _():
        xw_ref[pl.ds(TH + 1, 1), :, :] = prep(bot_ref[0])

    @pl.when(h == nh - 1)
    def _():  # image bottom: conv zero padding
        xw_ref[pl.ds(TH + 1, 1), :, :] = jnp.zeros((1, Wp, Cin), jnp.bfloat16)

    if apply_affine:
        # The BN shift turns the zero pad columns into relu(shift); restore the
        # conv's zero padding with two tiny column stores.
        zc = jnp.zeros((TH + 2, 1, Cin), jnp.bfloat16)
        xw_ref[:, pl.ds(0, 1), :] = zc
        xw_ref[:, pl.ds(Wp - 1, 1), :] = zc

    # ---- 3x3 conv as 3 accumulated MXU matmuls, one per ky, K = 3*Cin -------
    acc = None
    for ky in range(3):
        band = xw_ref[pl.ds(ky, TH), :, :]                       # (TH, Wp, Cin)
        cols = [band[:, kx:kx + W, :].reshape(TH * W, Cin) for kx in range(3)]
        bmat = jnp.concatenate(cols, axis=1)                     # (TH*W, 3*Cin)
        d = jnp.dot(bmat, w_ref[pl.ds(ky * 3 * Cin, 3 * Cin), :],
                    preferred_element_type=jnp.float32)          # (TH*W, Cout)
        acc = d if acc is None else acc + d

    # ---- raw conv tile (stage output keeps the 1-column W padding) ----------
    y_ref[:, :, pl.ds(1, W), :] = acc.reshape(1, TH, W, Cout).astype(y_ref.dtype)
    zcol = jnp.zeros((1, TH, 1, Cout), y_ref.dtype)
    y_ref[:, :, pl.ds(0, 1), :] = zcol
    y_ref[:, :, pl.ds(W + 1, 1), :] = zcol

    # ---- per-tile BN statistics (sum, sumsq) --------------------------------
    s = jnp.sum(acc, axis=0, keepdims=True)                      # (1, Cout)
    ss = jnp.sum(acc * acc, axis=0, keepdims=True)               # (1, Cout)
    st_ref[...] = jnp.concatenate([s, ss], axis=0).reshape(1, 1, 2, Cout)


def _conv_stage(x_pad, w_mat, scale, shift, *, apply_affine, row_tile, vmem_limit):
    """One Conv3x3 stage.  x_pad is (N, H, W+2, Cin_pad) bf16 (W zero-padded).
    Returns (raw conv output bf16 (N, H, W+2, Cout_pad), per-tile stats f32)."""
    N, H, Wp, Cin = x_pad.shape
    W = Wp - 2
    Cout = w_mat.shape[1]
    TH = row_tile
    nh = H // TH

    kernel = functools.partial(
        _conv_bn_stats_kernel,
        TH=TH, W=W, Wp=Wp, Cin=Cin, Cout=Cout, apply_affine=apply_affine)

    # Three auto-pipelined views of the same input: body row-tile plus single
    # halo rows above/below.  Halo indices are clamped at the image edges; the
    # kernel overwrites those rows with the conv's zero padding.
    top_spec = pl.BlockSpec(
        (1, 1, Wp, Cin), lambda n, h: (n, jnp.maximum(h * TH - 1, 0), 0, 0))
    body_spec = pl.BlockSpec((1, TH, Wp, Cin), lambda n, h: (n, h, 0, 0))
    bot_spec = pl.BlockSpec(
        (1, 1, Wp, Cin), lambda n, h: (n, jnp.minimum(h * TH + TH, H - 1), 0, 0))
    w_spec = pl.BlockSpec((9 * Cin, Cout), lambda n, h: (0, 0))

    in_specs = []
    args = []
    if apply_affine:
        in_specs += [pl.BlockSpec((1, Cin), lambda n, h: (0, 0)),
                     pl.BlockSpec((1, Cin), lambda n, h: (0, 0))]
        args += [scale, shift]
    in_specs += [top_spec, body_spec, bot_spec, w_spec]
    args += [x_pad, x_pad, x_pad, w_mat]

    y, st = pl.pallas_call(
        kernel,
        grid=(N, nh),
        in_specs=in_specs,
        out_specs=(
            pl.BlockSpec((1, TH, Wp, Cout), lambda n, h: (n, h, 0, 0)),
            pl.BlockSpec((1, 1, 2, Cout), lambda n, h: (n, h, 0, 0)),
        ),
        out_shape=(
            jax.ShapeDtypeStruct((N, H, Wp, Cout), jnp.bfloat16),
            jax.ShapeDtypeStruct((N, nh, 2, Cout), jnp.float32),
        ),
        scratch_shapes=[pltpu.VMEM((TH + 2, Wp, Cin), jnp.bfloat16)],
        compiler_params=pltpu.CompilerParams(
            dimension_semantics=("parallel", "parallel"),
            vmem_limit_bytes=vmem_limit),
    )(*args)
    return y, st


# ---------------------------------------------------------------------------
# Final BatchNorm + ReLU apply: lane-dense elementwise kernel, large blocks,
# bf16 output, drops the W padding columns.
# ---------------------------------------------------------------------------
def _bn_relu_kernel(scale_ref, shift_ref, y_ref, o_ref, *, W):
    y = y_ref[:, :, pl.ds(1, W), :].astype(jnp.float32)
    o_ref[...] = jnp.maximum(y * scale_ref[...] + shift_ref[...],
                             0.0).astype(o_ref.dtype)


def _bn_relu_apply(y_pad, scale, shift, *, row_tile, vmem_limit):
    N, H, Wp, C = y_pad.shape
    W = Wp - 2
    TH = row_tile
    nh = H // TH
    return pl.pallas_call(
        functools.partial(_bn_relu_kernel, W=W),
        grid=(N, nh),
        in_specs=[
            pl.BlockSpec((1, C), lambda n, h: (0, 0)),
            pl.BlockSpec((1, C), lambda n, h: (0, 0)),
            pl.BlockSpec((1, TH, Wp, C), lambda n, h: (n, h, 0, 0)),
        ],
        out_specs=pl.BlockSpec((1, TH, W, C), lambda n, h: (n, h, 0, 0)),
        out_shape=jax.ShapeDtypeStruct((N, H, W, C), jnp.bfloat16),
        compiler_params=pltpu.CompilerParams(
            dimension_semantics=("parallel", "parallel"),
            vmem_limit_bytes=vmem_limit),
    )(scale, shift, y_pad)


def _bn_fold(stats, gamma_pad, beta_pad, count):
    """Fold per-tile (sum, sumsq) partials into per-channel (scale, shift)."""
    tot = jnp.sum(stats, axis=(0, 1))                # (2, Cpad)
    mean = tot[0] / count
    var = jnp.maximum(tot[1] / count - mean * mean, 0.0)   # biased variance
    scale = gamma_pad * jax.lax.rsqrt(var + EPS)
    shift = beta_pad - mean * scale
    return scale[None, :], shift[None, :]


def double_conv(x_nchw, w1, g1, b1, w2, g2, b2):
    """Forward pass of DoubleConv.  x is NCHW, weights are HWIO (3,3,Cin,Cout)."""
    N, Cin, H, W = x_nchw.shape
    Cout = w1.shape[-1]
    C1 = _round_up(max(Cin, LANE), LANE)
    C2 = _round_up(max(Cout, LANE), LANE)
    count = N * H * W

    vlim = _VMEM_LIMIT
    budget = vlim // 2
    th1 = _pick_conv_row_tile(H, W, C1, C2, budget)
    th2 = _pick_conv_row_tile(H, W, C2, C2, budget)
    thr = _pick_bnrelu_row_tile(H, W, C2, budget)

    # Wrapper-side layout plumbing (XLA): NCHW -> NHWC, pad W by 1 column on
    # each side (conv padding) and channels to a lane-dense 128, cast to bf16.
    x = jnp.transpose(x_nchw, (0, 2, 3, 1)).astype(jnp.bfloat16)
    x = jnp.pad(x, ((0, 0), (0, 0), (1, 1), (0, C1 - Cin)))

    def prep_w(w, ci, cip, cop):
        co = w.shape[-1]
        wp = jnp.pad(w, ((0, 0), (0, 0), (0, cip - ci), (0, cop - co)))
        return wp.reshape(9 * cip, cop).astype(jnp.bfloat16)   # (ky,kx,ci) major

    w1m = prep_w(w1, Cin, C1, C2)
    w2m = prep_w(w2, Cout, C2, C2)
    g1p = jnp.pad(g1.astype(jnp.float32), (0, C2 - Cout))
    b1p = jnp.pad(b1.astype(jnp.float32), (0, C2 - Cout))
    g2p = jnp.pad(g2.astype(jnp.float32), (0, C2 - Cout))
    b2p = jnp.pad(b2.astype(jnp.float32), (0, C2 - Cout))

    # Stage 1: conv1 + BN1 partial stats (no affine applied to the raw input).
    y1, st1 = _conv_stage(x, w1m, None, None,
                          apply_affine=False, row_tile=th1, vmem_limit=vlim)
    sc1, sh1 = _bn_fold(st1, g1p, b1p, count)

    # Stage 2: BN1 + ReLU folded into conv2, plus BN2 partial stats.
    y2, st2 = _conv_stage(y1, w2m, sc1, sh1,
                          apply_affine=True, row_tile=th2, vmem_limit=vlim)
    sc2, sh2 = _bn_fold(st2, g2p, b2p, count)

    # Final BN2 + ReLU (large lane-dense blocks, bf16 out, drops W padding).
    out_nhwc = _bn_relu_apply(y2, sc2, sh2, row_tile=thr, vmem_limit=vlim)

    # Back to PyTorch's NCHW f32, drop channel padding.
    return jnp.transpose(out_nhwc[..., :Cout], (0, 3, 1, 2)).astype(jnp.float32)


# ---------------- pure-JAX reference (for correctness check) ----------------
def _ref_double_conv(x_nchw, w1, g1, b1, w2, g2, b2):
    def conv(x, w):
        return jax.lax.conv_general_dilated(
            x, w, window_strides=(1, 1), padding="SAME",
            dimension_numbers=("NHWC", "HWIO", "NHWC"))

    def bn_relu(x, g, b):
        mean = jnp.mean(x, axis=(0, 1, 2), keepdims=True)
        var = jnp.mean((x - mean) ** 2, axis=(0, 1, 2), keepdims=True)
        return jnp.maximum((x - mean) * jax.lax.rsqrt(var + EPS) * g + b, 0.0)

    x = jnp.transpose(x_nchw, (0, 2, 3, 1))
    y = bn_relu(conv(x, w1), g1, b1)
    y = bn_relu(conv(y, w2), g2, b2)
    return jnp.transpose(y, (0, 3, 1, 2))


if __name__ == "__main__":
    N, Cin, Cout, H, W = 2, 4, 8, 16, 16

    key = jax.random.PRNGKey(0)
    kx, kw1, kw2 = jax.random.split(key, 3)

    x = jax.random.normal(kx, (N, Cin, H, W), jnp.float32)
    # Conv weights in HWIO layout (3, 3, Cin, Cout), deterministic init.
    w1 = jax.random.normal(kw1, (3, 3, Cin, Cout), jnp.float32) * 0.1
    w2 = jax.random.normal(kw2, (3, 3, Cout, Cout), jnp.float32) * 0.1
    # BatchNorm affine params, PyTorch defaults (gamma=1, beta=0).
    g1 = jnp.ones((Cout,), jnp.float32)
    b1 = jnp.zeros((Cout,), jnp.float32)
    g2 = jnp.ones((Cout,), jnp.float32)
    b2 = jnp.zeros((Cout,), jnp.float32)

    out = jax.jit(double_conv)(x, w1, g1, b1, w2, g2, b2)
    out = jax.block_until_ready(out)

    ref = _ref_double_conv(x, w1, g1, b1, w2, g2, b2)
    max_err = float(jnp.max(jnp.abs(out - ref)))
    assert out.shape == (N, Cout, H, W), out.shape
    # bf16 MXU inputs and bf16 intermediate activations (f32 accumulation / BN)
    # give ~1e-2-level deviations vs. the pure-f32 reference.
    assert max_err < 5e-2, f"max abs error {max_err}"

    print("KERNEL_OK")
</pallas_src>

<mosaic_0001>
module attributes {stable_mosaic.version = 11 : i64} {
  func.func @_bn_relu_kernel(%arg0: i32, %arg1: i32, %arg2: memref<1x128xf32, #tpu.memory_space<vmem>>, %arg3: memref<1x128xf32, #tpu.memory_space<vmem>>, %arg4: memref<1x16x18x128xbf16, #tpu.memory_space<vmem>>, %arg5: memref<1x16x16x128xbf16, #tpu.memory_space<vmem>>) attributes {dimension_semantics = [#tpu.dimension_semantics<parallel>, #tpu.dimension_semantics<parallel>], iteration_bounds = array<i64: 2, 1>, scalar_prefetch = 0 : i64, scratch_operands = 0 : i64, tpu.core_type = #tpu.core_type<tc>, window_params = [{pipeline_mode = #tpu.pipeline_mode<synchronous>, transform_indices = @transform_0, window_bounds = array<i64: 1, 128>}, {pipeline_mode = #tpu.pipeline_mode<synchronous>, transform_indices = @transform_1, window_bounds = array<i64: 1, 128>}, {transform_indices = @transform_2, window_bounds = array<i64: 1, 16, 18, 128>}, {transform_indices = @transform_3, window_bounds = array<i64: 1, 16, 16, 128>}]} {
    %c0 = arith.constant 0 : index
    %c0_0 = arith.constant 0 : index
    %c1 = arith.constant 1 : index
    %c0_1 = arith.constant 0 : index
    %0 = vector.load %arg4[%c0, %c0_0, %c1, %c0_1] : memref<1x16x18x128xbf16, #tpu.memory_space<vmem>>, vector<1x16x16x128xbf16>
    %1 = arith.extf %0 : vector<1x16x16x128xbf16> to vector<1x16x16x128xf32>
    %c0_2 = arith.constant 0 : index
    %c0_3 = arith.constant 0 : index
    %2 = vector.load %arg2[%c0_2, %c0_3] : memref<1x128xf32, #tpu.memory_space<vmem>>, vector<1x128xf32>
    %3 = vector.shape_cast %2 : vector<1x128xf32> to vector<1x1x1x128xf32>
    %4 = vector.broadcast %3 : vector<1x1x1x128xf32> to vector<1x16x16x128xf32>
    %5 = arith.mulf %1, %4 : vector<1x16x16x128xf32>
    %c0_4 = arith.constant 0 : index
    %c0_5 = arith.constant 0 : index
    %6 = vector.load %arg3[%c0_4, %c0_5] : memref<1x128xf32, #tpu.memory_space<vmem>>, vector<1x128xf32>
    %7 = vector.shape_cast %6 : vector<1x128xf32> to vector<1x1x1x128xf32>
    %8 = vector.broadcast %7 : vector<1x1x1x128xf32> to vector<1x16x16x128xf32>
    %9 = arith.addf %5, %8 : vector<1x16x16x128xf32>
    %cst = arith.constant 0.000000e+00 : f32
    %10 = vector.broadcast %cst : f32 to vector<1x16x16x128xf32>
    %11 = arith.maximumf %9, %10 : vector<1x16x16x128xf32>
    %12 = arith.truncf %11 : vector<1x16x16x128xf32> to vector<1x16x16x128xbf16>
    %c0_6 = arith.constant 0 : index
    %c0_7 = arith.constant 0 : index
    %c0_8 = arith.constant 0 : index
    %c0_9 = arith.constant 0 : index
    %13 = vector.load %arg5[%c0_6, %c0_7, %c0_8, %c0_9] : memref<1x16x16x128xbf16, #tpu.memory_space<vmem>>, vector<1x16x16x128xbf16>
    tpu.vector_store %arg5[%c0_6, %c0_7, %c0_8, %c0_9], %12 {strides = array<i32>} : memref<1x16x16x128xbf16, #tpu.memory_space<vmem>>, vector<1x16x16x128xbf16>,
    return
  }
  func.func @transform_0(%arg0: i32, %arg1: i32) -> (i32, i32) {
    %c0_i32 = arith.constant 0 : i32
    %c0_i32_0 = arith.constant 0 : i32
    %c0_i32_1 = arith.constant 0 : i32
    return %c0_i32, %c0_i32_0 : i32, i32
  }
  func.func @transform_1(%arg0: i32, %arg1: i32) -> (i32, i32) {
    %c0_i32 = arith.constant 0 : i32
    %c0_i32_0 = arith.constant 0 : i32
    %c0_i32_1 = arith.constant 0 : i32
    return %c0_i32, %c0_i32_0 : i32, i32
  }
  func.func @transform_2(%arg0: i32, %arg1: i32) -> (i32, i32, i32, i32) {
    %c0_i32 = arith.constant 0 : i32
    %c0_i32_0 = arith.constant 0 : i32
    %c0_i32_1 = arith.constant 0 : i32
    return %arg0, %arg1, %c0_i32, %c0_i32_0 : i32, i32, i32, i32
  }
  func.func @transform_3(%arg0: i32, %arg1: i32) -> (i32, i32, i32, i32) {
    %c0_i32 = arith.constant 0 : i32
    %c0_i32_0 = arith.constant 0 : i32
    %c0_i32_1 = arith.constant 0 : i32
    return %arg0, %arg1, %c0_i32, %c0_i32_0 : i32, i32, i32, i32
  }
}

module attributes {stable_mosaic.version = 11 : i64} {
  func.func @_conv_bn_stats_kernel(%arg0: i32, %arg1: i32, %arg2: memref<1x1x18x128xbf16, #tpu.memory_space<vmem>>, %arg3: memref<1x16x18x128xbf16, #tpu.memory_space<vmem>>, %arg4: memref<1x1x18x128xbf16, #tpu.memory_space<vmem>>, %arg5: memref<1152x128xbf16, #tpu.memory_space<vmem>>, %arg6: memref<1x16x18x128xbf16, #tpu.memory_space<vmem>>, %arg7: memref<1x1x2x128xf32, #tpu.memory_space<vmem>>, %arg8: memref<18x18x128xbf16, #tpu.memory_space<vmem>>) attributes {dimension_semantics = [#tpu.dimension_semantics<parallel>, #tpu.dimension_semantics<parallel>], iteration_bounds = array<i64: 2, 1>, scalar_prefetch = 0 : i64, scratch_operands = 1 : i64, tpu.core_type = #tpu.core_type<tc>, window_params = [{transform_indices = @transform_0, window_bounds = array<i64: 1, 1, 18, 128>}, {transform_indices = @transform_1, window_bounds = array<i64: 1, 16, 18, 128>}, {transform_indices = @transform_2, window_bounds = array<i64: 1, 1, 18, 128>}, {pipeline_mode = #tpu.pipeline_mode<synchronous>, transform_indices = @transform_3, window_bounds = array<i64: 1152, 128>}, {transform_indices = @transform_4, window_bounds = array<i64: 1, 16, 18, 128>}, {transform_indices = @transform_5, window_bounds = array<i64: 1, 1, 2, 128>}]} {
    %c0 = arith.constant 0 : index
    %c0_0 = arith.constant 0 : index
    %c0_1 = arith.constant 0 : index
    %c0_2 = arith.constant 0 : index
    %0 = vector.load %arg3[%c0, %c0_0, %c0_1, %c0_2] : memref<1x16x18x128xbf16, #tpu.memory_space<vmem>>, vector<1x16x18x128xbf16>
    %1 = vector.shape_cast %0 : vector<1x16x18x128xbf16> to vector<16x18x128xbf16>
    %c1 = arith.constant 1 : index
    %c0_3 = arith.constant 0 : index
    %c0_4 = arith.constant 0 : index
    %2 = vector.load %arg8[%c1, %c0_3, %c0_4] : memref<18x18x128xbf16, #tpu.memory_space<vmem>>, vector<16x18x128xbf16>
    tpu.vector_store %arg8[%c1, %c0_3, %c0_4], %1 {strides = array<i32>} : memref<18x18x128xbf16, #tpu.memory_space<vmem>>, vector<16x18x128xbf16>,
    %c0_i32 = arith.constant 0 : i32
    %3 = arith.cmpi sgt, %arg1, %c0_i32 : i32
    %4 = arith.extui %3 : i1 to i32
    %c0_i32_5 = arith.constant 0 : i32
    %5 = arith.cmpi ne, %4, %c0_i32_5 : i32
    scf.if %5 {
      %c0_44 = arith.constant 0 : index
      %c0_45 = arith.constant 0 : index
      %c0_46 = arith.constant 0 : index
      %c0_47 = arith.constant 0 : index
      %61 = vector.load %arg2[%c0_44, %c0_45, %c0_46, %c0_47] : memref<1x1x18x128xbf16, #tpu.memory_space<vmem>>, vector<1x1x18x128xbf16>
      %62 = vector.shape_cast %61 : vector<1x1x18x128xbf16> to vector<1x18x128xbf16>
      %c0_48 = arith.constant 0 : index
      %c0_49 = arith.constant 0 : index
      %c0_50 = arith.constant 0 : index
      %63 = vector.load %arg8[%c0_48, %c0_49, %c0_50] : memref<18x18x128xbf16, #tpu.memory_space<vmem>>, vector<1x18x128xbf16>
      tpu.vector_store %arg8[%c0_48, %c0_49, %c0_50], %62 {strides = array<i32>} : memref<18x18x128xbf16, #tpu.memory_space<vmem>>, vector<1x18x128xbf16>,
    } else {
    }
    %c0_i32_6 = arith.constant 0 : i32
    %6 = arith.cmpi eq, %arg1, %c0_i32_6 : i32
    %7 = arith.extui %6 : i1 to i32
    %c0_i32_7 = arith.constant 0 : i32
    %8 = arith.cmpi ne, %7, %c0_i32_7 : i32
    scf.if %8 {
      %cst_44 = arith.constant 0.000000e+00 : bf16
      %61 = vector.broadcast %cst_44 : bf16 to vector<1x18x128xbf16>
      %c0_45 = arith.constant 0 : index
      %c0_46 = arith.constant 0 : index
      %c0_47 = arith.constant 0 : index
      %62 = vector.load %arg8[%c0_45, %c0_46, %c0_47] : memref<18x18x128xbf16, #tpu.memory_space<vmem>>, vector<1x18x128xbf16>
      tpu.vector_store %arg8[%c0_45, %c0_46, %c0_47], %61 {strides = array<i32>} : memref<18x18x128xbf16, #tpu.memory_space<vmem>>, vector<1x18x128xbf16>,
    } else {
    }
    %c0_i32_8 = arith.constant 0 : i32
    %9 = arith.cmpi slt, %arg1, %c0_i32_8 : i32
    %10 = arith.extui %9 : i1 to i32
    %c0_i32_9 = arith.constant 0 : i32
    %11 = arith.cmpi ne, %10, %c0_i32_9 : i32
    scf.if %11 {
      %c0_44 = arith.constant 0 : index
      %c0_45 = arith.constant 0 : index
      %c0_46 = arith.constant 0 : index
      %c0_47 = arith.constant 0 : index
      %61 = vector.load %arg4[%c0_44, %c0_45, %c0_46, %c0_47] : memref<1x1x18x128xbf16, #tpu.memory_space<vmem>>, vector<1x1x18x128xbf16>
      %62 = vector.shape_cast %61 : vector<1x1x18x128xbf16> to vector<1x18x128xbf16>
      %c17_48 = arith.constant 17 : index
      %c0_49 = arith.constant 0 : index
      %c0_50 = arith.constant 0 : index
      %63 = vector.load %arg8[%c17_48, %c0_49, %c0_50] : memref<18x18x128xbf16, #tpu.memory_space<vmem>>, vector<1x18x128xbf16>
      tpu.vector_store %arg8[%c17_48, %c0_49, %c0_50], %62 {strides = array<i32>} : memref<18x18x128xbf16, #tpu.memory_space<vmem>>, vector<1x18x128xbf16>,
    } else {
    }
    %c0_i32_10 = arith.constant 0 : i32
    %12 = arith.cmpi eq, %arg1, %c0_i32_10 : i32
    %13 = arith.extui %12 : i1 to i32
    %c0_i32_11 = arith.constant 0 : i32
    %14 = arith.cmpi ne, %13, %c0_i32_11 : i32
    scf.if %14 {
      %cst_44 = arith.constant 0.000000e+00 : bf16
      %61 = vector.broadcast %cst_44 : bf16 to vector<1x18x128xbf16>
      %c17_45 = arith.constant 17 : index
      %c0_46 = arith.constant 0 : index
      %c0_47 = arith.constant 0 : index
      %62 = vector.load %arg8[%c17_45, %c0_46, %c0_47] : memref<18x18x128xbf16, #tpu.memory_space<vmem>>, vector<1x18x128xbf16>
      tpu.vector_store %arg8[%c17_45, %c0_46, %c0_47], %61 {strides = array<i32>} : memref<18x18x128xbf16, #tpu.memory_space<vmem>>, vector<1x18x128xbf16>,
    } else {
    }
    %c0_12 = arith.constant 0 : index
    %c0_13 = arith.constant 0 : index
    %c0_14 = arith.constant 0 : index
    %15 = vector.load %arg8[%c0_12, %c0_13, %c0_14] : memref<18x18x128xbf16, #tpu.memory_space<vmem>>, vector<16x18x128xbf16>
    %16 = vector.extract_strided_slice %15 {offsets = [0, 0, 0], sizes = [16, 16, 128], strides = [1, 1, 1]} : vector<16x18x128xbf16> to vector<16x16x128xbf16>
    %17 = vector.shape_cast %16 : vector<16x16x128xbf16> to vector<256x128xbf16>
    %18 = vector.extract_strided_slice %15 {offsets = [0, 1, 0], sizes = [16, 16, 128], strides = [1, 1, 1]} : vector<16x18x128xbf16> to vector<16x16x128xbf16>
    %19 = vector.shape_cast %18 : vector<16x16x128xbf16> to vector<256x128xbf16>
    %20 = vector.extract_strided_slice %15 {offsets = [0, 2, 0], sizes = [16, 16, 128], strides = [1, 1, 1]} : vector<16x18x128xbf16> to vector<16x16x128xbf16>
    %21 = vector.shape_cast %20 : vector<16x16x128xbf16> to vector<256x128xbf16>
    %22 = tpu.concatenate %17, %19, %21 in 1 : vector<256x128xbf16>, vector<256x128xbf16>, vector<256x128xbf16> -> vector<256x384xbf16>
    %c0_15 = arith.constant 0 : index
    %c0_16 = arith.constant 0 : index
    %23 = vector.load %arg5[%c0_15, %c0_16] : memref<1152x128xbf16, #tpu.memory_space<vmem>>, vector<384x128xbf16>
    %cst = arith.constant dense<0.000000e+00> : vector<256x128xf32>
    %24 = tpu.matmul %22, %23, %cst {dimension_numbers = #tpu.dot_dimension_numbers<[1], [0], [0], [1], [0, 0, 1, 1], [], []>} : vector<256x384xbf16>, vector<384x128xbf16>, vector<256x128xf32> -> vector<256x128xf32>
    %c1_17 = arith.constant 1 : index
    %c0_18 = arith.constant 0 : index
    %c0_19 = arith.constant 0 : index
    %25 = vector.load %arg8[%c1_17, %c0_18, %c0_19] : memref<18x18x128xbf16, #tpu.memory_space<vmem>>, vector<16x18x128xbf16>
    %26 = vector.extract_strided_slice %25 {offsets = [0, 0, 0], sizes = [16, 16, 128], strides = [1, 1, 1]} : vector<16x18x128xbf16> to vector<16x16x128xbf16>
    %27 = vector.shape_cast %26 : vector<16x16x128xbf16> to vector<256x128xbf16>
    %28 = vector.extract_strided_slice %25 {offsets = [0, 1, 0], sizes = [16, 16, 128], strides = [1, 1, 1]} : vector<16x18x128xbf16> to vector<16x16x128xbf16>
    %29 = vector.shape_cast %28 : vector<16x16x128xbf16> to vector<256x128xbf16>
    %30 = vector.extract_strided_slice %25 {offsets = [0, 2, 0], sizes = [16, 16, 128], strides = [1, 1, 1]} : vector<16x18x128xbf16> to vector<16x16x128xbf16>
    %31 = vector.shape_cast %30 : vector<16x16x128xbf16> to vector<256x128xbf16>
    %32 = tpu.concatenate %27, %29, %31 in 1 : vector<256x128xbf16>, vector<256x128xbf16>, vector<256x128xbf16> -> vector<256x384xbf16>
    %c384 = arith.constant 384 : index
    %c0_20 = arith.constant 0 : index
    %33 = vector.load %arg5[%c384, %c0_20] : memref<1152x128xbf16, #tpu.memory_space<vmem>>, vector<384x128xbf16>
    %cst_21 = arith.constant dense<0.000000e+00> : vector<256x128xf32>
    %34 = tpu.matmul %32, %33, %cst_21 {dimension_numbers = #tpu.dot_dimension_numbers<[1], [0], [0], [1], [0, 0, 1, 1], [], []>} : vector<256x384xbf16>, vector<384x128xbf16>, vector<256x128xf32> -> vector<256x128xf32>
    %35 = arith.addf %24, %34 : vector<256x128xf32>
    %c2 = arith.constant 2 : index
    %c0_22 = arith.constant 0 : index
    %c0_23 = arith.constant 0 : index
    %36 = vector.load %arg8[%c2, %c0_22, %c0_23] : memref<18x18x128xbf16, #tpu.memory_space<vmem>>, vector<16x18x128xbf16>
    %37 = vector.extract_strided_slice %36 {offsets = [0, 0, 0], sizes = [16, 16, 128], strides = [1, 1, 1]} : vector<16x18x128xbf16> to vector<16x16x128xbf16>
    %38 = vector.shape_cast %37 : vector<16x16x128xbf16> to vector<256x128xbf16>
    %39 = vector.extract_strided_slice %36 {offsets = [0, 1, 0], sizes = [16, 16, 128], strides = [1, 1, 1]} : vector<16x18x128xbf16> to vector<16x16x128xbf16>
    %40 = vector.shape_cast %39 : vector<16x16x128xbf16> to vector<256x128xbf16>
    %41 = vector.extract_strided_slice %36 {offsets = [0, 2, 0], sizes = [16, 16, 128], strides = [1, 1, 1]} : vector<16x18x128xbf16> to vector<16x16x128xbf16>
    %42 = vector.shape_cast %41 : vector<16x16x128xbf16> to vector<256x128xbf16>
    %43 = tpu.concatenate %38, %40, %42 in 1 : vector<256x128xbf16>, vector<256x128xbf16>, vector<256x128xbf16> -> vector<256x384xbf16>
    %c768 = arith.constant 768 : index
    %c0_24 = arith.constant 0 : index
    %44 = vector.load %arg5[%c768, %c0_24] : memref<1152x128xbf16, #tpu.memory_space<vmem>>, vector<384x128xbf16>
    %cst_25 = arith.constant dense<0.000000e+00> : vector<256x128xf32>
    %45 = tpu.matmul %43, %44, %cst_25 {dimension_numbers = #tpu.dot_dimension_numbers<[1], [0], [0], [1], [0, 0, 1, 1], [], []>} : vector<256x384xbf16>, vector<384x128xbf16>, vector<256x128xf32> -> vector<256x128xf32>
    %46 = arith.addf %35, %45 : vector<256x128xf32>
    %47 = vector.shape_cast %46 : vector<256x128xf32> to vector<1x16x16x128xf32>
    %48 = arith.truncf %47 : vector<1x16x16x128xf32> to vector<1x16x16x128xbf16>
    %c0_26 = arith.constant 0 : index
    %c0_27 = arith.constant 0 : index
    %c1_28 = arith.constant 1 : index
    %c0_29 = arith.constant 0 : index
    %49 = vector.load %arg6[%c0_26, %c0_27, %c1_28, %c0_29] : memref<1x16x18x128xbf16, #tpu.memory_space<vmem>>, vector<1x16x16x128xbf16>
    tpu.vector_store %arg6[%c0_26, %c0_27, %c1_28, %c0_29], %48 {strides = array<i32>} : memref<1x16x18x128xbf16, #tpu.memory_space<vmem>>, vector<1x16x16x128xbf16>,
    %cst_30 = arith.constant 0.000000e+00 : bf16
    %50 = vector.broadcast %cst_30 : bf16 to vector<1x16x1x128xbf16>
    %c0_31 = arith.constant 0 : index
    %c0_32 = arith.constant 0 : index
    %c0_33 = arith.constant 0 : index
    %c0_34 = arith.constant 0 : index
    %51 = vector.load %arg6[%c0_31, %c0_32, %c0_33, %c0_34] : memref<1x16x18x128xbf16, #tpu.memory_space<vmem>>, vector<1x16x1x128xbf16>
    tpu.vector_store %arg6[%c0_31, %c0_32, %c0_33, %c0_34], %50 {strides = array<i32>} : memref<1x16x18x128xbf16, #tpu.memory_space<vmem>>, vector<1x16x1x128xbf16>,
    %c0_35 = arith.constant 0 : index
    %c0_36 = arith.constant 0 : index
    %c17 = arith.constant 17 : index
    %c0_37 = arith.constant 0 : index
    %52 = vector.load %arg6[%c0_35, %c0_36, %c17, %c0_37] : memref<1x16x18x128xbf16, #tpu.memory_space<vmem>>, vector<1x16x1x128xbf16>
    tpu.vector_store %arg6[%c0_35, %c0_36, %c17, %c0_37], %50 {strides = array<i32>} : memref<1x16x18x128xbf16, #tpu.memory_space<vmem>>, vector<1x16x1x128xbf16>,
    %cst_38 = arith.constant dense<0.000000e+00> : vector<128xf32>
    %53 = vector.multi_reduction <add>, %46, %cst_38 [0] : vector<256x128xf32> to vector<128xf32>
    %54 = vector.shape_cast %53 : vector<128xf32> to vector<1x128xf32>
    %55 = arith.mulf %46, %46 : vector<256x128xf32>
    %cst_39 = arith.constant dense<0.000000e+00> : vector<128xf32>
    %56 = vector.multi_reduction <add>, %55, %cst_39 [0] : vector<256x128xf32> to vector<128xf32>
    %57 = vector.shape_cast %56 : vector<128xf32> to vector<1x128xf32>
    %58 = tpu.concatenate %54, %57 in 0 : vector<1x128xf32>, vector<1x128xf32> -> vector<2x128xf32>
    %59 = vector.shape_cast %58 : vector<2x128xf32> to vector<1x1x2x128xf32>
    %c0_40 = arith.constant 0 : index
    %c0_41 = arith.constant 0 : index
    %c0_42 = arith.constant 0 : index
    %c0_43 = arith.constant 0 : index
    %60 = vector.load %arg7[%c0_40, %c0_41, %c0_42, %c0_43] : memref<1x1x2x128xf32, #tpu.memory_space<vmem>>, vector<1x1x2x128xf32>
    tpu.vector_store %arg7[%c0_40, %c0_41, %c0_42, %c0_43], %59 {strides = array<i32>} : memref<1x1x2x128xf32, #tpu.memory_space<vmem>>, vector<1x1x2x128xf32>,
    return
  }
  func.func @transform_0(%arg0: i32, %arg1: i32) -> (i32, i32, i32, i32) {
    %c16_i32 = arith.constant 16 : i32
    %0 = arith.muli %arg1, %c16_i32 : i32
    %c1_i32 = arith.constant 1 : i32
    %1 = arith.subi %0, %c1_i32 : i32
    %c0_i32 = arith.constant 0 : i32
    %2 = arith.maxsi %1, %c0_i32 : i32
    %c0_i32_0 = arith.constant 0 : i32
    %c0_i32_1 = arith.constant 0 : i32
    %c0_i32_2 = arith.constant 0 : i32
    return %arg0, %2, %c0_i32_0, %c0_i32_1 : i32, i32, i32, i32
  }
  func.func @transform_1(%arg0: i32, %arg1: i32) -> (i32, i32, i32, i32) {
    %c0_i32 = arith.constant 0 : i32
    %c0_i32_0 = arith.constant 0 : i32
    %c0_i32_1 = arith.constant 0 : i32
    return %arg0, %arg1, %c0_i32, %c0_i32_0 : i32, i32, i32, i32
  }
  func.func @transform_2(%arg0: i32, %arg1: i32) -> (i32, i32, i32, i32) {
    %c16_i32 = arith.constant 16 : i32
    %0 = arith.muli %arg1, %c16_i32 : i32
    %c16_i32_0 = arith.constant 16 : i32
    %1 = arith.addi %0, %c16_i32_0 : i32
    %c15_i32 = arith.constant 15 : i32
    %2 = arith.minsi %1, %c15_i32 : i32
    %c0_i32 = arith.constant 0 : i32
    %c0_i32_1 = arith.constant 0 : i32
    %c0_i32_2 = arith.constant 0 : i32
    return %arg0, %2, %c0_i32, %c0_i32_1 : i32, i32, i32, i32
  }
  func.func @transform_3(%arg0: i32, %arg1: i32) -> (i32, i32) {
    %c0_i32 = arith.constant 0 : i32
    %c0_i32_0 = arith.constant 0 : i32
    %c0_i32_1 = arith.constant 0 : i32
    return %c0_i32, %c0_i32_0 : i32, i32
  }
  func.func @transform_4(%arg0: i32, %arg1: i32) -> (i32, i32, i32, i32) {
    %c0_i32 = arith.constant 0 : i32
    %c0_i32_0 = arith.constant 0 : i32
    %c0_i32_1 = arith.constant 0 : i32
    return %arg0, %arg1, %c0_i32, %c0_i32_0 : i32, i32, i32, i32
  }
  func.func @transform_5(%arg0: i32, %arg1: i32) -> (i32, i32, i32, i32) {
    %c0_i32 = arith.constant 0 : i32
    %c0_i32_0 = arith.constant 0 : i32
    %c0_i32_1 = arith.constant 0 : i32
    return %arg0, %arg1, %c0_i32, %c0_i32_0 : i32, i32, i32, i32
  }
}

module attributes {stable_mosaic.version = 11 : i64} {
  func.func @_conv_bn_stats_kernel(%arg0: i32, %arg1: i32, %arg2: memref<1x128xf32, #tpu.memory_space<vmem>>, %arg3: memref<1x128xf32, #tpu.memory_space<vmem>>, %arg4: memref<1x1x18x128xbf16, #tpu.memory_space<vmem>>, %arg5: memref<1x16x18x128xbf16, #tpu.memory_space<vmem>>, %arg6: memref<1x1x18x128xbf16, #tpu.memory_space<vmem>>, %arg7: memref<1152x128xbf16, #tpu.memory_space<vmem>>, %arg8: memref<1x16x18x128xbf16, #tpu.memory_space<vmem>>, %arg9: memref<1x1x2x128xf32, #tpu.memory_space<vmem>>, %arg10: memref<18x18x128xbf16, #tpu.memory_space<vmem>>) attributes {dimension_semantics = [#tpu.dimension_semantics<parallel>, #tpu.dimension_semantics<parallel>], iteration_bounds = array<i64: 2, 1>, scalar_prefetch = 0 : i64, scratch_operands = 1 : i64, tpu.core_type = #tpu.core_type<tc>, window_params = [{pipeline_mode = #tpu.pipeline_mode<synchronous>, transform_indices = @transform_0, window_bounds = array<i64: 1, 128>}, {pipeline_mode = #tpu.pipeline_mode<synchronous>, transform_indices = @transform_1, window_bounds = array<i64: 1, 128>}, {transform_indices = @transform_2, window_bounds = array<i64: 1, 1, 18, 128>}, {transform_indices = @transform_3, window_bounds = array<i64: 1, 16, 18, 128>}, {transform_indices = @transform_4, window_bounds = array<i64: 1, 1, 18, 128>}, {pipeline_mode = #tpu.pipeline_mode<synchronous>, transform_indices = @transform_5, window_bounds = array<i64: 1152, 128>}, {transform_indices = @transform_6, window_bounds = array<i64: 1, 16, 18, 128>}, {transform_indices = @transform_7, window_bounds = array<i64: 1, 1, 2, 128>}]} {
    %c0 = arith.constant 0 : index
    %c0_0 = arith.constant 0 : index
    %c0_1 = arith.constant 0 : index
    %c0_2 = arith.constant 0 : index
    %0 = vector.load %arg5[%c0, %c0_0, %c0_1, %c0_2] : memref<1x16x18x128xbf16, #tpu.memory_space<vmem>>, vector<1x16x18x128xbf16>
    %1 = vector.shape_cast %0 : vector<1x16x18x128xbf16> to vector<16x18x128xbf16>
    %2 = arith.extf %1 : vector<16x18x128xbf16> to vector<16x18x128xf32>
    %c0_3 = arith.constant 0 : index
    %c0_4 = arith.constant 0 : index
    %3 = vector.load %arg2[%c0_3, %c0_4] : memref<1x128xf32, #tpu.memory_space<vmem>>, vector<1x128xf32>
    %4 = vector.shape_cast %3 : vector<1x128xf32> to vector<1x1x128xf32>
    %5 = vector.broadcast %4 : vector<1x1x128xf32> to vector<16x18x128xf32>
    %6 = arith.mulf %2, %5 : vector<16x18x128xf32>
    %c0_5 = arith.constant 0 : index
    %c0_6 = arith.constant 0 : index
    %7 = vector.load %arg3[%c0_5, %c0_6] : memref<1x128xf32, #tpu.memory_space<vmem>>, vector<1x128xf32>
    %8 = vector.shape_cast %7 : vector<1x128xf32> to vector<1x1x128xf32>
    %9 = vector.broadcast %8 : vector<1x1x128xf32> to vector<16x18x128xf32>
    %10 = arith.addf %6, %9 : vector<16x18x128xf32>
    %cst = arith.constant 0.000000e+00 : f32
    %11 = vector.broadcast %cst : f32 to vector<16x18x128xf32>
    %12 = arith.maximumf %10, %11 : vector<16x18x128xf32>
    %13 = arith.truncf %12 : vector<16x18x128xf32> to vector<16x18x128xbf16>
    %c1 = arith.constant 1 : index
    %c0_7 = arith.constant 0 : index
    %c0_8 = arith.constant 0 : index
    %14 = vector.load %arg10[%c1, %c0_7, %c0_8] : memref<18x18x128xbf16, #tpu.memory_space<vmem>>, vector<16x18x128xbf16>
    tpu.vector_store %arg10[%c1, %c0_7, %c0_8], %13 {strides = array<i32>} : memref<18x18x128xbf16, #tpu.memory_space<vmem>>, vector<16x18x128xbf16>,
    %c0_i32 = arith.constant 0 : i32
    %15 = arith.cmpi sgt, %arg1, %c0_i32 : i32
    %16 = arith.extui %15 : i1 to i32
    %c0_i32_9 = arith.constant 0 : i32
    %17 = arith.cmpi ne, %16, %c0_i32_9 : i32
    scf.if %17 {
      %c0_56 = arith.constant 0 : index
      %c0_57 = arith.constant 0 : index
      %c0_58 = arith.constant 0 : index
      %c0_59 = arith.constant 0 : index
      %76 = vector.load %arg4[%c0_56, %c0_57, %c0_58, %c0_59] : memref<1x1x18x128xbf16, #tpu.memory_space<vmem>>, vector<1x1x18x128xbf16>
      %77 = vector.shape_cast %76 : vector<1x1x18x128xbf16> to vector<1x18x128xbf16>
      %78 = arith.extf %77 : vector<1x18x128xbf16> to vector<1x18x128xf32>
      %c0_60 = arith.constant 0 : index
      %c0_61 = arith.constant 0 : index
      %79 = vector.load %arg2[%c0_60, %c0_61] : memref<1x128xf32, #tpu.memory_space<vmem>>, vector<1x128xf32>
      %80 = vector.shape_cast %79 : vector<1x128xf32> to vector<1x1x128xf32>
      %81 = vector.broadcast %80 : vector<1x1x128xf32> to vector<1x18x128xf32>
      %82 = arith.mulf %78, %81 : vector<1x18x128xf32>
      %c0_62 = arith.constant 0 : index
      %c0_63 = arith.constant 0 : index
      %83 = vector.load %arg3[%c0_62, %c0_63] : memref<1x128xf32, #tpu.memory_space<vmem>>, vector<1x128xf32>
      %84 = vector.shape_cast %83 : vector<1x128xf32> to vector<1x1x128xf32>
      %85 = vector.broadcast %84 : vector<1x1x128xf32> to vector<1x18x128xf32>
      %86 = arith.addf %82, %85 : vector<1x18x128xf32>
      %cst_64 = arith.constant 0.000000e+00 : f32
      %87 = vector.broadcast %cst_64 : f32 to vector<1x18x128xf32>
      %88 = arith.maximumf %86, %87 : vector<1x18x128xf32>
      %89 = arith.truncf %88 : vector<1x18x128xf32> to vector<1x18x128xbf16>
      %c0_65 = arith.constant 0 : index
      %c0_66 = arith.constant 0 : index
      %c0_67 = arith.constant 0 : index
      %90 = vector.load %arg10[%c0_65, %c0_66, %c0_67] : memref<18x18x128xbf16, #tpu.memory_space<vmem>>, vector<1x18x128xbf16>
      tpu.vector_store %arg10[%c0_65, %c0_66, %c0_67], %89 {strides = array<i32>} : memref<18x18x128xbf16, #tpu.memory_space<vmem>>, vector<1x18x128xbf16>,
    } else {
    }
    %c0_i32_10 = arith.constant 0 : i32
    %18 = arith.cmpi eq, %arg1, %c0_i32_10 : i32
    %19 = arith.extui %18 : i1 to i32
    %c0_i32_11 = arith.constant 0 : i32
    %20 = arith.cmpi ne, %19, %c0_i32_11 : i32
    scf.if %20 {
      %cst_56 = arith.constant 0.000000e+00 : bf16
      %76 = vector.broadcast %cst_56 : bf16 to vector<1x18x128xbf16>
      %c0_57 = arith.constant 0 : index
      %c0_58 = arith.constant 0 : index
      %c0_59 = arith.constant 0 : index
      %77 = vector.load %arg10[%c0_57, %c0_58, %c0_59] : memref<18x18x128xbf16, #tpu.memory_space<vmem>>, vector<1x18x128xbf16>
      tpu.vector_store %arg10[%c0_57, %c0_58, %c0_59], %76 {strides = array<i32>} : memref<18x18x128xbf16, #tpu.memory_space<vmem>>, vector<1x18x128xbf16>,
    } else {
    }
    %c0_i32_12 = arith.constant 0 : i32
    %21 = arith.cmpi slt, %arg1, %c0_i32_12 : i32
    %22 = arith.extui %21 : i1 to i32
    %c0_i32_13 = arith.constant 0 : i32
    %23 = arith.cmpi ne, %22, %c0_i32_13 : i32
    scf.if %23 {
      %c0_56 = arith.constant 0 : index
      %c0_57 = arith.constant 0 : index
      %c0_58 = arith.constant 0 : index
      %c0_59 = arith.constant 0 : index
      %76 = vector.load %arg6[%c0_56, %c0_57, %c0_58, %c0_59] : memref<1x1x18x128xbf16, #tpu.memory_space<vmem>>, vector<1x1x18x128xbf16>
      %77 = vector.shape_cast %76 : vector<1x1x18x128xbf16> to vector<1x18x128xbf16>
      %78 = arith.extf %77 : vector<1x18x128xbf16> to vector<1x18x128xf32>
      %c0_60 = arith.constant 0 : index
      %c0_61 = arith.constant 0 : index
      %79 = vector.load %arg2[%c0_60, %c0_61] : memref<1x128xf32, #tpu.memory_space<vmem>>, vector<1x128xf32>
      %80 = vector.shape_cast %79 : vector<1x128xf32> to vector<1x1x128xf32>
      %81 = vector.broadcast %80 : vector<1x1x128xf32> to vector<1x18x128xf32>
      %82 = arith.mulf %78, %81 : vector<1x18x128xf32>
      %c0_62 = arith.constant 0 : index
      %c0_63 = arith.constant 0 : index
      %83 = vector.load %arg3[%c0_62, %c0_63] : memref<1x128xf32, #tpu.memory_space<vmem>>, vector<1x128xf32>
      %84 = vector.shape_cast %83 : vector<1x128xf32> to vector<1x1x128xf32>
      %85 = vector.broadcast %84 : vector<1x1x128xf32> to vector<1x18x128xf32>
      %86 = arith.addf %82, %85 : vector<1x18x128xf32>
      %cst_64 = arith.constant 0.000000e+00 : f32
      %87 = vector.broadcast %cst_64 : f32 to vector<1x18x128xf32>
      %88 = arith.maximumf %86, %87 : vector<1x18x128xf32>
      %89 = arith.truncf %88 : vector<1x18x128xf32> to vector<1x18x128xbf16>
      %c17_65 = arith.constant 17 : index
      %c0_66 = arith.constant 0 : index
      %c0_67 = arith.constant 0 : index
      %90 = vector.load %arg10[%c17_65, %c0_66, %c0_67] : memref<18x18x128xbf16, #tpu.memory_space<vmem>>, vector<1x18x128xbf16>
      tpu.vector_store %arg10[%c17_65, %c0_66, %c0_67], %89 {strides = array<i32>} : memref<18x18x128xbf16, #tpu.memory_space<vmem>>, vector<1x18x128xbf16>,
    } else {
    }
    %c0_i32_14 = arith.constant 0 : i32
    %24 = arith.cmpi eq, %arg1, %c0_i32_14 : i32
    %25 = arith.extui %24 : i1 to i32
    %c0_i32_15 = arith.constant 0 : i32
    %26 = arith.cmpi ne, %25, %c0_i32_15 : i32
    scf.if %26 {
      %cst_56 = arith.constant 0.000000e+00 : bf16
      %76 = vector.broadcast %cst_56 : bf16 to vector<1x18x128xbf16>
      %c17_57 = arith.constant 17 : index
      %c0_58 = arith.constant 0 : index
      %c0_59 = arith.constant 0 : index
      %77 = vector.load %arg10[%c17_57, %c0_58, %c0_59] : memref<18x18x128xbf16, #tpu.memory_space<vmem>>, vector<1x18x128xbf16>
      tpu.vector_store %arg10[%c17_57, %c0_58, %c0_59], %76 {strides = array<i32>} : memref<18x18x128xbf16, #tpu.memory_space<vmem>>, vector<1x18x128xbf16>,
    } else {
    }
    %cst_16 = arith.constant 0.000000e+00 : bf16
    %27 = vector.broadcast %cst_16 : bf16 to vector<18x1x128xbf16>
    %c0_17 = arith.constant 0 : index
    %c0_18 = arith.constant 0 : index
    %c0_19 = arith.constant 0 : index
    %28 = vector.load %arg10[%c0_17, %c0_18, %c0_19] : memref<18x18x128xbf16, #tpu.memory_space<vmem>>, vector<18x1x128xbf16>
    tpu.vector_store %arg10[%c0_17, %c0_18, %c0_19], %27 {strides = array<i32>} : memref<18x18x128xbf16, #tpu.memory_space<vmem>>, vector<18x1x128xbf16>,
    %c0_20 = arith.constant 0 : index
    %c17 = arith.constant 17 : index
    %c0_21 = arith.constant 0 : index
    %29 = vector.load %arg10[%c0_20, %c17, %c0_21] : memref<18x18x128xbf16, #tpu.memory_space<vmem>>, vector<18x1x128xbf16>
    tpu.vector_store %arg10[%c0_20, %c17, %c0_21], %27 {strides = array<i32>} : memref<18x18x128xbf16, #tpu.memory_space<vmem>>, vector<18x1x128xbf16>,
    %c0_22 = arith.constant 0 : index
    %c0_23 = arith.constant 0 : index
    %c0_24 = arith.constant 0 : index
    %30 = vector.load %arg10[%c0_22, %c0_23, %c0_24] : memref<18x18x128xbf16, #tpu.memory_space<vmem>>, vector<16x18x128xbf16>
    %31 = vector.extract_strided_slice %30 {offsets = [0, 0, 0], sizes = [16, 16, 128], strides = [1, 1, 1]} : vector<16x18x128xbf16> to vector<16x16x128xbf16>
    %32 = vector.shape_cast %31 : vector<16x16x128xbf16> to vector<256x128xbf16>
    %33 = vector.extract_strided_slice %30 {offsets = [0, 1, 0], sizes = [16, 16, 128], strides = [1, 1, 1]} : vector<16x18x128xbf16> to vector<16x16x128xbf16>
    %34 = vector.shape_cast %33 : vector<16x16x128xbf16> to vector<256x128xbf16>
    %35 = vector.extract_strided_slice %30 {offsets = [0, 2, 0], sizes = [16, 16, 128], strides = [1, 1, 1]} : vector<16x18x128xbf16> to vector<16x16x128xbf16>
    %36 = vector.shape_cast %35 : vector<16x16x128xbf16> to vector<256x128xbf16>
    %37 = tpu.concatenate %32, %34, %36 in 1 : vector<256x128xbf16>, vector<256x128xbf16>, vector<256x128xbf16> -> vector<256x384xbf16>
    %c0_25 = arith.constant 0 : index
    %c0_26 = arith.constant 0 : index
    %38 = vector.load %arg7[%c0_25, %c0_26] : memref<1152x128xbf16, #tpu.memory_space<vmem>>, vector<384x128xbf16>
    %cst_27 = arith.constant dense<0.000000e+00> : vector<256x128xf32>
    %39 = tpu.matmul %37, %38, %cst_27 {dimension_numbers = #tpu.dot_dimension_numbers<[1], [0], [0], [1], [0, 0, 1, 1], [], []>} : vector<256x384xbf16>, vector<384x128xbf16>, vector<256x128xf32> -> vector<256x128xf32>
    %c1_28 = arith.constant 1 : index
    %c0_29 = arith.constant 0 : index
    %c0_30 = arith.constant 0 : index
    %40 = vector.load %arg10[%c1_28, %c0_29, %c0_30] : memref<18x18x128xbf16, #tpu.memory_space<vmem>>, vector<16x18x128xbf16>
    %41 = vector.extract_strided_slice %40 {offsets = [0, 0, 0], sizes = [16, 16, 128], strides = [1, 1, 1]} : vector<16x18x128xbf16> to vector<16x16x128xbf16>
    %42 = vector.shape_cast %41 : vector<16x16x128xbf16> to vector<256x128xbf16>
    %43 = vector.extract_strided_slice %40 {offsets = [0, 1, 0], sizes = [16, 16, 128], strides = [1, 1, 1]} : vector<16x18x128xbf16> to vector<16x16x128xbf16>
    %44 = vector.shape_cast %43 : vector<16x16x128xbf16> to vector<256x128xbf16>
    %45 = vector.extract_strided_slice %40 {offsets = [0, 2, 0], sizes = [16, 16, 128], strides = [1, 1, 1]} : vector<16x18x128xbf16> to vector<16x16x128xbf16>
    %46 = vector.shape_cast %45 : vector<16x16x128xbf16> to vector<256x128xbf16>
    %47 = tpu.concatenate %42, %44, %46 in 1 : vector<256x128xbf16>, vector<256x128xbf16>, vector<256x128xbf16> -> vector<256x384xbf16>
    %c384 = arith.constant 384 : index
    %c0_31 = arith.constant 0 : index
    %48 = vector.load %arg7[%c384, %c0_31] : memref<1152x128xbf16, #tpu.memory_space<vmem>>, vector<384x128xbf16>
    %cst_32 = arith.constant dense<0.000000e+00> : vector<256x128xf32>
    %49 = tpu.matmul %47, %48, %cst_32 {dimension_numbers = #tpu.dot_dimension_numbers<[1], [0], [0], [1], [0, 0, 1, 1], [], []>} : vector<256x384xbf16>, vector<384x128xbf16>, vector<256x128xf32> -> vector<256x128xf32>
    %50 = arith.addf %39, %49 : vector<256x128xf32>
    %c2 = arith.constant 2 : index
    %c0_33 = arith.constant 0 : index
    %c0_34 = arith.constant 0 : index
    %51 = vector.load %arg10[%c2, %c0_33, %c0_34] : memref<18x18x128xbf16, #tpu.memory_space<vmem>>, vector<16x18x128xbf16>
    %52 = vector.extract_strided_slice %51 {offsets = [0, 0, 0], sizes = [16, 16, 128], strides = [1, 1, 1]} : vector<16x18x128xbf16> to vector<16x16x128xbf16>
    %53 = vector.shape_cast %52 : vector<16x16x128xbf16> to vector<256x128xbf16>
    %54 = vector.extract_strided_slice %51 {offsets = [0, 1, 0], sizes = [16, 16, 128], strides = [1, 1, 1]} : vector<16x18x128xbf16> to vector<16x16x128xbf16>
    %55 = vector.shape_cast %54 : vector<16x16x128xbf16> to vector<256x128xbf16>
    %56 = vector.extract_strided_slice %51 {offsets = [0, 2, 0], sizes = [16, 16, 128], strides = [1, 1, 1]} : vector<16x18x128xbf16> to vector<16x16x128xbf16>
    %57 = vector.shape_cast %56 : vector<16x16x128xbf16> to vector<256x128xbf16>
    %58 = tpu.concatenate %53, %55, %57 in 1 : vector<256x128xbf16>, vector<256x128xbf16>, vector<256x128xbf16> -> vector<256x384xbf16>
    %c768 = arith.constant 768 : index
    %c0_35 = arith.constant 0 : index
    %59 = vector.load %arg7[%c768, %c0_35] : memref<1152x128xbf16, #tpu.memory_space<vmem>>, vector<384x128xbf16>
    %cst_36 = arith.constant dense<0.000000e+00> : vector<256x128xf32>
    %60 = tpu.matmul %58, %59, %cst_36 {dimension_numbers = #tpu.dot_dimension_numbers<[1], [0], [0], [1], [0, 0, 1, 1], [], []>} : vector<256x384xbf16>, vector<384x128xbf16>, vector<256x128xf32> -> vector<256x128xf32>
    %61 = arith.addf %50, %60 : vector<256x128xf32>
    %62 = vector.shape_cast %61 : vector<256x128xf32> to vector<1x16x16x128xf32>
    %63 = arith.truncf %62 : vector<1x16x16x128xf32> to vector<1x16x16x128xbf16>
    %c0_37 = arith.constant 0 : index
    %c0_38 = arith.constant 0 : index
    %c1_39 = arith.constant 1 : index
    %c0_40 = arith.constant 0 : index
    %64 = vector.load %arg8[%c0_37, %c0_38, %c1_39, %c0_40] : memref<1x16x18x128xbf16, #tpu.memory_space<vmem>>, vector<1x16x16x128xbf16>
    tpu.vector_store %arg8[%c0_37, %c0_38, %c1_39, %c0_40], %63 {strides = array<i32>} : memref<1x16x18x128xbf16, #tpu.memory_space<vmem>>, vector<1x16x16x128xbf16>,
    %cst_41 = arith.constant 0.000000e+00 : bf16
    %65 = vector.broadcast %cst_41 : bf16 to vector<1x16x1x128xbf16>
    %c0_42 = arith.constant 0 : index
    %c0_43 = arith.constant 0 : index
    %c0_44 = arith.constant 0 : index
    %c0_45 = arith.constant 0 : index
    %66 = vector.load %arg8[%c0_42, %c0_43, %c0_44, %c0_45] : memref<1x16x18x128xbf16, #tpu.memory_space<vmem>>, vector<1x16x1x128xbf16>
    tpu.vector_store %arg8[%c0_42, %c0_43, %c0_44, %c0_45], %65 {strides = array<i32>} : memref<1x16x18x128xbf16, #tpu.memory_space<vmem>>, vector<1x16x1x128xbf16>,
    %c0_46 = arith.constant 0 : index
    %c0_47 = arith.constant 0 : index
    %c17_48 = arith.constant 17 : index
    %c0_49 = arith.constant 0 : index
    %67 = vector.load %arg8[%c0_46, %c0_47, %c17_48, %c0_49] : memref<1x16x18x128xbf16, #tpu.memory_space<vmem>>, vector<1x16x1x128xbf16>
    tpu.vector_store %arg8[%c0_46, %c0_47, %c17_48, %c0_49], %65 {strides = array<i32>} : memref<1x16x18x128xbf16, #tpu.memory_space<vmem>>, vector<1x16x1x128xbf16>,
    %cst_50 = arith.constant dense<0.000000e+00> : vector<128xf32>
    %68 = vector.multi_reduction <add>, %61, %cst_50 [0] : vector<256x128xf32> to vector<128xf32>
    %69 = vector.shape_cast %68 : vector<128xf32> to vector<1x128xf32>
    %70 = arith.mulf %61, %61 : vector<256x128xf32>
    %cst_51 = arith.constant dense<0.000000e+00> : vector<128xf32>
    %71 = vector.multi_reduction <add>, %70, %cst_51 [0] : vector<256x128xf32> to vector<128xf32>
    %72 = vector.shape_cast %71 : vector<128xf32> to vector<1x128xf32>
    %73 = tpu.concatenate %69, %72 in 0 : vector<1x128xf32>, vector<1x128xf32> -> vector<2x128xf32>
    %74 = vector.shape_cast %73 : vector<2x128xf32> to vector<1x1x2x128xf32>
    %c0_52 = arith.constant 0 : index
    %c0_53 = arith.constant 0 : index
    %c0_54 = arith.constant 0 : index
    %c0_55 = arith.constant 0 : index
    %75 = vector.load %arg9[%c0_52, %c0_53, %c0_54, %c0_55] : memref<1x1x2x128xf32, #tpu.memory_space<vmem>>, vector<1x1x2x128xf32>
    tpu.vector_store %arg9[%c0_52, %c0_53, %c0_54, %c0_55], %74 {strides = array<i32>} : memref<1x1x2x128xf32, #tpu.memory_space<vmem>>, vector<1x1x2x128xf32>,
    return
  }
  func.func @transform_0(%arg0: i32, %arg1: i32) -> (i32, i32) {
    %c0_i32 = arith.constant 0 : i32
    %c0_i32_0 = arith.constant 0 : i32
    %c0_i32_1 = arith.constant 0 : i32
    return %c0_i32, %c0_i32_0 : i32, i32
  }
  func.func @transform_1(%arg0: i32, %arg1: i32) -> (i32, i32) {
    %c0_i32 = arith.constant 0 : i32
    %c0_i32_0 = arith.constant 0 : i32
    %c0_i32_1 = arith.constant 0 : i32
    return %c0_i32, %c0_i32_0 : i32, i32
  }
  func.func @transform_2(%arg0: i32, %arg1: i32) -> (i32, i32, i32, i32) {
    %c16_i32 = arith.constant 16 : i32
    %0 = arith.muli %arg1, %c16_i32 : i32
    %c1_i32 = arith.constant 1 : i32
    %1 = arith.subi %0, %c1_i32 : i32
    %c0_i32 = arith.constant 0 : i32
    %2 = arith.maxsi %1, %c0_i32 : i32
    %c0_i32_0 = arith.constant 0 : i32
    %c0_i32_1 = arith.constant 0 : i32
    %c0_i32_2 = arith.constant 0 : i32
    return %arg0, %2, %c0_i32_0, %c0_i32_1 : i32, i32, i32, i32
  }
  func.func @transform_3(%arg0: i32, %arg1: i32) -> (i32, i32, i32, i32) {
    %c0_i32 = arith.constant 0 : i32
    %c0_i32_0 = arith.constant 0 : i32
    %c0_i32_1 = arith.constant 0 : i32
    return %arg0, %arg1, %c0_i32, %c0_i32_0 : i32, i32, i32, i32
  }
  func.func @transform_4(%arg0: i32, %arg1: i32) -> (i32, i32, i32, i32) {
    %c16_i32 = arith.constant 16 : i32
    %0 = arith.muli %arg1, %c16_i32 : i32
    %c16_i32_0 = arith.constant 16 : i32
    %1 = arith.addi %0, %c16_i32_0 : i32
    %c15_i32 = arith.constant 15 : i32
    %2 = arith.minsi %1, %c15_i32 : i32
    %c0_i32 = arith.constant 0 : i32
    %c0_i32_1 = arith.constant 0 : i32
    %c0_i32_2 = arith.constant 0 : i32
    return %arg0, %2, %c0_i32, %c0_i32_1 : i32, i32, i32, i32
  }
  func.func @transform_5(%arg0: i32, %arg1: i32) -> (i32, i32) {
    %c0_i32 = arith.constant 0 : i32
    %c0_i32_0 = arith.constant 0 : i32
    %c0_i32_1 = arith.constant 0 : i32
    return %c0_i32, %c0_i32_0 : i32, i32
  }
  func.func @transform_6(%arg0: i32, %arg1: i32) -> (i32, i32, i32, i32) {
    %c0_i32 = arith.constant 0 : i32
    %c0_i32_0 = arith.constant 0 : i32
    %c0_i32_1 = arith.constant 0 : i32
    return %arg0, %arg1, %c0_i32, %c0_i32_0 : i32, i32, i32, i32
  }
  func.func @transform_7(%arg0: i32, %arg1: i32) -> (i32, i32, i32, i32) {
    %c0_i32 = arith.constant 0 : i32
    %c0_i32_0 = arith.constant 0 : i32
    %c0_i32_1 = arith.constant 0 : i32
    return %arg0, %arg1, %c0_i32, %c0_i32_0 : i32, i32, i32, i32
  }
}

</mosaic_0001>

<llo_original>
// kernel: double_conv.5
$region0: #{double_conv.5}
  #allocation0 [shape = 'u32[]', space=smem, size = 0x4, offset = 0x4, fixed_abs, tag = 'smem constant byte address 0x4 - core index']
  #allocation1 [shape = 'u32[72,128]{1,0:T(1,128)}', space=vmem, size = 0x9000, scoped, tag = 'internal scratch']
  %s0 = inlined_call_operand.vmem [shape: f32[1,128], index: 0, kind: input, shape index: {}]
  %s1 = inlined_call_operand.vmem [shape: f32[1,128], index: 1, kind: input, shape index: {}]
  %s2 = inlined_call_operand.vmem [shape: bf16[2,16,18,128], index: 2, kind: input, shape index: {}]
  %s3 = inlined_call_operand.vmem [shape: bf16[2,16,16,128], index: 3, kind: output, shape index: {}]
  %s4 = sld [smem:[#allocation0]]
  $region45: #{double_conv.5} parent=0
    _
  %s6 = ssub.s32 1, %s4
  %s7 = scalar_select 0, %s6, %s4
  loop: start=0, step=1, limit=4
  $region2: #{double_conv.5} parent=0 // loop_pre_header
    _
  $region3: #{double_conv.5} parent=0 // loop_header
    %s9 = sphi 0, %s13
    %p10 = scmp.ge.s32.totalorder %s9, 4
    %s16 = sphi 0, %s28
    %s17 = sphi 0, %s24
    %s18 = sphi 0, %s16
    %s19 = sphi 0, %s17
    %s20 = sphi 0, %s18
    %s21 = sphi 0, %s19
    %s29 = sphi 0, %s29
    %s31 = sphi 0, %s29
    %s32 = sphi 0, %s31
    %s46 = sphi 0, %s32
    %s50 = sphi 0, %s50
    %s52 = sphi 0, %s50
    %s53 = sphi 0, %s52
    %s67 = sphi 0, %s53
    %s75 = sphi 0, %s77
    %s78 = sphi 0, %s75
    %s79 = sphi 0, %s78
    %s95 = sphi 0, %s79
    %s103 = sphi 0, %s105
    %s106 = sphi 0, %s103
    %s107 = sphi 0, %s106
    %s123 = sphi 0, %s107
  $region4: #{double_conv.5} parent=0 // loop_header_branch
    %12 = sbr.rel (%p10) target = $region8
  $region5: #{double_conv.5} parent=0 // loop_body
    %s14 = ssub.s32 %s9, 1
    %s15 = ssub.s32 %s9, 2
    %s22 = sadd.s32 1, %s17
    %p23 = scmp.ge.s32.totalorder %s22, 1
    %s24 = scalar_select %p23, 0, %s22
    %s25 = sadd.s32 1, %s16
    %s26 = scalar_select %p23, %s25, %s16
    %p27 = scmp.ge.s32.totalorder %s26, 2
    %s28 = scalar_select %p27, 0, %s26
    %s30 = sadd.s32 %s29, 1
    %p33 = scmp.eq.s32.totalorder %s9, 1
    %p34 = scmp.ne.s32.totalorder %s29, %s31
    %p35 = scmp.eq.s32.totalorder %s9, 0
    %p36 = por %p34, %p35
    %p37 = scmp.ne.s32.totalorder %s29, %s31
    %p38 = scmp.eq.s32.totalorder %s14, 1
    %p39 = por %p37, %p38
    %p40 = scmp.ne.s32.totalorder %s31, %s32
    %p41 = scmp.eq.s32.totalorder %s14, 0
    %p42 = por %p40, %p41
    %p43 = scmp.ne.s32.totalorder %s31, %s32
    %p44 = scmp.eq.s32.totalorder %s15, 1
    %p45 = por %p43, %p44
    %p47 = scmp.ne.s32.totalorder %s32, %s46
    %p48 = scmp.eq.s32.totalorder %s15, 0
    %p49 = por %p47, %p48
    %s51 = sadd.s32 %s50, 1
    %p54 = scmp.eq.s32.totalorder %s9, 1
    %p55 = scmp.ne.s32.totalorder %s50, %s52
    %p56 = scmp.eq.s32.totalorder %s9, 0
    %p57 = por %p55, %p56
    %p58 = scmp.ne.s32.totalorder %s50, %s52
    %p59 = scmp.eq.s32.totalorder %s14, 1
    %p60 = por %p58, %p59
    %p61 = scmp.ne.s32.totalorder %s52, %s53
    %p62 = scmp.eq.s32.totalorder %s14, 0
    %p63 = por %p61, %p62
    %p64 = scmp.ne.s32.totalorder %s52, %s53
    %p65 = scmp.eq.s32.totalorder %s15, 1
    %p66 = por %p64, %p65
    %p68 = scmp.ne.s32.totalorder %s53, %s67
    %p69 = scmp.eq.s32.totalorder %s15, 0
    %p70 = por %p68, %p69
    %s71 = ssub.s32 %s16, %s28
    %s72 = ssub.s32 %s17, %s24
    %s73 = sor.u32 %s71, %s72
    %p74 = scmp.eq.s32.totalorder %s73, 0
    %s76 = sadd.s32 %s75, 1
    %s77 = scalar_select %p74, %s75, %s76
    %p80 = pneg %p74
    %p81 = scmp.eq.s32.totalorder %s9, 1
    %p82 = por %p80, %p81
    %p83 = scmp.ne.s32.totalorder %s75, %s78
    %p84 = scmp.eq.s32.totalorder %s9, 0
    %p85 = por %p83, %p84
    %p86 = scmp.ne.s32.totalorder %s75, %s78
    %p87 = scmp.eq.s32.totalorder %s14, 1
    %p88 = por %p86, %p87
    %p89 = scmp.ne.s32.totalorder %s78, %s79
    %p90 = scmp.eq.s32.totalorder %s14, 0
    %p91 = por %p89, %p90
    %p92 = scmp.ne.s32.totalorder %s78, %s79
    %p93 = scmp.eq.s32.totalorder %s15, 1
    %p94 = por %p92, %p93
    %p96 = scmp.ne.s32.totalorder %s79, %s95
    %p97 = scmp.eq.s32.totalorder %s15, 0
    %p98 = por %p96, %p97
    %s99 = ssub.s32 %s16, %s28
    %s100 = ssub.s32 %s17, %s24
    %s101 = sor.u32 %s99, %s100
    %p102 = scmp.eq.s32.totalorder %s101, 0
    %s104 = sadd.s32 %s103, 1
    %s105 = scalar_select %p102, %s103, %s104
    %p108 = pneg %p102
    %p109 = scmp.eq.s32.totalorder %s9, 1
    %p110 = por %p108, %p109
    %p111 = scmp.ne.s32.totalorder %s103, %s106
    %p112 = scmp.eq.s32.totalorder %s9, 0
    %p113 = por %p111, %p112
    %p114 = scmp.ne.s32.totalorder %s103, %s106
    %p115 = scmp.eq.s32.totalorder %s14, 1
    %p116 = por %p114, %p115
    %p117 = scmp.ne.s32.totalorder %s106, %s107
    %p118 = scmp.eq.s32.totalorder %s14, 0
    %p119 = por %p117, %p118
    %p120 = scmp.ne.s32.totalorder %s106, %s107
    %p121 = scmp.eq.s32.totalorder %s15, 1
    %p122 = por %p120, %p121
    %p124 = scmp.ne.s32.totalorder %s107, %s123
    %p125 = scmp.eq.s32.totalorder %s15, 0
    %p126 = por %p124, %p125
    %p127 = scmp.le.s32.totalorder 1, %s9
    %p128 = scmp.lt.s32.totalorder %s9, 3
    %p129 = pnand %p127, %p128
    %p130 = pneg %p129
    // Predicated region
    $region9: #{double_conv.5} parent=5 // pred_check
      _
    $region10: #{double_conv.5} parent=5 // pred_check_branch
      %132 = sbr.rel (%p129) target = $region12
    $region11: #{double_conv.5} parent=5 // pred_region
      %s133 = ssub.s32 %s9, 1
      // Predicated region
      $region13: #{double_conv.5} parent=11 // pred_check
        %p134 = pneg %p42
      $region14: #{double_conv.5} parent=11 // pred_check_branch
        %136 = sbr.rel (%p134) target = $region16
      $region15: #{double_conv.5} parent=11 // pred_region
        _
      $region16: #{double_conv.5} parent=11 // pred_fallthru
        _
      // Predicated region
      $region17: #{double_conv.5} parent=11 // pred_check
        %p137 = pneg %p63
      $region18: #{double_conv.5} parent=11 // pred_check_branch
        %139 = sbr.rel (%p137) target = $region20
      $region19: #{double_conv.5} parent=11 // pred_region
        _
      $region20: #{double_conv.5} parent=11 // pred_fallthru
        _
    $region12: #{double_conv.5} parent=5 // pred_fallthru
      _
    %p140 = scmp.lt.s32.totalorder %s9, 2
    // Predicated region
    $region21: #{double_conv.5} parent=5 // pred_check
      %p141 = pneg %p140
    $region22: #{double_conv.5} parent=5 // pred_check_branch
      %143 = sbr.rel (%p141) target = $region24
    $region23: #{double_conv.5} parent=5 // pred_region
      // Predicated region
      $region25: #{double_conv.5} parent=23 // pred_check
        %p144 = pneg %p85
      $region26: #{double_conv.5} parent=23 // pred_check_branch
        %146 = sbr.rel (%p144) target = $region28
      $region27: #{double_conv.5} parent=23 // pred_region
        %s147 = smul.u32 16, %s17
        %p148 = scmp.lt.s32.totalorder %s16, 1
        %s149 = scalar_select %p148, %s16, 1
        %p150 = scmp.lt.s32.totalorder %s147, 15
        %s151 = scalar_select %p150, %s147, 15
        %s152 = smul.addr %s151, 3
        %s153 = smul.addr %s149, 48
        %s154 = sadd.s32 %s152, %s153
        %s155 = smul.addr %s154, 4
        %s156 = scalar_lea.vmem %s2, %s155
        %s157 = smul.u32 16, %s17
      $region28: #{double_conv.5} parent=23 // pred_fallthru
        _
    $region24: #{double_conv.5} parent=5 // pred_fallthru
      _
    %p158 = scmp.le.s32.totalorder 1, %s9
    %p159 = scmp.lt.s32.totalorder %s9, 3
    %p160 = pnand %p158, %p159
    %p161 = pneg %p160
    // Predicated region
    $region29: #{double_conv.5} parent=5 // pred_check
      _
    $region30: #{double_conv.5} parent=5 // pred_check_branch
      %163 = sbr.rel (%p160) target = $region32
    $region31: #{double_conv.5} parent=5 // pred_region
      %s164 = ssub.s32 %s9, 1
      %p165 = pneg %p42
      %p166 = pneg %p39
      %p167 = pneg %p63
      %p168 = pneg %p60
      %s169 = smul.u32 16, %s19
      %p170 = scmp.lt.s32.totalorder %s18, 1
      %s171 = scalar_select %p170, %s18, 1
      %p172 = scmp.lt.s32.totalorder %s169, 15
      %s173 = scalar_select %p172, %s169, 15
      %s174 = smul.addr %s173, 3
      %s175 = smul.addr %s171, 48
      %s176 = sadd.s32 %s174, %s175
      %s177 = smul.addr %s176, 4
      %s178 = scalar_lea.vmem %s2, %s177
      %p179 = pneg %p91
      %p180 = pneg %p88
      %p181 = pneg %p119
      %p182 = pneg %p116
      %s183 = smul.u32 16, %s19
      %p184 = scmp.lt.s32.totalorder %s18, 1
      %s185 = scalar_select %p184, %s18, 1
      %p186 = scmp.lt.s32.totalorder %s183, 15
      %s187 = scalar_select %p186, %s183, 15
      %s188 = smul.addr %s187, 2
      %s189 = smul.addr %s185, 32
      %s190 = sadd.s32 %s188, %s189
      %s191 = smul.addr %s190, 4
      %s192 = scalar_lea.vmem %s3, %s191
      %s193 = smul.u32 16, %s19
      %p194 = scmp.lt.s32.totalorder %s18, 1
      %s195 = scalar_select %p194, %s18, 1
      %p196 = scmp.lt.s32.totalorder %s193, 15
      %s197 = scalar_select %p196, %s193, 15
      %s198 = smul.addr %s197, 3
      %s199 = smul.addr %s195, 48
      %s200 = sadd.s32 %s198, %s199
      %s201 = smul.addr %s200, 4
      %s202 = scalar_lea.vmem %s2, %s201
      %s203 = smul.u32 16, %s19
      %s204 = smul.u32 16, %s19
      %p205 = scmp.lt.s32.totalorder %s18, 1
      %s206 = scalar_select %p205, %s18, 1
      %p207 = scmp.lt.s32.totalorder %s204, 15
      %s208 = scalar_select %p207, %s204, 15
      %s209 = smul.addr %s208, 2
      %s210 = smul.addr %s206, 32
      %s211 = sadd.s32 %s209, %s210
      %s212 = smul.addr %s211, 4
      %s213 = scalar_lea.vmem %s3, %s212
      %s214 = smul.u32 16, %s19
      %v215 = vld [vmem:[%s202] sm:$0xf]
      %v216 = vld [vmem:[%s202 + $0x4] sm:$0xf]
      %v217 = vld [vmem:[%s202 + $0x8] sm:$0x1]
      %v218 = vld [vmem:[%s202 + $0xc] sm:$0xf]
      %v219 = vld [vmem:[%s202 + $0x10] sm:$0xf]
      %v220 = vld [vmem:[%s202 + $0x14] sm:$0x1]
      %v221 = vld [vmem:[%s202 + $0x18] sm:$0xf]
      %v222 = vld [vmem:[%s202 + $0x1c] sm:$0xf]
      %v223 = vld [vmem:[%s202 + $0x20] sm:$0x1]
      %v224 = vld [vmem:[%s202 + $0x24] sm:$0xf]
      %v225 = vld [vmem:[%s202 + $0x28] sm:$0xf]
      %v226 = vld [vmem:[%s202 + $0x2c] sm:$0x1]
      %v227 = vld [vmem:[%s202 + $0x30] sm:$0xf]
      %v228 = vld [vmem:[%s202 + $0x34] sm:$0xf]
      %v229 = vld [vmem:[%s202 + $0x38] sm:$0x1]
      %v230 = vld [vmem:[%s202 + $0x3c] sm:$0xf]
      %v231 = vld [vmem:[%s202 + $0x40] sm:$0xf]
      %v232 = vld [vmem:[%s202 + $0x44] sm:$0x1]
      %v233 = vld [vmem:[%s202 + $0x48] sm:$0xf]
      %v234 = vld [vmem:[%s202 + $0x4c] sm:$0xf]
      %v235 = vld [vmem:[%s202 + $0x50] sm:$0x1]
      %v236 = vld [vmem:[%s202 + $0x54] sm:$0xf]
      %v237 = vld [vmem:[%s202 + $0x58] sm:$0xf]
      %v238 = vld [vmem:[%s202 + $0x5c] sm:$0x1]
      %v239 = vld [vmem:[%s202 + $0x60] sm:$0xf]
      %v240 = vld [vmem:[%s202 + $0x64] sm:$0xf]
      %v241 = vld [vmem:[%s202 + $0x68] sm:$0x1]
      %v242 = vld [vmem:[%s202 + $0x6c] sm:$0xf]
      %v243 = vld [vmem:[%s202 + $0x70] sm:$0xf]
      %v244 = vld [vmem:[%s202 + $0x74] sm:$0x1]
      %v245 = vld [vmem:[%s202 + $0x78] sm:$0xf]
      %v246 = vld [vmem:[%s202 + $0x7c] sm:$0xf]
      %v247 = vld [vmem:[%s202 + $0x80] sm:$0x1]
      %v248 = vld [vmem:[%s202 + $0x84] sm:$0xf]
      %v249 = vld [vmem:[%s202 + $0x88] sm:$0xf]
      %v250 = vld [vmem:[%s202 + $0x8c] sm:$0x1]
      %v251 = vld [vmem:[%s202 + $0x90] sm:$0xf]
      %v252 = vld [vmem:[%s202 + $0x94] sm:$0xf]
      %v253 = vld [vmem:[%s202 + $0x98] sm:$0x1]
      %v254 = vld [vmem:[%s202 + $0x9c] sm:$0xf]
      %v255 = vld [vmem:[%s202 + $0xa0] sm:$0xf]
      %v256 = vld [vmem:[%s202 + $0xa4] sm:$0x1]
      %v257 = vld [vmem:[%s202 + $0xa8] sm:$0xf]
      %v258 = vld [vmem:[%s202 + $0xac] sm:$0xf]
      %v259 = vld [vmem:[%s202 + $0xb0] sm:$0x1]
      %v260 = vld [vmem:[%s202 + $0xb4] sm:$0xf]
      %v261 = vld [vmem:[%s202 + $0xb8] sm:$0xf]
      %v262 = vld [vmem:[%s202 + $0xbc] sm:$0x1]
      %v263 = vunpack.c.l.bf16 %v215
      %v264 = vunpack.c.l.bf16 %v216
      %v265 = vunpack.c.l.bf16 %v217
      %v266 = vunpack.c.l.bf16 %v218
      %v267 = vunpack.c.l.bf16 %v219
      %v268 = vunpack.c.l.bf16 %v220
      %v269 = vunpack.c.l.bf16 %v221
      %v270 = vunpack.c.l.bf16 %v222
      %v271 = vunpack.c.l.bf16 %v223
      %v272 = vunpack.c.l.bf16 %v224
      %v273 = vunpack.c.l.bf16 %v225
      %v274 = vunpack.c.l.bf16 %v226
      %v275 = vunpack.c.l.bf16 %v227
      %v276 = vunpack.c.l.bf16 %v228
      %v277 = vunpack.c.l.bf16 %v229
      %v278 = vunpack.c.l.bf16 %v230
      %v279 = vunpack.c.l.bf16 %v231
      %v280 = vunpack.c.l.bf16 %v232
      %v281 = vunpack.c.l.bf16 %v233
      %v282 = vunpack.c.l.bf16 %v234
      %v283 = vunpack.c.l.bf16 %v235
      %v284 = vunpack.c.l.bf16 %v236
      %v285 = vunpack.c.l.bf16 %v237
      %v286 = vunpack.c.l.bf16 %v238
      %v287 = vunpack.c.l.bf16 %v239
      %v288 = vunpack.c.l.bf16 %v240
      %v289 = vunpack.c.l.bf16 %v241
      %v290 = vunpack.c.l.bf16 %v242
      %v291 = vunpack.c.l.bf16 %v243
      %v292 = vunpack.c.l.bf16 %v244
      %v293 = vunpack.c.l.bf16 %v245
      %v294 = vunpack.c.l.bf16 %v246
      %v295 = vunpack.c.l.bf16 %v247
      %v296 = vunpack.c.l.bf16 %v248
      %v297 = vunpack.c.l.bf16 %v249
      %v298 = vunpack.c.l.bf16 %v250
      %v299 = vunpack.c.l.bf16 %v251
      %v300 = vunpack.c.l.bf16 %v252
      %v301 = vunpack.c.l.bf16 %v253
      %v302 = vunpack.c.l.bf16 %v254
      %v303 = vunpack.c.l.bf16 %v255
      %v304 = vunpack.c.l.bf16 %v256
      %v305 = vunpack.c.l.bf16 %v257
      %v306 = vunpack.c.l.bf16 %v258
      %v307 = vunpack.c.l.bf16 %v259
      %v308 = vunpack.c.l.bf16 %v260
      %v309 = vunpack.c.l.bf16 %v261
      %v310 = vunpack.c.l.bf16 %v262
      %v311 = vld [vmem:[%s0] sm:$0x1]
      %v313 = vperm.slane %v311, 0
      %v315 = vmul.f32 %v263, %v313
      %v316 = vmul.f32 %v264, %v313
      %v317 = vmul.f32 %v265, %v313
      %v318 = vmul.f32 %v266, %v313
      %v319 = vmul.f32 %v267, %v313
      %v320 = vmul.f32 %v268, %v313
      %v321 = vmul.f32 %v269, %v313
      %v322 = vmul.f32 %v270, %v313
      %v323 = vmul.f32 %v271, %v313
      %v324 = vmul.f32 %v272, %v313
      %v325 = vmul.f32 %v273, %v313
      %v326 = vmul.f32 %v274, %v313
      %v327 = vmul.f32 %v275, %v313
      %v328 = vmul.f32 %v276, %v313
      %v329 = vmul.f32 %v277, %v313
      %v330 = vmul.f32 %v278, %v313
      %v331 = vmul.f32 %v279, %v313
      %v332 = vmul.f32 %v280, %v313
      %v333 = vmul.f32 %v281, %v313
      %v334 = vmul.f32 %v282, %v313
      %v335 = vmul.f32 %v283, %v313
      %v336 = vmul.f32 %v284, %v313
      %v337 = vmul.f32 %v285, %v313
      %v338 = vmul.f32 %v286, %v313
      %v339 = vmul.f32 %v287, %v313
      %v340 = vmul.f32 %v288, %v313
      %v341 = vmul.f32 %v289, %v313
      %v342 = vmul.f32 %v290, %v313
      %v343 = vmul.f32 %v291, %v313
      %v344 = vmul.f32 %v292, %v313
      %v345 = vmul.f32 %v293, %v313
      %v346 = vmul.f32 %v294, %v313
      %v347 = vmul.f32 %v295, %v313
      %v348 = vmul.f32 %v296, %v313
      %v349 = vmul.f32 %v297, %v313
      %v350 = vmul.f32 %v298, %v313
      %v351 = vmul.f32 %v299, %v313
      %v352 = vmul.f32 %v300, %v313
      %v353 = vmul.f32 %v301, %v313
      %v354 = vmul.f32 %v302, %v313
      %v355 = vmul.f32 %v303, %v313
      %v356 = vmul.f32 %v304, %v313
      %v357 = vmul.f32 %v305, %v313
      %v358 = vmul.f32 %v306, %v313
      %v359 = vmul.f32 %v307, %v313
      %v360 = vmul.f32 %v308, %v313
      %v361 = vmul.f32 %v309, %v313
      %v362 = vmul.f32 %v310, %v313
      %v363 = vld [vmem:[%s1] sm:$0x1]
      %v365 = vperm.slane %v363, 0
      %v367 = vadd.f32 %v315, %v365
      %v368 = vadd.f32 %v316, %v365
      %v369 = vadd.f32 %v317, %v365
      %v370 = vadd.f32 %v318, %v365
      %v371 = vadd.f32 %v319, %v365
      %v372 = vadd.f32 %v320, %v365
      %v373 = vadd.f32 %v321, %v365
      %v374 = vadd.f32 %v322, %v365
      %v375 = vadd.f32 %v323, %v365
      %v376 = vadd.f32 %v324, %v365
      %v377 = vadd.f32 %v325, %v365
      %v378 = vadd.f32 %v326, %v365
      %v379 = vadd.f32 %v327, %v365
      %v380 = vadd.f32 %v328, %v365
      %v381 = vadd.f32 %v329, %v365
      %v382 = vadd.f32 %v330, %v365
      %v383 = vadd.f32 %v331, %v365
      %v384 = vadd.f32 %v332, %v365
      %v385 = vadd.f32 %v333, %v365
      %v386 = vadd.f32 %v334, %v365
      %v387 = vadd.f32 %v335, %v365
      %v388 = vadd.f32 %v336, %v365
      %v389 = vadd.f32 %v337, %v365
      %v390 = vadd.f32 %v338, %v365
      %v391 = vadd.f32 %v339, %v365
      %v392 = vadd.f32 %v340, %v365
      %v393 = vadd.f32 %v341, %v365
      %v394 = vadd.f32 %v342, %v365
      %v395 = vadd.f32 %v343, %v365
      %v396 = vadd.f32 %v344, %v365
      %v397 = vadd.f32 %v345, %v365
      %v398 = vadd.f32 %v346, %v365
      %v399 = vadd.f32 %v347, %v365
      %v400 = vadd.f32 %v348, %v365
      %v401 = vadd.f32 %v349, %v365
      %v402 = vadd.f32 %v350, %v365
      %v403 = vadd.f32 %v351, %v365
      %v404 = vadd.f32 %v352, %v365
      %v405 = vadd.f32 %v353, %v365
      %v406 = vadd.f32 %v354, %v365
      %v407 = vadd.f32 %v355, %v365
      %v408 = vadd.f32 %v356, %v365
      %v409 = vadd.f32 %v357, %v365
      %v410 = vadd.f32 %v358, %v365
      %v411 = vadd.f32 %v359, %v365
      %v412 = vadd.f32 %v360, %v365
      %v413 = vadd.f32 %v361, %v365
      %v414 = vadd.f32 %v362, %v365
      %v415 = vmax.f32 %v367, 0.0
      %v416 = vmax.f32 %v368, 0.0
      %v417 = vmax.f32 %v369, 0.0
      %v418 = vmax.f32 %v370, 0.0
      %v419 = vmax.f32 %v371, 0.0
      %v420 = vmax.f32 %v372, 0.0
      %v421 = vmax.f32 %v373, 0.0
      %v422 = vmax.f32 %v374, 0.0
      %v423 = vmax.f32 %v375, 0.0
      %v424 = vmax.f32 %v376, 0.0
      %v425 = vmax.f32 %v377, 0.0
      %v426 = vmax.f32 %v378, 0.0
      %v427 = vmax.f32 %v379, 0.0
      %v428 = vmax.f32 %v380, 0.0
      %v429 = vmax.f32 %v381, 0.0
      %v430 = vmax.f32 %v382, 0.0
      %v431 = vmax.f32 %v383, 0.0
      %v432 = vmax.f32 %v384, 0.0
      %v433 = vmax.f32 %v385, 0.0
      %v434 = vmax.f32 %v386, 0.0
      %v435 = vmax.f32 %v387, 0.0
      %v436 = vmax.f32 %v388, 0.0
      %v437 = vmax.f32 %v389, 0.0
      %v438 = vmax.f32 %v390, 0.0
      %v439 = vmax.f32 %v391, 0.0
      %v440 = vmax.f32 %v392, 0.0
      %v441 = vmax.f32 %v393, 0.0
      %v442 = vmax.f32 %v394, 0.0
      %v443 = vmax.f32 %v395, 0.0
      %v444 = vmax.f32 %v396, 0.0
      %v445 = vmax.f32 %v397, 0.0
      %v446 = vmax.f32 %v398, 0.0
      %v447 = vmax.f32 %v399, 0.0
      %v448 = vmax.f32 %v400, 0.0
      %v449 = vmax.f32 %v401, 0.0
      %v450 = vmax.f32 %v402, 0.0
      %v451 = vmax.f32 %v403, 0.0
      %v452 = vmax.f32 %v404, 0.0
      %v453 = vmax.f32 %v405, 0.0
      %v454 = vmax.f32 %v406, 0.0
      %v455 = vmax.f32 %v407, 0.0
      %v456 = vmax.f32 %v408, 0.0
      %v457 = vmax.f32 %v409, 0.0
      %v458 = vmax.f32 %v410, 0.0
      %v459 = vmax.f32 %v411, 0.0
      %v460 = vmax.f32 %v412, 0.0
      %v461 = vmax.f32 %v413, 0.0
      %v462 = vmax.f32 %v414, 0.0
      %v463 = vpack.c.bf16 %v415, %v415
      %v464 = vpack.c.bf16 %v416, %v416
      %v465 = vpack.c.bf16 %v417, %v417
      %v466 = vpack.c.bf16 %v418, %v418
      %v467 = vpack.c.bf16 %v419, %v419
      %v468 = vpack.c.bf16 %v420, %v420
      %v469 = vpack.c.bf16 %v421, %v421
      %v470 = vpack.c.bf16 %v422, %v422
      %v471 = vpack.c.bf16 %v423, %v423
      %v472 = vpack.c.bf16 %v424, %v424
      %v473 = vpack.c.bf16 %v425, %v425
      %v474 = vpack.c.bf16 %v426, %v426
      %v475 = vpack.c.bf16 %v427, %v427
      %v476 = vpack.c.bf16 %v428, %v428
      %v477 = vpack.c.bf16 %v429, %v429
      %v478 = vpack.c.bf16 %v430, %v430
      %v479 = vpack.c.bf16 %v431, %v431
      %v480 = vpack.c.bf16 %v432, %v432
      %v481 = vpack.c.bf16 %v433, %v433
      %v482 = vpack.c.bf16 %v434, %v434
      %v483 = vpack.c.bf16 %v435, %v435
      %v484 = vpack.c.bf16 %v436, %v436
      %v485 = vpack.c.bf16 %v437, %v437
      %v486 = vpack.c.bf16 %v438, %v438
      %v487 = vpack.c.bf16 %v439, %v439
      %v488 = vpack.c.bf16 %v440, %v440
      %v489 = vpack.c.bf16 %v441, %v441
      %v490 = vpack.c.bf16 %v442, %v442
      %v491 = vpack.c.bf16 %v443, %v443
      %v492 = vpack.c.bf16 %v444, %v444
      %v493 = vpack.c.bf16 %v445, %v445
      %v494 = vpack.c.bf16 %v446, %v446
      %v495 = vpack.c.bf16 %v447, %v447
      %v496 = vpack.c.bf16 %v448, %v448
      %v497 = vpack.c.bf16 %v449, %v449
      %v498 = vpack.c.bf16 %v450, %v450
      %v499 = vpack.c.bf16 %v451, %v451
      %v500 = vpack.c.bf16 %v452, %v452
      %v501 = vpack.c.bf16 %v453, %v453
      %v502 = vpack.c.bf16 %v454, %v454
      %v503 = vpack.c.bf16 %v455, %v455
      %v504 = vpack.c.bf16 %v456, %v456
      %v505 = vpack.c.bf16 %v457, %v457
      %v506 = vpack.c.bf16 %v458, %v458
      %v507 = vpack.c.bf16 %v459, %v459
      %v508 = vpack.c.bf16 %v460, %v460
      %v509 = vpack.c.bf16 %v461, %v461
      %v510 = vpack.c.bf16 %v462, %v462
      %vm511 = vsmask.f32 3328
      %vm512 = vsmask.f32 7440
      %vm513 = vmor %vm511, %vm512
      %v515 = vshrl.u32 %v463, 16
      %v517 = vrot.slane %v515, 4
      %v518 = vshll.u32 %v463, 16
      %v520 = vrot.slane %v518, 5
      %v521 = vor.u32 %v517, %v520
      %v522 = vrot.slane %v521, 4
      %v524 = vshll.u32 %v464, 16
      %v526 = vrot.slane %v524, 5
      %v527 = vsel %vm513, %v522, %v526
      %v528 = vshrl.u32 %v464, 16
      %v530 = vrot.slane %v528, 4
      %v531 = vor.u32 %v530, %v526
      %v532 = vrot.slane %v531, 4
      %v534 = vshll.u32 %v465, 16
      %v536 = vrot.slane %v534, 5
      %v537 = vsel %vm513, %v532, %v536
      %v539 = vshrl.u32 %v466, 16
      %v541 = vrot.slane %v539, 4
      %v542 = vshll.u32 %v466, 16
      %v544 = vrot.slane %v542, 5
      %v545 = vor.u32 %v541, %v544
      %v546 = vrot.slane %v545, 4
      %v548 = vshll.u32 %v467, 16
      %v550 = vrot.slane %v548, 5
      %v551 = vsel %vm513, %v546, %v550
      %v552 = vshrl.u32 %v467, 16
      %v554 = vrot.slane %v552, 4
      %v555 = vor.u32 %v554, %v550
      %v556 = vrot.slane %v555, 4
      %v558 = vshll.u32 %v468, 16
      %v560 = vrot.slane %v558, 5
      %v561 = vsel %vm513, %v556, %v560
      %v563 = vshrl.u32 %v469, 16
      %v565 = vrot.slane %v563, 4
      %v566 = vshll.u32 %v469, 16
      %v568 = vrot.slane %v566, 5
      %v569 = vor.u32 %v565, %v568
      %v570 = vrot.slane %v569, 4
      %v572 = vshll.u32 %v470, 16
      %v574 = vrot.slane %v572, 5
      %v575 = vsel %vm513, %v570, %v574
      %v576 = vshrl.u32 %v470, 16
      %v578 = vrot.slane %v576, 4
      %v579 = vor.u32 %v578, %v574
      %v580 = vrot.slane %v579, 4
      %v582 = vshll.u32 %v471, 16
      %v584 = vrot.slane %v582, 5
      %v585 = vsel %vm513, %v580, %v584
      %v587 = vshrl.u32 %v472, 16
      %v589 = vrot.slane %v587, 4
      %v590 = vshll.u32 %v472, 16
      %v592 = vrot.slane %v590, 5
      %v593 = vor.u32 %v589, %v592
      %v594 = vrot.slane %v593, 4
      %v596 = vshll.u32 %v473, 16
      %v598 = vrot.slane %v596, 5
      %v599 = vsel %vm513, %v594, %v598
      %v600 = vshrl.u32 %v473, 16
      %v602 = vrot.slane %v600, 4
      %v603 = vor.u32 %v602, %v598
      %v604 = vrot.slane %v603, 4
      %v606 = vshll.u32 %v474, 16
      %v608 = vrot.slane %v606, 5
      %v609 = vsel %vm513, %v604, %v608
      %v611 = vshrl.u32 %v475, 16
      %v613 = vrot.slane %v611, 4
      %v614 = vshll.u32 %v475, 16
      %v616 = vrot.slane %v614, 5
      %v617 = vor.u32 %v613, %v616
      %v618 = vrot.slane %v617, 4
      %v620 = vshll.u32 %v476, 16
      %v622 = vrot.slane %v620, 5
      %v623 = vsel %vm513, %v618, %v622
      %v624 = vshrl.u32 %v476, 16
      %v626 = vrot.slane %v624, 4
      %v627 = vor.u32 %v626, %v622
      %v628 = vrot.slane %v627, 4
      %v630 = vshll.u32 %v477, 16
      %v632 = vrot.slane %v630, 5
      %v633 = vsel %vm513, %v628, %v632
      %v635 = vshrl.u32 %v478, 16
      %v637 = vrot.slane %v635, 4
      %v638 = vshll.u32 %v478, 16
      %v640 = vrot.slane %v638, 5
      %v641 = vor.u32 %v637, %v640
      %v642 = vrot.slane %v641, 4
      %v644 = vshll.u32 %v479, 16
      %v646 = vrot.slane %v644, 5
      %v647 = vsel %vm513, %v642, %v646
      %v648 = vshrl.u32 %v479, 16
      %v650 = vrot.slane %v648, 4
      %v651 = vor.u32 %v650, %v646
      %v652 = vrot.slane %v651, 4
      %v654 = vshll.u32 %v480, 16
      %v656 = vrot.slane %v654, 5
      %v657 = vsel %vm513, %v652, %v656
      %v659 = vshrl.u32 %v481, 16
      %v661 = vrot.slane %v659, 4
      %v662 = vshll.u32 %v481, 16
      %v664 = vrot.slane %v662, 5
      %v665 = vor.u32 %v661, %v664
      %v666 = vrot.slane %v665, 4
      %v668 = vshll.u32 %v482, 16
      %v670 = vrot.slane %v668, 5
      %v671 = vsel %vm513, %v666, %v670
      %v672 = vshrl.u32 %v482, 16
      %v674 = vrot.slane %v672, 4
      %v675 = vor.u32 %v674, %v670
      %v676 = vrot.slane %v675, 4
      %v678 = vshll.u32 %v483, 16
      %v680 = vrot.slane %v678, 5
      %v681 = vsel %vm513, %v676, %v680
      %v683 = vshrl.u32 %v484, 16
      %v685 = vrot.slane %v683, 4
      %v686 = vshll.u32 %v484, 16
      %v688 = vrot.slane %v686, 5
      %v689 = vor.u32 %v685, %v688
      %v690 = vrot.slane %v689, 4
      %v692 = vshll.u32 %v485, 16
      %v694 = vrot.slane %v692, 5
      %v695 = vsel %vm513, %v690, %v694
      %v696 = vshrl.u32 %v485, 16
      %v698 = vrot.slane %v696, 4
      %v699 = vor.u32 %v698, %v694
      %v700 = vrot.slane %v699, 4
      %v702 = vshll.u32 %v486, 16
      %v704 = vrot.slane %v702, 5
      %v705 = vsel %vm513, %v700, %v704
      %v707 = vshrl.u32 %v487, 16
      %v709 = vrot.slane %v707, 4
      %v710 = vshll.u32 %v487, 16
      %v712 = vrot.slane %v710, 5
      %v713 = vor.u32 %v709, %v712
      %v714 = vrot.slane %v713, 4
      %v716 = vshll.u32 %v488, 16
      %v718 = vrot.slane %v716, 5
      %v719 = vsel %vm513, %v714, %v718
      %v720 = vshrl.u32 %v488, 16
      %v722 = vrot.slane %v720, 4
      %v723 = vor.u32 %v722, %v718
      %v724 = vrot.slane %v723, 4
      %v726 = vshll.u32 %v489, 16
      %v728 = vrot.slane %v726, 5
      %v729 = vsel %vm513, %v724, %v728
      %v731 = vshrl.u32 %v490, 16
      %v733 = vrot.slane %v731, 4
      %v734 = vshll.u32 %v490, 16
      %v736 = vrot.slane %v734, 5
      %v737 = vor.u32 %v733, %v736
      %v738 = vrot.slane %v737, 4
      %v740 = vshll.u32 %v491, 16
      %v742 = vrot.slane %v740, 5
      %v743 = vsel %vm513, %v738, %v742
      %v744 = vshrl.u32 %v491, 16
      %v746 = vrot.slane %v744, 4
      %v747 = vor.u32 %v746, %v742
      %v748 = vrot.slane %v747, 4
      %v750 = vshll.u32 %v492, 16
      %v752 = vrot.slane %v750, 5
      %v753 = vsel %vm513, %v748, %v752
      %v755 = vshrl.u32 %v493, 16
      %v757 = vrot.slane %v755, 4
      %v758 = vshll.u32 %v493, 16
      %v760 = vrot.slane %v758, 5
      %v761 = vor.u32 %v757, %v760
      %v762 = vrot.slane %v761, 4
      %v764 = vshll.u32 %v494, 16
      %v766 = vrot.slane %v764, 5
      %v767 = vsel %vm513, %v762, %v766
      %v768 = vshrl.u32 %v494, 16
      %v770 = vrot.slane %v768, 4
      %v771 = vor.u32 %v770, %v766
      %v772 = vrot.slane %v771, 4
      %v774 = vshll.u32 %v495, 16
      %v776 = vrot.slane %v774, 5
      %v777 = vsel %vm513, %v772, %v776
      %v779 = vshrl.u32 %v496, 16
      %v781 = vrot.slane %v779, 4
      %v782 = vshll.u32 %v496, 16
      %v784 = vrot.slane %v782, 5
      %v785 = vor.u32 %v781, %v784
      %v786 = vrot.slane %v785, 4
      %v788 = vshll.u32 %v497, 16
      %v790 = vrot.slane %v788, 5
      %v791 = vsel %vm513, %v786, %v790
      %v792 = vshrl.u32 %v497, 16
      %v794 = vrot.slane %v792, 4
      %v795 = vor.u32 %v794, %v790
      %v796 = vrot.slane %v795, 4
      %v798 = vshll.u32 %v498, 16
      %v800 = vrot.slane %v798, 5
      %v801 = vsel %vm513, %v796, %v800
      %v803 = vshrl.u32 %v499, 16
      %v805 = vrot.slane %v803, 4
      %v806 = vshll.u32 %v499, 16
      %v808 = vrot.slane %v806, 5
      %v809 = vor.u32 %v805, %v808
      %v810 = vrot.slane %v809, 4
      %v812 = vshll.u32 %v500, 16
      %v814 = vrot.slane %v812, 5
      %v815 = vsel %vm513, %v810, %v814
      %v816 = vshrl.u32 %v500, 16
      %v818 = vrot.slane %v816, 4
      %v819 = vor.u32 %v818, %v814
      %v820 = vrot.slane %v819, 4
      %v822 = vshll.u32 %v501, 16
      %v824 = vrot.slane %v822, 5
      %v825 = vsel %vm513, %v820, %v824
      %v827 = vshrl.u32 %v502, 16
      %v829 = vrot.slane %v827, 4
      %v830 = vshll.u32 %v502, 16
      %v832 = vrot.slane %v830, 5
      %v833 = vor.u32 %v829, %v832
      %v834 = vrot.slane %v833, 4
      %v836 = vshll.u32 %v503, 16
      %v838 = vrot.slane %v836, 5
      %v839 = vsel %vm513, %v834, %v838
      %v840 = vshrl.u32 %v503, 16
      %v842 = vrot.slane %v840, 4
      %v843 = vor.u32 %v842, %v838
      %v844 = vrot.slane %v843, 4
      %v846 = vshll.u32 %v504, 16
      %v848 = vrot.slane %v846, 5
      %v849 = vsel %vm513, %v844, %v848
      %v851 = vshrl.u32 %v505, 16
      %v853 = vrot.slane %v851, 4
      %v854 = vshll.u32 %v505, 16
      %v856 = vrot.slane %v854, 5
      %v857 = vor.u32 %v853, %v856
      %v858 = vrot.slane %v857, 4
      %v860 = vshll.u32 %v506, 16
      %v862 = vrot.slane %v860, 5
      %v863 = vsel %vm513, %v858, %v862
      %v864 = vshrl.u32 %v506, 16
      %v866 = vrot.slane %v864, 4
      %v867 = vor.u32 %v866, %v862
      %v868 = vrot.slane %v867, 4
      %v870 = vshll.u32 %v507, 16
      %v872 = vrot.slane %v870, 5
      %v873 = vsel %vm513, %v868, %v872
      %v875 = vshrl.u32 %v508, 16
      %v877 = vrot.slane %v875, 4
      %v878 = vshll.u32 %v508, 16
      %v880 = vrot.slane %v878, 5
      %v881 = vor.u32 %v877, %v880
      %v882 = vrot.slane %v881, 4
      %v884 = vshll.u32 %v509, 16
      %v886 = vrot.slane %v884, 5
      %v887 = vsel %vm513, %v882, %v886
      %v888 = vshrl.u32 %v509, 16
      %v890 = vrot.slane %v888, 4
      %v891 = vor.u32 %v890, %v886
      %v892 = vrot.slane %v891, 4
      %v894 = vshll.u32 %v510, 16
      %v896 = vrot.slane %v894, 5
      %v897 = vsel %vm513, %v892, %v896
      %930 = vst [vmem:[%s213] sm:$0xf] %v527
      %931 = vst [vmem:[%s213 + $0x4] sm:$0xf] %v537
      %932 = vst [vmem:[%s213 + $0x8] sm:$0xf] %v551
      %933 = vst [vmem:[%s213 + $0xc] sm:$0xf] %v561
      %934 = vst [vmem:[%s213 + $0x10] sm:$0xf] %v575
      %935 = vst [vmem:[%s213 + $0x14] sm:$0xf] %v585
      %936 = vst [vmem:[%s213 + $0x18] sm:$0xf] %v599
      %937 = vst [vmem:[%s213 + $0x1c] sm:$0xf] %v609
      %938 = vst [vmem:[%s213 + $0x20] sm:$0xf] %v623
      %939 = vst [vmem:[%s213 + $0x24] sm:$0xf] %v633
      %940 = vst [vmem:[%s213 + $0x28] sm:$0xf] %v647
      %941 = vst [vmem:[%s213 + $0x2c] sm:$0xf] %v657
      %942 = vst [vmem:[%s213 + $0x30] sm:$0xf] %v671
      %943 = vst [vmem:[%s213 + $0x34] sm:$0xf] %v681
      %944 = vst [vmem:[%s213 + $0x38] sm:$0xf] %v695
      %945 = vst [vmem:[%s213 + $0x3c] sm:$0xf] %v705
      %946 = vst [vmem:[%s213 + $0x40] sm:$0xf] %v719
      %947 = vst [vmem:[%s213 + $0x44] sm:$0xf] %v729
      %948 = vst [vmem:[%s213 + $0x48] sm:$0xf] %v743
      %949 = vst [vmem:[%s213 + $0x4c] sm:$0xf] %v753
      %950 = vst [vmem:[%s213 + $0x50] sm:$0xf] %v767
      %951 = vst [vmem:[%s213 + $0x54] sm:$0xf] %v777
      %952 = vst [vmem:[%s213 + $0x58] sm:$0xf] %v791
      %953 = vst [vmem:[%s213 + $0x5c] sm:$0xf] %v801
      %954 = vst [vmem:[%s213 + $0x60] sm:$0xf] %v815
      %955 = vst [vmem:[%s213 + $0x64] sm:$0xf] %v825
      %956 = vst [vmem:[%s213 + $0x68] sm:$0xf] %v839
      %957 = vst [vmem:[%s213 + $0x6c] sm:$0xf] %v849
      %958 = vst [vmem:[%s213 + $0x70] sm:$0xf] %v863
      %959 = vst [vmem:[%s213 + $0x74] sm:$0xf] %v873
      %960 = vst [vmem:[%s213 + $0x78] sm:$0xf] %v887
      %961 = vst [vmem:[%s213 + $0x7c] sm:$0xf] %v897
      %s962 = smul.u32 16, %s19
      %p963 = scmp.lt.s32.totalorder %s18, 1
      %s964 = scalar_select %p963, %s18, 1
      %p965 = scmp.lt.s32.totalorder %s962, 15
      %s966 = scalar_select %p965, %s962, 15
      %s967 = smul.addr %s966, 2
      %s968 = smul.addr %s964, 32
      %s969 = sadd.s32 %s967, %s968
      %s970 = smul.addr %s969, 4
      %s971 = scalar_lea.vmem %s3, %s970
      // Predicated region
      $region33: #{double_conv.5} parent=31 // pred_check
        %p972 = pneg %p116
      $region34: #{double_conv.5} parent=31 // pred_check_branch
        %974 = sbr.rel (%p972) target = $region36
      $region35: #{double_conv.5} parent=31 // pred_region
        %s975 = smul.u32 16, %s19
      $region36: #{double_conv.5} parent=31 // pred_fallthru
        _
    $region32: #{double_conv.5} parent=5 // pred_fallthru
      _
    %p976 = scmp.le.s32.totalorder 2, %s9
    // Predicated region
    $region37: #{double_conv.5} parent=5 // pred_check
      %p977 = pneg %p976
    $region38: #{double_conv.5} parent=5 // pred_check_branch
      %979 = sbr.rel (%p977) target = $region40
    $region39: #{double_conv.5} parent=5 // pred_region
      %s980 = ssub.s32 %s9, 2
      // Predicated region
      $region41: #{double_conv.5} parent=39 // pred_check
        %p981 = pneg %p122
      $region42: #{double_conv.5} parent=39 // pred_check_branch
        %983 = sbr.rel (%p981) target = $region44
      $region43: #{double_conv.5} parent=39 // pred_region
        %s984 = smul.u32 16, %s21
        %p985 = scmp.lt.s32.totalorder %s20, 1
        %s986 = scalar_select %p985, %s20, 1
        %p987 = scmp.lt.s32.totalorder %s984, 15
        %s988 = scalar_select %p987, %s984, 15
        %s989 = smul.addr %s988, 2
        %s990 = smul.addr %s986, 32
        %s991 = sadd.s32 %s989, %s990
        %s992 = smul.addr %s991, 4
        %s993 = scalar_lea.vmem %s3, %s992
      $region44: #{double_conv.5} parent=39 // pred_fallthru
        _
    $region40: #{double_conv.5} parent=5 // pred_fallthru
      _
  $region6: #{double_conv.5} parent=0 // loop_footer
    %s13 = sadd.s32 1, %s9
  $region7: #{double_conv.5} parent=0 // loop_footer_branch
    %8 = sbr.rel target = $region3
  $region8: #{double_conv.5} parent=0 // loop_exit
    _

// kernel: double_conv.3
$region0: #{double_conv.3}
  #allocation0 [shape = 'u32[]', space=smem, size = 0x4, offset = 0x4, fixed_abs, tag = 'smem constant byte address 0x4 - core index']
  #allocation1 [shape = 'u32[72,128]{1,0:T(1,128)}', space=vmem, size = 0x9000, scoped, tag = 'internal scratch']
  #allocation2 [shape = 'bf16[18,18,128]{2,1,0:T(8,128)(2,1)}', space=vmem, size = 0x1b000, scoped, tag = 'scratch operand']
  %s0 = inlined_call_operand.vmem [shape: bf16[2,16,18,128], index: 0, kind: input, shape index: {}, may-alias: {0,1,2}]
  %s1 = inlined_call_operand.vmem [shape: bf16[2,16,18,128], index: 1, kind: input, shape index: {}, may-alias: {0,1,2}]
  %s2 = inlined_call_operand.vmem [shape: bf16[2,16,18,128], index: 2, kind: input, shape index: {}, may-alias: {0,1,2}]
  %s3 = inlined_call_operand.vmem [shape: bf16[1152,128], index: 3, kind: input, shape index: {}]
  %s4 = inlined_call_operand.vmem [shape: bf16[2,16,18,128], index: 4, kind: output, shape index: {0}]
  %s5 = inlined_call_operand.vmem [shape: f32[2,1,2,128], index: 5, kind: output, shape index: {1}]
  %6 = xla_tuple %s4, %s5
  %s7 = sld [smem:[#allocation0]]
  $region73: #{double_conv.3} parent=0
    _
  %s9 = ssub.s32 1, %s7
  %s10 = scalar_select 0, %s9, %s7
  loop: start=0, step=1, limit=4
  $region2: #{double_conv.3} parent=0 // loop_pre_header
    _
  $region3: #{double_conv.3} parent=0 // loop_header
    %s12 = sphi 0, %s16
    %p13 = scmp.ge.s32.totalorder %s12, 4
    %s19 = sphi 0, %s31
    %s20 = sphi 0, %s27
    %s21 = sphi 0, %s19
    %s22 = sphi 0, %s20
    %s23 = sphi 0, %s21
    %s24 = sphi 0, %s22
    %s44 = sphi 0, %s46
    %s47 = sphi 0, %s44
    %s48 = sphi 0, %s47
    %s64 = sphi 0, %s48
    %s72 = sphi 0, %s74
    %s75 = sphi 0, %s72
    %s76 = sphi 0, %s75
    %s92 = sphi 0, %s76
    %s108 = sphi 0, %s110
    %s111 = sphi 0, %s108
    %s112 = sphi 0, %s111
    %s128 = sphi 0, %s112
    %s132 = sphi 0, %s132
    %s134 = sphi 0, %s132
    %s135 = sphi 0, %s134
    %s149 = sphi 0, %s135
    %s157 = sphi 0, %s159
    %s160 = sphi 0, %s157
    %s161 = sphi 0, %s160
    %s177 = sphi 0, %s161
    %s185 = sphi 0, %s187
    %s188 = sphi 0, %s185
    %s189 = sphi 0, %s188
    %s205 = sphi 0, %s189
  $region4: #{double_conv.3} parent=0 // loop_header_branch
    %15 = sbr.rel (%p13) target = $region8
  $region5: #{double_conv.3} parent=0 // loop_body
    %s17 = ssub.s32 %s12, 1
    %s18 = ssub.s32 %s12, 2
    %s25 = sadd.s32 1, %s20
    %p26 = scmp.ge.s32.totalorder %s25, 1
    %s27 = scalar_select %p26, 0, %s25
    %s28 = sadd.s32 1, %s19
    %s29 = scalar_select %p26, %s28, %s19
    %p30 = scmp.ge.s32.totalorder %s29, 2
    %s31 = scalar_select %p30, 0, %s29
    %s32 = smul.u32 %s20, 16
    %s33 = ssub.s32 %s32, 1
    %p34 = scmp.gt.s32.totalorder %s33, 0
    %s35 = scalar_select %p34, %s33, 0
    %s36 = smul.u32 %s27, 16
    %s37 = ssub.s32 %s36, 1
    %p38 = scmp.gt.s32.totalorder %s37, 0
    %s39 = scalar_select %p38, %s37, 0
    %s40 = ssub.s32 %s19, %s31
    %s41 = ssub.s32 %s35, %s39
    %s42 = sor.u32 %s40, %s41
    %p43 = scmp.eq.s32.totalorder %s42, 0
    %s45 = sadd.s32 %s44, 1
    %s46 = scalar_select %p43, %s44, %s45
    %p49 = pneg %p43
    %p50 = scmp.eq.s32.totalorder %s12, 1
    %p51 = por %p49, %p50
    %p52 = scmp.ne.s32.totalorder %s44, %s47
    %p53 = scmp.eq.s32.totalorder %s12, 0
    %p54 = por %p52, %p53
    %p55 = scmp.ne.s32.totalorder %s44, %s47
    %p56 = scmp.eq.s32.totalorder %s17, 1
    %p57 = por %p55, %p56
    %p58 = scmp.ne.s32.totalorder %s47, %s48
    %p59 = scmp.eq.s32.totalorder %s17, 0
    %p60 = por %p58, %p59
    %p61 = scmp.ne.s32.totalorder %s47, %s48
    %p62 = scmp.eq.s32.totalorder %s18, 1
    %p63 = por %p61, %p62
    %p65 = scmp.ne.s32.totalorder %s48, %s64
    %p66 = scmp.eq.s32.totalorder %s18, 0
    %p67 = por %p65, %p66
    %s68 = ssub.s32 %s19, %s31
    %s69 = ssub.s32 %s20, %s27
    %s70 = sor.u32 %s68, %s69
    %p71 = scmp.eq.s32.totalorder %s70, 0
    %s73 = sadd.s32 %s72, 1
    %s74 = scalar_select %p71, %s72, %s73
    %p77 = pneg %p71
    %p78 = scmp.eq.s32.totalorder %s12, 1
    %p79 = por %p77, %p78
    %p80 = scmp.ne.s32.totalorder %s72, %s75
    %p81 = scmp.eq.s32.totalorder %s12, 0
    %p82 = por %p80, %p81
    %p83 = scmp.ne.s32.totalorder %s72, %s75
    %p84 = scmp.eq.s32.totalorder %s17, 1
    %p85 = por %p83, %p84
    %p86 = scmp.ne.s32.totalorder %s75, %s76
    %p87 = scmp.eq.s32.totalorder %s17, 0
    %p88 = por %p86, %p87
    %p89 = scmp.ne.s32.totalorder %s75, %s76
    %p90 = scmp.eq.s32.totalorder %s18, 1
    %p91 = por %p89, %p90
    %p93 = scmp.ne.s32.totalorder %s76, %s92
    %p94 = scmp.eq.s32.totalorder %s18, 0
    %p95 = por %p93, %p94
    %s96 = smul.u32 %s20, 16
    %s97 = sadd.s32 %s96, 16
    %p98 = scmp.lt.s32.totalorder %s97, 15
    %s99 = scalar_select %p98, %s97, 15
    %s100 = smul.u32 %s27, 16
    %s101 = sadd.s32 %s100, 16
    %p102 = scmp.lt.s32.totalorder %s101, 15
    %s103 = scalar_select %p102, %s101, 15
    %s104 = ssub.s32 %s19, %s31
    %s105 = ssub.s32 %s99, %s103
    %s106 = sor.u32 %s104, %s105
    %p107 = scmp.eq.s32.totalorder %s106, 0
    %s109 = sadd.s32 %s108, 1
    %s110 = scalar_select %p107, %s108, %s109
    %p113 = pneg %p107
    %p114 = scmp.eq.s32.totalorder %s12, 1
    %p115 = por %p113, %p114
    %p116 = scmp.ne.s32.totalorder %s108, %s111
    %p117 = scmp.eq.s32.totalorder %s12, 0
    %p118 = por %p116, %p117
    %p119 = scmp.ne.s32.totalorder %s108, %s111
    %p120 = scmp.eq.s32.totalorder %s17, 1
    %p121 = por %p119, %p120
    %p122 = scmp.ne.s32.totalorder %s111, %s112
    %p123 = scmp.eq.s32.totalorder %s17, 0
    %p124 = por %p122, %p123
    %p125 = scmp.ne.s32.totalorder %s111, %s112
    %p126 = scmp.eq.s32.totalorder %s18, 1
    %p127 = por %p125, %p126
    %p129 = scmp.ne.s32.totalorder %s112, %s128
    %p130 = scmp.eq.s32.totalorder %s18, 0
    %p131 = por %p129, %p130
    %s133 = sadd.s32 %s132, 1
    %p136 = scmp.eq.s32.totalorder %s12, 1
    %p137 = scmp.ne.s32.totalorder %s132, %s134
    %p138 = scmp.eq.s32.totalorder %s12, 0
    %p139 = por %p137, %p138
    %p140 = scmp.ne.s32.totalorder %s132, %s134
    %p141 = scmp.eq.s32.totalorder %s17, 1
    %p142 = por %p140, %p141
    %p143 = scmp.ne.s32.totalorder %s134, %s135
    %p144 = scmp.eq.s32.totalorder %s17, 0
    %p145 = por %p143, %p144
    %p146 = scmp.ne.s32.totalorder %s134, %s135
    %p147 = scmp.eq.s32.totalorder %s18, 1
    %p148 = por %p146, %p147
    %p150 = scmp.ne.s32.totalorder %s135, %s149
    %p151 = scmp.eq.s32.totalorder %s18, 0
    %p152 = por %p150, %p151
    %s153 = ssub.s32 %s19, %s31
    %s154 = ssub.s32 %s20, %s27
    %s155 = sor.u32 %s153, %s154
    %p156 = scmp.eq.s32.totalorder %s155, 0
    %s158 = sadd.s32 %s157, 1
    %s159 = scalar_select %p156, %s157, %s158
    %p162 = pneg %p156
    %p163 = scmp.eq.s32.totalorder %s12, 1
    %p164 = por %p162, %p163
    %p165 = scmp.ne.s32.totalorder %s157, %s160
    %p166 = scmp.eq.s32.totalorder %s12, 0
    %p167 = por %p165, %p166
    %p168 = scmp.ne.s32.totalorder %s157, %s160
    %p169 = scmp.eq.s32.totalorder %s17, 1
    %p170 = por %p168, %p169
    %p171 = scmp.ne.s32.totalorder %s160, %s161
    %p172 = scmp.eq.s32.totalorder %s17, 0
    %p173 = por %p171, %p172
    %p174 = scmp.ne.s32.totalorder %s160, %s161
    %p175 = scmp.eq.s32.totalorder %s18, 1
    %p176 = por %p174, %p175
    %p178 = scmp.ne.s32.totalorder %s161, %s177
    %p179 = scmp.eq.s32.totalorder %s18, 0
    %p180 = por %p178, %p179
    %s181 = ssub.s32 %s19, %s31
    %s182 = ssub.s32 %s20, %s27
    %s183 = sor.u32 %s181, %s182
    %p184 = scmp.eq.s32.totalorder %s183, 0
    %s186 = sadd.s32 %s185, 1
    %s187 = scalar_select %p184, %s185, %s186
    %p190 = pneg %p184
    %p191 = scmp.eq.s32.totalorder %s12, 1
    %p192 = por %p190, %p191
    %p193 = scmp.ne.s32.totalorder %s185, %s188
    %p194 = scmp.eq.s32.totalorder %s12, 0
    %p195 = por %p193, %p194
    %p196 = scmp.ne.s32.totalorder %s185, %s188
    %p197 = scmp.eq.s32.totalorder %s17, 1
    %p198 = por %p196, %p197
    %p199 = scmp.ne.s32.totalorder %s188, %s189
    %p200 = scmp.eq.s32.totalorder %s17, 0
    %p201 = por %p199, %p200
    %p202 = scmp.ne.s32.totalorder %s188, %s189
    %p203 = scmp.eq.s32.totalorder %s18, 1
    %p204 = por %p202, %p203
    %p206 = scmp.ne.s32.totalorder %s189, %s205
    %p207 = scmp.eq.s32.totalorder %s18, 0
    %p208 = por %p206, %p207
    %p209 = scmp.le.s32.totalorder 1, %s12
    %p210 = scmp.lt.s32.totalorder %s12, 3
    %p211 = pnand %p209, %p210
    %p212 = pneg %p211
    // Predicated region
    $region9: #{double_conv.3} parent=5 // pred_check
      _
    $region10: #{double_conv.3} parent=5 // pred_check_branch
      %214 = sbr.rel (%p211) target = $region12
    $region11: #{double_conv.3} parent=5 // pred_region
      %s215 = ssub.s32 %s12, 1
      // Predicated region
      $region13: #{double_conv.3} parent=11 // pred_check
        %p216 = pneg %p145
      $region14: #{double_conv.3} parent=11 // pred_check_branch
        %218 = sbr.rel (%p216) target = $region16
      $region15: #{double_conv.3} parent=11 // pred_region
        _
      $region16: #{double_conv.3} parent=11 // pred_fallthru
        _
    $region12: #{double_conv.3} parent=5 // pred_fallthru
      _
    %p219 = scmp.lt.s32.totalorder %s12, 2
    // Predicated region
    $region17: #{double_conv.3} parent=5 // pred_check
      %p220 = pneg %p219
    $region18: #{double_conv.3} parent=5 // pred_check_branch
      %222 = sbr.rel (%p220) target = $region20
    $region19: #{double_conv.3} parent=5 // pred_region
      // Predicated region
      $region21: #{double_conv.3} parent=19 // pred_check
        %p223 = pneg %p54
      $region22: #{double_conv.3} parent=19 // pred_check_branch
        %225 = sbr.rel (%p223) target = $region24
      $region23: #{double_conv.3} parent=19 // pred_region
        %s226 = smul.u32 %s20, 16
        %s227 = ssub.s32 %s226, 1
        %p228 = scmp.gt.s32.totalorder %s227, 0
        %s229 = scalar_select %p228, %s227, 0
        %p230 = scmp.lt.s32.totalorder %s19, 1
        %s231 = scalar_select %p230, %s19, 1
        %p232 = scmp.lt.s32.totalorder %s229, 15
        %s233 = scalar_select %p232, %s229, 15
        %s234 = smul.addr %s233, 3
        %s235 = smul.addr %s231, 48
        %s236 = sadd.s32 %s234, %s235
        %s237 = smul.addr %s236, 4
        %s238 = scalar_lea.vmem %s0, %s237
        %s239 = smul.u32 %s20, 16
        %s240 = ssub.s32 %s239, 1
        %p241 = scmp.gt.s32.totalorder %s240, 0
        %s242 = scalar_select %p241, %s240, 0
      $region24: #{double_conv.3} parent=19 // pred_fallthru
        _
      // Predicated region
      $region25: #{double_conv.3} parent=19 // pred_check
        %p243 = pneg %p82
      $region26: #{double_conv.3} parent=19 // pred_check_branch
        %245 = sbr.rel (%p243) target = $region28
      $region27: #{double_conv.3} parent=19 // pred_region
        %s246 = smul.u32 16, %s20
        %p247 = scmp.lt.s32.totalorder %s19, 1
        %s248 = scalar_select %p247, %s19, 1
        %p249 = scmp.lt.s32.totalorder %s246, 15
        %s250 = scalar_select %p249, %s246, 15
        %s251 = smul.addr %s250, 3
        %s252 = smul.addr %s248, 48
        %s253 = sadd.s32 %s251, %s252
        %s254 = smul.addr %s253, 4
        %s255 = scalar_lea.vmem %s1, %s254
        %s256 = smul.u32 16, %s20
      $region28: #{double_conv.3} parent=19 // pred_fallthru
        _
      // Predicated region
      $region29: #{double_conv.3} parent=19 // pred_check
        %p257 = pneg %p118
      $region30: #{double_conv.3} parent=19 // pred_check_branch
        %259 = sbr.rel (%p257) target = $region32
      $region31: #{double_conv.3} parent=19 // pred_region
        %s260 = smul.u32 %s20, 16
        %s261 = sadd.s32 %s260, 16
        %p262 = scmp.lt.s32.totalorder %s261, 15
        %s263 = scalar_select %p262, %s261, 15
        %p264 = scmp.lt.s32.totalorder %s19, 1
        %s265 = scalar_select %p264, %s19, 1
        %p266 = scmp.lt.s32.totalorder %s263, 15
        %s267 = scalar_select %p266, %s263, 15
        %s268 = smul.addr %s267, 3
        %s269 = smul.addr %s265, 48
        %s270 = sadd.s32 %s268, %s269
        %s271 = smul.addr %s270, 4
        %s272 = scalar_lea.vmem %s2, %s271
        %s273 = smul.u32 %s20, 16
        %s274 = sadd.s32 %s273, 16
        %p275 = scmp.lt.s32.totalorder %s274, 15
        %s276 = scalar_select %p275, %s274, 15
      $region32: #{double_conv.3} parent=19 // pred_fallthru
        _
    $region20: #{double_conv.3} parent=5 // pred_fallthru
      _
    %p277 = scmp.le.s32.totalorder 1, %s12
    %p278 = scmp.lt.s32.totalorder %s12, 3
    %p279 = pnand %p277, %p278
    %p280 = pneg %p279
    // Predicated region
    $region33: #{double_conv.3} parent=5 // pred_check
      _
    $region34: #{double_conv.3} parent=5 // pred_check_branch
      %282 = sbr.rel (%p279) target = $region36
    $region35: #{double_conv.3} parent=5 // pred_region
      %s283 = ssub.s32 %s12, 1
      %s284 = smul.u32 %s22, 16
      %s285 = ssub.s32 %s284, 1
      %p286 = scmp.gt.s32.totalorder %s285, 0
      %s287 = scalar_select %p286, %s285, 0
      %p288 = scmp.lt.s32.totalorder %s21, 1
      %s289 = scalar_select %p288, %s21, 1
      %p290 = scmp.lt.s32.totalorder %s287, 15
      %s291 = scalar_select %p290, %s287, 15
      %s292 = smul.addr %s291, 3
      %s293 = smul.addr %s289, 48
      %s294 = sadd.s32 %s292, %s293
      %s295 = smul.addr %s294, 4
      %s296 = scalar_lea.vmem %s0, %s295
      %p297 = pneg %p60
      %p298 = pneg %p57
      %s299 = smul.u32 16, %s22
      %p300 = scmp.lt.s32.totalorder %s21, 1
      %s301 = scalar_select %p300, %s21, 1
      %p302 = scmp.lt.s32.totalorder %s299, 15
      %s303 = scalar_select %p302, %s299, 15
      %s304 = smul.addr %s303, 3
      %s305 = smul.addr %s301, 48
      %s306 = sadd.s32 %s304, %s305
      %s307 = smul.addr %s306, 4
      %s308 = scalar_lea.vmem %s1, %s307
      %p309 = pneg %p88
      %p310 = pneg %p85
      %s311 = smul.u32 %s22, 16
      %s312 = sadd.s32 %s311, 16
      %p313 = scmp.lt.s32.totalorder %s312, 15
      %s314 = scalar_select %p313, %s312, 15
      %p315 = scmp.lt.s32.totalorder %s21, 1
      %s316 = scalar_select %p315, %s21, 1
      %p317 = scmp.lt.s32.totalorder %s314, 15
      %s318 = scalar_select %p317, %s314, 15
      %s319 = smul.addr %s318, 3
      %s320 = smul.addr %s316, 48
      %s321 = sadd.s32 %s319, %s320
      %s322 = smul.addr %s321, 4
      %s323 = scalar_lea.vmem %s2, %s322
      %p324 = pneg %p124
      %p325 = pneg %p121
      %p326 = pneg %p145
      %p327 = pneg %p142
      %p328 = pneg %p173
      %p329 = pneg %p170
      %s330 = smul.u32 16, %s22
      %p331 = scmp.lt.s32.totalorder %s21, 1
      %s332 = scalar_select %p331, %s21, 1
      %p333 = scmp.lt.s32.totalorder %s330, 15
      %s334 = scalar_select %p333, %s330, 15
      %s335 = smul.addr %s334, 3
      %s336 = smul.addr %s332, 48
      %s337 = sadd.s32 %s335, %s336
      %s338 = smul.addr %s337, 4
      %s339 = scalar_lea.vmem %s4, %s338
      %p340 = pneg %p201
      %p341 = pneg %p198
      %p342 = scmp.lt.s32.totalorder %s21, 1
      %s343 = scalar_select %p342, %s21, 1
      %p344 = scmp.lt.s32.totalorder %s22, 0
      %s345 = scalar_select %p344, %s22, 0
      %s346 = sadd.s32 %s345, %s343
      %s347 = smul.addr %s346, 2
      %s348 = scalar_lea.vmem %s5, %s347
      %s349 = smul.u32 %s22, 16
      %s350 = ssub.s32 %s349, 1
      %p351 = scmp.gt.s32.totalorder %s350, 0
      %s352 = scalar_select %p351, %s350, 0
      %p353 = scmp.lt.s32.totalorder %s21, 1
      %s354 = scalar_select %p353, %s21, 1
      %p355 = scmp.lt.s32.totalorder %s352, 15
      %s356 = scalar_select %p355, %s352, 15
      %s357 = smul.addr %s356, 3
      %s358 = smul.addr %s354, 48
      %s359 = sadd.s32 %s357, %s358
      %s360 = smul.addr %s359, 4
      %s361 = scalar_lea.vmem %s0, %s360
      %s362 = smul.u32 %s22, 16
      %s363 = ssub.s32 %s362, 1
      %p364 = scmp.gt.s32.totalorder %s363, 0
      %s365 = scalar_select %p364, %s363, 0
      %s366 = smul.u32 16, %s22
      %p367 = scmp.lt.s32.totalorder %s21, 1
      %s368 = scalar_select %p367, %s21, 1
      %p369 = scmp.lt.s32.totalorder %s366, 15
      %s370 = scalar_select %p369, %s366, 15
      %s371 = smul.addr %s370, 3
      %s372 = smul.addr %s368, 48
      %s373 = sadd.s32 %s371, %s372
      %s374 = smul.addr %s373, 4
      %s375 = scalar_lea.vmem %s1, %s374
      %s376 = smul.u32 16, %s22
      %s377 = smul.u32 %s22, 16
      %s378 = sadd.s32 %s377, 16
      %p379 = scmp.lt.s32.totalorder %s378, 15
      %s380 = scalar_select %p379, %s378, 15
      %p381 = scmp.lt.s32.totalorder %s21, 1
      %s382 = scalar_select %p381, %s21, 1
      %p383 = scmp.lt.s32.totalorder %s380, 15
      %s384 = scalar_select %p383, %s380, 15
      %s385 = smul.addr %s384, 3
      %s386 = smul.addr %s382, 48
      %s387 = sadd.s32 %s385, %s386
      %s388 = smul.addr %s387, 4
      %s389 = scalar_lea.vmem %s2, %s388
      %s390 = smul.u32 %s22, 16
      %s391 = sadd.s32 %s390, 16
      %p392 = scmp.lt.s32.totalorder %s391, 15
      %s393 = scalar_select %p392, %s391, 15
      %s394 = smul.u32 16, %s22
      %p395 = scmp.lt.s32.totalorder %s21, 1
      %s396 = scalar_select %p395, %s21, 1
      %p397 = scmp.lt.s32.totalorder %s394, 15
      %s398 = scalar_select %p397, %s394, 15
      %s399 = smul.addr %s398, 3
      %s400 = smul.addr %s396, 48
      %s401 = sadd.s32 %s399, %s400
      %s402 = smul.addr %s401, 4
      %s403 = scalar_lea.vmem %s4, %s402
      %s404 = smul.u32 16, %s22
      %p405 = scmp.lt.s32.totalorder %s21, 1
      %s406 = scalar_select %p405, %s21, 1
      %p407 = scmp.lt.s32.totalorder %s22, 0
      %s408 = scalar_select %p407, %s22, 0
      %s409 = sadd.s32 %s408, %s406
      %s410 = smul.addr %s409, 2
      %s411 = scalar_lea.vmem %s5, %s410
      %v413 = vld [vmem:[%s375] sm:$0xf]
      %v414 = vld [vmem:[%s375 + $0x4] sm:$0xf]
      %v415 = vld [vmem:[%s375 + $0x8] sm:$0x1]
      %v416 = vld [vmem:[%s375 + $0xc] sm:$0xf]
      %v417 = vld [vmem:[%s375 + $0x10] sm:$0xf]
      %v418 = vld [vmem:[%s375 + $0x14] sm:$0x1]
      %v419 = vld [vmem:[%s375 + $0x18] sm:$0xf]
      %v420 = vld [vmem:[%s375 + $0x1c] sm:$0xf]
      %v421 = vld [vmem:[%s375 + $0x20] sm:$0x1]
      %v422 = vld [vmem:[%s375 + $0x24] sm:$0xf]
      %v423 = vld [vmem:[%s375 + $0x28] sm:$0xf]
      %v424 = vld [vmem:[%s375 + $0x2c] sm:$0x1]
      %v425 = vld [vmem:[%s375 + $0x30] sm:$0xf]
      %v426 = vld [vmem:[%s375 + $0x34] sm:$0xf]
      %v427 = vld [vmem:[%s375 + $0x38] sm:$0x1]
      %v428 = vld [vmem:[%s375 + $0x3c] sm:$0xf]
      %v429 = vld [vmem:[%s375 + $0x40] sm:$0xf]
      %v430 = vld [vmem:[%s375 + $0x44] sm:$0x1]
      %v431 = vld [vmem:[%s375 + $0x48] sm:$0xf]
      %v432 = vld [vmem:[%s375 + $0x4c] sm:$0xf]
      %v433 = vld [vmem:[%s375 + $0x50] sm:$0x1]
      %v434 = vld [vmem:[%s375 + $0x54] sm:$0xf]
      %v435 = vld [vmem:[%s375 + $0x58] sm:$0xf]
      %v436 = vld [vmem:[%s375 + $0x5c] sm:$0x1]
      %v437 = vld [vmem:[%s375 + $0x60] sm:$0xf]
      %v438 = vld [vmem:[%s375 + $0x64] sm:$0xf]
      %v439 = vld [vmem:[%s375 + $0x68] sm:$0x1]
      %v440 = vld [vmem:[%s375 + $0x6c] sm:$0xf]
      %v441 = vld [vmem:[%s375 + $0x70] sm:$0xf]
      %v442 = vld [vmem:[%s375 + $0x74] sm:$0x1]
      %v443 = vld [vmem:[%s375 + $0x78] sm:$0xf]
      %v444 = vld [vmem:[%s375 + $0x7c] sm:$0xf]
      %v445 = vld [vmem:[%s375 + $0x80] sm:$0x1]
      %v446 = vld [vmem:[%s375 + $0x84] sm:$0xf]
      %v447 = vld [vmem:[%s375 + $0x88] sm:$0xf]
      %v448 = vld [vmem:[%s375 + $0x8c] sm:$0x1]
      %v449 = vld [vmem:[%s375 + $0x90] sm:$0xf]
      %v450 = vld [vmem:[%s375 + $0x94] sm:$0xf]
      %v451 = vld [vmem:[%s375 + $0x98] sm:$0x1]
      %v452 = vld [vmem:[%s375 + $0x9c] sm:$0xf]
      %v453 = vld [vmem:[%s375 + $0xa0] sm:$0xf]
      %v454 = vld [vmem:[%s375 + $0xa4] sm:$0x1]
      %v455 = vld [vmem:[%s375 + $0xa8] sm:$0xf]
      %v456 = vld [vmem:[%s375 + $0xac] sm:$0xf]
      %v457 = vld [vmem:[%s375 + $0xb0] sm:$0x1]
      %v458 = vld [vmem:[%s375 + $0xb4] sm:$0xf]
      %v459 = vld [vmem:[%s375 + $0xb8] sm:$0xf]
      %v460 = vld [vmem:[%s375 + $0xbc] sm:$0x1]
      %s461 = scalar_lea.vmem [#allocation2], 12
      %462 = vst [vmem:[%s461] sm:$0xf] %v413
      %463 = vst [vmem:[%s461 + $0x4] sm:$0xf] %v414
      %464 = vst [vmem:[%s461 + $0x8] sm:$0x1] %v415
      %465 = vst [vmem:[%s461 + $0xc] sm:$0xf] %v416
      %466 = vst [vmem:[%s461 + $0x10] sm:$0xf] %v417
      %467 = vst [vmem:[%s461 + $0x14] sm:$0x1] %v418
      %468 = vst [vmem:[%s461 + $0x18] sm:$0xf] %v419
      %469 = vst [vmem:[%s461 + $0x1c] sm:$0xf] %v420
      %470 = vst [vmem:[%s461 + $0x20] sm:$0x1] %v421
      %471 = vst [vmem:[%s461 + $0x24] sm:$0xf] %v422
      %472 = vst [vmem:[%s461 + $0x28] sm:$0xf] %v423
      %473 = vst [vmem:[%s461 + $0x2c] sm:$0x1] %v424
      %474 = vst [vmem:[%s461 + $0x30] sm:$0xf] %v425
      %475 = vst [vmem:[%s461 + $0x34] sm:$0xf] %v426
      %476 = vst [vmem:[%s461 + $0x38] sm:$0x1] %v427
      %477 = vst [vmem:[%s461 + $0x3c] sm:$0xf] %v428
      %478 = vst [vmem:[%s461 + $0x40] sm:$0xf] %v429
      %479 = vst [vmem:[%s461 + $0x44] sm:$0x1] %v430
      %480 = vst [vmem:[%s461 + $0x48] sm:$0xf] %v431
      %481 = vst [vmem:[%s461 + $0x4c] sm:$0xf] %v432
      %482 = vst [vmem:[%s461 + $0x50] sm:$0x1] %v433
      %483 = vst [vmem:[%s461 + $0x54] sm:$0xf] %v434
      %484 = vst [vmem:[%s461 + $0x58] sm:$0xf] %v435
      %485 = vst [vmem:[%s461 + $0x5c] sm:$0x1] %v436
      %486 = vst [vmem:[%s461 + $0x60] sm:$0xf] %v437
      %487 = vst [vmem:[%s461 + $0x64] sm:$0xf] %v438
      %488 = vst [vmem:[%s461 + $0x68] sm:$0x1] %v439
      %489 = vst [vmem:[%s461 + $0x6c] sm:$0xf] %v440
      %490 = vst [vmem:[%s461 + $0x70] sm:$0xf] %v441
      %491 = vst [vmem:[%s461 + $0x74] sm:$0x1] %v442
      %492 = vst [vmem:[%s461 + $0x78] sm:$0xf] %v443
      %493 = vst [vmem:[%s461 + $0x7c] sm:$0xf] %v444
      %494 = vst [vmem:[%s461 + $0x80] sm:$0x1] %v445
      %495 = vst [vmem:[%s461 + $0x84] sm:$0xf] %v446
      %496 = vst [vmem:[%s461 + $0x88] sm:$0xf] %v447
      %497 = vst [vmem:[%s461 + $0x8c] sm:$0x1] %v448
      %498 = vst [vmem:[%s461 + $0x90] sm:$0xf] %v449
      %499 = vst [vmem:[%s461 + $0x94] sm:$0xf] %v450
      %500 = vst [vmem:[%s461 + $0x98] sm:$0x1] %v451
      %501 = vst [vmem:[%s461 + $0x9c] sm:$0xf] %v452
      %502 = vst [vmem:[%s461 + $0xa0] sm:$0xf] %v453
      %503 = vst [vmem:[%s461 + $0xa4] sm:$0x1] %v454
      %504 = vst [vmem:[%s461 + $0xa8] sm:$0xf] %v455
      %505 = vst [vmem:[%s461 + $0xac] sm:$0xf] %v456
      %506 = vst [vmem:[%s461 + $0xb0] sm:$0x1] %v457
      %507 = vst [vmem:[%s461 + $0xb4] sm:$0xf] %v458
      %508 = vst [vmem:[%s461 + $0xb8] sm:$0xf] %v459
      %509 = vst [vmem:[%s461 + $0xbc] sm:$0x1] %v460
      %p510 = scmp.gt.s32.totalorder %s22, 0
      // Predicated region
      $region37: #{double_conv.3} parent=35 // pred_check
        %p511 = pneg %p510
      $region38: #{double_conv.3} parent=35 // pred_check_branch
        %513 = sbr.rel (%p511) target = $region40
      $region39: #{double_conv.3} parent=35 // pred_region
        %v514 = vld [vmem:[%s361] sm:$0xf]
        %v515 = vld [vmem:[%s361 + $0x4] sm:$0xf]
        %v516 = vld [vmem:[%s361 + $0x8] sm:$0x1]
        %517 = vst [vmem:[#allocation2] sm:$0xf] %v514
        %518 = vst [vmem:[#allocation2 + $0x4] sm:$0xf] %v515
        %519 = vst [vmem:[#allocation2 + $0x8] sm:$0x1] %v516
      $region40: #{double_conv.3} parent=35 // pred_fallthru
        _
      %p520 = scmp.eq.s32.totalorder %s22, 0
      // Predicated region
      $region41: #{double_conv.3} parent=35 // pred_check
        %p521 = pneg %p520
      $region42: #{double_conv.3} parent=35 // pred_check_branch
        %523 = sbr.rel (%p521) target = $region44
      $region43: #{double_conv.3} parent=35 // pred_region
        %524 = vst [vmem:[#allocation2] sm:$0xf] 0
        %525 = vst [vmem:[#allocation2 + $0x4] sm:$0xf] 0
        %526 = vst [vmem:[#allocation2 + $0x8] sm:$0x1] 0
      $region44: #{double_conv.3} parent=35 // pred_fallthru
        _
      %p527 = scmp.lt.s32.totalorder %s22, 0
      // Predicated region
      $region45: #{double_conv.3} parent=35 // pred_check
        %p528 = pneg %p527
      $region46: #{double_conv.3} parent=35 // pred_check_branch
        %530 = sbr.rel (%p528) target = $region48
      $region47: #{double_conv.3} parent=35 // pred_region
        %v531 = vld [vmem:[%s389] sm:$0xf]
        %v532 = vld [vmem:[%s389 + $0x4] sm:$0xf]
        %v533 = vld [vmem:[%s389 + $0x8] sm:$0x1]
        %s534 = scalar_lea.vmem [#allocation2], 204
        %535 = vst [vmem:[%s534] sm:$0xf] %v531
        %536 = vst [vmem:[%s534 + $0x4] sm:$0xf] %v532
        %537 = vst [vmem:[%s534 + $0x8] sm:$0x1] %v533
      $region48: #{double_conv.3} parent=35 // pred_fallthru
        _
      // Predicated region
      $region49: #{double_conv.3} parent=35 // pred_check
        %p538 = pneg %p520
      $region50: #{double_conv.3} parent=35 // pred_check_branch
        %540 = sbr.rel (%p538) target = $region52
      $region51: #{double_conv.3} parent=35 // pred_region
        %s541 = scalar_lea.vmem [#allocation2], 204
        %542 = vst [vmem:[%s541] sm:$0xf] 0
        %543 = vst [vmem:[%s541 + $0x4] sm:$0xf] 0
        %544 = vst [vmem:[%s541 + $0x8] sm:$0x1] 0
      $region52: #{double_conv.3} parent=35 // pred_fallthru
        _
      %v545 = vld [vmem:[#allocation2] sm:$0xf]
      %v546 = vld [vmem:[#allocation2 + $0x4] sm:$0xf]
      %v547 = vld [vmem:[#allocation2 + $0x8] sm:$0x1]
      %v548 = vld [vmem:[#allocation2 + $0xc] sm:$0xf]
      %v549 = vld [vmem:[#allocation2 + $0x10] sm:$0xf]
      %v550 = vld [vmem:[#allocation2 + $0x14] sm:$0x1]
      %v551 = vld [vmem:[#allocation2 + $0x18] sm:$0xf]
      %v552 = vld [vmem:[#allocation2 + $0x1c] sm:$0xf]
      %v553 = vld [vmem:[#allocation2 + $0x20] sm:$0x1]
      %v554 = vld [vmem:[#allocation2 + $0x24] sm:$0xf]
      %v555 = vld [vmem:[#allocation2 + $0x28] sm:$0xf]
      %v556 = vld [vmem:[#allocation2 + $0x2c] sm:$0x1]
      %v557 = vld [vmem:[#allocation2 + $0x30] sm:$0xf]
      %v558 = vld [vmem:[#allocation2 + $0x34] sm:$0xf]
      %v559 = vld [vmem:[#allocation2 + $0x38] sm:$0x1]
      %v560 = vld [vmem:[#allocation2 + $0x3c] sm:$0xf]
      %v561 = vld [vmem:[#allocation2 + $0x40] sm:$0xf]
      %v562 = vld [vmem:[#allocation2 + $0x44] sm:$0x1]
      %v563 = vld [vmem:[#allocation2 + $0x48] sm:$0xf]
      %v564 = vld [vmem:[#allocation2 + $0x4c] sm:$0xf]
      %v565 = vld [vmem:[#allocation2 + $0x50] sm:$0x1]
      %v566 = vld [vmem:[#allocation2 + $0x54] sm:$0xf]
      %v567 = vld [vmem:[#allocation2 + $0x58] sm:$0xf]
      %v568 = vld [vmem:[#allocation2 + $0x5c] sm:$0x1]
      %v569 = vld [vmem:[#allocation2 + $0x60] sm:$0xf]
      %v570 = vld [vmem:[#allocation2 + $0x64] sm:$0xf]
      %v571 = vld [vmem:[#allocation2 + $0x68] sm:$0x1]
      %v572 = vld [vmem:[#allocation2 + $0x6c] sm:$0xf]
      %v573 = vld [vmem:[#allocation2 + $0x70] sm:$0xf]
      %v574 = vld [vmem:[#allocation2 + $0x74] sm:$0x1]
      %v575 = vld [vmem:[#allocation2 + $0x78] sm:$0xf]
      %v576 = vld [vmem:[#allocation2 + $0x7c] sm:$0xf]
      %v577 = vld [vmem:[#allocation2 + $0x80] sm:$0x1]
      %v578 = vld [vmem:[#allocation2 + $0x84] sm:$0xf]
      %v579 = vld [vmem:[#allocation2 + $0x88] sm:$0xf]
      %v580 = vld [vmem:[#allocation2 + $0x8c] sm:$0x1]
      %v581 = vld [vmem:[#allocation2 + $0x90] sm:$0xf]
      %v582 = vld [vmem:[#allocation2 + $0x94] sm:$0xf]
      %v583 = vld [vmem:[#allocation2 + $0x98] sm:$0x1]
      %v584 = vld [vmem:[#allocation2 + $0x9c] sm:$0xf]
      %v585 = vld [vmem:[#allocation2 + $0xa0] sm:$0xf]
      %v586 = vld [vmem:[#allocation2 + $0xa4] sm:$0x1]
      %v587 = vld [vmem:[#allocation2 + $0xa8] sm:$0xf]
      %v588 = vld [vmem:[#allocation2 + $0xac] sm:$0xf]
      %v589 = vld [vmem:[#allocation2 + $0xb0] sm:$0x1]
      %v590 = vld [vmem:[#allocation2 + $0xb4] sm:$0xf]
      %v591 = vld [vmem:[#allocation2 + $0xb8] sm:$0xf]
      %v592 = vld [vmem:[#allocation2 + $0xbc] sm:$0x1]
      %vm593 = vsmask.f32 3328
      %vm594 = vsmask.f32 7440
      %vm595 = vmor %vm593, %vm594
      %v597 = vshrl.u32 %v545, 16
      %v599 = vrot.slane %v597, 4
      %v600 = vshll.u32 %v545, 16
      %v602 = vrot.slane %v600, 5
      %v603 = vor.u32 %v599, %v602
      %v604 = vrot.slane %v603, 4
      %v606 = vshll.u32 %v546, 16
      %v608 = vrot.slane %v606, 5
      %v609 = vsel %vm595, %v604, %v608
      %v610 = vshrl.u32 %v546, 16
      %v612 = vrot.slane %v610, 4
      %v613 = vor.u32 %v612, %v608
      %v614 = vrot.slane %v613, 4
      %v616 = vshll.u32 %v547, 16
      %v618 = vrot.slane %v616, 5
      %v619 = vsel %vm595, %v614, %v618
      %v621 = vshrl.u32 %v548, 16
      %v623 = vrot.slane %v621, 4
      %v624 = vshll.u32 %v548, 16
      %v626 = vrot.slane %v624, 5
      %v627 = vor.u32 %v623, %v626
      %v628 = vrot.slane %v627, 4
      %v630 = vshll.u32 %v549, 16
      %v632 = vrot.slane %v630, 5
      %v633 = vsel %vm595, %v628, %v632
      %v634 = vshrl.u32 %v549, 16
      %v636 = vrot.slane %v634, 4
      %v637 = vor.u32 %v636, %v632
      %v638 = vrot.slane %v637, 4
      %v640 = vshll.u32 %v550, 16
      %v642 = vrot.slane %v640, 5
      %v643 = vsel %vm595, %v638, %v642
      %v645 = vshrl.u32 %v551, 16
      %v647 = vrot.slane %v645, 4
      %v648 = vshll.u32 %v551, 16
      %v650 = vrot.slane %v648, 5
      %v651 = vor.u32 %v647, %v650
      %v652 = vrot.slane %v651, 4
      %v654 = vshll.u32 %v552, 16
      %v656 = vrot.slane %v654, 5
      %v657 = vsel %vm595, %v652, %v656
      %v658 = vshrl.u32 %v552, 16
      %v660 = vrot.slane %v658, 4
      %v661 = vor.u32 %v660, %v656
      %v662 = vrot.slane %v661, 4
      %v664 = vshll.u32 %v553, 16
      %v666 = vrot.slane %v664, 5
      %v667 = vsel %vm595, %v662, %v666
      %v669 = vshrl.u32 %v554, 16
      %v671 = vrot.slane %v669, 4
      %v672 = vshll.u32 %v554, 16
      %v674 = vrot.slane %v672, 5
      %v675 = vor.u32 %v671, %v674
      %v676 = vrot.slane %v675, 4
      %v678 = vshll.u32 %v555, 16
      %v680 = vrot.slane %v678, 5
      %v681 = vsel %vm595, %v676, %v680
      %v682 = vshrl.u32 %v555, 16
      %v684 = vrot.slane %v682, 4
      %v685 = vor.u32 %v684, %v680
      %v686 = vrot.slane %v685, 4
      %v688 = vshll.u32 %v556, 16
      %v690 = vrot.slane %v688, 5
      %v691 = vsel %vm595, %v686, %v690
      %v693 = vshrl.u32 %v557, 16
      %v695 = vrot.slane %v693, 4
      %v696 = vshll.u32 %v557, 16
      %v698 = vrot.slane %v696, 5
      %v699 = vor.u32 %v695, %v698
      %v700 = vrot.slane %v699, 4
      %v702 = vshll.u32 %v558, 16
      %v704 = vrot.slane %v702, 5
      %v705 = vsel %vm595, %v700, %v704
      %v706 = vshrl.u32 %v558, 16
      %v708 = vrot.slane %v706, 4
      %v709 = vor.u32 %v708, %v704
      %v710 = vrot.slane %v709, 4
      %v712 = vshll.u32 %v559, 16
      %v714 = vrot.slane %v712, 5
      %v715 = vsel %vm595, %v710, %v714
      %v717 = vshrl.u32 %v560, 16
      %v719 = vrot.slane %v717, 4
      %v720 = vshll.u32 %v560, 16
      %v722 = vrot.slane %v720, 5
      %v723 = vor.u32 %v719, %v722
      %v724 = vrot.slane %v723, 4
      %v726 = vshll.u32 %v561, 16
      %v728 = vrot.slane %v726, 5
      %v729 = vsel %vm595, %v724, %v728
      %v730 = vshrl.u32 %v561, 16
      %v732 = vrot.slane %v730, 4
      %v733 = vor.u32 %v732, %v728
      %v734 = vrot.slane %v733, 4
      %v736 = vshll.u32 %v562, 16
      %v738 = vrot.slane %v736, 5
      %v739 = vsel %vm595, %v734, %v738
      %v741 = vshrl.u32 %v563, 16
      %v743 = vrot.slane %v741, 4
      %v744 = vshll.u32 %v563, 16
      %v746 = vrot.slane %v744, 5
      %v747 = vor.u32 %v743, %v746
      %v748 = vrot.slane %v747, 4
      %v750 = vshll.u32 %v564, 16
      %v752 = vrot.slane %v750, 5
      %v753 = vsel %vm595, %v748, %v752
      %v754 = vshrl.u32 %v564, 16
      %v756 = vrot.slane %v754, 4
      %v757 = vor.u32 %v756, %v752
      %v758 = vrot.slane %v757, 4
      %v760 = vshll.u32 %v565, 16
      %v762 = vrot.slane %v760, 5
      %v763 = vsel %vm595, %v758, %v762
      %v765 = vshrl.u32 %v566, 16
      %v767 = vrot.slane %v765, 4
      %v768 = vshll.u32 %v566, 16
      %v770 = vrot.slane %v768, 5
      %v771 = vor.u32 %v767, %v770
      %v772 = vrot.slane %v771, 4
      %v774 = vshll.u32 %v567, 16
      %v776 = vrot.slane %v774, 5
      %v777 = vsel %vm595, %v772, %v776
      %v778 = vshrl.u32 %v567, 16
      %v780 = vrot.slane %v778, 4
      %v781 = vor.u32 %v780, %v776
      %v782 = vrot.slane %v781, 4
      %v784 = vshll.u32 %v568, 16
      %v786 = vrot.slane %v784, 5
      %v787 = vsel %vm595, %v782, %v786
      %v789 = vshrl.u32 %v569, 16
      %v791 = vrot.slane %v789, 4
      %v792 = vshll.u32 %v569, 16
      %v794 = vrot.slane %v792, 5
      %v795 = vor.u32 %v791, %v794
      %v796 = vrot.slane %v795, 4
      %v798 = vshll.u32 %v570, 16
      %v800 = vrot.slane %v798, 5
      %v801 = vsel %vm595, %v796, %v800
      %v802 = vshrl.u32 %v570, 16
      %v804 = vrot.slane %v802, 4
      %v805 = vor.u32 %v804, %v800
      %v806 = vrot.slane %v805, 4
      %v808 = vshll.u32 %v571, 16
      %v810 = vrot.slane %v808, 5
      %v811 = vsel %vm595, %v806, %v810
      %v813 = vshrl.u32 %v572, 16
      %v815 = vrot.slane %v813, 4
      %v816 = vshll.u32 %v572, 16
      %v818 = vrot.slane %v816, 5
      %v819 = vor.u32 %v815, %v818
      %v820 = vrot.slane %v819, 4
      %v822 = vshll.u32 %v573, 16
      %v824 = vrot.slane %v822, 5
      %v825 = vsel %vm595, %v820, %v824
      %v826 = vshrl.u32 %v573, 16
      %v828 = vrot.slane %v826, 4
      %v829 = vor.u32 %v828, %v824
      %v830 = vrot.slane %v829, 4
      %v832 = vshll.u32 %v574, 16
      %v834 = vrot.slane %v832, 5
      %v835 = vsel %vm595, %v830, %v834
      %v837 = vshrl.u32 %v575, 16
      %v839 = vrot.slane %v837, 4
      %v840 = vshll.u32 %v575, 16
      %v842 = vrot.slane %v840, 5
      %v843 = vor.u32 %v839, %v842
      %v844 = vrot.slane %v843, 4
      %v846 = vshll.u32 %v576, 16
      %v848 = vrot.slane %v846, 5
      %v849 = vsel %vm595, %v844, %v848
      %v850 = vshrl.u32 %v576, 16
      %v852 = vrot.slane %v850, 4
      %v853 = vor.u32 %v852, %v848
      %v854 = vrot.slane %v853, 4
      %v856 = vshll.u32 %v577, 16
      %v858 = vrot.slane %v856, 5
      %v859 = vsel %vm595, %v854, %v858
      %v861 = vshrl.u32 %v578, 16
      %v863 = vrot.slane %v861, 4
      %v864 = vshll.u32 %v578, 16
      %v866 = vrot.slane %v864, 5
      %v867 = vor.u32 %v863, %v866
      %v868 = vrot.slane %v867, 4
      %v870 = vshll.u32 %v579, 16
      %v872 = vrot.slane %v870, 5
      %v873 = vsel %vm595, %v868, %v872
      %v874 = vshrl.u32 %v579, 16
      %v876 = vrot.slane %v874, 4
      %v877 = vor.u32 %v876, %v872
      %v878 = vrot.slane %v877, 4
      %v880 = vshll.u32 %v580, 16
      %v882 = vrot.slane %v880, 5
      %v883 = vsel %vm595, %v878, %v882
      %v885 = vshrl.u32 %v581, 16
      %v887 = vrot.slane %v885, 4
      %v888 = vshll.u32 %v581, 16
      %v890 = vrot.slane %v888, 5
      %v891 = vor.u32 %v887, %v890
      %v892 = vrot.slane %v891, 4
      %v894 = vshll.u32 %v582, 16
      %v896 = vrot.slane %v894, 5
      %v897 = vsel %vm595, %v892, %v896
      %v898 = vshrl.u32 %v582, 16
      %v900 = vrot.slane %v898, 4
      %v901 = vor.u32 %v900, %v896
      %v902 = vrot.slane %v901, 4
      %v904 = vshll.u32 %v583, 16
      %v906 = vrot.slane %v904, 5
      %v907 = vsel %vm595, %v902, %v906
      %v909 = vshrl.u32 %v584, 16
      %v911 = vrot.slane %v909, 4
      %v912 = vshll.u32 %v584, 16
      %v914 = vrot.slane %v912, 5
      %v915 = vor.u32 %v911, %v914
      %v916 = vrot.slane %v915, 4
      %v918 = vshll.u32 %v585, 16
      %v920 = vrot.slane %v918, 5
      %v921 = vsel %vm595, %v916, %v920
      %v922 = vshrl.u32 %v585, 16
      %v924 = vrot.slane %v922, 4
      %v925 = vor.u32 %v924, %v920
      %v926 = vrot.slane %v925, 4
      %v928 = vshll.u32 %v586, 16
      %v930 = vrot.slane %v928, 5
      %v931 = vsel %vm595, %v926, %v930
      %v933 = vshrl.u32 %v587, 16
      %v935 = vrot.slane %v933, 4
      %v936 = vshll.u32 %v587, 16
      %v938 = vrot.slane %v936, 5
      %v939 = vor.u32 %v935, %v938
      %v940 = vrot.slane %v939, 4
      %v942 = vshll.u32 %v588, 16
      %v944 = vrot.slane %v942, 5
      %v945 = vsel %vm595, %v940, %v944
      %v946 = vshrl.u32 %v588, 16
      %v948 = vrot.slane %v946, 4
      %v949 = vor.u32 %v948, %v944
      %v950 = vrot.slane %v949, 4
      %v952 = vshll.u32 %v589, 16
      %v954 = vrot.slane %v952, 5
      %v955 = vsel %vm595, %v950, %v954
      %v957 = vshrl.u32 %v590, 16
      %v959 = vrot.slane %v957, 4
      %v960 = vshll.u32 %v590, 16
      %v962 = vrot.slane %v960, 5
      %v963 = vor.u32 %v959, %v962
      %v964 = vrot.slane %v963, 4
      %v966 = vshll.u32 %v591, 16
      %v968 = vrot.slane %v966, 5
      %v969 = vsel %vm595, %v964, %v968
      %v970 = vshrl.u32 %v591, 16
      %v972 = vrot.slane %v970, 4
      %v973 = vor.u32 %v972, %v968
      %v974 = vrot.slane %v973, 4
      %v976 = vshll.u32 %v592, 16
      %v978 = vrot.slane %v976, 5
      %v979 = vsel %vm595, %v974, %v978
      %vm1028 = vcmask 1042432
      %vm1029 = vcmask 1046532
      %vm1030 = vmor %vm1028, %vm1029
      %v1031 = vrot.slane %v545, 5
      %v1032 = vrot.slane %v1031, 4
      %v1033 = vrot.slane %v546, 5
      %v1034 = vsel %vm1030, %v1032, %v1033
      %v1035 = vrot.slane %v1033, 4
      %v1036 = vrot.slane %v547, 5
      %v1037 = vsel %vm1030, %v1035, %v1036
      %v1038 = vrot.slane %v548, 5
      %v1039 = vrot.slane %v1038, 4
      %v1040 = vrot.slane %v549, 5
      %v1041 = vsel %vm1030, %v1039, %v1040
      %v1042 = vrot.slane %v1040, 4
      %v1043 = vrot.slane %v550, 5
      %v1044 = vsel %vm1030, %v1042, %v1043
      %v1045 = vrot.slane %v551, 5
      %v1046 = vrot.slane %v1045, 4
      %v1047 = vrot.slane %v552, 5
      %v1048 = vsel %vm1030, %v1046, %v1047
      %v1049 = vrot.slane %v1047, 4
      %v1050 = vrot.slane %v553, 5
      %v1051 = vsel %vm1030, %v1049, %v1050
      %v1052 = vrot.slane %v554, 5
      %v1053 = vrot.slane %v1052, 4
      %v1054 = vrot.slane %v555, 5
      %v1055 = vsel %vm1030, %v1053, %v1054
      %v1056 = vrot.slane %v1054, 4
      %v1057 = vrot.slane %v556, 5
      %v1058 = vsel %vm1030, %v1056, %v1057
      %v1059 = vrot.slane %v557, 5
      %v1060 = vrot.slane %v1059, 4
      %v1061 = vrot.slane %v558, 5
      %v1062 = vsel %vm1030, %v1060, %v1061
      %v1063 = vrot.slane %v1061, 4
      %v1064 = vrot.slane %v559, 5
      %v1065 = vsel %vm1030, %v1063, %v1064
      %v1066 = vrot.slane %v560, 5
      %v1067 = vrot.slane %v1066, 4
      %v1068 = vrot.slane %v561, 5
      %v1069 = vsel %vm1030, %v1067, %v1068
      %v1070 = vrot.slane %v1068, 4
      %v1071 = vrot.slane %v562, 5
      %v1072 = vsel %vm1030, %v1070, %v1071
      %v1073 = vrot.slane %v563, 5
      %v1074 = vrot.slane %v1073, 4
      %v1075 = vrot.slane %v564, 5
      %v1076 = vsel %vm1030, %v1074, %v1075
      %v1077 = vrot.slane %v1075, 4
      %v1078 = vrot.slane %v565, 5
      %v1079 = vsel %vm1030, %v1077, %v1078
      %v1080 = vrot.slane %v566, 5
      %v1081 = vrot.slane %v1080, 4
      %v1082 = vrot.slane %v567, 5
      %v1083 = vsel %vm1030, %v1081, %v1082
      %v1084 = vrot.slane %v1082, 4
      %v1085 = vrot.slane %v568, 5
      %v1086 = vsel %vm1030, %v1084, %v1085
      %v1087 = vrot.slane %v569, 5
      %v1088 = vrot.slane %v1087, 4
      %v1089 = vrot.slane %v570, 5
      %v1090 = vsel %vm1030, %v1088, %v1089
      %v1091 = vrot.slane %v1089, 4
      %v1092 = vrot.slane %v571, 5
      %v1093 = vsel %vm1030, %v1091, %v1092
      %v1094 = vrot.slane %v572, 5
      %v1095 = vrot.slane %v1094, 4
      %v1096 = vrot.slane %v573, 5
      %v1097 = vsel %vm1030, %v1095, %v1096
      %v1098 = vrot.slane %v1096, 4
      %v1099 = vrot.slane %v574, 5
      %v1100 = vsel %vm1030, %v1098, %v1099
      %v1101 = vrot.slane %v575, 5
      %v1102 = vrot.slane %v1101, 4
      %v1103 = vrot.slane %v576, 5
      %v1104 = vsel %vm1030, %v1102, %v1103
      %v1105 = vrot.slane %v1103, 4
      %v1106 = vrot.slane %v577, 5
      %v1107 = vsel %vm1030, %v1105, %v1106
      %v1108 = vrot.slane %v578, 5
      %v1109 = vrot.slane %v1108, 4
      %v1110 = vrot.slane %v579, 5
      %v1111 = vsel %vm1030, %v1109, %v1110
      %v1112 = vrot.slane %v1110, 4
      %v1113 = vrot.slane %v580, 5
      %v1114 = vsel %vm1030, %v1112, %v1113
      %v1115 = vrot.slane %v581, 5
      %v1116 = vrot.slane %v1115, 4
      %v1117 = vrot.slane %v582, 5
      %v1118 = vsel %vm1030, %v1116, %v1117
      %v1119 = vrot.slane %v1117, 4
      %v1120 = vrot.slane %v583, 5
      %v1121 = vsel %vm1030, %v1119, %v1120
      %v1122 = vrot.slane %v584, 5
      %v1123 = vrot.slane %v1122, 4
      %v1124 = vrot.slane %v585, 5
      %v1125 = vsel %vm1030, %v1123, %v1124
      %v1126 = vrot.slane %v1124, 4
      %v1127 = vrot.slane %v586, 5
      %v1128 = vsel %vm1030, %v1126, %v1127
      %v1129 = vrot.slane %v587, 5
      %v1130 = vrot.slane %v1129, 4
      %v1131 = vrot.slane %v588, 5
      %v1132 = vsel %vm1030, %v1130, %v1131
      %v1133 = vrot.slane %v1131, 4
      %v1134 = vrot.slane %v589, 5
      %v1135 = vsel %vm1030, %v1133, %v1134
      %v1136 = vrot.slane %v590, 5
      %v1137 = vrot.slane %v1136, 4
      %v1138 = vrot.slane %v591, 5
      %v1139 = vsel %vm1030, %v1137, %v1138
      %v1140 = vrot.slane %v1138, 4
      %v1141 = vrot.slane %v592, 5
      %v1142 = vsel %vm1030, %v1140, %v1141
      %v1143 = vunpack.c.l.b16 %v545
      %v1144 = vunpack.c.l.b16 %v546
      %v1145 = vunpack.c.l.b16 %v548
      %v1146 = vunpack.c.l.b16 %v549
      %v1147 = vunpack.c.l.b16 %v551
      %v1148 = vunpack.c.l.b16 %v552
      %v1149 = vunpack.c.l.b16 %v554
      %v1150 = vunpack.c.l.b16 %v555
      %v1151 = vunpack.c.l.b16 %v557
      %v1152 = vunpack.c.l.b16 %v558
      %v1153 = vunpack.c.l.b16 %v560
      %v1154 = vunpack.c.l.b16 %v561
      %v1155 = vunpack.c.l.b16 %v563
      %v1156 = vunpack.c.l.b16 %v564
      %v1157 = vunpack.c.l.b16 %v566
      %v1158 = vunpack.c.l.b16 %v567
      %v1159 = vunpack.c.l.b16 %v569
      %v1160 = vunpack.c.l.b16 %v570
      %v1161 = vunpack.c.l.b16 %v572
      %v1162 = vunpack.c.l.b16 %v573
      %v1163 = vunpack.c.l.b16 %v575
      %v1164 = vunpack.c.l.b16 %v576
      %v1165 = vunpack.c.l.b16 %v578
      %v1166 = vunpack.c.l.b16 %v579
      %v1167 = vunpack.c.l.b16 %v581
      %v1168 = vunpack.c.l.b16 %v582
      %v1169 = vunpack.c.l.b16 %v584
      %v1170 = vunpack.c.l.b16 %v585
      %v1171 = vunpack.c.l.b16 %v587
      %v1172 = vunpack.c.l.b16 %v588
      %v1173 = vunpack.c.l.b16 %v590
      %v1174 = vunpack.c.l.b16 %v591
      %v1175 = vpack.c.b16 %v1144, %v1143
      %v1176 = vpack.c.b16 %v1146, %v1145
      %v1177 = vpack.c.b16 %v1148, %v1147
      %v1178 = vpack.c.b16 %v1150, %v1149
      %v1179 = vpack.c.b16 %v1152, %v1151
      %v1180 = vpack.c.b16 %v1154, %v1153
      %v1181 = vpack.c.b16 %v1156, %v1155
      %v1182 = vpack.c.b16 %v1158, %v1157
      %v1183 = vpack.c.b16 %v1160, %v1159
      %v1184 = vpack.c.b16 %v1162, %v1161
      %v1185 = vpack.c.b16 %v1164, %v1163
      %v1186 = vpack.c.b16 %v1166, %v1165
      %v1187 = vpack.c.b16 %v1168, %v1167
      %v1188 = vpack.c.b16 %v1170, %v1169
      %v1189 = vpack.c.b16 %v1172, %v1171
      %v1190 = vpack.c.b16 %v1174, %v1173
      %v1207 = vunpack.c.l.b16 %v609
      %v1208 = vunpack.c.l.b16 %v619
      %v1209 = vunpack.c.l.b16 %v633
      %v1210 = vunpack.c.l.b16 %v643
      %v1211 = vunpack.c.l.b16 %v657
      %v1212 = vunpack.c.l.b16 %v667
      %v1213 = vunpack.c.l.b16 %v681
      %v1214 = vunpack.c.l.b16 %v691
      %v1215 = vunpack.c.l.b16 %v705
      %v1216 = vunpack.c.l.b16 %v715
      %v1217 = vunpack.c.l.b16 %v729
      %v1218 = vunpack.c.l.b16 %v739
      %v1219 = vunpack.c.l.b16 %v753
      %v1220 = vunpack.c.l.b16 %v763
      %v1221 = vunpack.c.l.b16 %v777
      %v1222 = vunpack.c.l.b16 %v787
      %v1223 = vunpack.c.l.b16 %v801
      %v1224 = vunpack.c.l.b16 %v811
      %v1225 = vunpack.c.l.b16 %v825
      %v1226 = vunpack.c.l.b16 %v835
      %v1227 = vunpack.c.l.b16 %v849
      %v1228 = vunpack.c.l.b16 %v859
      %v1229 = vunpack.c.l.b16 %v873
      %v1230 = vunpack.c.l.b16 %v883
      %v1231 = vunpack.c.l.b16 %v897
      %v1232 = vunpack.c.l.b16 %v907
      %v1233 = vunpack.c.l.b16 %v921
      %v1234 = vunpack.c.l.b16 %v931
      %v1235 = vunpack.c.l.b16 %v945
      %v1236 = vunpack.c.l.b16 %v955
      %v1237 = vunpack.c.l.b16 %v969
      %v1238 = vunpack.c.l.b16 %v979
      %v1239 = vpack.c.b16 %v1208, %v1207
      %v1240 = vpack.c.b16 %v1210, %v1209
      %v1241 = vpack.c.b16 %v1212, %v1211
      %v1242 = vpack.c.b16 %v1214, %v1213
      %v1243 = vpack.c.b16 %v1216, %v1215
      %v1244 = vpack.c.b16 %v1218, %v1217
      %v1245 = vpack.c.b16 %v1220, %v1219
      %v1246 = vpack.c.b16 %v1222, %v1221
      %v1247 = vpack.c.b16 %v1224, %v1223
      %v1248 = vpack.c.b16 %v1226, %v1225
      %v1249 = vpack.c.b16 %v1228, %v1227
      %v1250 = vpack.c.b16 %v1230, %v1229
      %v1251 = vpack.c.b16 %v1232, %v1231
      %v1252 = vpack.c.b16 %v1234, %v1233
      %v1253 = vpack.c.b16 %v1236, %v1235
      %v1254 = vpack.c.b16 %v1238, %v1237
      %v1271 = vunpack.c.l.b16 %v1034
      %v1272 = vunpack.c.l.b16 %v1037
      %v1273 = vunpack.c.l.b16 %v1041
      %v1274 = vunpack.c.l.b16 %v1044
      %v1275 = vunpack.c.l.b16 %v1048
      %v1276 = vunpack.c.l.b16 %v1051
      %v1277 = vunpack.c.l.b16 %v1055
      %v1278 = vunpack.c.l.b16 %v1058
      %v1279 = vunpack.c.l.b16 %v1062
      %v1280 = vunpack.c.l.b16 %v1065
      %v1281 = vunpack.c.l.b16 %v1069
      %v1282 = vunpack.c.l.b16 %v1072
      %v1283 = vunpack.c.l.b16 %v1076
      %v1284 = vunpack.c.l.b16 %v1079
      %v1285 = vunpack.c.l.b16 %v1083
      %v1286 = vunpack.c.l.b16 %v1086
      %v1287 = vunpack.c.l.b16 %v1090
      %v1288 = vunpack.c.l.b16 %v1093
      %v1289 = vunpack.c.l.b16 %v1097
      %v1290 = vunpack.c.l.b16 %v1100
      %v1291 = vunpack.c.l.b16 %v1104
      %v1292 = vunpack.c.l.b16 %v1107
      %v1293 = vunpack.c.l.b16 %v1111
      %v1294 = vunpack.c.l.b16 %v1114
      %v1295 = vunpack.c.l.b16 %v1118
      %v1296 = vunpack.c.l.b16 %v1121
      %v1297 = vunpack.c.l.b16 %v1125
      %v1298 = vunpack.c.l.b16 %v1128
      %v1299 = vunpack.c.l.b16 %v1132
      %v1300 = vunpack.c.l.b16 %v1135
      %v1301 = vunpack.c.l.b16 %v1139
      %v1302 = vunpack.c.l.b16 %v1142
      %v1303 = vpack.c.b16 %v1272, %v1271
      %v1304 = vpack.c.b16 %v1274, %v1273
      %v1305 = vpack.c.b16 %v1276, %v1275
      %v1306 = vpack.c.b16 %v1278, %v1277
      %v1307 = vpack.c.b16 %v1280, %v1279
      %v1308 = vpack.c.b16 %v1282, %v1281
      %v1309 = vpack.c.b16 %v1284, %v1283
      %v1310 = vpack.c.b16 %v1286, %v1285
      %v1311 = vpack.c.b16 %v1288, %v1287
      %v1312 = vpack.c.b16 %v1290, %v1289
      %v1313 = vpack.c.b16 %v1292, %v1291
      %v1314 = vpack.c.b16 %v1294, %v1293
      %v1315 = vpack.c.b16 %v1296, %v1295
      %v1316 = vpack.c.b16 %v1298, %v1297
      %v1317 = vpack.c.b16 %v1300, %v1299
      %v1318 = vpack.c.b16 %v1302, %v1301
      %v1335 = vld [vmem:[%s3] sm:$0xf]
      %v1336 = vld [vmem:[%s3 + $0x4] sm:$0xf]
      %v1337 = vld [vmem:[%s3 + $0x8] sm:$0xf]
      %v1338 = vld [vmem:[%s3 + $0xc] sm:$0xf]
      %v1339 = vld [vmem:[%s3 + $0x10] sm:$0xf]
      %v1340 = vld [vmem:[%s3 + $0x14] sm:$0xf]
      %v1341 = vld [vmem:[%s3 + $0x18] sm:$0xf]
      %v1342 = vld [vmem:[%s3 + $0x1c] sm:$0xf]
      %v1343 = vld [vmem:[%s3 + $0x20] sm:$0xf]
      %v1344 = vld [vmem:[%s3 + $0x24] sm:$0xf]
      %v1345 = vld [vmem:[%s3 + $0x28] sm:$0xf]
      %v1346 = vld [vmem:[%s3 + $0x2c] sm:$0xf]
      %v1347 = vld [vmem:[%s3 + $0x30] sm:$0xf]
      %v1348 = vld [vmem:[%s3 + $0x34] sm:$0xf]
      %v1349 = vld [vmem:[%s3 + $0x38] sm:$0xf]
      %v1350 = vld [vmem:[%s3 + $0x3c] sm:$0xf]
      %v1351 = vld [vmem:[%s3 + $0x40] sm:$0xf]
      %v1352 = vld [vmem:[%s3 + $0x44] sm:$0xf]
      %v1353 = vld [vmem:[%s3 + $0x48] sm:$0xf]
      %v1354 = vld [vmem:[%s3 + $0x4c] sm:$0xf]
      %v1355 = vld [vmem:[%s3 + $0x50] sm:$0xf]
      %v1356 = vld [vmem:[%s3 + $0x54] sm:$0xf]
      %v1357 = vld [vmem:[%s3 + $0x58] sm:$0xf]
      %v1358 = vld [vmem:[%s3 + $0x5c] sm:$0xf]
      %v1359 = vld [vmem:[%s3 + $0x60] sm:$0xf]
      %v1360 = vld [vmem:[%s3 + $0x64] sm:$0xf]
      %v1361 = vld [vmem:[%s3 + $0x68] sm:$0xf]
      %v1362 = vld [vmem:[%s3 + $0x6c] sm:$0xf]
      %v1363 = vld [vmem:[%s3 + $0x70] sm:$0xf]
      %v1364 = vld [vmem:[%s3 + $0x74] sm:$0xf]
      %v1365 = vld [vmem:[%s3 + $0x78] sm:$0xf]
      %v1366 = vld [vmem:[%s3 + $0x7c] sm:$0xf]
      %v1367 = vld [vmem:[%s3 + $0x80] sm:$0xf]
      %v1368 = vld [vmem:[%s3 + $0x84] sm:$0xf]
      %v1369 = vld [vmem:[%s3 + $0x88] sm:$0xf]
      %v1370 = vld [vmem:[%s3 + $0x8c] sm:$0xf]
      %v1371 = vld [vmem:[%s3 + $0x90] sm:$0xf]
      %v1372 = vld [vmem:[%s3 + $0x94] sm:$0xf]
      %v1373 = vld [vmem:[%s3 + $0x98] sm:$0xf]
      %v1374 = vld [vmem:[%s3 + $0x9c] sm:$0xf]
      %v1375 = vld [vmem:[%s3 + $0xa0] sm:$0xf]
      %v1376 = vld [vmem:[%s3 + $0xa4] sm:$0xf]
      %v1377 = vld [vmem:[%s3 + $0xa8] sm:$0xf]
      %v1378 = vld [vmem:[%s3 + $0xac] sm:$0xf]
      %v1379 = vld [vmem:[%s3 + $0xb0] sm:$0xf]
      %v1380 = vld [vmem:[%s3 + $0xb4] sm:$0xf]
      %v1381 = vld [vmem:[%s3 + $0xb8] sm:$0xf]
      %v1382 = vld [vmem:[%s3 + $0xbc] sm:$0xf]
      %v1383 = vld [vmem:[%s461] sm:$0xf]
      %v1384 = vld [vmem:[%s461 + $0x4] sm:$0xf]
      %v1385 = vld [vmem:[%s461 + $0x8] sm:$0x1]
      %v1386 = vld [vmem:[%s461 + $0xc] sm:$0xf]
      %v1387 = vld [vmem:[%s461 + $0x10] sm:$0xf]
      %v1388 = vld [vmem:[%s461 + $0x14] sm:$0x1]
      %v1389 = vld [vmem:[%s461 + $0x18] sm:$0xf]
      %v1390 = vld [vmem:[%s461 + $0x1c] sm:$0xf]
      %v1391 = vld [vmem:[%s461 + $0x20] sm:$0x1]
      %v1392 = vld [vmem:[%s461 + $0x24] sm:$0xf]
      %v1393 = vld [vmem:[%s461 + $0x28] sm:$0xf]
      %v1394 = vld [vmem:[%s461 + $0x2c] sm:$0x1]
      %v1395 = vld [vmem:[%s461 + $0x30] sm:$0xf]
      %v1396 = vld [vmem:[%s461 + $0x34] sm:$0xf]
      %v1397 = vld [vmem:[%s461 + $0x38] sm:$0x1]
      %v1398 = vld [vmem:[%s461 + $0x3c] sm:$0xf]
      %v1399 = vld [vmem:[%s461 + $0x40] sm:$0xf]
      %v1400 = vld [vmem:[%s461 + $0x44] sm:$0x1]
      %v1401 = vld [vmem:[%s461 + $0x48] sm:$0xf]
      %v1402 = vld [vmem:[%s461 + $0x4c] sm:$0xf]
      %v1403 = vld [vmem:[%s461 + $0x50] sm:$0x1]
      %v1404 = vld [vmem:[%s461 + $0x54] sm:$0xf]
      %v1405 = vld [vmem:[%s461 + $0x58] sm:$0xf]
      %v1406 = vld [vmem:[%s461 + $0x5c] sm:$0x1]
      %v1407 = vld [vmem:[%s461 + $0x60] sm:$0xf]
      %v1408 = vld [vmem:[%s461 + $0x64] sm:$0xf]
      %v1409 = vld [vmem:[%s461 + $0x68] sm:$0x1]
      %v1410 = vld [vmem:[%s461 + $0x6c] sm:$0xf]
      %v1411 = vld [vmem:[%s461 + $0x70] sm:$0xf]
      %v1412 = vld [vmem:[%s461 + $0x74] sm:$0x1]
      %v1413 = vld [vmem:[%s461 + $0x78] sm:$0xf]
      %v1414 = vld [vmem:[%s461 + $0x7c] sm:$0xf]
      %v1415 = vld [vmem:[%s461 + $0x80] sm:$0x1]
      %v1416 = vld [vmem:[%s461 + $0x84] sm:$0xf]
      %v1417 = vld [vmem:[%s461 + $0x88] sm:$0xf]
      %v1418 = vld [vmem:[%s461 + $0x8c] sm:$0x1]
      %v1419 = vld [vmem:[%s461 + $0x90] sm:$0xf]
      %v1420 = vld [vmem:[%s461 + $0x94] sm:$0xf]
      %v1421 = vld [vmem:[%s461 + $0x98] sm:$0x1]
      %v1422 = vld [vmem:[%s461 + $0x9c] sm:$0xf]
      %v1423 = vld [vmem:[%s461 + $0xa0] sm:$0xf]
      %v1424 = vld [vmem:[%s461 + $0xa4] sm:$0x1]
      %v1425 = vld [vmem:[%s461 + $0xa8] sm:$0xf]
      %v1426 = vld [vmem:[%s461 + $0xac] sm:$0xf]
      %v1427 = vld [vmem:[%s461 + $0xb0] sm:$0x1]
      %v1428 = vld [vmem:[%s461 + $0xb4] sm:$0xf]
      %v1429 = vld [vmem:[%s461 + $0xb8] sm:$0xf]
      %v1430 = vld [vmem:[%s461 + $0xbc] sm:$0x1]
      %v1432 = vshrl.u32 %v1383, 16
      %v1434 = vrot.slane %v1432, 4
      %v1435 = vshll.u32 %v1383, 16
      %v1437 = vrot.slane %v1435, 5
      %v1438 = vor.u32 %v1434, %v1437
      %v1439 = vrot.slane %v1438, 4
      %v1441 = vshll.u32 %v1384, 16
      %v1443 = vrot.slane %v1441, 5
      %v1444 = vsel %vm595, %v1439, %v1443
      %v1445 = vshrl.u32 %v1384, 16
      %v1447 = vrot.slane %v1445, 4
      %v1448 = vor.u32 %v1447, %v1443
      %v1449 = vrot.slane %v1448, 4
      %v1451 = vshll.u32 %v1385, 16
      %v1453 = vrot.slane %v1451, 5
      %v1454 = vsel %vm595, %v1449, %v1453
      %v1456 = vshrl.u32 %v1386, 16
      %v1458 = vrot.slane %v1456, 4
      %v1459 = vshll.u32 %v1386, 16
      %v1461 = vrot.slane %v1459, 5
      %v1462 = vor.u32 %v1458, %v1461
      %v1463 = vrot.slane %v1462, 4
      %v1465 = vshll.u32 %v1387, 16
      %v1467 = vrot.slane %v1465, 5
      %v1468 = vsel %vm595, %v1463, %v1467
      %v1469 = vshrl.u32 %v1387, 16
      %v1471 = vrot.slane %v1469, 4
      %v1472 = vor.u32 %v1471, %v1467
      %v1473 = vrot.slane %v1472, 4
      %v1475 = vshll.u32 %v1388, 16
      %v1477 = vrot.slane %v1475, 5
      %v1478 = vsel %vm595, %v1473, %v1477
      %v1480 = vshrl.u32 %v1389, 16
      %v1482 = vrot.slane %v1480, 4
      %v1483 = vshll.u32 %v1389, 16
      %v1485 = vrot.slane %v1483, 5
      %v1486 = vor.u32 %v1482, %v1485
      %v1487 = vrot.slane %v1486, 4
      %v1489 = vshll.u32 %v1390, 16
      %v1491 = vrot.slane %v1489, 5
      %v1492 = vsel %vm595, %v1487, %v1491
      %v1493 = vshrl.u32 %v1390, 16
      %v1495 = vrot.slane %v1493, 4
      %v1496 = vor.u32 %v1495, %v1491
      %v1497 = vrot.slane %v1496, 4
      %v1499 = vshll.u32 %v1391, 16
      %v1501 = vrot.slane %v1499, 5
      %v1502 = vsel %vm595, %v1497, %v1501
      %v1504 = vshrl.u32 %v1392, 16
      %v1506 = vrot.slane %v1504, 4
      %v1507 = vshll.u32 %v1392, 16
      %v1509 = vrot.slane %v1507, 5
      %v1510 = vor.u32 %v1506, %v1509
      %v1511 = vrot.slane %v1510, 4
      %v1513 = vshll.u32 %v1393, 16
      %v1515 = vrot.slane %v1513, 5
      %v1516 = vsel %vm595, %v1511, %v1515
      %v1517 = vshrl.u32 %v1393, 16
      %v1519 = vrot.slane %v1517, 4
      %v1520 = vor.u32 %v1519, %v1515
      %v1521 = vrot.slane %v1520, 4
      %v1523 = vshll.u32 %v1394, 16
      %v1525 = vrot.slane %v1523, 5
      %v1526 = vsel %vm595, %v1521, %v1525
      %v1528 = vshrl.u32 %v1395, 16
      %v1530 = vrot.slane %v1528, 4
      %v1531 = vshll.u32 %v1395, 16
      %v1533 = vrot.slane %v1531, 5
      %v1534 = vor.u32 %v1530, %v1533
      %v1535 = vrot.slane %v1534, 4
      %v1537 = vshll.u32 %v1396, 16
      %v1539 = vrot.slane %v1537, 5
      %v1540 = vsel %vm595, %v1535, %v1539
      %v1541 = vshrl.u32 %v1396, 16
      %v1543 = vrot.slane %v1541, 4
      %v1544 = vor.u32 %v1543, %v1539
      %v1545 = vrot.slane %v1544, 4
      %v1547 = vshll.u32 %v1397, 16
      %v1549 = vrot.slane %v1547, 5
      %v1550 = vsel %vm595, %v1545, %v1549
      %v1552 = vshrl.u32 %v1398, 16
      %v1554 = vrot.slane %v1552, 4
      %v1555 = vshll.u32 %v1398, 16
      %v1557 = vrot.slane %v1555, 5
      %v1558 = vor.u32 %v1554, %v1557
      %v1559 = vrot.slane %v1558, 4
      %v1561 = vshll.u32 %v1399, 16
      %v1563 = vrot.slane %v1561, 5
      %v1564 = vsel %vm595, %v1559, %v1563
      %v1565 = vshrl.u32 %v1399, 16
      %v1567 = vrot.slane %v1565, 4
      %v1568 = vor.u32 %v1567, %v1563
      %v1569 = vrot.slane %v1568, 4
      %v1571 = vshll.u32 %v1400, 16
      %v1573 = vrot.slane %v1571, 5
      %v1574 = vsel %vm595, %v1569, %v1573
      %v1576 = vshrl.u32 %v1401, 16
      %v1578 = vrot.slane %v1576, 4
      %v1579 = vshll.u32 %v1401, 16
      %v1581 = vrot.slane %v1579, 5
      %v1582 = vor.u32 %v1578, %v1581
      %v1583 = vrot.slane %v1582, 4
      %v1585 = vshll.u32 %v1402, 16
      %v1587 = vrot.slane %v1585, 5
      %v1588 = vsel %vm595, %v1583, %v1587
      %v1589 = vshrl.u32 %v1402, 16
      %v1591 = vrot.slane %v1589, 4
      %v1592 = vor.u32 %v1591, %v1587
      %v1593 = vrot.slane %v1592, 4
      %v1595 = vshll.u32 %v1403, 16
      %v1597 = vrot.slane %v1595, 5
      %v1598 = vsel %vm595, %v1593, %v1597
      %v1600 = vshrl.u32 %v1404, 16
      %v1602 = vrot.slane %v1600, 4
      %v1603 = vshll.u32 %v1404, 16
      %v1605 = vrot.slane %v1603, 5
      %v1606 = vor.u32 %v1602, %v1605
      %v1607 = vrot.slane %v1606, 4
      %v1609 = vshll.u32 %v1405, 16
      %v1611 = vrot.slane %v1609, 5
      %v1612 = vsel %vm595, %v1607, %v1611
      %v1613 = vshrl.u32 %v1405, 16
      %v1615 = vrot.slane %v1613, 4
      %v1616 = vor.u32 %v1615, %v1611
      %v1617 = vrot.slane %v1616, 4
      %v1619 = vshll.u32 %v1406, 16
      %v1621 = vrot.slane %v1619, 5
      %v1622 = vsel %vm595, %v1617, %v1621
      %v1624 = vshrl.u32 %v1407, 16
      %v1626 = vrot.slane %v1624, 4
      %v1627 = vshll.u32 %v1407, 16
      %v1629 = vrot.slane %v1627, 5
      %v1630 = vor.u32 %v1626, %v1629
      %v1631 = vrot.slane %v1630, 4
      %v1633 = vshll.u32 %v1408, 16
      %v1635 = vrot.slane %v1633, 5
      %v1636 = vsel %vm595, %v1631, %v1635
      %v1637 = vshrl.u32 %v1408, 16
      %v1639 = vrot.slane %v1637, 4
      %v1640 = vor.u32 %v1639, %v1635
      %v1641 = vrot.slane %v1640, 4
      %v1643 = vshll.u32 %v1409, 16
      %v1645 = vrot.slane %v1643, 5
      %v1646 = vsel %vm595, %v1641, %v1645
      %v1648 = vshrl.u32 %v1410, 16
      %v1650 = vrot.slane %v1648, 4
      %v1651 = vshll.u32 %v1410, 16
      %v1653 = vrot.slane %v1651, 5
      %v1654 = vor.u32 %v1650, %v1653
      %v1655 = vrot.slane %v1654, 4
      %v1657 = vshll.u32 %v1411, 16
      %v1659 = vrot.slane %v1657, 5
      %v1660 = vsel %vm595, %v1655, %v1659
      %v1661 = vshrl.u32 %v1411, 16
      %v1663 = vrot.slane %v1661, 4
      %v1664 = vor.u32 %v1663, %v1659
      %v1665 = vrot.slane %v1664, 4
      %v1667 = vshll.u32 %v1412, 16
      %v1669 = vrot.slane %v1667, 5
      %v1670 = vsel %vm595, %v1665, %v1669
      %v1672 = vshrl.u32 %v1413, 16
      %v1674 = vrot.slane %v1672, 4
      %v1675 = vshll.u32 %v1413, 16
      %v1677 = vrot.slane %v1675, 5
      %v1678 = vor.u32 %v1674, %v1677
      %v1679 = vrot.slane %v1678, 4
      %v1681 = vshll.u32 %v1414, 16
      %v1683 = vrot.slane %v1681, 5
      %v1684 = vsel %vm595, %v1679, %v1683
      %v1685 = vshrl.u32 %v1414, 16
      %v1687 = vrot.slane %v1685, 4
      %v1688 = vor.u32 %v1687, %v1683
      %v1689 = vrot.slane %v1688, 4
      %v1691 = vshll.u32 %v1415, 16
      %v1693 = vrot.slane %v1691, 5
      %v1694 = vsel %vm595, %v1689, %v1693
      %v1696 = vshrl.u32 %v1416, 16
      %v1698 = vrot.slane %v1696, 4
      %v1699 = vshll.u32 %v1416, 16
      %v1701 = vrot.slane %v1699, 5
      %v1702 = vor.u32 %v1698, %v1701
      %v1703 = vrot.slane %v1702, 4
      %v1705 = vshll.u32 %v1417, 16
      %v1707 = vrot.slane %v1705, 5
      %v1708 = vsel %vm595, %v1703, %v1707
      %v1709 = vshrl.u32 %v1417, 16
      %v1711 = vrot.slane %v1709, 4
      %v1712 = vor.u32 %v1711, %v1707
      %v1713 = vrot.slane %v1712, 4
      %v1715 = vshll.u32 %v1418, 16
      %v1717 = vrot.slane %v1715, 5
      %v1718 = vsel %vm595, %v1713, %v1717
      %v1720 = vshrl.u32 %v1419, 16
      %v1722 = vrot.slane %v1720, 4
      %v1723 = vshll.u32 %v1419, 16
      %v1725 = vrot.slane %v1723, 5
      %v1726 = vor.u32 %v1722, %v1725
      %v1727 = vrot.slane %v1726, 4
      %v1729 = vshll.u32 %v1420, 16
      %v1731 = vrot.slane %v1729, 5
      %v1732 = vsel %vm595, %v1727, %v1731
      %v1733 = vshrl.u32 %v1420, 16
      %v1735 = vrot.slane %v1733, 4
      %v1736 = vor.u32 %v1735, %v1731
      %v1737 = vrot.slane %v1736, 4
      %v1739 = vshll.u32 %v1421, 16
      %v1741 = vrot.slane %v1739, 5
      %v1742 = vsel %vm595, %v1737, %v1741
      %v1744 = vshrl.u32 %v1422, 16
      %v1746 = vrot.slane %v1744, 4
      %v1747 = vshll.u32 %v1422, 16
      %v1749 = vrot.slane %v1747, 5
      %v1750 = vor.u32 %v1746, %v1749
      %v1751 = vrot.slane %v1750, 4
      %v1753 = vshll.u32 %v1423, 16
      %v1755 = vrot.slane %v1753, 5
      %v1756 = vsel %vm595, %v1751, %v1755
      %v1757 = vshrl.u32 %v1423, 16
      %v1759 = vrot.slane %v1757, 4
      %v1760 = vor.u32 %v1759, %v1755
      %v1761 = vrot.slane %v1760, 4
      %v1763 = vshll.u32 %v1424, 16
      %v1765 = vrot.slane %v1763, 5
      %v1766 = vsel %vm595, %v1761, %v1765
      %v1768 = vshrl.u32 %v1425, 16
      %v1770 = vrot.slane %v1768, 4
      %v1771 = vshll.u32 %v1425, 16
      %v1773 = vrot.slane %v1771, 5
      %v1774 = vor.u32 %v1770, %v1773
      %v1775 = vrot.slane %v1774, 4
      %v1777 = vshll.u32 %v1426, 16
      %v1779 = vrot.slane %v1777, 5
      %v1780 = vsel %vm595, %v1775, %v1779
      %v1781 = vshrl.u32 %v1426, 16
      %v1783 = vrot.slane %v1781, 4
      %v1784 = vor.u32 %v1783, %v1779
      %v1785 = vrot.slane %v1784, 4
      %v1787 = vshll.u32 %v1427, 16
      %v1789 = vrot.slane %v1787, 5
      %v1790 = vsel %vm595, %v1785, %v1789
      %v1792 = vshrl.u32 %v1428, 16
      %v1794 = vrot.slane %v1792, 4
      %v1795 = vshll.u32 %v1428, 16
      %v1797 = vrot.slane %v1795, 5
      %v1798 = vor.u32 %v1794, %v1797
      %v1799 = vrot.slane %v1798, 4
      %v1801 = vshll.u32 %v1429, 16
      %v1803 = vrot.slane %v1801, 5
      %v1804 = vsel %vm595, %v1799, %v1803
      %v1805 = vshrl.u32 %v1429, 16
      %v1807 = vrot.slane %v1805, 4
      %v1808 = vor.u32 %v1807, %v1803
      %v1809 = vrot.slane %v1808, 4
      %v1811 = vshll.u32 %v1430, 16
      %v1813 = vrot.slane %v1811, 5
      %v1814 = vsel %vm595, %v1809, %v1813
      %v1863 = vrot.slane %v1383, 5
      %v1864 = vrot.slane %v1863, 4
      %v1865 = vrot.slane %v1384, 5
      %v1866 = vsel %vm1030, %v1864, %v1865
      %v1867 = vrot.slane %v1865, 4
      %v1868 = vrot.slane %v1385, 5
      %v1869 = vsel %vm1030, %v1867, %v1868
      %v1870 = vrot.slane %v1386, 5
      %v1871 = vrot.slane %v1870, 4
      %v1872 = vrot.slane %v1387, 5
      %v1873 = vsel %vm1030, %v1871, %v1872
      %v1874 = vrot.slane %v1872, 4
      %v1875 = vrot.slane %v1388, 5
      %v1876 = vsel %vm1030, %v1874, %v1875
      %v1877 = vrot.slane %v1389, 5
      %v1878 = vrot.slane %v1877, 4
      %v1879 = vrot.slane %v1390, 5
      %v1880 = vsel %vm1030, %v1878, %v1879
      %v1881 = vrot.slane %v1879, 4
      %v1882 = vrot.slane %v1391, 5
      %v1883 = vsel %vm1030, %v1881, %v1882
      %v1884 = vrot.slane %v1392, 5
      %v1885 = vrot.slane %v1884, 4
      %v1886 = vrot.slane %v1393, 5
      %v1887 = vsel %vm1030, %v1885, %v1886
      %v1888 = vrot.slane %v1886, 4
      %v1889 = vrot.slane %v1394, 5
      %v1890 = vsel %vm1030, %v1888, %v1889
      %v1891 = vrot.slane %v1395, 5
      %v1892 = vrot.slane %v1891, 4
      %v1893 = vrot.slane %v1396, 5
      %v1894 = vsel %vm1030, %v1892, %v1893
      %v1895 = vrot.slane %v1893, 4
      %v1896 = vrot.slane %v1397, 5
      %v1897 = vsel %vm1030, %v1895, %v1896
      %v1898 = vrot.slane %v1398, 5
      %v1899 = vrot.slane %v1898, 4
      %v1900 = vrot.slane %v1399, 5
      %v1901 = vsel %vm1030, %v1899, %v1900
      %v1902 = vrot.slane %v1900, 4
      %v1903 = vrot.slane %v1400, 5
      %v1904 = vsel %vm1030, %v1902, %v1903
      %v1905 = vrot.slane %v1401, 5
      %v1906 = vrot.slane %v1905, 4
      %v1907 = vrot.slane %v1402, 5
      %v1908 = vsel %vm1030, %v1906, %v1907
      %v1909 = vrot.slane %v1907, 4
      %v1910 = vrot.slane %v1403, 5
      %v1911 = vsel %vm1030, %v1909, %v1910
      %v1912 = vrot.slane %v1404, 5
      %v1913 = vrot.slane %v1912, 4
      %v1914 = vrot.slane %v1405, 5
      %v1915 = vsel %vm1030, %v1913, %v1914
      %v1916 = vrot.slane %v1914, 4
      %v1917 = vrot.slane %v1406, 5
      %v1918 = vsel %vm1030, %v1916, %v1917
      %v1919 = vrot.slane %v1407, 5
      %v1920 = vrot.slane %v1919, 4
      %v1921 = vrot.slane %v1408, 5
      %v1922 = vsel %vm1030, %v1920, %v1921
      %v1923 = vrot.slane %v1921, 4
      %v1924 = vrot.slane %v1409, 5
      %v1925 = vsel %vm1030, %v1923, %v1924
      %v1926 = vrot.slane %v1410, 5
      %v1927 = vrot.slane %v1926, 4
      %v1928 = vrot.slane %v1411, 5
      %v1929 = vsel %vm1030, %v1927, %v1928
      %v1930 = vrot.slane %v1928, 4
      %v1931 = vrot.slane %v1412, 5
      %v1932 = vsel %vm1030, %v1930, %v1931
      %v1933 = vrot.slane %v1413, 5
      %v1934 = vrot.slane %v1933, 4
      %v1935 = vrot.slane %v1414, 5
      %v1936 = vsel %vm1030, %v1934, %v1935
      %v1937 = vrot.slane %v1935, 4
      %v1938 = vrot.slane %v1415, 5
      %v1939 = vsel %vm1030, %v1937, %v1938
      %v1940 = vrot.slane %v1416, 5
      %v1941 = vrot.slane %v1940, 4
      %v1942 = vrot.slane %v1417, 5
      %v1943 = vsel %vm1030, %v1941, %v1942
      %v1944 = vrot.slane %v1942, 4
      %v1945 = vrot.slane %v1418, 5
      %v1946 = vsel %vm1030, %v1944, %v1945
      %v1947 = vrot.slane %v1419, 5
      %v1948 = vrot.slane %v1947, 4
      %v1949 = vrot.slane %v1420, 5
      %v1950 = vsel %vm1030, %v1948, %v1949
      %v1951 = vrot.slane %v1949, 4
      %v1952 = vrot.slane %v1421, 5
      %v1953 = vsel %vm1030, %v1951, %v1952
      %v1954 = vrot.slane %v1422, 5
      %v1955 = vrot.slane %v1954, 4
      %v1956 = vrot.slane %v1423, 5
      %v1957 = vsel %vm1030, %v1955, %v1956
      %v1958 = vrot.slane %v1956, 4
      %v1959 = vrot.slane %v1424, 5
      %v1960 = vsel %vm1030, %v1958, %v1959
      %v1961 = vrot.slane %v1425, 5
      %v1962 = vrot.slane %v1961, 4
      %v1963 = vrot.slane %v1426, 5
      %v1964 = vsel %vm1030, %v1962, %v1963
      %v1965 = vrot.slane %v1963, 4
      %v1966 = vrot.slane %v1427, 5
      %v1967 = vsel %vm1030, %v1965, %v1966
      %v1968 = vrot.slane %v1428, 5
      %v1969 = vrot.slane %v1968, 4
      %v1970 = vrot.slane %v1429, 5
      %v1971 = vsel %vm1030, %v1969, %v1970
      %v1972 = vrot.slane %v1970, 4
      %v1973 = vrot.slane %v1430, 5
      %v1974 = vsel %vm1030, %v1972, %v1973
      %v1975 = vunpack.c.l.b16 %v1383
      %v1976 = vunpack.c.l.b16 %v1384
      %v1977 = vunpack.c.l.b16 %v1386
      %v1978 = vunpack.c.l.b16 %v1387
      %v1979 = vunpack.c.l.b16 %v1389
      %v1980 = vunpack.c.l.b16 %v1390
      %v1981 = vunpack.c.l.b16 %v1392
      %v1982 = vunpack.c.l.b16 %v1393
      %v1983 = vunpack.c.l.b16 %v1395
      %v1984 = vunpack.c.l.b16 %v1396
      %v1985 = vunpack.c.l.b16 %v1398
      %v1986 = vunpack.c.l.b16 %v1399
      %v1987 = vunpack.c.l.b16 %v1401
      %v1988 = vunpack.c.l.b16 %v1402
      %v1989 = vunpack.c.l.b16 %v1404
      %v1990 = vunpack.c.l.b16 %v1405
      %v1991 = vunpack.c.l.b16 %v1407
      %v1992 = vunpack.c.l.b16 %v1408
      %v1993 = vunpack.c.l.b16 %v1410
      %v1994 = vunpack.c.l.b16 %v1411
      %v1995 = vunpack.c.l.b16 %v1413
      %v1996 = vunpack.c.l.b16 %v1414
      %v1997 = vunpack.c.l.b16 %v1416
      %v1998 = vunpack.c.l.b16 %v1417
      %v1999 = vunpack.c.l.b16 %v1419
      %v2000 = vunpack.c.l.b16 %v1420
      %v2001 = vunpack.c.l.b16 %v1422
      %v2002 = vunpack.c.l.b16 %v1423
      %v2003 = vunpack.c.l.b16 %v1425
      %v2004 = vunpack.c.l.b16 %v1426
      %v2005 = vunpack.c.l.b16 %v1428
      %v2006 = vunpack.c.l.b16 %v1429
      %v2007 = vpack.c.b16 %v1976, %v1975
      %v2008 = vpack.c.b16 %v1978, %v1977
      %v2009 = vpack.c.b16 %v1980, %v1979
      %v2010 = vpack.c.b16 %v1982, %v1981
      %v2011 = vpack.c.b16 %v1984, %v1983
      %v2012 = vpack.c.b16 %v1986, %v1985
      %v2013 = vpack.c.b16 %v1988, %v1987
      %v2014 = vpack.c.b16 %v1990, %v1989
      %v2015 = vpack.c.b16 %v1992, %v1991
      %v2016 = vpack.c.b16 %v1994, %v1993
      %v2017 = vpack.c.b16 %v1996, %v1995
      %v2018 = vpack.c.b16 %v1998, %v1997
      %v2019 = vpack.c.b16 %v2000, %v1999
      %v2020 = vpack.c.b16 %v2002, %v2001
      %v2021 = vpack.c.b16 %v2004, %v2003
      %v2022 = vpack.c.b16 %v2006, %v2005
      %v2039 = vunpack.c.l.b16 %v1444
      %v2040 = vunpack.c.l.b16 %v1454
      %v2041 = vunpack.c.l.b16 %v1468
      %v2042 = vunpack.c.l.b16 %v1478
      %v2043 = vunpack.c.l.b16 %v1492
      %v2044 = vunpack.c.l.b16 %v1502
      %v2045 = vunpack.c.l.b16 %v1516
      %v2046 = vunpack.c.l.b16 %v1526
      %v2047 = vunpack.c.l.b16 %v1540
      %v2048 = vunpack.c.l.b16 %v1550
      %v2049 = vunpack.c.l.b16 %v1564
      %v2050 = vunpack.c.l.b16 %v1574
      %v2051 = vunpack.c.l.b16 %v1588
      %v2052 = vunpack.c.l.b16 %v1598
      %v2053 = vunpack.c.l.b16 %v1612
      %v2054 = vunpack.c.l.b16 %v1622
      %v2055 = vunpack.c.l.b16 %v1636
      %v2056 = vunpack.c.l.b16 %v1646
      %v2057 = vunpack.c.l.b16 %v1660
      %v2058 = vunpack.c.l.b16 %v1670
      %v2059 = vunpack.c.l.b16 %v1684
      %v2060 = vunpack.c.l.b16 %v1694
      %v2061 = vunpack.c.l.b16 %v1708
      %v2062 = vunpack.c.l.b16 %v1718
      %v2063 = vunpack.c.l.b16 %v1732
      %v2064 = vunpack.c.l.b16 %v1742
      %v2065 = vunpack.c.l.b16 %v1756
      %v2066 = vunpack.c.l.b16 %v1766
      %v2067 = vunpack.c.l.b16 %v1780
      %v2068 = vunpack.c.l.b16 %v1790
      %v2069 = vunpack.c.l.b16 %v1804
      %v2070 = vunpack.c.l.b16 %v1814
      %v2071 = vpack.c.b16 %v2040, %v2039
      %v2072 = vpack.c.b16 %v2042, %v2041
      %v2073 = vpack.c.b16 %v2044, %v2043
      %v2074 = vpack.c.b16 %v2046, %v2045
      %v2075 = vpack.c.b16 %v2048, %v2047
      %v2076 = vpack.c.b16 %v2050, %v2049
      %v2077 = vpack.c.b16 %v2052, %v2051
      %v2078 = vpack.c.b16 %v2054, %v2053
      %v2079 = vpack.c.b16 %v2056, %v2055
      %v2080 = vpack.c.b16 %v2058, %v2057
      %v2081 = vpack.c.b16 %v2060, %v2059
      %v2082 = vpack.c.b16 %v2062, %v2061
      %v2083 = vpack.c.b16 %v2064, %v2063
      %v2084 = vpack.c.b16 %v2066, %v2065
      %v2085 = vpack.c.b16 %v2068, %v2067
      %v2086 = vpack.c.b16 %v2070, %v2069
      %v2103 = vunpack.c.l.b16 %v1866
      %v2104 = vunpack.c.l.b16 %v1869
      %v2105 = vunpack.c.l.b16 %v1873
      %v2106 = vunpack.c.l.b16 %v1876
      %v2107 = vunpack.c.l.b16 %v1880
      %v2108 = vunpack.c.l.b16 %v1883
      %v2109 = vunpack.c.l.b16 %v1887
      %v2110 = vunpack.c.l.b16 %v1890
      %v2111 = vunpack.c.l.b16 %v1894
      %v2112 = vunpack.c.l.b16 %v1897
      %v2113 = vunpack.c.l.b16 %v1901
      %v2114 = vunpack.c.l.b16 %v1904
      %v2115 = vunpack.c.l.b16 %v1908
      %v2116 = vunpack.c.l.b16 %v1911
      %v2117 = vunpack.c.l.b16 %v1915
      %v2118 = vunpack.c.l.b16 %v1918
      %v2119 = vunpack.c.l.b16 %v1922
      %v2120 = vunpack.c.l.b16 %v1925
      %v2121 = vunpack.c.l.b16 %v1929
      %v2122 = vunpack.c.l.b16 %v1932
      %v2123 = vunpack.c.l.b16 %v1936
      %v2124 = vunpack.c.l.b16 %v1939
      %v2125 = vunpack.c.l.b16 %v1943
      %v2126 = vunpack.c.l.b16 %v1946
      %v2127 = vunpack.c.l.b16 %v1950
      %v2128 = vunpack.c.l.b16 %v1953
      %v2129 = vunpack.c.l.b16 %v1957
      %v2130 = vunpack.c.l.b16 %v1960
      %v2131 = vunpack.c.l.b16 %v1964
      %v2132 = vunpack.c.l.b16 %v1967
      %v2133 = vunpack.c.l.b16 %v1971
      %v2134 = vunpack.c.l.b16 %v1974
      %v2135 = vpack.c.b16 %v2104, %v2103
      %v2136 = vpack.c.b16 %v2106, %v2105
      %v2137 = vpack.c.b16 %v2108, %v2107
      %v2138 = vpack.c.b16 %v2110, %v2109
      %v2139 = vpack.c.b16 %v2112, %v2111
      %v2140 = vpack.c.b16 %v2114, %v2113
      %v2141 = vpack.c.b16 %v2116, %v2115
      %v2142 = vpack.c.b16 %v2118, %v2117
      %v2143 = vpack.c.b16 %v2120, %v2119
      %v2144 = vpack.c.b16 %v2122, %v2121
      %v2145 = vpack.c.b16 %v2124, %v2123
      %v2146 = vpack.c.b16 %v2126, %v2125
      %v2147 = vpack.c.b16 %v2128, %v2127
      %v2148 = vpack.c.b16 %v2130, %v2129
      %v2149 = vpack.c.b16 %v2132, %v2131
      %v2150 = vpack.c.b16 %v2134, %v2133
      %v2167 = vld [vmem:[%s3 + $0xc0] sm:$0xf]
      %v2168 = vld [vmem:[%s3 + $0xc4] sm:$0xf]
      %v2169 = vld [vmem:[%s3 + $0xc8] sm:$0xf]
      %v2170 = vld [vmem:[%s3 + $0xcc] sm:$0xf]
      %v2171 = vld [vmem:[%s3 + $0xd0] sm:$0xf]
      %v2172 = vld [vmem:[%s3 + $0xd4] sm:$0xf]
      %v2173 = vld [vmem:[%s3 + $0xd8] sm:$0xf]
      %v2174 = vld [vmem:[%s3 + $0xdc] sm:$0xf]
      %v2175 = vld [vmem:[%s3 + $0xe0] sm:$0xf]
      %v2176 = vld [vmem:[%s3 + $0xe4] sm:$0xf]
      %v2177 = vld [vmem:[%s3 + $0xe8] sm:$0xf]
      %v2178 = vld [vmem:[%s3 + $0xec] sm:$0xf]
      %v2179 = vld [vmem:[%s3 + $0xf0] sm:$0xf]
      %v2180 = vld [vmem:[%s3 + $0xf4] sm:$0xf]
      %v2181 = vld [vmem:[%s3 + $0xf8] sm:$0xf]
      %v2182 = vld [vmem:[%s3 + $0xfc] sm:$0xf]
      %v2183 = vld [vmem:[%s3 + $0x100] sm:$0xf]
      %v2184 = vld [vmem:[%s3 + $0x104] sm:$0xf]
      %v2185 = vld [vmem:[%s3 + $0x108] sm:$0xf]
      %v2186 = vld [vmem:[%s3 + $0x10c] sm:$0xf]
      %v2187 = vld [vmem:[%s3 + $0x110] sm:$0xf]
      %v2188 = vld [vmem:[%s3 + $0x114] sm:$0xf]
      %v2189 = vld [vmem:[%s3 + $0x118] sm:$0xf]
      %v2190 = vld [vmem:[%s3 + $0x11c] sm:$0xf]
      %v2191 = vld [vmem:[%s3 + $0x120] sm:$0xf]
      %v2192 = vld [vmem:[%s3 + $0x124] sm:$0xf]
      %v2193 = vld [vmem:[%s3 + $0x128] sm:$0xf]
      %v2194 = vld [vmem:[%s3 + $0x12c] sm:$0xf]
      %v2195 = vld [vmem:[%s3 + $0x130] sm:$0xf]
      %v2196 = vld [vmem:[%s3 + $0x134] sm:$0xf]
      %v2197 = vld [vmem:[%s3 + $0x138] sm:$0xf]
      %v2198 = vld [vmem:[%s3 + $0x13c] sm:$0xf]
      %v2199 = vld [vmem:[%s3 + $0x140] sm:$0xf]
      %v2200 = vld [vmem:[%s3 + $0x144] sm:$0xf]
      %v2201 = vld [vmem:[%s3 + $0x148] sm:$0xf]
      %v2202 = vld [vmem:[%s3 + $0x14c] sm:$0xf]
      %v2203 = vld [vmem:[%s3 + $0x150] sm:$0xf]
      %v2204 = vld [vmem:[%s3 + $0x154] sm:$0xf]
      %v2205 = vld [vmem:[%s3 + $0x158] sm:$0xf]
      %v2206 = vld [vmem:[%s3 + $0x15c] sm:$0xf]
      %v2207 = vld [vmem:[%s3 + $0x160] sm:$0xf]
      %v2208 = vld [vmem:[%s3 + $0x164] sm:$0xf]
      %v2209 = vld [vmem:[%s3 + $0x168] sm:$0xf]
      %v2210 = vld [vmem:[%s3 + $0x16c] sm:$0xf]
      %v2211 = vld [vmem:[%s3 + $0x170] sm:$0xf]
      %v2212 = vld [vmem:[%s3 + $0x174] sm:$0xf]
      %v2213 = vld [vmem:[%s3 + $0x178] sm:$0xf]
      %v2214 = vld [vmem:[%s3 + $0x17c] sm:$0xf]
      %v2263 = vunpack.c.l.b16 %v2167
      %v2264 = vunpack.c.l.b16 %v2168
      %v2265 = vunpack.c.l.b16 %v2169
      %v2266 = vunpack.c.l.b16 %v2170
      %v2267 = vunpack.c.l.b16 %v2171
      %v2268 = vunpack.c.l.b16 %v2172
      %v2269 = vunpack.c.l.b16 %v2173
      %v2270 = vunpack.c.l.b16 %v2174
      %v2271 = vunpack.c.l.b16 %v2175
      %v2272 = vunpack.c.l.b16 %v2176
      %v2273 = vunpack.c.l.b16 %v2177
      %v2274 = vunpack.c.l.b16 %v2178
      %v2275 = vunpack.c.l.b16 %v2179
      %v2276 = vunpack.c.l.b16 %v2180
      %v2277 = vunpack.c.l.b16 %v2181
      %v2278 = vunpack.c.l.b16 %v2182
      %v2279 = vunpack.c.l.b16 %v2183
      %v2280 = vunpack.c.l.b16 %v2184
      %v2281 = vunpack.c.l.b16 %v2185
      %v2282 = vunpack.c.l.b16 %v2186
      %v2283 = vunpack.c.l.b16 %v2187
      %v2284 = vunpack.c.l.b16 %v2188
      %v2285 = vunpack.c.l.b16 %v2189
      %v2286 = vunpack.c.l.b16 %v2190
      %v2287 = vunpack.c.l.b16 %v2191
      %v2288 = vunpack.c.l.b16 %v2192
      %v2289 = vunpack.c.l.b16 %v2193
      %v2290 = vunpack.c.l.b16 %v2194
      %v2291 = vunpack.c.l.b16 %v2195
      %v2292 = vunpack.c.l.b16 %v2196
      %v2293 = vunpack.c.l.b16 %v2197
      %v2294 = vunpack.c.l.b16 %v2198
      %v2295 = vunpack.c.l.b16 %v2199
      %v2296 = vunpack.c.l.b16 %v2200
      %v2297 = vunpack.c.l.b16 %v2201
      %v2298 = vunpack.c.l.b16 %v2202
      %v2299 = vunpack.c.l.b16 %v2203
      %v2300 = vunpack.c.l.b16 %v2204
      %v2301 = vunpack.c.l.b16 %v2205
      %v2302 = vunpack.c.l.b16 %v2206
      %v2303 = vunpack.c.l.b16 %v2207
      %v2304 = vunpack.c.l.b16 %v2208
      %v2305 = vunpack.c.l.b16 %v2209
      %v2306 = vunpack.c.l.b16 %v2210
      %v2307 = vunpack.c.l.b16 %v2211
      %v2308 = vunpack.c.l.b16 %v2212
      %v2309 = vunpack.c.l.b16 %v2213
      %v2310 = vunpack.c.l.b16 %v2214
      %v2311 = vpack.c.b16 %v2264, %v2263
      %v2312 = vpack.c.b16 %v2266, %v2265
      %v2313 = vpack.c.b16 %v2268, %v2267
      %v2314 = vpack.c.b16 %v2270, %v2269
      %v2315 = vpack.c.b16 %v2272, %v2271
      %v2316 = vpack.c.b16 %v2274, %v2273
      %v2317 = vpack.c.b16 %v2276, %v2275
      %v2318 = vpack.c.b16 %v2278, %v2277
      %v2319 = vpack.c.b16 %v2280, %v2279
      %v2320 = vpack.c.b16 %v2282, %v2281
      %v2321 = vpack.c.b16 %v2284, %v2283
      %v2322 = vpack.c.b16 %v2286, %v2285
      %v2323 = vpack.c.b16 %v2288, %v2287
      %v2324 = vpack.c.b16 %v2290, %v2289
      %v2325 = vpack.c.b16 %v2292, %v2291
      %v2326 = vpack.c.b16 %v2294, %v2293
      %v2327 = vpack.c.b16 %v2296, %v2295
      %v2328 = vpack.c.b16 %v2298, %v2297
      %v2329 = vpack.c.b16 %v2300, %v2299
      %v2330 = vpack.c.b16 %v2302, %v2301
      %v2331 = vpack.c.b16 %v2304, %v2303
      %v2332 = vpack.c.b16 %v2306, %v2305
      %v2333 = vpack.c.b16 %v2308, %v2307
      %v2334 = vpack.c.b16 %v2310, %v2309
      %2359 = vmatpush.bf16.msra.mxu0 %v2318
      %2360 = vmatpush.bf16.msra.mxu0 %v2317
      %2361 = vmatpush.bf16.msra.mxu0 %v2316
      %2362 = vmatpush.bf16.msra.mxu0 %v2315
      %2363 = vmatpush.bf16.msra.mxu0 %v2314
      %2364 = vmatpush.bf16.msra.mxu0 %v2313
      %2365 = vmatpush.bf16.msra.mxu0 %v2312
      %2366 = vmatpush.bf16.msra.mxu0 %v2311
      %2367 = vmatmul.bf16.gmra.mxu0 %v2007
      %v2368 = vpop.f32.mrf.mxu0
      %v2369 = vadd.f32 0.0, %v2368
      %v2370 = vpop.f32.mrf.mxu0
      %v2371 = vadd.f32 0.0, %v2370
      %2372 = vmatmul.bf16.gmra.mxu0 %v2008
      %v2373 = vpop.f32.mrf.mxu0
      %v2374 = vadd.f32 0.0, %v2373
      %v2375 = vpop.f32.mrf.mxu0
      %v2376 = vadd.f32 0.0, %v2375
      %2377 = vmatmul.bf16.gmra.mxu0 %v2009
      %v2378 = vpop.f32.mrf.mxu0
      %v2379 = vadd.f32 0.0, %v2378
      %v2380 = vpop.f32.mrf.mxu0
      %v2381 = vadd.f32 0.0, %v2380
      %2382 = vmatmul.bf16.gmra.mxu0 %v2010
      %v2383 = vpop.f32.mrf.mxu0
      %v2384 = vadd.f32 0.0, %v2383
      %v2385 = vpop.f32.mrf.mxu0
      %v2386 = vadd.f32 0.0, %v2385
      %2387 = vmatmul.bf16.gmra.mxu0 %v2011
      %v2388 = vpop.f32.mrf.mxu0
      %v2389 = vadd.f32 0.0, %v2388
      %v2390 = vpop.f32.mrf.mxu0
      %v2391 = vadd.f32 0.0, %v2390
      %2392 = vmatmul.bf16.gmra.mxu0 %v2012
      %v2393 = vpop.f32.mrf.mxu0
      %v2394 = vadd.f32 0.0, %v2393
      %v2395 = vpop.f32.mrf.mxu0
      %v2396 = vadd.f32 0.0, %v2395
      %2397 = vmatmul.bf16.gmra.mxu0 %v2013
      %v2398 = vpop.f32.mrf.mxu0
      %v2399 = vadd.f32 0.0, %v2398
      %v2400 = vpop.f32.mrf.mxu0
      %v2401 = vadd.f32 0.0, %v2400
      %2402 = vmatmul.bf16.gmra.mxu0 %v2014
      %v2403 = vpop.f32.mrf.mxu0
      %v2404 = vadd.f32 0.0, %v2403
      %v2405 = vpop.f32.mrf.mxu0
      %v2406 = vadd.f32 0.0, %v2405
      %2407 = vmatmul.bf16.gmra.mxu0 %v2015
      %v2408 = vpop.f32.mrf.mxu0
      %v2409 = vadd.f32 0.0, %v2408
      %v2410 = vpop.f32.mrf.mxu0
      %v2411 = vadd.f32 0.0, %v2410
      %2412 = vmatmul.bf16.gmra.mxu0 %v2016
      %v2413 = vpop.f32.mrf.mxu0
      %v2414 = vadd.f32 0.0, %v2413
      %v2415 = vpop.f32.mrf.mxu0
      %v2416 = vadd.f32 0.0, %v2415
      %2417 = vmatmul.bf16.gmra.mxu0 %v2017
      %v2418 = vpop.f32.mrf.mxu0
      %v2419 = vadd.f32 0.0, %v2418
      %v2420 = vpop.f32.mrf.mxu0
      %v2421 = vadd.f32 0.0, %v2420
      %2422 = vmatmul.bf16.gmra.mxu0 %v2018
      %v2423 = vpop.f32.mrf.mxu0
      %v2424 = vadd.f32 0.0, %v2423
      %v2425 = vpop.f32.mrf.mxu0
      %v2426 = vadd.f32 0.0, %v2425
      %2427 = vmatmul.bf16.gmra.mxu0 %v2019
      %v2428 = vpop.f32.mrf.mxu0
      %v2429 = vadd.f32 0.0, %v2428
      %v2430 = vpop.f32.mrf.mxu0
      %v2431 = vadd.f32 0.0, %v2430
      %2432 = vmatmul.bf16.gmra.mxu0 %v2020
      %v2433 = vpop.f32.mrf.mxu0
      %v2434 = vadd.f32 0.0, %v2433
      %v2435 = vpop.f32.mrf.mxu0
      %v2436 = vadd.f32 0.0, %v2435
      %2437 = vmatmul.bf16.gmra.mxu0 %v2021
      %v2438 = vpop.f32.mrf.mxu0
      %v2439 = vadd.f32 0.0, %v2438
      %v2440 = vpop.f32.mrf.mxu0
      %v2441 = vadd.f32 0.0, %v2440
      %2442 = vmatmul.bf16.gmra.mxu0 %v2022
      %v2443 = vpop.f32.mrf.mxu0
      %v2444 = vadd.f32 0.0, %v2443
      %v2445 = vpop.f32.mrf.mxu0
      %v2446 = vadd.f32 0.0, %v2445
      %2447 = vdwg.mxu0
      %2448 = vmatpush.bf16.msra.mxu0 %v2326
      %2449 = vmatpush.bf16.msra.mxu0 %v2325
      %2450 = vmatpush.bf16.msra.mxu0 %v2324
      %2451 = vmatpush.bf16.msra.mxu0 %v2323
      %2452 = vmatpush.bf16.msra.mxu0 %v2322
      %2453 = vmatpush.bf16.msra.mxu0 %v2321
      %2454 = vmatpush.bf16.msra.mxu0 %v2320
      %2455 = vmatpush.bf16.msra.mxu0 %v2319
      %2456 = vmatmul.bf16.gmra.mxu0 %v2071
      %v2457 = vpop.f32.mrf.mxu0
      %v2458 = vadd.f32 %v2369, %v2457
      %v2459 = vpop.f32.mrf.mxu0
      %v2460 = vadd.f32 %v2371, %v2459
      %2461 = vmatmul.bf16.gmra.mxu0 %v2072
      %v2462 = vpop.f32.mrf.mxu0
      %v2463 = vadd.f32 %v2374, %v2462
      %v2464 = vpop.f32.mrf.mxu0
      %v2465 = vadd.f32 %v2376, %v2464
      %2466 = vmatmul.bf16.gmra.mxu0 %v2073
      %v2467 = vpop.f32.mrf.mxu0
      %v2468 = vadd.f32 %v2379, %v2467
      %v2469 = vpop.f32.mrf.mxu0
      %v2470 = vadd.f32 %v2381, %v2469
      %2471 = vmatmul.bf16.gmra.mxu0 %v2074
      %v2472 = vpop.f32.mrf.mxu0
      %v2473 = vadd.f32 %v2384, %v2472
      %v2474 = vpop.f32.mrf.mxu0
      %v2475 = vadd.f32 %v2386, %v2474
      %2476 = vmatmul.bf16.gmra.mxu0 %v2075
      %v2477 = vpop.f32.mrf.mxu0
      %v2478 = vadd.f32 %v2389, %v2477
      %v2479 = vpop.f32.mrf.mxu0
      %v2480 = vadd.f32 %v2391, %v2479
      %2481 = vmatmul.bf16.gmra.mxu0 %v2076
      %v2482 = vpop.f32.mrf.mxu0
      %v2483 = vadd.f32 %v2394, %v2482
      %v2484 = vpop.f32.mrf.mxu0
      %v2485 = vadd.f32 %v2396, %v2484
      %2486 = vmatmul.bf16.gmra.mxu0 %v2077
      %v2487 = vpop.f32.mrf.mxu0
      %v2488 = vadd.f32 %v2399, %v2487
      %v2489 = vpop.f32.mrf.mxu0
      %v2490 = vadd.f32 %v2401, %v2489
      %2491 = vmatmul.bf16.gmra.mxu0 %v2078
      %v2492 = vpop.f32.mrf.mxu0
      %v2493 = vadd.f32 %v2404, %v2492
      %v2494 = vpop.f32.mrf.mxu0
      %v2495 = vadd.f32 %v2406, %v2494
      %2496 = vmatmul.bf16.gmra.mxu0 %v2079
      %v2497 = vpop.f32.mrf.mxu0
      %v2498 = vadd.f32 %v2409, %v2497
      %v2499 = vpop.f32.mrf.mxu0
      %v2500 = vadd.f32 %v2411, %v2499
      %2501 = vmatmul.bf16.gmra.mxu0 %v2080
      %v2502 = vpop.f32.mrf.mxu0
      %v2503 = vadd.f32 %v2414, %v2502
      %v2504 = vpop.f32.mrf.mxu0
      %v2505 = vadd.f32 %v2416, %v2504
      %2506 = vmatmul.bf16.gmra.mxu0 %v2081
      %v2507 = vpop.f32.mrf.mxu0
      %v2508 = vadd.f32 %v2419, %v2507
      %v2509 = vpop.f32.mrf.mxu0
      %v2510 = vadd.f32 %v2421, %v2509
      %2511 = vmatmul.bf16.gmra.mxu0 %v2082
      %v2512 = vpop.f32.mrf.mxu0
      %v2513 = vadd.f32 %v2424, %v2512
      %v2514 = vpop.f32.mrf.mxu0
      %v2515 = vadd.f32 %v2426, %v2514
      %2516 = vmatmul.bf16.gmra.mxu0 %v2083
      %v2517 = vpop.f32.mrf.mxu0
      %v2518 = vadd.f32 %v2429, %v2517
      %v2519 = vpop.f32.mrf.mxu0
      %v2520 = vadd.f32 %v2431, %v2519
      %2521 = vmatmul.bf16.gmra.mxu0 %v2084
      %v2522 = vpop.f32.mrf.mxu0
      %v2523 = vadd.f32 %v2434, %v2522
      %v2524 = vpop.f32.mrf.mxu0
      %v2525 = vadd.f32 %v2436, %v2524
      %2526 = vmatmul.bf16.gmra.mxu0 %v2085
      %v2527 = vpop.f32.mrf.mxu0
      %v2528 = vadd.f32 %v2439, %v2527
      %v2529 = vpop.f32.mrf.mxu0
      %v2530 = vadd.f32 %v2441, %v2529
      %2531 = vmatmul.bf16.gmra.mxu0 %v2086
      %v2532 = vpop.f32.mrf.mxu0
      %v2533 = vadd.f32 %v2444, %v2532
      %v2534 = vpop.f32.mrf.mxu0
      %v2535 = vadd.f32 %v2446, %v2534
      %2536 = vdwg.mxu0
      %2537 = vmatpush.bf16.msra.mxu0 %v2334
      %2538 = vmatpush.bf16.msra.mxu0 %v2333
      %2539 = vmatpush.bf16.msra.mxu0 %v2332
      %2540 = vmatpush.bf16.msra.mxu0 %v2331
      %2541 = vmatpush.bf16.msra.mxu0 %v2330
      %2542 = vmatpush.bf16.msra.mxu0 %v2329
      %2543 = vmatpush.bf16.msra.mxu0 %v2328
      %2544 = vmatpush.bf16.msra.mxu0 %v2327
      %2545 = vmatmul.bf16.gmra.mxu0 %v2135
      %v2546 = vpop.f32.mrf.mxu0
      %v2547 = vadd.f32 %v2458, %v2546
      %v2548 = vpop.f32.mrf.mxu0
      %v2549 = vadd.f32 %v2460, %v2548
      %2550 = vmatmul.bf16.gmra.mxu0 %v2136
      %v2551 = vpop.f32.mrf.mxu0
      %v2552 = vadd.f32 %v2463, %v2551
      %v2553 = vpop.f32.mrf.mxu0
      %v2554 = vadd.f32 %v2465, %v2553
      %2555 = vmatmul.bf16.gmra.mxu0 %v2137
      %v2556 = vpop.f32.mrf.mxu0
      %v2557 = vadd.f32 %v2468, %v2556
      %v2558 = vpop.f32.mrf.mxu0
      %v2559 = vadd.f32 %v2470, %v2558
      %2560 = vmatmul.bf16.gmra.mxu0 %v2138
      %v2561 = vpop.f32.mrf.mxu0
      %v2562 = vadd.f32 %v2473, %v2561
      %v2563 = vpop.f32.mrf.mxu0
      %v2564 = vadd.f32 %v2475, %v2563
      %2565 = vmatmul.bf16.gmra.mxu0 %v2139
      %v2566 = vpop.f32.mrf.mxu0
      %v2567 = vadd.f32 %v2478, %v2566
      %v2568 = vpop.f32.mrf.mxu0
      %v2569 = vadd.f32 %v2480, %v2568
      %2570 = vmatmul.bf16.gmra.mxu0 %v2140
      %v2571 = vpop.f32.mrf.mxu0
      %v2572 = vadd.f32 %v2483, %v2571
      %v2573 = vpop.f32.mrf.mxu0
      %v2574 = vadd.f32 %v2485, %v2573
      %2575 = vmatmul.bf16.gmra.mxu0 %v2141
      %v2576 = vpop.f32.mrf.mxu0
      %v2577 = vadd.f32 %v2488, %v2576
      %v2578 = vpop.f32.mrf.mxu0
      %v2579 = vadd.f32 %v2490, %v2578
      %2580 = vmatmul.bf16.gmra.mxu0 %v2142
      %v2581 = vpop.f32.mrf.mxu0
      %v2582 = vadd.f32 %v2493, %v2581
      %v2583 = vpop.f32.mrf.mxu0
      %v2584 = vadd.f32 %v2495, %v2583
      %2585 = vmatmul.bf16.gmra.mxu0 %v2143
      %v2586 = vpop.f32.mrf.mxu0
      %v2587 = vadd.f32 %v2498, %v2586
      %v2588 = vpop.f32.mrf.mxu0
      %v2589 = vadd.f32 %v2500, %v2588
      %2590 = vmatmul.bf16.gmra.mxu0 %v2144
      %v2591 = vpop.f32.mrf.mxu0
      %v2592 = vadd.f32 %v2503, %v2591
      %v2593 = vpop.f32.mrf.mxu0
      %v2594 = vadd.f32 %v2505, %v2593
      %2595 = vmatmul.bf16.gmra.mxu0 %v2145
      %v2596 = vpop.f32.mrf.mxu0
      %v2597 = vadd.f32 %v2508, %v2596
      %v2598 = vpop.f32.mrf.mxu0
      %v2599 = vadd.f32 %v2510, %v2598
      %2600 = vmatmul.bf16.gmra.mxu0 %v2146
      %v2601 = vpop.f32.mrf.mxu0
      %v2602 = vadd.f32 %v2513, %v2601
      %v2603 = vpop.f32.mrf.mxu0
      %v2604 = vadd.f32 %v2515, %v2603
      %2605 = vmatmul.bf16.gmra.mxu0 %v2147
      %v2606 = vpop.f32.mrf.mxu0
      %v2607 = vadd.f32 %v2518, %v2606
      %v2608 = vpop.f32.mrf.mxu0
      %v2609 = vadd.f32 %v2520, %v2608
      %2610 = vmatmul.bf16.gmra.mxu0 %v2148
      %v2611 = vpop.f32.mrf.mxu0
      %v2612 = vadd.f32 %v2523, %v2611
      %v2613 = vpop.f32.mrf.mxu0
      %v2614 = vadd.f32 %v2525, %v2613
      %2615 = vmatmul.bf16.gmra.mxu0 %v2149
      %v2616 = vpop.f32.mrf.mxu0
      %v2617 = vadd.f32 %v2528, %v2616
      %v2618 = vpop.f32.mrf.mxu0
      %v2619 = vadd.f32 %v2530, %v2618
      %2620 = vmatmul.bf16.gmra.mxu0 %v2150
      %v2621 = vpop.f32.mrf.mxu0
      %v2622 = vadd.f32 %v2533, %v2621
      %v2623 = vpop.f32.mrf.mxu0
      %v2624 = vadd.f32 %v2535, %v2623
      %2625 = vdwg.mxu0
      %v2674 = vunpack.c.l.b16 %v1335
      %v2675 = vunpack.c.l.b16 %v1336
      %v2676 = vunpack.c.l.b16 %v1337
      %v2677 = vunpack.c.l.b16 %v1338
      %v2678 = vunpack.c.l.b16 %v1339
      %v2679 = vunpack.c.l.b16 %v1340
      %v2680 = vunpack.c.l.b16 %v1341
      %v2681 = vunpack.c.l.b16 %v1342
      %v2682 = vunpack.c.l.b16 %v1343
      %v2683 = vunpack.c.l.b16 %v1344
      %v2684 = vunpack.c.l.b16 %v1345
      %v2685 = vunpack.c.l.b16 %v1346
      %v2686 = vunpack.c.l.b16 %v1347
      %v2687 = vunpack.c.l.b16 %v1348
      %v2688 = vunpack.c.l.b16 %v1349
      %v2689 = vunpack.c.l.b16 %v1350
      %v2690 = vunpack.c.l.b16 %v1351
      %v2691 = vunpack.c.l.b16 %v1352
      %v2692 = vunpack.c.l.b16 %v1353
      %v2693 = vunpack.c.l.b16 %v1354
      %v2694 = vunpack.c.l.b16 %v1355
      %v2695 = vunpack.c.l.b16 %v1356
      %v2696 = vunpack.c.l.b16 %v1357
      %v2697 = vunpack.c.l.b16 %v1358
      %v2698 = vunpack.c.l.b16 %v1359
      %v2699 = vunpack.c.l.b16 %v1360
      %v2700 = vunpack.c.l.b16 %v1361
      %v2701 = vunpack.c.l.b16 %v1362
      %v2702 = vunpack.c.l.b16 %v1363
      %v2703 = vunpack.c.l.b16 %v1364
      %v2704 = vunpack.c.l.b16 %v1365
      %v2705 = vunpack.c.l.b16 %v1366
      %v2706 = vunpack.c.l.b16 %v1367
      %v2707 = vunpack.c.l.b16 %v1368
      %v2708 = vunpack.c.l.b16 %v1369
      %v2709 = vunpack.c.l.b16 %v1370
      %v2710 = vunpack.c.l.b16 %v1371
      %v2711 = vunpack.c.l.b16 %v1372
      %v2712 = vunpack.c.l.b16 %v1373
      %v2713 = vunpack.c.l.b16 %v1374
      %v2714 = vunpack.c.l.b16 %v1375
      %v2715 = vunpack.c.l.b16 %v1376
      %v2716 = vunpack.c.l.b16 %v1377
      %v2717 = vunpack.c.l.b16 %v1378
      %v2718 = vunpack.c.l.b16 %v1379
      %v2719 = vunpack.c.l.b16 %v1380
      %v2720 = vunpack.c.l.b16 %v1381
      %v2721 = vunpack.c.l.b16 %v1382
      %v2722 = vpack.c.b16 %v2675, %v2674
      %v2723 = vpack.c.b16 %v2677, %v2676
      %v2724 = vpack.c.b16 %v2679, %v2678
      %v2725 = vpack.c.b16 %v2681, %v2680
      %v2726 = vpack.c.b16 %v2683, %v2682
      %v2727 = vpack.c.b16 %v2685, %v2684
      %v2728 = vpack.c.b16 %v2687, %v2686
      %v2729 = vpack.c.b16 %v2689, %v2688
      %v2730 = vpack.c.b16 %v2691, %v2690
      %v2731 = vpack.c.b16 %v2693, %v2692
      %v2732 = vpack.c.b16 %v2695, %v2694
      %v2733 = vpack.c.b16 %v2697, %v2696
      %v2734 = vpack.c.b16 %v2699, %v2698
      %v2735 = vpack.c.b16 %v2701, %v2700
      %v2736 = vpack.c.b16 %v2703, %v2702
      %v2737 = vpack.c.b16 %v2705, %v2704
      %v2738 = vpack.c.b16 %v2707, %v2706
      %v2739 = vpack.c.b16 %v2709, %v2708
      %v2740 = vpack.c.b16 %v2711, %v2710
      %v2741 = vpack.c.b16 %v2713, %v2712
      %v2742 = vpack.c.b16 %v2715, %v2714
      %v2743 = vpack.c.b16 %v2717, %v2716
      %v2744 = vpack.c.b16 %v2719, %v2718
      %v2745 = vpack.c.b16 %v2721, %v2720
      %2770 = vmatpush.bf16.msra.mxu0 %v2729
      %2771 = vmatpush.bf16.msra.mxu0 %v2728
      %2772 = vmatpush.bf16.msra.mxu0 %v2727
      %2773 = vmatpush.bf16.msra.mxu0 %v2726
      %2774 = vmatpush.bf16.msra.mxu0 %v2725
      %2775 = vmatpush.bf16.msra.mxu0 %v2724
      %2776 = vmatpush.bf16.msra.mxu0 %v2723
      %2777 = vmatpush.bf16.msra.mxu0 %v2722
      %2778 = vmatmul.bf16.gmra.mxu0 %v1175
      %v2779 = vpop.f32.mrf.mxu0
      %v2780 = vadd.f32 %v2547, %v2779
      %v2781 = vpop.f32.mrf.mxu0
      %v2782 = vadd.f32 %v2549, %v2781
      %2783 = vmatmul.bf16.gmra.mxu0 %v1176
      %v2784 = vpop.f32.mrf.mxu0
      %v2785 = vadd.f32 %v2552, %v2784
      %v2786 = vpop.f32.mrf.mxu0
      %v2787 = vadd.f32 %v2554, %v2786
      %2788 = vmatmul.bf16.gmra.mxu0 %v1177
      %v2789 = vpop.f32.mrf.mxu0
      %v2790 = vadd.f32 %v2557, %v2789
      %v2791 = vpop.f32.mrf.mxu0
      %v2792 = vadd.f32 %v2559, %v2791
      %2793 = vmatmul.bf16.gmra.mxu0 %v1178
      %v2794 = vpop.f32.mrf.mxu0
      %v2795 = vadd.f32 %v2562, %v2794
      %v2796 = vpop.f32.mrf.mxu0
      %v2797 = vadd.f32 %v2564, %v2796
      %2798 = vmatmul.bf16.gmra.mxu0 %v1179
      %v2799 = vpop.f32.mrf.mxu0
      %v2800 = vadd.f32 %v2567, %v2799
      %v2801 = vpop.f32.mrf.mxu0
      %v2802 = vadd.f32 %v2569, %v2801
      %2803 = vmatmul.bf16.gmra.mxu0 %v1180
      %v2804 = vpop.f32.mrf.mxu0
      %v2805 = vadd.f32 %v2572, %v2804
      %v2806 = vpop.f32.mrf.mxu0
      %v2807 = vadd.f32 %v2574, %v2806
      %2808 = vmatmul.bf16.gmra.mxu0 %v1181
      %v2809 = vpop.f32.mrf.mxu0
      %v2810 = vadd.f32 %v2577, %v2809
      %v2811 = vpop.f32.mrf.mxu0
      %v2812 = vadd.f32 %v2579, %v2811
      %2813 = vmatmul.bf16.gmra.mxu0 %v1182
      %v2814 = vpop.f32.mrf.mxu0
      %v2815 = vadd.f32 %v2582, %v2814
      %v2816 = vpop.f32.mrf.mxu0
      %v2817 = vadd.f32 %v2584, %v2816
      %2818 = vmatmul.bf16.gmra.mxu0 %v1183
      %v2819 = vpop.f32.mrf.mxu0
      %v2820 = vadd.f32 %v2587, %v2819
      %v2821 = vpop.f32.mrf.mxu0
      %v2822 = vadd.f32 %v2589, %v2821
      %2823 = vmatmul.bf16.gmra.mxu0 %v1184
      %v2824 = vpop.f32.mrf.mxu0
      %v2825 = vadd.f32 %v2592, %v2824
      %v2826 = vpop.f32.mrf.mxu0
      %v2827 = vadd.f32 %v2594, %v2826
      %2828 = vmatmul.bf16.gmra.mxu0 %v1185
      %v2829 = vpop.f32.mrf.mxu0
      %v2830 = vadd.f32 %v2597, %v2829
      %v2831 = vpop.f32.mrf.mxu0
      %v2832 = vadd.f32 %v2599, %v2831
      %2833 = vmatmul.bf16.gmra.mxu0 %v1186
      %v2834 = vpop.f32.mrf.mxu0
      %v2835 = vadd.f32 %v2602, %v2834
      %v2836 = vpop.f32.mrf.mxu0
      %v2837 = vadd.f32 %v2604, %v2836
      %2838 = vmatmul.bf16.gmra.mxu0 %v1187
      %v2839 = vpop.f32.mrf.mxu0
      %v2840 = vadd.f32 %v2607, %v2839
      %v2841 = vpop.f32.mrf.mxu0
      %v2842 = vadd.f32 %v2609, %v2841
      %2843 = vmatmul.bf16.gmra.mxu0 %v1188
      %v2844 = vpop.f32.mrf.mxu0
      %v2845 = vadd.f32 %v2612, %v2844
      %v2846 = vpop.f32.mrf.mxu0
      %v2847 = vadd.f32 %v2614, %v2846
      %2848 = vmatmul.bf16.gmra.mxu0 %v1189
      %v2849 = vpop.f32.mrf.mxu0
      %v2850 = vadd.f32 %v2617, %v2849
      %v2851 = vpop.f32.mrf.mxu0
      %v2852 = vadd.f32 %v2619, %v2851
      %2853 = vmatmul.bf16.gmra.mxu0 %v1190
      %v2854 = vpop.f32.mrf.mxu0
      %v2855 = vadd.f32 %v2622, %v2854
      %v2856 = vpop.f32.mrf.mxu0
      %v2857 = vadd.f32 %v2624, %v2856
      %2858 = vdwg.mxu0
      %2859 = vmatpush.bf16.msra.mxu0 %v2737
      %2860 = vmatpush.bf16.msra.mxu0 %v2736
      %2861 = vmatpush.bf16.msra.mxu0 %v2735
      %2862 = vmatpush.bf16.msra.mxu0 %v2734
      %2863 = vmatpush.bf16.msra.mxu0 %v2733
      %2864 = vmatpush.bf16.msra.mxu0 %v2732
      %2865 = vmatpush.bf16.msra.mxu0 %v2731
      %2866 = vmatpush.bf16.msra.mxu0 %v2730
      %2867 = vmatmul.bf16.gmra.mxu0 %v1239
      %v2868 = vpop.f32.mrf.mxu0
      %v2869 = vadd.f32 %v2780, %v2868
      %v2870 = vpop.f32.mrf.mxu0
      %v2871 = vadd.f32 %v2782, %v2870
      %2872 = vmatmul.bf16.gmra.mxu0 %v1240
      %v2873 = vpop.f32.mrf.mxu0
      %v2874 = vadd.f32 %v2785, %v2873
      %v2875 = vpop.f32.mrf.mxu0
      %v2876 = vadd.f32 %v2787, %v2875
      %2877 = vmatmul.bf16.gmra.mxu0 %v1241
      %v2878 = vpop.f32.mrf.mxu0
      %v2879 = vadd.f32 %v2790, %v2878
      %v2880 = vpop.f32.mrf.mxu0
      %v2881 = vadd.f32 %v2792, %v2880
      %2882 = vmatmul.bf16.gmra.mxu0 %v1242
      %v2883 = vpop.f32.mrf.mxu0
      %v2884 = vadd.f32 %v2795, %v2883
      %v2885 = vpop.f32.mrf.mxu0
      %v2886 = vadd.f32 %v2797, %v2885
      %2887 = vmatmul.bf16.gmra.mxu0 %v1243
      %v2888 = vpop.f32.mrf.mxu0
      %v2889 = vadd.f32 %v2800, %v2888
      %v2890 = vpop.f32.mrf.mxu0
      %v2891 = vadd.f32 %v2802, %v2890
      %2892 = vmatmul.bf16.gmra.mxu0 %v1244
      %v2893 = vpop.f32.mrf.mxu0
      %v2894 = vadd.f32 %v2805, %v2893
      %v2895 = vpop.f32.mrf.mxu0
      %v2896 = vadd.f32 %v2807, %v2895
      %2897 = vmatmul.bf16.gmra.mxu0 %v1245
      %v2898 = vpop.f32.mrf.mxu0
      %v2899 = vadd.f32 %v2810, %v2898
      %v2900 = vpop.f32.mrf.mxu0
      %v2901 = vadd.f32 %v2812, %v2900
      %2902 = vmatmul.bf16.gmra.mxu0 %v1246
      %v2903 = vpop.f32.mrf.mxu0
      %v2904 = vadd.f32 %v2815, %v2903
      %v2905 = vpop.f32.mrf.mxu0
      %v2906 = vadd.f32 %v2817, %v2905
      %2907 = vmatmul.bf16.gmra.mxu0 %v1247
      %v2908 = vpop.f32.mrf.mxu0
      %v2909 = vadd.f32 %v2820, %v2908
      %v2910 = vpop.f32.mrf.mxu0
      %v2911 = vadd.f32 %v2822, %v2910
      %2912 = vmatmul.bf16.gmra.mxu0 %v1248
      %v2913 = vpop.f32.mrf.mxu0
      %v2914 = vadd.f32 %v2825, %v2913
      %v2915 = vpop.f32.mrf.mxu0
      %v2916 = vadd.f32 %v2827, %v2915
      %2917 = vmatmul.bf16.gmra.mxu0 %v1249
      %v2918 = vpop.f32.mrf.mxu0
      %v2919 = vadd.f32 %v2830, %v2918
      %v2920 = vpop.f32.mrf.mxu0
      %v2921 = vadd.f32 %v2832, %v2920
      %2922 = vmatmul.bf16.gmra.mxu0 %v1250
      %v2923 = vpop.f32.mrf.mxu0
      %v2924 = vadd.f32 %v2835, %v2923
      %v2925 = vpop.f32.mrf.mxu0
      %v2926 = vadd.f32 %v2837, %v2925
      %2927 = vmatmul.bf16.gmra.mxu0 %v1251
      %v2928 = vpop.f32.mrf.mxu0
      %v2929 = vadd.f32 %v2840, %v2928
      %v2930 = vpop.f32.mrf.mxu0
      %v2931 = vadd.f32 %v2842, %v2930
      %2932 = vmatmul.bf16.gmra.mxu0 %v1252
      %v2933 = vpop.f32.mrf.mxu0
      %v2934 = vadd.f32 %v2845, %v2933
      %v2935 = vpop.f32.mrf.mxu0
      %v2936 = vadd.f32 %v2847, %v2935
      %2937 = vmatmul.bf16.gmra.mxu0 %v1253
      %v2938 = vpop.f32.mrf.mxu0
      %v2939 = vadd.f32 %v2850, %v2938
      %v2940 = vpop.f32.mrf.mxu0
      %v2941 = vadd.f32 %v2852, %v2940
      %2942 = vmatmul.bf16.gmra.mxu0 %v1254
      %v2943 = vpop.f32.mrf.mxu0
      %v2944 = vadd.f32 %v2855, %v2943
      %v2945 = vpop.f32.mrf.mxu0
      %v2946 = vadd.f32 %v2857, %v2945
      %2947 = vdwg.mxu0
      %2948 = vmatpush.bf16.msra.mxu0 %v2745
      %2949 = vmatpush.bf16.msra.mxu0 %v2744
      %2950 = vmatpush.bf16.msra.mxu0 %v2743
      %2951 = vmatpush.bf16.msra.mxu0 %v2742
      %2952 = vmatpush.bf16.msra.mxu0 %v2741
      %2953 = vmatpush.bf16.msra.mxu0 %v2740
      %2954 = vmatpush.bf16.msra.mxu0 %v2739
      %2955 = vmatpush.bf16.msra.mxu0 %v2738
      %2956 = vmatmul.bf16.gmra.mxu0 %v1303
      %v2957 = vpop.f32.mrf.mxu0
      %v2958 = vadd.f32 %v2869, %v2957
      %v2959 = vpop.f32.mrf.mxu0
      %v2960 = vadd.f32 %v2871, %v2959
      %2961 = vmatmul.bf16.gmra.mxu0 %v1304
      %v2962 = vpop.f32.mrf.mxu0
      %v2963 = vadd.f32 %v2874, %v2962
      %v2964 = vpop.f32.mrf.mxu0
      %v2965 = vadd.f32 %v2876, %v2964
      %2966 = vmatmul.bf16.gmra.mxu0 %v1305
      %v2967 = vpop.f32.mrf.mxu0
      %v2968 = vadd.f32 %v2879, %v2967
      %v2969 = vpop.f32.mrf.mxu0
      %v2970 = vadd.f32 %v2881, %v2969
      %2971 = vmatmul.bf16.gmra.mxu0 %v1306
      %v2972 = vpop.f32.mrf.mxu0
      %v2973 = vadd.f32 %v2884, %v2972
      %v2974 = vpop.f32.mrf.mxu0
      %v2975 = vadd.f32 %v2886, %v2974
      %2976 = vmatmul.bf16.gmra.mxu0 %v1307
      %v2977 = vpop.f32.mrf.mxu0
      %v2978 = vadd.f32 %v2889, %v2977
      %v2979 = vpop.f32.mrf.mxu0
      %v2980 = vadd.f32 %v2891, %v2979
      %2981 = vmatmul.bf16.gmra.mxu0 %v1308
      %v2982 = vpop.f32.mrf.mxu0
      %v2983 = vadd.f32 %v2894, %v2982
      %v2984 = vpop.f32.mrf.mxu0
      %v2985 = vadd.f32 %v2896, %v2984
      %2986 = vmatmul.bf16.gmra.mxu0 %v1309
      %v2987 = vpop.f32.mrf.mxu0
      %v2988 = vadd.f32 %v2899, %v2987
      %v2989 = vpop.f32.mrf.mxu0
      %v2990 = vadd.f32 %v2901, %v2989
      %2991 = vmatmul.bf16.gmra.mxu0 %v1310
      %v2992 = vpop.f32.mrf.mxu0
      %v2993 = vadd.f32 %v2904, %v2992
      %v2994 = vpop.f32.mrf.mxu0
      %v2995 = vadd.f32 %v2906, %v2994
      %2996 = vmatmul.bf16.gmra.mxu0 %v1311
      %v2997 = vpop.f32.mrf.mxu0
      %v2998 = vadd.f32 %v2909, %v2997
      %v2999 = vpop.f32.mrf.mxu0
      %v3000 = vadd.f32 %v2911, %v2999
      %3001 = vmatmul.bf16.gmra.mxu0 %v1312
      %v3002 = vpop.f32.mrf.mxu0
      %v3003 = vadd.f32 %v2914, %v3002
      %v3004 = vpop.f32.mrf.mxu0
      %v3005 = vadd.f32 %v2916, %v3004
      %3006 = vmatmul.bf16.gmra.mxu0 %v1313
      %v3007 = vpop.f32.mrf.mxu0
      %v3008 = vadd.f32 %v2919, %v3007
      %v3009 = vpop.f32.mrf.mxu0
      %v3010 = vadd.f32 %v2921, %v3009
      %3011 = vmatmul.bf16.gmra.mxu0 %v1314
      %v3012 = vpop.f32.mrf.mxu0
      %v3013 = vadd.f32 %v2924, %v3012
      %v3014 = vpop.f32.mrf.mxu0
      %v3015 = vadd.f32 %v2926, %v3014
      %3016 = vmatmul.bf16.gmra.mxu0 %v1315
      %v3017 = vpop.f32.mrf.mxu0
      %v3018 = vadd.f32 %v2929, %v3017
      %v3019 = vpop.f32.mrf.mxu0
      %v3020 = vadd.f32 %v2931, %v3019
      %3021 = vmatmul.bf16.gmra.mxu0 %v1316
      %v3022 = vpop.f32.mrf.mxu0
      %v3023 = vadd.f32 %v2934, %v3022
      %v3024 = vpop.f32.mrf.mxu0
      %v3025 = vadd.f32 %v2936, %v3024
      %3026 = vmatmul.bf16.gmra.mxu0 %v1317
      %v3027 = vpop.f32.mrf.mxu0
      %v3028 = vadd.f32 %v2939, %v3027
      %v3029 = vpop.f32.mrf.mxu0
      %v3030 = vadd.f32 %v2941, %v3029
      %3031 = vmatmul.bf16.gmra.mxu0 %v1318
      %v3032 = vpop.f32.mrf.mxu0
      %v3033 = vadd.f32 %v2944, %v3032
      %v3034 = vpop.f32.mrf.mxu0
      %v3035 = vadd.f32 %v2946, %v3034
      %3036 = vdwg.mxu0
      %s3037 = scalar_lea.vmem [#allocation2], 24
      %v3038 = vld [vmem:[%s3037] sm:$0xf]
      %v3039 = vld [vmem:[%s3037 + $0x4] sm:$0xf]
      %v3040 = vld [vmem:[%s3037 + $0x8] sm:$0x1]
      %v3041 = vld [vmem:[%s3037 + $0xc] sm:$0xf]
      %v3042 = vld [vmem:[%s3037 + $0x10] sm:$0xf]
      %v3043 = vld [vmem:[%s3037 + $0x14] sm:$0x1]
      %v3044 = vld [vmem:[%s3037 + $0x18] sm:$0xf]
      %v3045 = vld [vmem:[%s3037 + $0x1c] sm:$0xf]
      %v3046 = vld [vmem:[%s3037 + $0x20] sm:$0x1]
      %v3047 = vld [vmem:[%s3037 + $0x24] sm:$0xf]
      %v3048 = vld [vmem:[%s3037 + $0x28] sm:$0xf]
      %v3049 = vld [vmem:[%s3037 + $0x2c] sm:$0x1]
      %v3050 = vld [vmem:[%s3037 + $0x30] sm:$0xf]
      %v3051 = vld [vmem:[%s3037 + $0x34] sm:$0xf]
      %v3052 = vld [vmem:[%s3037 + $0x38] sm:$0x1]
      %v3053 = vld [vmem:[%s3037 + $0x3c] sm:$0xf]
      %v3054 = vld [vmem:[%s3037 + $0x40] sm:$0xf]
      %v3055 = vld [vmem:[%s3037 + $0x44] sm:$0x1]
      %v3056 = vld [vmem:[%s3037 + $0x48] sm:$0xf]
      %v3057 = vld [vmem:[%s3037 + $0x4c] sm:$0xf]
      %v3058 = vld [vmem:[%s3037 + $0x50] sm:$0x1]
      %v3059 = vld [vmem:[%s3037 + $0x54] sm:$0xf]
      %v3060 = vld [vmem:[%s3037 + $0x58] sm:$0xf]
      %v3061 = vld [vmem:[%s3037 + $0x5c] sm:$0x1]
      %v3062 = vld [vmem:[%s3037 + $0x60] sm:$0xf]
      %v3063 = vld [vmem:[%s3037 + $0x64] sm:$0xf]
      %v3064 = vld [vmem:[%s3037 + $0x68] sm:$0x1]
      %v3065 = vld [vmem:[%s3037 + $0x6c] sm:$0xf]
      %v3066 = vld [vmem:[%s3037 + $0x70] sm:$0xf]
      %v3067 = vld [vmem:[%s3037 + $0x74] sm:$0x1]
      %v3068 = vld [vmem:[%s3037 + $0x78] sm:$0xf]
      %v3069 = vld [vmem:[%s3037 + $0x7c] sm:$0xf]
      %v3070 = vld [vmem:[%s3037 + $0x80] sm:$0x1]
      %v3071 = vld [vmem:[%s3037 + $0x84] sm:$0xf]
      %v3072 = vld [vmem:[%s3037 + $0x88] sm:$0xf]
      %v3073 = vld [vmem:[%s3037 + $0x8c] sm:$0x1]
      %v3074 = vld [vmem:[%s3037 + $0x90] sm:$0xf]
      %v3075 = vld [vmem:[%s3037 + $0x94] sm:$0xf]
      %v3076 = vld [vmem:[%s3037 + $0x98] sm:$0x1]
      %v3077 = vld [vmem:[%s3037 + $0x9c] sm:$0xf]
      %v3078 = vld [vmem:[%s3037 + $0xa0] sm:$0xf]
      %v3079 = vld [vmem:[%s3037 + $0xa4] sm:$0x1]
      %v3080 = vld [vmem:[%s3037 + $0xa8] sm:$0xf]
      %v3081 = vld [vmem:[%s3037 + $0xac] sm:$0xf]
      %v3082 = vld [vmem:[%s3037 + $0xb0] sm:$0x1]
      %v3083 = vld [vmem:[%s3037 + $0xb4] sm:$0xf]
      %v3084 = vld [vmem:[%s3037 + $0xb8] sm:$0xf]
      %v3085 = vld [vmem:[%s3037 + $0xbc] sm:$0x1]
      %v3087 = vshrl.u32 %v3038, 16
      %v3089 = vrot.slane %v3087, 4
      %v3090 = vshll.u32 %v3038, 16
      %v3092 = vrot.slane %v3090, 5
      %v3093 = vor.u32 %v3089, %v3092
      %v3094 = vrot.slane %v3093, 4
      %v3096 = vshll.u32 %v3039, 16
      %v3098 = vrot.slane %v3096, 5
      %v3099 = vsel %vm595, %v3094, %v3098
      %v3100 = vshrl.u32 %v3039, 16
      %v3102 = vrot.slane %v3100, 4
      %v3103 = vor.u32 %v3102, %v3098
      %v3104 = vrot.slane %v3103, 4
      %v3106 = vshll.u32 %v3040, 16
      %v3108 = vrot.slane %v3106, 5
      %v3109 = vsel %vm595, %v3104, %v3108
      %v3111 = vshrl.u32 %v3041, 16
      %v3113 = vrot.slane %v3111, 4
      %v3114 = vshll.u32 %v3041, 16
      %v3116 = vrot.slane %v3114, 5
      %v3117 = vor.u32 %v3113, %v3116
      %v3118 = vrot.slane %v3117, 4
      %v3120 = vshll.u32 %v3042, 16
      %v3122 = vrot.slane %v3120, 5
      %v3123 = vsel %vm595, %v3118, %v3122
      %v3124 = vshrl.u32 %v3042, 16
      %v3126 = vrot.slane %v3124, 4
      %v3127 = vor.u32 %v3126, %v3122
      %v3128 = vrot.slane %v3127, 4
      %v3130 = vshll.u32 %v3043, 16
      %v3132 = vrot.slane %v3130, 5
      %v3133 = vsel %vm595, %v3128, %v3132
      %v3135 = vshrl.u32 %v3044, 16
      %v3137 = vrot.slane %v3135, 4
      %v3138 = vshll.u32 %v3044, 16
      %v3140 = vrot.slane %v3138, 5
      %v3141 = vor.u32 %v3137, %v3140
      %v3142 = vrot.slane %v3141, 4
      %v3144 = vshll.u32 %v3045, 16
      %v3146 = vrot.slane %v3144, 5
      %v3147 = vsel %vm595, %v3142, %v3146
      %v3148 = vshrl.u32 %v3045, 16
      %v3150 = vrot.slane %v3148, 4
      %v3151 = vor.u32 %v3150, %v3146
      %v3152 = vrot.slane %v3151, 4
      %v3154 = vshll.u32 %v3046, 16
      %v3156 = vrot.slane %v3154, 5
      %v3157 = vsel %vm595, %v3152, %v3156
      %v3159 = vshrl.u32 %v3047, 16
      %v3161 = vrot.slane %v3159, 4
      %v3162 = vshll.u32 %v3047, 16
      %v3164 = vrot.slane %v3162, 5
      %v3165 = vor.u32 %v3161, %v3164
      %v3166 = vrot.slane %v3165, 4
      %v3168 = vshll.u32 %v3048, 16
      %v3170 = vrot.slane %v3168, 5
      %v3171 = vsel %vm595, %v3166, %v3170
      %v3172 = vshrl.u32 %v3048, 16
      %v3174 = vrot.slane %v3172, 4
      %v3175 = vor.u32 %v3174, %v3170
      %v3176 = vrot.slane %v3175, 4
      %v3178 = vshll.u32 %v3049, 16
      %v3180 = vrot.slane %v3178, 5
      %v3181 = vsel %vm595, %v3176, %v3180
      %v3183 = vshrl.u32 %v3050, 16
      %v3185 = vrot.slane %v3183, 4
      %v3186 = vshll.u32 %v3050, 16
      %v3188 = vrot.slane %v3186, 5
      %v3189 = vor.u32 %v3185, %v3188
      %v3190 = vrot.slane %v3189, 4
      %v3192 = vshll.u32 %v3051, 16
      %v3194 = vrot.slane %v3192, 5
      %v3195 = vsel %vm595, %v3190, %v3194
      %v3196 = vshrl.u32 %v3051, 16
      %v3198 = vrot.slane %v3196, 4
      %v3199 = vor.u32 %v3198, %v3194
      %v3200 = vrot.slane %v3199, 4
      %v3202 = vshll.u32 %v3052, 16
      %v3204 = vrot.slane %v3202, 5
      %v3205 = vsel %vm595, %v3200, %v3204
      %v3207 = vshrl.u32 %v3053, 16
      %v3209 = vrot.slane %v3207, 4
      %v3210 = vshll.u32 %v3053, 16
      %v3212 = vrot.slane %v3210, 5
      %v3213 = vor.u32 %v3209, %v3212
      %v3214 = vrot.slane %v3213, 4
      %v3216 = vshll.u32 %v3054, 16
      %v3218 = vrot.slane %v3216, 5
      %v3219 = vsel %vm595, %v3214, %v3218
      %v3220 = vshrl.u32 %v3054, 16
      %v3222 = vrot.slane %v3220, 4
      %v3223 = vor.u32 %v3222, %v3218
      %v3224 = vrot.slane %v3223, 4
      %v3226 = vshll.u32 %v3055, 16
      %v3228 = vrot.slane %v3226, 5
      %v3229 = vsel %vm595, %v3224, %v3228
      %v3231 = vshrl.u32 %v3056, 16
      %v3233 = vrot.slane %v3231, 4
      %v3234 = vshll.u32 %v3056, 16
      %v3236 = vrot.slane %v3234, 5
      %v3237 = vor.u32 %v3233, %v3236
      %v3238 = vrot.slane %v3237, 4
      %v3240 = vshll.u32 %v3057, 16
      %v3242 = vrot.slane %v3240, 5
      %v3243 = vsel %vm595, %v3238, %v3242
      %v3244 = vshrl.u32 %v3057, 16
      %v3246 = vrot.slane %v3244, 4
      %v3247 = vor.u32 %v3246, %v3242
      %v3248 = vrot.slane %v3247, 4
      %v3250 = vshll.u32 %v3058, 16
      %v3252 = vrot.slane %v3250, 5
      %v3253 = vsel %vm595, %v3248, %v3252
      %v3255 = vshrl.u32 %v3059, 16
      %v3257 = vrot.slane %v3255, 4
      %v3258 = vshll.u32 %v3059, 16
      %v3260 = vrot.slane %v3258, 5
      %v3261 = vor.u32 %v3257, %v3260
      %v3262 = vrot.slane %v3261, 4
      %v3264 = vshll.u32 %v3060, 16
      %v3266 = vrot.slane %v3264, 5
      %v3267 = vsel %vm595, %v3262, %v3266
      %v3268 = vshrl.u32 %v3060, 16
      %v3270 = vrot.slane %v3268, 4
      %v3271 = vor.u32 %v3270, %v3266
      %v3272 = vrot.slane %v3271, 4
      %v3274 = vshll.u32 %v3061, 16
      %v3276 = vrot.slane %v3274, 5
      %v3277 = vsel %vm595, %v3272, %v3276
      %v3279 = vshrl.u32 %v3062, 16
      %v3281 = vrot.slane %v3279, 4
      %v3282 = vshll.u32 %v3062, 16
      %v3284 = vrot.slane %v3282, 5
      %v3285 = vor.u32 %v3281, %v3284
      %v3286 = vrot.slane %v3285, 4
      %v3288 = vshll.u32 %v3063, 16
      %v3290 = vrot.slane %v3288, 5
      %v3291 = vsel %vm595, %v3286, %v3290
      %v3292 = vshrl.u32 %v3063, 16
      %v3294 = vrot.slane %v3292, 4
      %v3295 = vor.u32 %v3294, %v3290
      %v3296 = vrot.slane %v3295, 4
      %v3298 = vshll.u32 %v3064, 16
      %v3300 = vrot.slane %v3298, 5
      %v3301 = vsel %vm595, %v3296, %v3300
      %v3303 = vshrl.u32 %v3065, 16
      %v3305 = vrot.slane %v3303, 4
      %v3306 = vshll.u32 %v3065, 16
      %v3308 = vrot.slane %v3306, 5
      %v3309 = vor.u32 %v3305, %v3308
      %v3310 = vrot.slane %v3309, 4
      %v3312 = vshll.u32 %v3066, 16
      %v3314 = vrot.slane %v3312, 5
      %v3315 = vsel %vm595, %v3310, %v3314
      %v3316 = vshrl.u32 %v3066, 16
      %v3318 = vrot.slane %v3316, 4
      %v3319 = vor.u32 %v3318, %v3314
      %v3320 = vrot.slane %v3319, 4
      %v3322 = vshll.u32 %v3067, 16
      %v3324 = vrot.slane %v3322, 5
      %v3325 = vsel %vm595, %v3320, %v3324
      %v3327 = vshrl.u32 %v3068, 16
      %v3329 = vrot.slane %v3327, 4
      %v3330 = vshll.u32 %v3068, 16
      %v3332 = vrot.slane %v3330, 5
      %v3333 = vor.u32 %v3329, %v3332
      %v3334 = vrot.slane %v3333, 4
      %v3336 = vshll.u32 %v3069, 16
      %v3338 = vrot.slane %v3336, 5
      %v3339 = vsel %vm595, %v3334, %v3338
      %v3340 = vshrl.u32 %v3069, 16
      %v3342 = vrot.slane %v3340, 4
      %v3343 = vor.u32 %v3342, %v3338
      %v3344 = vrot.slane %v3343, 4
      %v3346 = vshll.u32 %v3070, 16
      %v3348 = vrot.slane %v3346, 5
      %v3349 = vsel %vm595, %v3344, %v3348
      %v3351 = vshrl.u32 %v3071, 16
      %v3353 = vrot.slane %v3351, 4
      %v3354 = vshll.u32 %v3071, 16
      %v3356 = vrot.slane %v3354, 5
      %v3357 = vor.u32 %v3353, %v3356
      %v3358 = vrot.slane %v3357, 4
      %v3360 = vshll.u32 %v3072, 16
      %v3362 = vrot.slane %v3360, 5
      %v3363 = vsel %vm595, %v3358, %v3362
      %v3364 = vshrl.u32 %v3072, 16
      %v3366 = vrot.slane %v3364, 4
      %v3367 = vor.u32 %v3366, %v3362
      %v3368 = vrot.slane %v3367, 4
      %v3370 = vshll.u32 %v3073, 16
      %v3372 = vrot.slane %v3370, 5
      %v3373 = vsel %vm595, %v3368, %v3372
      %v3375 = vshrl.u32 %v3074, 16
      %v3377 = vrot.slane %v3375, 4
      %v3378 = vshll.u32 %v3074, 16
      %v3380 = vrot.slane %v3378, 5
      %v3381 = vor.u32 %v3377, %v3380
      %v3382 = vrot.slane %v3381, 4
      %v3384 = vshll.u32 %v3075, 16
      %v3386 = vrot.slane %v3384, 5
      %v3387 = vsel %vm595, %v3382, %v3386
      %v3388 = vshrl.u32 %v3075, 16
      %v3390 = vrot.slane %v3388, 4
      %v3391 = vor.u32 %v3390, %v3386
      %v3392 = vrot.slane %v3391, 4
      %v3394 = vshll.u32 %v3076, 16
      %v3396 = vrot.slane %v3394, 5
      %v3397 = vsel %vm595, %v3392, %v3396
      %v3399 = vshrl.u32 %v3077, 16
      %v3401 = vrot.slane %v3399, 4
      %v3402 = vshll.u32 %v3077, 16
      %v3404 = vrot.slane %v3402, 5
      %v3405 = vor.u32 %v3401, %v3404
      %v3406 = vrot.slane %v3405, 4
      %v3408 = vshll.u32 %v3078, 16
      %v3410 = vrot.slane %v3408, 5
      %v3411 = vsel %vm595, %v3406, %v3410
      %v3412 = vshrl.u32 %v3078, 16
      %v3414 = vrot.slane %v3412, 4
      %v3415 = vor.u32 %v3414, %v3410
      %v3416 = vrot.slane %v3415, 4
      %v3418 = vshll.u32 %v3079, 16
      %v3420 = vrot.slane %v3418, 5
      %v3421 = vsel %vm595, %v3416, %v3420
      %v3423 = vshrl.u32 %v3080, 16
      %v3425 = vrot.slane %v3423, 4
      %v3426 = vshll.u32 %v3080, 16
      %v3428 = vrot.slane %v3426, 5
      %v3429 = vor.u32 %v3425, %v3428
      %v3430 = vrot.slane %v3429, 4
      %v3432 = vshll.u32 %v3081, 16
      %v3434 = vrot.slane %v3432, 5
      %v3435 = vsel %vm595, %v3430, %v3434
      %v3436 = vshrl.u32 %v3081, 16
      %v3438 = vrot.slane %v3436, 4
      %v3439 = vor.u32 %v3438, %v3434
      %v3440 = vrot.slane %v3439, 4
      %v3442 = vshll.u32 %v3082, 16
      %v3444 = vrot.slane %v3442, 5
      %v3445 = vsel %vm595, %v3440, %v3444
      %v3447 = vshrl.u32 %v3083, 16
      %v3449 = vrot.slane %v3447, 4
      %v3450 = vshll.u32 %v3083, 16
      %v3452 = vrot.slane %v3450, 5
      %v3453 = vor.u32 %v3449, %v3452
      %v3454 = vrot.slane %v3453, 4
      %v3456 = vshll.u32 %v3084, 16
      %v3458 = vrot.slane %v3456, 5
      %v3459 = vsel %vm595, %v3454, %v3458
      %v3460 = vshrl.u32 %v3084, 16
      %v3462 = vrot.slane %v3460, 4
      %v3463 = vor.u32 %v3462, %v3458
      %v3464 = vrot.slane %v3463, 4
      %v3466 = vshll.u32 %v3085, 16
      %v3468 = vrot.slane %v3466, 5
      %v3469 = vsel %vm595, %v3464, %v3468
      %v3518 = vrot.slane %v3038, 5
      %v3519 = vrot.slane %v3518, 4
      %v3520 = vrot.slane %v3039, 5
      %v3521 = vsel %vm1030, %v3519, %v3520
      %v3522 = vrot.slane %v3520, 4
      %v3523 = vrot.slane %v3040, 5
      %v3524 = vsel %vm1030, %v3522, %v3523
      %v3525 = vrot.slane %v3041, 5
      %v3526 = vrot.slane %v3525, 4
      %v3527 = vrot.slane %v3042, 5
      %v3528 = vsel %vm1030, %v3526, %v3527
      %v3529 = vrot.slane %v3527, 4
      %v3530 = vrot.slane %v3043, 5
      %v3531 = vsel %vm1030, %v3529, %v3530
      %v3532 = vrot.slane %v3044, 5
      %v3533 = vrot.slane %v3532, 4
      %v3534 = vrot.slane %v3045, 5
      %v3535 = vsel %vm1030, %v3533, %v3534
      %v3536 = vrot.slane %v3534, 4
      %v3537 = vrot.slane %v3046, 5
      %v3538 = vsel %vm1030, %v3536, %v3537
      %v3539 = vrot.slane %v3047, 5
      %v3540 = vrot.slane %v3539, 4
      %v3541 = vrot.slane %v3048, 5
      %v3542 = vsel %vm1030, %v3540, %v3541
      %v3543 = vrot.slane %v3541, 4
      %v3544 = vrot.slane %v3049, 5
      %v3545 = vsel %vm1030, %v3543, %v3544
      %v3546 = vrot.slane %v3050, 5
      %v3547 = vrot.slane %v3546, 4
      %v3548 = vrot.slane %v3051, 5
      %v3549 = vsel %vm1030, %v3547, %v3548
      %v3550 = vrot.slane %v3548, 4
      %v3551 = vrot.slane %v3052, 5
      %v3552 = vsel %vm1030, %v3550, %v3551
      %v3553 = vrot.slane %v3053, 5
      %v3554 = vrot.slane %v3553, 4
      %v3555 = vrot.slane %v3054, 5
      %v3556 = vsel %vm1030, %v3554, %v3555
      %v3557 = vrot.slane %v3555, 4
      %v3558 = vrot.slane %v3055, 5
      %v3559 = vsel %vm1030, %v3557, %v3558
      %v3560 = vrot.slane %v3056, 5
      %v3561 = vrot.slane %v3560, 4
      %v3562 = vrot.slane %v3057, 5
      %v3563 = vsel %vm1030, %v3561, %v3562
      %v3564 = vrot.slane %v3562, 4
      %v3565 = vrot.slane %v3058, 5
      %v3566 = vsel %vm1030, %v3564, %v3565
      %v3567 = vrot.slane %v3059, 5
      %v3568 = vrot.slane %v3567, 4
      %v3569 = vrot.slane %v3060, 5
      %v3570 = vsel %vm1030, %v3568, %v3569
      %v3571 = vrot.slane %v3569, 4
      %v3572 = vrot.slane %v3061, 5
      %v3573 = vsel %vm1030, %v3571, %v3572
      %v3574 = vrot.slane %v3062, 5
      %v3575 = vrot.slane %v3574, 4
      %v3576 = vrot.slane %v3063, 5
      %v3577 = vsel %vm1030, %v3575, %v3576
      %v3578 = vrot.slane %v3576, 4
      %v3579 = vrot.slane %v3064, 5
      %v3580 = vsel %vm1030, %v3578, %v3579
      %v3581 = vrot.slane %v3065, 5
      %v3582 = vrot.slane %v3581, 4
      %v3583 = vrot.slane %v3066, 5
      %v3584 = vsel %vm1030, %v3582, %v3583
      %v3585 = vrot.slane %v3583, 4
      %v3586 = vrot.slane %v3067, 5
      %v3587 = vsel %vm1030, %v3585, %v3586
      %v3588 = vrot.slane %v3068, 5
      %v3589 = vrot.slane %v3588, 4
      %v3590 = vrot.slane %v3069, 5
      %v3591 = vsel %vm1030, %v3589, %v3590
      %v3592 = vrot.slane %v3590, 4
      %v3593 = vrot.slane %v3070, 5
      %v3594 = vsel %vm1030, %v3592, %v3593
      %v3595 = vrot.slane %v3071, 5
      %v3596 = vrot.slane %v3595, 4
      %v3597 = vrot.slane %v3072, 5
      %v3598 = vsel %vm1030, %v3596, %v3597
      %v3599 = vrot.slane %v3597, 4
      %v3600 = vrot.slane %v3073, 5
      %v3601 = vsel %vm1030, %v3599, %v3600
      %v3602 = vrot.slane %v3074, 5
      %v3603 = vrot.slane %v3602, 4
      %v3604 = vrot.slane %v3075, 5
      %v3605 = vsel %vm1030, %v3603, %v3604
      %v3606 = vrot.slane %v3604, 4
      %v3607 = vrot.slane %v3076, 5
      %v3608 = vsel %vm1030, %v3606, %v3607
      %v3609 = vrot.slane %v3077, 5
      %v3610 = vrot.slane %v3609, 4
      %v3611 = vrot.slane %v3078, 5
      %v3612 = vsel %vm1030, %v3610, %v3611
      %v3613 = vrot.slane %v3611, 4
      %v3614 = vrot.slane %v3079, 5
      %v3615 = vsel %vm1030, %v3613, %v3614
      %v3616 = vrot.slane %v3080, 5
      %v3617 = vrot.slane %v3616, 4
      %v3618 = vrot.slane %v3081, 5
      %v3619 = vsel %vm1030, %v3617, %v3618
      %v3620 = vrot.slane %v3618, 4
      %v3621 = vrot.slane %v3082, 5
      %v3622 = vsel %vm1030, %v3620, %v3621
      %v3623 = vrot.slane %v3083, 5
      %v3624 = vrot.slane %v3623, 4
      %v3625 = vrot.slane %v3084, 5
      %v3626 = vsel %vm1030, %v3624, %v3625
      %v3627 = vrot.slane %v3625, 4
      %v3628 = vrot.slane %v3085, 5
      %v3629 = vsel %vm1030, %v3627, %v3628
      %v3630 = vunpack.c.l.b16 %v3038
      %v3631 = vunpack.c.l.b16 %v3039
      %v3632 = vunpack.c.l.b16 %v3041
      %v3633 = vunpack.c.l.b16 %v3042
      %v3634 = vunpack.c.l.b16 %v3044
      %v3635 = vunpack.c.l.b16 %v3045
      %v3636 = vunpack.c.l.b16 %v3047
      %v3637 = vunpack.c.l.b16 %v3048
      %v3638 = vunpack.c.l.b16 %v3050
      %v3639 = vunpack.c.l.b16 %v3051
      %v3640 = vunpack.c.l.b16 %v3053
      %v3641 = vunpack.c.l.b16 %v3054
      %v3642 = vunpack.c.l.b16 %v3056
      %v3643 = vunpack.c.l.b16 %v3057
      %v3644 = vunpack.c.l.b16 %v3059
      %v3645 = vunpack.c.l.b16 %v3060
      %v3646 = vunpack.c.l.b16 %v3062
      %v3647 = vunpack.c.l.b16 %v3063
      %v3648 = vunpack.c.l.b16 %v3065
      %v3649 = vunpack.c.l.b16 %v3066
      %v3650 = vunpack.c.l.b16 %v3068
      %v3651 = vunpack.c.l.b16 %v3069
      %v3652 = vunpack.c.l.b16 %v3071
      %v3653 = vunpack.c.l.b16 %v3072
      %v3654 = vunpack.c.l.b16 %v3074
      %v3655 = vunpack.c.l.b16 %v3075
      %v3656 = vunpack.c.l.b16 %v3077
      %v3657 = vunpack.c.l.b16 %v3078
      %v3658 = vunpack.c.l.b16 %v3080
      %v3659 = vunpack.c.l.b16 %v3081
      %v3660 = vunpack.c.l.b16 %v3083
      %v3661 = vunpack.c.l.b16 %v3084
      %v3662 = vpack.c.b16 %v3631, %v3630
      %v3663 = vpack.c.b16 %v3633, %v3632
      %v3664 = vpack.c.b16 %v3635, %v3634
      %v3665 = vpack.c.b16 %v3637, %v3636
      %v3666 = vpack.c.b16 %v3639, %v3638
      %v3667 = vpack.c.b16 %v3641, %v3640
      %v3668 = vpack.c.b16 %v3643, %v3642
      %v3669 = vpack.c.b16 %v3645, %v3644
      %v3670 = vpack.c.b16 %v3647, %v3646
      %v3671 = vpack.c.b16 %v3649, %v3648
      %v3672 = vpack.c.b16 %v3651, %v3650
      %v3673 = vpack.c.b16 %v3653, %v3652
      %v3674 = vpack.c.b16 %v3655, %v3654
      %v3675 = vpack.c.b16 %v3657, %v3656
      %v3676 = vpack.c.b16 %v3659, %v3658
      %v3677 = vpack.c.b16 %v3661, %v3660
      %v3694 = vunpack.c.l.b16 %v3099
      %v3695 = vunpack.c.l.b16 %v3109
      %v3696 = vunpack.c.l.b16 %v3123
      %v3697 = vunpack.c.l.b16 %v3133
      %v3698 = vunpack.c.l.b16 %v3147
      %v3699 = vunpack.c.l.b16 %v3157
      %v3700 = vunpack.c.l.b16 %v3171
      %v3701 = vunpack.c.l.b16 %v3181
      %v3702 = vunpack.c.l.b16 %v3195
      %v3703 = vunpack.c.l.b16 %v3205
      %v3704 = vunpack.c.l.b16 %v3219
      %v3705 = vunpack.c.l.b16 %v3229
      %v3706 = vunpack.c.l.b16 %v3243
      %v3707 = vunpack.c.l.b16 %v3253
      %v3708 = vunpack.c.l.b16 %v3267
      %v3709 = vunpack.c.l.b16 %v3277
      %v3710 = vunpack.c.l.b16 %v3291
      %v3711 = vunpack.c.l.b16 %v3301
      %v3712 = vunpack.c.l.b16 %v3315
      %v3713 = vunpack.c.l.b16 %v3325
      %v3714 = vunpack.c.l.b16 %v3339
      %v3715 = vunpack.c.l.b16 %v3349
      %v3716 = vunpack.c.l.b16 %v3363
      %v3717 = vunpack.c.l.b16 %v3373
      %v3718 = vunpack.c.l.b16 %v3387
      %v3719 = vunpack.c.l.b16 %v3397
      %v3720 = vunpack.c.l.b16 %v3411
      %v3721 = vunpack.c.l.b16 %v3421
      %v3722 = vunpack.c.l.b16 %v3435
      %v3723 = vunpack.c.l.b16 %v3445
      %v3724 = vunpack.c.l.b16 %v3459
      %v3725 = vunpack.c.l.b16 %v3469
      %v3726 = vpack.c.b16 %v3695, %v3694
      %v3727 = vpack.c.b16 %v3697, %v3696
      %v3728 = vpack.c.b16 %v3699, %v3698
      %v3729 = vpack.c.b16 %v3701, %v3700
      %v3730 = vpack.c.b16 %v3703, %v3702
      %v3731 = vpack.c.b16 %v3705, %v3704
      %v3732 = vpack.c.b16 %v3707, %v3706
      %v3733 = vpack.c.b16 %v3709, %v3708
      %v3734 = vpack.c.b16 %v3711, %v3710
      %v3735 = vpack.c.b16 %v3713, %v3712
      %v3736 = vpack.c.b16 %v3715, %v3714
      %v3737 = vpack.c.b16 %v3717, %v3716
      %v3738 = vpack.c.b16 %v3719, %v3718
      %v3739 = vpack.c.b16 %v3721, %v3720
      %v3740 = vpack.c.b16 %v3723, %v3722
      %v3741 = vpack.c.b16 %v3725, %v3724
      %v3758 = vunpack.c.l.b16 %v3521
      %v3759 = vunpack.c.l.b16 %v3524
      %v3760 = vunpack.c.l.b16 %v3528
      %v3761 = vunpack.c.l.b16 %v3531
      %v3762 = vunpack.c.l.b16 %v3535
      %v3763 = vunpack.c.l.b16 %v3538
      %v3764 = vunpack.c.l.b16 %v3542
      %v3765 = vunpack.c.l.b16 %v3545
      %v3766 = vunpack.c.l.b16 %v3549
      %v3767 = vunpack.c.l.b16 %v3552
      %v3768 = vunpack.c.l.b16 %v3556
      %v3769 = vunpack.c.l.b16 %v3559
      %v3770 = vunpack.c.l.b16 %v3563
      %v3771 = vunpack.c.l.b16 %v3566
      %v3772 = vunpack.c.l.b16 %v3570
      %v3773 = vunpack.c.l.b16 %v3573
      %v3774 = vunpack.c.l.b16 %v3577
      %v3775 = vunpack.c.l.b16 %v3580
      %v3776 = vunpack.c.l.b16 %v3584
      %v3777 = vunpack.c.l.b16 %v3587
      %v3778 = vunpack.c.l.b16 %v3591
      %v3779 = vunpack.c.l.b16 %v3594
      %v3780 = vunpack.c.l.b16 %v3598
      %v3781 = vunpack.c.l.b16 %v3601
      %v3782 = vunpack.c.l.b16 %v3605
      %v3783 = vunpack.c.l.b16 %v3608
      %v3784 = vunpack.c.l.b16 %v3612
      %v3785 = vunpack.c.l.b16 %v3615
      %v3786 = vunpack.c.l.b16 %v3619
      %v3787 = vunpack.c.l.b16 %v3622
      %v3788 = vunpack.c.l.b16 %v3626
      %v3789 = vunpack.c.l.b16 %v3629
      %v3790 = vpack.c.b16 %v3759, %v3758
      %v3791 = vpack.c.b16 %v3761, %v3760
      %v3792 = vpack.c.b16 %v3763, %v3762
      %v3793 = vpack.c.b16 %v3765, %v3764
      %v3794 = vpack.c.b16 %v3767, %v3766
      %v3795 = vpack.c.b16 %v3769, %v3768
      %v3796 = vpack.c.b16 %v3771, %v3770
      %v3797 = vpack.c.b16 %v3773, %v3772
      %v3798 = vpack.c.b16 %v3775, %v3774
      %v3799 = vpack.c.b16 %v3777, %v3776
      %v3800 = vpack.c.b16 %v3779, %v3778
      %v3801 = vpack.c.b16 %v3781, %v3780
      %v3802 = vpack.c.b16 %v3783, %v3782
      %v3803 = vpack.c.b16 %v3785, %v3784
      %v3804 = vpack.c.b16 %v3787, %v3786
      %v3805 = vpack.c.b16 %v3789, %v3788
      %v3822 = vld [vmem:[%s3 + $0x180] sm:$0xf]
      %v3823 = vld [vmem:[%s3 + $0x184] sm:$0xf]
      %v3824 = vld [vmem:[%s3 + $0x188] sm:$0xf]
      %v3825 = vld [vmem:[%s3 + $0x18c] sm:$0xf]
      %v3826 = vld [vmem:[%s3 + $0x190] sm:$0xf]
      %v3827 = vld [vmem:[%s3 + $0x194] sm:$0xf]
      %v3828 = vld [vmem:[%s3 + $0x198] sm:$0xf]
      %v3829 = vld [vmem:[%s3 + $0x19c] sm:$0xf]
      %v3830 = vld [vmem:[%s3 + $0x1a0] sm:$0xf]
      %v3831 = vld [vmem:[%s3 + $0x1a4] sm:$0xf]
      %v3832 = vld [vmem:[%s3 + $0x1a8] sm:$0xf]
      %v3833 = vld [vmem:[%s3 + $0x1ac] sm:$0xf]
      %v3834 = vld [vmem:[%s3 + $0x1b0] sm:$0xf]
      %v3835 = vld [vmem:[%s3 + $0x1b4] sm:$0xf]
      %v3836 = vld [vmem:[%s3 + $0x1b8] sm:$0xf]
      %v3837 = vld [vmem:[%s3 + $0x1bc] sm:$0xf]
      %v3838 = vld [vmem:[%s3 + $0x1c0] sm:$0xf]
      %v3839 = vld [vmem:[%s3 + $0x1c4] sm:$0xf]
      %v3840 = vld [vmem:[%s3 + $0x1c8] sm:$0xf]
      %v3841 = vld [vmem:[%s3 + $0x1cc] sm:$0xf]
      %v3842 = vld [vmem:[%s3 + $0x1d0] sm:$0xf]
      %v3843 = vld [vmem:[%s3 + $0x1d4] sm:$0xf]
      %v3844 = vld [vmem:[%s3 + $0x1d8] sm:$0xf]
      %v3845 = vld [vmem:[%s3 + $0x1dc] sm:$0xf]
      %v3846 = vld [vmem:[%s3 + $0x1e0] sm:$0xf]
      %v3847 = vld [vmem:[%s3 + $0x1e4] sm:$0xf]
      %v3848 = vld [vmem:[%s3 + $0x1e8] sm:$0xf]
      %v3849 = vld [vmem:[%s3 + $0x1ec] sm:$0xf]
      %v3850 = vld [vmem:[%s3 + $0x1f0] sm:$0xf]
      %v3851 = vld [vmem:[%s3 + $0x1f4] sm:$0xf]
      %v3852 = vld [vmem:[%s3 + $0x1f8] sm:$0xf]
      %v3853 = vld [vmem:[%s3 + $0x1fc] sm:$0xf]
      %v3854 = vld [vmem:[%s3 + $0x200] sm:$0xf]
      %v3855 = vld [vmem:[%s3 + $0x204] sm:$0xf]
      %v3856 = vld [vmem:[%s3 + $0x208] sm:$0xf]
      %v3857 = vld [vmem:[%s3 + $0x20c] sm:$0xf]
      %v3858 = vld [vmem:[%s3 + $0x210] sm:$0xf]
      %v3859 = vld [vmem:[%s3 + $0x214] sm:$0xf]
      %v3860 = vld [vmem:[%s3 + $0x218] sm:$0xf]
      %v3861 = vld [vmem:[%s3 + $0x21c] sm:$0xf]
      %v3862 = vld [vmem:[%s3 + $0x220] sm:$0xf]
      %v3863 = vld [vmem:[%s3 + $0x224] sm:$0xf]
      %v3864 = vld [vmem:[%s3 + $0x228] sm:$0xf]
      %v3865 = vld [vmem:[%s3 + $0x22c] sm:$0xf]
      %v3866 = vld [vmem:[%s3 + $0x230] sm:$0xf]
      %v3867 = vld [vmem:[%s3 + $0x234] sm:$0xf]
      %v3868 = vld [vmem:[%s3 + $0x238] sm:$0xf]
      %v3869 = vld [vmem:[%s3 + $0x23c] sm:$0xf]
      %v3918 = vunpack.c.l.b16 %v3822
      %v3919 = vunpack.c.l.b16 %v3823
      %v3920 = vunpack.c.l.b16 %v3824
      %v3921 = vunpack.c.l.b16 %v3825
      %v3922 = vunpack.c.l.b16 %v3826
      %v3923 = vunpack.c.l.b16 %v3827
      %v3924 = vunpack.c.l.b16 %v3828
      %v3925 = vunpack.c.l.b16 %v3829
      %v3926 = vunpack.c.l.b16 %v3830
      %v3927 = vunpack.c.l.b16 %v3831
      %v3928 = vunpack.c.l.b16 %v3832
      %v3929 = vunpack.c.l.b16 %v3833
      %v3930 = vunpack.c.l.b16 %v3834
      %v3931 = vunpack.c.l.b16 %v3835
      %v3932 = vunpack.c.l.b16 %v3836
      %v3933 = vunpack.c.l.b16 %v3837
      %v3934 = vunpack.c.l.b16 %v3838
      %v3935 = vunpack.c.l.b16 %v3839
      %v3936 = vunpack.c.l.b16 %v3840
      %v3937 = vunpack.c.l.b16 %v3841
      %v3938 = vunpack.c.l.b16 %v3842
      %v3939 = vunpack.c.l.b16 %v3843
      %v3940 = vunpack.c.l.b16 %v3844
      %v3941 = vunpack.c.l.b16 %v3845
      %v3942 = vunpack.c.l.b16 %v3846
      %v3943 = vunpack.c.l.b16 %v3847
      %v3944 = vunpack.c.l.b16 %v3848
      %v3945 = vunpack.c.l.b16 %v3849
      %v3946 = vunpack.c.l.b16 %v3850
      %v3947 = vunpack.c.l.b16 %v3851
      %v3948 = vunpack.c.l.b16 %v3852
      %v3949 = vunpack.c.l.b16 %v3853
      %v3950 = vunpack.c.l.b16 %v3854
      %v3951 = vunpack.c.l.b16 %v3855
      %v3952 = vunpack.c.l.b16 %v3856
      %v3953 = vunpack.c.l.b16 %v3857
      %v3954 = vunpack.c.l.b16 %v3858
      %v3955 = vunpack.c.l.b16 %v3859
      %v3956 = vunpack.c.l.b16 %v3860
      %v3957 = vunpack.c.l.b16 %v3861
      %v3958 = vunpack.c.l.b16 %v3862
      %v3959 = vunpack.c.l.b16 %v3863
      %v3960 = vunpack.c.l.b16 %v3864
      %v3961 = vunpack.c.l.b16 %v3865
      %v3962 = vunpack.c.l.b16 %v3866
      %v3963 = vunpack.c.l.b16 %v3867
      %v3964 = vunpack.c.l.b16 %v3868
      %v3965 = vunpack.c.l.b16 %v3869
      %v3966 = vpack.c.b16 %v3919, %v3918
      %v3967 = vpack.c.b16 %v3921, %v3920
      %v3968 = vpack.c.b16 %v3923, %v3922
      %v3969 = vpack.c.b16 %v3925, %v3924
      %v3970 = vpack.c.b16 %v3927, %v3926
      %v3971 = vpack.c.b16 %v3929, %v3928
      %v3972 = vpack.c.b16 %v3931, %v3930
      %v3973 = vpack.c.b16 %v3933, %v3932
      %v3974 = vpack.c.b16 %v3935, %v3934
      %v3975 = vpack.c.b16 %v3937, %v3936
      %v3976 = vpack.c.b16 %v3939, %v3938
      %v3977 = vpack.c.b16 %v3941, %v3940
      %v3978 = vpack.c.b16 %v3943, %v3942
      %v3979 = vpack.c.b16 %v3945, %v3944
      %v3980 = vpack.c.b16 %v3947, %v3946
      %v3981 = vpack.c.b16 %v3949, %v3948
      %v3982 = vpack.c.b16 %v3951, %v3950
      %v3983 = vpack.c.b16 %v3953, %v3952
      %v3984 = vpack.c.b16 %v3955, %v3954
      %v3985 = vpack.c.b16 %v3957, %v3956
      %v3986 = vpack.c.b16 %v3959, %v3958
      %v3987 = vpack.c.b16 %v3961, %v3960
      %v3988 = vpack.c.b16 %v3963, %v3962
      %v3989 = vpack.c.b16 %v3965, %v3964
      %4014 = vmatpush.bf16.msra.mxu0 %v3973
      %4015 = vmatpush.bf16.msra.mxu0 %v3972
      %4016 = vmatpush.bf16.msra.mxu0 %v3971
      %4017 = vmatpush.bf16.msra.mxu0 %v3970
      %4018 = vmatpush.bf16.msra.mxu0 %v3969
      %4019 = vmatpush.bf16.msra.mxu0 %v3968
      %4020 = vmatpush.bf16.msra.mxu0 %v3967
      %4021 = vmatpush.bf16.msra.mxu0 %v3966
      %4022 = vmatmul.bf16.gmra.mxu0 %v3662
      %v4023 = vpop.f32.mrf.mxu0
      %v4024 = vadd.f32 0.0, %v4023
      %v4025 = vpop.f32.mrf.mxu0
      %v4026 = vadd.f32 0.0, %v4025
      %4027 = vmatmul.bf16.gmra.mxu0 %v3663
      %v4028 = vpop.f32.mrf.mxu0
      %v4029 = vadd.f32 0.0, %v4028
      %v4030 = vpop.f32.mrf.mxu0
      %v4031 = vadd.f32 0.0, %v4030
      %4032 = vmatmul.bf16.gmra.mxu0 %v3664
      %v4033 = vpop.f32.mrf.mxu0
      %v4034 = vadd.f32 0.0, %v4033
      %v4035 = vpop.f32.mrf.mxu0
      %v4036 = vadd.f32 0.0, %v4035
      %4037 = vmatmul.bf16.gmra.mxu0 %v3665
      %v4038 = vpop.f32.mrf.mxu0
      %v4039 = vadd.f32 0.0, %v4038
      %v4040 = vpop.f32.mrf.mxu0
      %v4041 = vadd.f32 0.0, %v4040
      %4042 = vmatmul.bf16.gmra.mxu0 %v3666
      %v4043 = vpop.f32.mrf.mxu0
      %v4044 = vadd.f32 0.0, %v4043
      %v4045 = vpop.f32.mrf.mxu0
      %v4046 = vadd.f32 0.0, %v4045
      %4047 = vmatmul.bf16.gmra.mxu0 %v3667
      %v4048 = vpop.f32.mrf.mxu0
      %v4049 = vadd.f32 0.0, %v4048
      %v4050 = vpop.f32.mrf.mxu0
      %v4051 = vadd.f32 0.0, %v4050
      %4052 = vmatmul.bf16.gmra.mxu0 %v3668
      %v4053 = vpop.f32.mrf.mxu0
      %v4054 = vadd.f32 0.0, %v4053
      %v4055 = vpop.f32.mrf.mxu0
      %v4056 = vadd.f32 0.0, %v4055
      %4057 = vmatmul.bf16.gmra.mxu0 %v3669
      %v4058 = vpop.f32.mrf.mxu0
      %v4059 = vadd.f32 0.0, %v4058
      %v4060 = vpop.f32.mrf.mxu0
      %v4061 = vadd.f32 0.0, %v4060
      %4062 = vmatmul.bf16.gmra.mxu0 %v3670
      %v4063 = vpop.f32.mrf.mxu0
      %v4064 = vadd.f32 0.0, %v4063
      %v4065 = vpop.f32.mrf.mxu0
      %v4066 = vadd.f32 0.0, %v4065
      %4067 = vmatmul.bf16.gmra.mxu0 %v3671
      %v4068 = vpop.f32.mrf.mxu0
      %v4069 = vadd.f32 0.0, %v4068
      %v4070 = vpop.f32.mrf.mxu0
      %v4071 = vadd.f32 0.0, %v4070
      %4072 = vmatmul.bf16.gmra.mxu0 %v3672
      %v4073 = vpop.f32.mrf.mxu0
      %v4074 = vadd.f32 0.0, %v4073
      %v4075 = vpop.f32.mrf.mxu0
      %v4076 = vadd.f32 0.0, %v4075
      %4077 = vmatmul.bf16.gmra.mxu0 %v3673
      %v4078 = vpop.f32.mrf.mxu0
      %v4079 = vadd.f32 0.0, %v4078
      %v4080 = vpop.f32.mrf.mxu0
      %v4081 = vadd.f32 0.0, %v4080
      %4082 = vmatmul.bf16.gmra.mxu0 %v3674
      %v4083 = vpop.f32.mrf.mxu0
      %v4084 = vadd.f32 0.0, %v4083
      %v4085 = vpop.f32.mrf.mxu0
      %v4086 = vadd.f32 0.0, %v4085
      %4087 = vmatmul.bf16.gmra.mxu0 %v3675
      %v4088 = vpop.f32.mrf.mxu0
      %v4089 = vadd.f32 0.0, %v4088
      %v4090 = vpop.f32.mrf.mxu0
      %v4091 = vadd.f32 0.0, %v4090
      %4092 = vmatmul.bf16.gmra.mxu0 %v3676
      %v4093 = vpop.f32.mrf.mxu0
      %v4094 = vadd.f32 0.0, %v4093
      %v4095 = vpop.f32.mrf.mxu0
      %v4096 = vadd.f32 0.0, %v4095
      %4097 = vmatmul.bf16.gmra.mxu0 %v3677
      %v4098 = vpop.f32.mrf.mxu0
      %v4099 = vadd.f32 0.0, %v4098
      %v4100 = vpop.f32.mrf.mxu0
      %v4101 = vadd.f32 0.0, %v4100
      %4102 = vdwg.mxu0
      %4103 = vmatpush.bf16.msra.mxu0 %v3981
      %4104 = vmatpush.bf16.msra.mxu0 %v3980
      %4105 = vmatpush.bf16.msra.mxu0 %v3979
      %4106 = vmatpush.bf16.msra.mxu0 %v3978
      %4107 = vmatpush.bf16.msra.mxu0 %v3977
      %4108 = vmatpush.bf16.msra.mxu0 %v3976
      %4109 = vmatpush.bf16.msra.mxu0 %v3975
      %4110 = vmatpush.bf16.msra.mxu0 %v3974
      %4111 = vmatmul.bf16.gmra.mxu0 %v3726
      %v4112 = vpop.f32.mrf.mxu0
      %v4113 = vadd.f32 %v4024, %v4112
      %v4114 = vpop.f32.mrf.mxu0
      %v4115 = vadd.f32 %v4026, %v4114
      %4116 = vmatmul.bf16.gmra.mxu0 %v3727
      %v4117 = vpop.f32.mrf.mxu0
      %v4118 = vadd.f32 %v4029, %v4117
      %v4119 = vpop.f32.mrf.mxu0
      %v4120 = vadd.f32 %v4031, %v4119
      %4121 = vmatmul.bf16.gmra.mxu0 %v3728
      %v4122 = vpop.f32.mrf.mxu0
      %v4123 = vadd.f32 %v4034, %v4122
      %v4124 = vpop.f32.mrf.mxu0
      %v4125 = vadd.f32 %v4036, %v4124
      %4126 = vmatmul.bf16.gmra.mxu0 %v3729
      %v4127 = vpop.f32.mrf.mxu0
      %v4128 = vadd.f32 %v4039, %v4127
      %v4129 = vpop.f32.mrf.mxu0
      %v4130 = vadd.f32 %v4041, %v4129
      %4131 = vmatmul.bf16.gmra.mxu0 %v3730
      %v4132 = vpop.f32.mrf.mxu0
      %v4133 = vadd.f32 %v4044, %v4132
      %v4134 = vpop.f32.mrf.mxu0
      %v4135 = vadd.f32 %v4046, %v4134
      %4136 = vmatmul.bf16.gmra.mxu0 %v3731
      %v4137 = vpop.f32.mrf.mxu0
      %v4138 = vadd.f32 %v4049, %v4137
      %v4139 = vpop.f32.mrf.mxu0
      %v4140 = vadd.f32 %v4051, %v4139
      %4141 = vmatmul.bf16.gmra.mxu0 %v3732
      %v4142 = vpop.f32.mrf.mxu0
      %v4143 = vadd.f32 %v4054, %v4142
      %v4144 = vpop.f32.mrf.mxu0
      %v4145 = vadd.f32 %v4056, %v4144
      %4146 = vmatmul.bf16.gmra.mxu0 %v3733
      %v4147 = vpop.f32.mrf.mxu0
      %v4148 = vadd.f32 %v4059, %v4147
      %v4149 = vpop.f32.mrf.mxu0
      %v4150 = vadd.f32 %v4061, %v4149
      %4151 = vmatmul.bf16.gmra.mxu0 %v3734
      %v4152 = vpop.f32.mrf.mxu0
      %v4153 = vadd.f32 %v4064, %v4152
      %v4154 = vpop.f32.mrf.mxu0
      %v4155 = vadd.f32 %v4066, %v4154
      %4156 = vmatmul.bf16.gmra.mxu0 %v3735
      %v4157 = vpop.f32.mrf.mxu0
      %v4158 = vadd.f32 %v4069, %v4157
      %v4159 = vpop.f32.mrf.mxu0
      %v4160 = vadd.f32 %v4071, %v4159
      %4161 = vmatmul.bf16.gmra.mxu0 %v3736
      %v4162 = vpop.f32.mrf.mxu0
      %v4163 = vadd.f32 %v4074, %v4162
      %v4164 = vpop.f32.mrf.mxu0
      %v4165 = vadd.f32 %v4076, %v4164
      %4166 = vmatmul.bf16.gmra.mxu0 %v3737
      %v4167 = vpop.f32.mrf.mxu0
      %v4168 = vadd.f32 %v4079, %v4167
      %v4169 = vpop.f32.mrf.mxu0
      %v4170 = vadd.f32 %v4081, %v4169
      %4171 = vmatmul.bf16.gmra.mxu0 %v3738
      %v4172 = vpop.f32.mrf.mxu0
      %v4173 = vadd.f32 %v4084, %v4172
      %v4174 = vpop.f32.mrf.mxu0
      %v4175 = vadd.f32 %v4086, %v4174
      %4176 = vmatmul.bf16.gmra.mxu0 %v3739
      %v4177 = vpop.f32.mrf.mxu0
      %v4178 = vadd.f32 %v4089, %v4177
      %v4179 = vpop.f32.mrf.mxu0
      %v4180 = vadd.f32 %v4091, %v4179
      %4181 = vmatmul.bf16.gmra.mxu0 %v3740
      %v4182 = vpop.f32.mrf.mxu0
      %v4183 = vadd.f32 %v4094, %v4182
      %v4184 = vpop.f32.mrf.mxu0
      %v4185 = vadd.f32 %v4096, %v4184
      %4186 = vmatmul.bf16.gmra.mxu0 %v3741
      %v4187 = vpop.f32.mrf.mxu0
      %v4188 = vadd.f32 %v4099, %v4187
      %v4189 = vpop.f32.mrf.mxu0
      %v4190 = vadd.f32 %v4101, %v4189
      %4191 = vdwg.mxu0
      %4192 = vmatpush.bf16.msra.mxu0 %v3989
      %4193 = vmatpush.bf16.msra.mxu0 %v3988
      %4194 = vmatpush.bf16.msra.mxu0 %v3987
      %4195 = vmatpush.bf16.msra.mxu0 %v3986
      %4196 = vmatpush.bf16.msra.mxu0 %v3985
      %4197 = vmatpush.bf16.msra.mxu0 %v3984
      %4198 = vmatpush.bf16.msra.mxu0 %v3983
      %4199 = vmatpush.bf16.msra.mxu0 %v3982
      %4200 = vmatmul.bf16.gmra.mxu0 %v3790
      %v4201 = vpop.f32.mrf.mxu0
      %v4202 = vadd.f32 %v4113, %v4201
      %v4203 = vpop.f32.mrf.mxu0
      %v4204 = vadd.f32 %v4115, %v4203
      %4205 = vmatmul.bf16.gmra.mxu0 %v3791
      %v4206 = vpop.f32.mrf.mxu0
      %v4207 = vadd.f32 %v4118, %v4206
      %v4208 = vpop.f32.mrf.mxu0
      %v4209 = vadd.f32 %v4120, %v4208
      %4210 = vmatmul.bf16.gmra.mxu0 %v3792
      %v4211 = vpop.f32.mrf.mxu0
      %v4212 = vadd.f32 %v4123, %v4211
      %v4213 = vpop.f32.mrf.mxu0
      %v4214 = vadd.f32 %v4125, %v4213
      %4215 = vmatmul.bf16.gmra.mxu0 %v3793
      %v4216 = vpop.f32.mrf.mxu0
      %v4217 = vadd.f32 %v4128, %v4216
      %v4218 = vpop.f32.mrf.mxu0
      %v4219 = vadd.f32 %v4130, %v4218
      %4220 = vmatmul.bf16.gmra.mxu0 %v3794
      %v4221 = vpop.f32.mrf.mxu0
      %v4222 = vadd.f32 %v4133, %v4221
      %v4223 = vpop.f32.mrf.mxu0
      %v4224 = vadd.f32 %v4135, %v4223
      %4225 = vmatmul.bf16.gmra.mxu0 %v3795
      %v4226 = vpop.f32.mrf.mxu0
      %v4227 = vadd.f32 %v4138, %v4226
      %v4228 = vpop.f32.mrf.mxu0
      %v4229 = vadd.f32 %v4140, %v4228
      %4230 = vmatmul.bf16.gmra.mxu0 %v3796
      %v4231 = vpop.f32.mrf.mxu0
      %v4232 = vadd.f32 %v4143, %v4231
      %v4233 = vpop.f32.mrf.mxu0
      %v4234 = vadd.f32 %v4145, %v4233
      %4235 = vmatmul.bf16.gmra.mxu0 %v3797
      %v4236 = vpop.f32.mrf.mxu0
      %v4237 = vadd.f32 %v4148, %v4236
      %v4238 = vpop.f32.mrf.mxu0
      %v4239 = vadd.f32 %v4150, %v4238
      %4240 = vmatmul.bf16.gmra.mxu0 %v3798
      %v4241 = vpop.f32.mrf.mxu0
      %v4242 = vadd.f32 %v4153, %v4241
      %v4243 = vpop.f32.mrf.mxu0
      %v4244 = vadd.f32 %v4155, %v4243
      %4245 = vmatmul.bf16.gmra.mxu0 %v3799
      %v4246 = vpop.f32.mrf.mxu0
      %v4247 = vadd.f32 %v4158, %v4246
      %v4248 = vpop.f32.mrf.mxu0
      %v4249 = vadd.f32 %v4160, %v4248
      %4250 = vmatmul.bf16.gmra.mxu0 %v3800
      %v4251 = vpop.f32.mrf.mxu0
      %v4252 = vadd.f32 %v4163, %v4251
      %v4253 = vpop.f32.mrf.mxu0
      %v4254 = vadd.f32 %v4165, %v4253
      %4255 = vmatmul.bf16.gmra.mxu0 %v3801
      %v4256 = vpop.f32.mrf.mxu0
      %v4257 = vadd.f32 %v4168, %v4256
      %v4258 = vpop.f32.mrf.mxu0
      %v4259 = vadd.f32 %v4170, %v4258
      %4260 = vmatmul.bf16.gmra.mxu0 %v3802
      %v4261 = vpop.f32.mrf.mxu0
      %v4262 = vadd.f32 %v4173, %v4261
      %v4263 = vpop.f32.mrf.mxu0
      %v4264 = vadd.f32 %v4175, %v4263
      %4265 = vmatmul.bf16.gmra.mxu0 %v3803
      %v4266 = vpop.f32.mrf.mxu0
      %v4267 = vadd.f32 %v4178, %v4266
      %v4268 = vpop.f32.mrf.mxu0
      %v4269 = vadd.f32 %v4180, %v4268
      %4270 = vmatmul.bf16.gmra.mxu0 %v3804
      %v4271 = vpop.f32.mrf.mxu0
      %v4272 = vadd.f32 %v4183, %v4271
      %v4273 = vpop.f32.mrf.mxu0
      %v4274 = vadd.f32 %v4185, %v4273
      %4275 = vmatmul.bf16.gmra.mxu0 %v3805
      %v4276 = vpop.f32.mrf.mxu0
      %v4277 = vadd.f32 %v4188, %v4276
      %v4278 = vpop.f32.mrf.mxu0
      %v4279 = vadd.f32 %v4190, %v4278
      %4280 = vdwg.mxu0
      %v4281 = vadd.f32 %v2958, %v4202
      %v4282 = vadd.f32 %v2960, %v4204
      %v4283 = vadd.f32 %v2963, %v4207
      %v4284 = vadd.f32 %v2965, %v4209
      %v4285 = vadd.f32 %v2968, %v4212
      %v4286 = vadd.f32 %v2970, %v4214
      %v4287 = vadd.f32 %v2973, %v4217
      %v4288 = vadd.f32 %v2975, %v4219
      %v4289 = vadd.f32 %v2978, %v4222
      %v4290 = vadd.f32 %v2980, %v4224
      %v4291 = vadd.f32 %v2983, %v4227
      %v4292 = vadd.f32 %v2985, %v4229
      %v4293 = vadd.f32 %v2988, %v4232
      %v4294 = vadd.f32 %v2990, %v4234
      %v4295 = vadd.f32 %v2993, %v4237
      %v4296 = vadd.f32 %v2995, %v4239
      %v4297 = vadd.f32 %v2998, %v4242
      %v4298 = vadd.f32 %v3000, %v4244
      %v4299 = vadd.f32 %v3003, %v4247
      %v4300 = vadd.f32 %v3005, %v4249
      %v4301 = vadd.f32 %v3008, %v4252
      %v4302 = vadd.f32 %v3010, %v4254
      %v4303 = vadd.f32 %v3013, %v4257
      %v4304 = vadd.f32 %v3015, %v4259
      %v4305 = vadd.f32 %v3018, %v4262
      %v4306 = vadd.f32 %v3020, %v4264
      %v4307 = vadd.f32 %v3023, %v4267
      %v4308 = vadd.f32 %v3025, %v4269
      %v4309 = vadd.f32 %v3028, %v4272
      %v4310 = vadd.f32 %v3030, %v4274
      %v4311 = vadd.f32 %v3033, %v4277
      %v4312 = vadd.f32 %v3035, %v4279
      %v4313 = vpack.c.bf16 %v4281, %v4281
      %v4314 = vpack.c.bf16 %v4282, %v4282
      %v4315 = vpack.c.bf16 %v4283, %v4283
      %v4316 = vpack.c.bf16 %v4284, %v4284
      %v4317 = vpack.c.bf16 %v4285, %v4285
      %v4318 = vpack.c.bf16 %v4286, %v4286
      %v4319 = vpack.c.bf16 %v4287, %v4287
      %v4320 = vpack.c.bf16 %v4288, %v4288
      %v4321 = vpack.c.bf16 %v4289, %v4289
      %v4322 = vpack.c.bf16 %v4290, %v4290
      %v4323 = vpack.c.bf16 %v4291, %v4291
      %v4324 = vpack.c.bf16 %v4292, %v4292
      %v4325 = vpack.c.bf16 %v4293, %v4293
      %v4326 = vpack.c.bf16 %v4294, %v4294
      %v4327 = vpack.c.bf16 %v4295, %v4295
      %v4328 = vpack.c.bf16 %v4296, %v4296
      %v4329 = vpack.c.bf16 %v4297, %v4297
      %v4330 = vpack.c.bf16 %v4298, %v4298
      %v4331 = vpack.c.bf16 %v4299, %v4299
      %v4332 = vpack.c.bf16 %v4300, %v4300
      %v4333 = vpack.c.bf16 %v4301, %v4301
      %v4334 = vpack.c.bf16 %v4302, %v4302
      %v4335 = vpack.c.bf16 %v4303, %v4303
      %v4336 = vpack.c.bf16 %v4304, %v4304
      %v4337 = vpack.c.bf16 %v4305, %v4305
      %v4338 = vpack.c.bf16 %v4306, %v4306
      %v4339 = vpack.c.bf16 %v4307, %v4307
      %v4340 = vpack.c.bf16 %v4308, %v4308
      %v4341 = vpack.c.bf16 %v4309, %v4309
      %v4342 = vpack.c.bf16 %v4310, %v4310
      %v4343 = vpack.c.bf16 %v4311, %v4311
      %v4344 = vpack.c.bf16 %v4312, %v4312
      %vm4345 = vsmask.f32 256
      %vm4346 = vsmask.f32 4368
      %vm4347 = vmor %vm4345, %vm4346
      %v4349 = vshrl.u32 %v4313, 16
      %v4351 = vrot.slane %v4349, 7
      %v4352 = vshll.u32 %v4313, 16
      %v4354 = vor.u32 %v4351, %v4352
      %v4355 = vrot.slane %v4351, 4
      %v4357 = vshrl.u32 %v4314, 16
      %v4359 = vrot.slane %v4357, 7
      %v4360 = vshll.u32 %v4314, 16
      %v4362 = vor.u32 %v4359, %v4360
      %v4363 = vsel %vm4347, %v4355, %v4362
      %v4364 = vrot.slane %v4359, 4
      %v4366 = vshrl.u32 %v4315, 16
      %v4368 = vrot.slane %v4366, 7
      %v4369 = vshll.u32 %v4315, 16
      %v4371 = vor.u32 %v4368, %v4369
      %v4372 = vrot.slane %v4368, 4
      %v4374 = vshrl.u32 %v4316, 16
      %v4376 = vrot.slane %v4374, 7
      %v4377 = vshll.u32 %v4316, 16
      %v4379 = vor.u32 %v4376, %v4377
      %v4380 = vsel %vm4347, %v4372, %v4379
      %v4381 = vrot.slane %v4376, 4
      %v4383 = vshrl.u32 %v4317, 16
      %v4385 = vrot.slane %v4383, 7
      %v4386 = vshll.u32 %v4317, 16
      %v4388 = vor.u32 %v4385, %v4386
      %v4389 = vrot.slane %v4385, 4
      %v4391 = vshrl.u32 %v4318, 16
      %v4393 = vrot.slane %v4391, 7
      %v4394 = vshll.u32 %v4318, 16
      %v4396 = vor.u32 %v4393, %v4394
      %v4397 = vsel %vm4347, %v4389, %v4396
      %v4398 = vrot.slane %v4393, 4
      %v4400 = vshrl.u32 %v4319, 16
      %v4402 = vrot.slane %v4400, 7
      %v4403 = vshll.u32 %v4319, 16
      %v4405 = vor.u32 %v4402, %v4403
      %v4406 = vrot.slane %v4402, 4
      %v4408 = vshrl.u32 %v4320, 16
      %v4410 = vrot.slane %v4408, 7
      %v4411 = vshll.u32 %v4320, 16
      %v4413 = vor.u32 %v4410, %v4411
      %v4414 = vsel %vm4347, %v4406, %v4413
      %v4415 = vrot.slane %v4410, 4
      %v4417 = vshrl.u32 %v4321, 16
      %v4419 = vrot.slane %v4417, 7
      %v4420 = vshll.u32 %v4321, 16
      %v4422 = vor.u32 %v4419, %v4420
      %v4423 = vrot.slane %v4419, 4
      %v4425 = vshrl.u32 %v4322, 16
      %v4427 = vrot.slane %v4425, 7
      %v4428 = vshll.u32 %v4322, 16
      %v4430 = vor.u32 %v4427, %v4428
      %v4431 = vsel %vm4347, %v4423, %v4430
      %v4432 = vrot.slane %v4427, 4
      %v4434 = vshrl.u32 %v4323, 16
      %v4436 = vrot.slane %v4434, 7
      %v4437 = vshll.u32 %v4323, 16
      %v4439 = vor.u32 %v4436, %v4437
      %v4440 = vrot.slane %v4436, 4
      %v4442 = vshrl.u32 %v4324, 16
      %v4444 = vrot.slane %v4442, 7
      %v4445 = vshll.u32 %v4324, 16
      %v4447 = vor.u32 %v4444, %v4445
      %v4448 = vsel %vm4347, %v4440, %v4447
      %v4449 = vrot.slane %v4444, 4
      %v4451 = vshrl.u32 %v4325, 16
      %v4453 = vrot.slane %v4451, 7
      %v4454 = vshll.u32 %v4325, 16
      %v4456 = vor.u32 %v4453, %v4454
      %v4457 = vrot.slane %v4453, 4
      %v4459 = vshrl.u32 %v4326, 16
      %v4461 = vrot.slane %v4459, 7
      %v4462 = vshll.u32 %v4326, 16
      %v4464 = vor.u32 %v4461, %v4462
      %v4465 = vsel %vm4347, %v4457, %v4464
      %v4466 = vrot.slane %v4461, 4
      %v4468 = vshrl.u32 %v4327, 16
      %v4470 = vrot.slane %v4468, 7
      %v4471 = vshll.u32 %v4327, 16
      %v4473 = vor.u32 %v4470, %v4471
      %v4474 = vrot.slane %v4470, 4
      %v4476 = vshrl.u32 %v4328, 16
      %v4478 = vrot.slane %v4476, 7
      %v4479 = vshll.u32 %v4328, 16
      %v4481 = vor.u32 %v4478, %v4479
      %v4482 = vsel %vm4347, %v4474, %v4481
      %v4483 = vrot.slane %v4478, 4
      %v4485 = vshrl.u32 %v4329, 16
      %v4487 = vrot.slane %v4485, 7
      %v4488 = vshll.u32 %v4329, 16
      %v4490 = vor.u32 %v4487, %v4488
      %v4491 = vrot.slane %v4487, 4
      %v4493 = vshrl.u32 %v4330, 16
      %v4495 = vrot.slane %v4493, 7
      %v4496 = vshll.u32 %v4330, 16
      %v4498 = vor.u32 %v4495, %v4496
      %v4499 = vsel %vm4347, %v4491, %v4498
      %v4500 = vrot.slane %v4495, 4
      %v4502 = vshrl.u32 %v4331, 16
      %v4504 = vrot.slane %v4502, 7
      %v4505 = vshll.u32 %v4331, 16
      %v4507 = vor.u32 %v4504, %v4505
      %v4508 = vrot.slane %v4504, 4
      %v4510 = vshrl.u32 %v4332, 16
      %v4512 = vrot.slane %v4510, 7
      %v4513 = vshll.u32 %v4332, 16
      %v4515 = vor.u32 %v4512, %v4513
      %v4516 = vsel %vm4347, %v4508, %v4515
      %v4517 = vrot.slane %v4512, 4
      %v4519 = vshrl.u32 %v4333, 16
      %v4521 = vrot.slane %v4519, 7
      %v4522 = vshll.u32 %v4333, 16
      %v4524 = vor.u32 %v4521, %v4522
      %v4525 = vrot.slane %v4521, 4
      %v4527 = vshrl.u32 %v4334, 16
      %v4529 = vrot.slane %v4527, 7
      %v4530 = vshll.u32 %v4334, 16
      %v4532 = vor.u32 %v4529, %v4530
      %v4533 = vsel %vm4347, %v4525, %v4532
      %v4534 = vrot.slane %v4529, 4
      %v4536 = vshrl.u32 %v4335, 16
      %v4538 = vrot.slane %v4536, 7
      %v4539 = vshll.u32 %v4335, 16
      %v4541 = vor.u32 %v4538, %v4539
      %v4542 = vrot.slane %v4538, 4
      %v4544 = vshrl.u32 %v4336, 16
      %v4546 = vrot.slane %v4544, 7
      %v4547 = vshll.u32 %v4336, 16
      %v4549 = vor.u32 %v4546, %v4547
      %v4550 = vsel %vm4347, %v4542, %v4549
      %v4551 = vrot.slane %v4546, 4
      %v4553 = vshrl.u32 %v4337, 16
      %v4555 = vrot.slane %v4553, 7
      %v4556 = vshll.u32 %v4337, 16
      %v4558 = vor.u32 %v4555, %v4556
      %v4559 = vrot.slane %v4555, 4
      %v4561 = vshrl.u32 %v4338, 16
      %v4563 = vrot.slane %v4561, 7
      %v4564 = vshll.u32 %v4338, 16
      %v4566 = vor.u32 %v4563, %v4564
      %v4567 = vsel %vm4347, %v4559, %v4566
      %v4568 = vrot.slane %v4563, 4
      %v4570 = vshrl.u32 %v4339, 16
      %v4572 = vrot.slane %v4570, 7
      %v4573 = vshll.u32 %v4339, 16
      %v4575 = vor.u32 %v4572, %v4573
      %v4576 = vrot.slane %v4572, 4
      %v4578 = vshrl.u32 %v4340, 16
      %v4580 = vrot.slane %v4578, 7
      %v4581 = vshll.u32 %v4340, 16
      %v4583 = vor.u32 %v4580, %v4581
      %v4584 = vsel %vm4347, %v4576, %v4583
      %v4585 = vrot.slane %v4580, 4
      %v4587 = vshrl.u32 %v4341, 16
      %v4589 = vrot.slane %v4587, 7
      %v4590 = vshll.u32 %v4341, 16
      %v4592 = vor.u32 %v4589, %v4590
      %v4593 = vrot.slane %v4589, 4
      %v4595 = vshrl.u32 %v4342, 16
      %v4597 = vrot.slane %v4595, 7
      %v4598 = vshll.u32 %v4342, 16
      %v4600 = vor.u32 %v4597, %v4598
      %v4601 = vsel %vm4347, %v4593, %v4600
      %v4602 = vrot.slane %v4597, 4
      %v4604 = vshrl.u32 %v4343, 16
      %v4606 = vrot.slane %v4604, 7
      %v4607 = vshll.u32 %v4343, 16
      %v4609 = vor.u32 %v4606, %v4607
      %v4610 = vrot.slane %v4606, 4
      %v4612 = vshrl.u32 %v4344, 16
      %v4614 = vrot.slane %v4612, 7
      %v4615 = vshll.u32 %v4344, 16
      %v4617 = vor.u32 %v4614, %v4615
      %v4618 = vsel %vm4347, %v4610, %v4617
      %v4619 = vrot.slane %v4614, 4
      %vm4668 = vcmask 1043456
      %vm4669 = vsmask.f32 7938
      %vm4670 = vmand %vm4668, %vm4669
      %v4671 = vld [vmem:[%s403] sm:$0xf]
      %v4672 = vsel %vm4670, %v4354, %v4671
      %4673 = vst [vmem:[%s403] sm:$0xf] %v4672
      %4674 = vst [vmem:[%s403 + $0x4] sm:$0xf] %v4363
      %vm4675 = vcmask 1040384
      %vm4676 = vmand %vm4675, %vm4345
      %v4677 = vld [vmem:[%s403 + $0x8] sm:$0x1]
      %v4678 = vsel %vm4676, %v4364, %v4677
      %4679 = vst [vmem:[%s403 + $0x8] sm:$0x1] %v4678
      %v4680 = vld [vmem:[%s403 + $0xc] sm:$0xf]
      %v4681 = vsel %vm4670, %v4371, %v4680
      %4682 = vst [vmem:[%s403 + $0xc] sm:$0xf] %v4681
      %4683 = vst [vmem:[%s403 + $0x10] sm:$0xf] %v4380
      %v4684 = vld [vmem:[%s403 + $0x14] sm:$0x1]
      %v4685 = vsel %vm4676, %v4381, %v4684
      %4686 = vst [vmem:[%s403 + $0x14] sm:$0x1] %v4685
      %v4687 = vld [vmem:[%s403 + $0x18] sm:$0xf]
      %v4688 = vsel %vm4670, %v4388, %v4687
      %4689 = vst [vmem:[%s403 + $0x18] sm:$0xf] %v4688
      %4690 = vst [vmem:[%s403 + $0x1c] sm:$0xf] %v4397
      %v4691 = vld [vmem:[%s403 + $0x20] sm:$0x1]
      %v4692 = vsel %vm4676, %v4398, %v4691
      %4693 = vst [vmem:[%s403 + $0x20] sm:$0x1] %v4692
      %v4694 = vld [vmem:[%s403 + $0x24] sm:$0xf]
      %v4695 = vsel %vm4670, %v4405, %v4694
      %4696 = vst [vmem:[%s403 + $0x24] sm:$0xf] %v4695
      %4697 = vst [vmem:[%s403 + $0x28] sm:$0xf] %v4414
      %v4698 = vld [vmem:[%s403 + $0x2c] sm:$0x1]
      %v4699 = vsel %vm4676, %v4415, %v4698
      %4700 = vst [vmem:[%s403 + $0x2c] sm:$0x1] %v4699
      %v4701 = vld [vmem:[%s403 + $0x30] sm:$0xf]
      %v4702 = vsel %vm4670, %v4422, %v4701
      %4703 = vst [vmem:[%s403 + $0x30] sm:$0xf] %v4702
      %4704 = vst [vmem:[%s403 + $0x34] sm:$0xf] %v4431
      %v4705 = vld [vmem:[%s403 + $0x38] sm:$0x1]
      %v4706 = vsel %vm4676, %v4432, %v4705
      %4707 = vst [vmem:[%s403 + $0x38] sm:$0x1] %v4706
      %v4708 = vld [vmem:[%s403 + $0x3c] sm:$0xf]
      %v4709 = vsel %vm4670, %v4439, %v4708
      %4710 = vst [vmem:[%s403 + $0x3c] sm:$0xf] %v4709
      %4711 = vst [vmem:[%s403 + $0x40] sm:$0xf] %v4448
      %v4712 = vld [vmem:[%s403 + $0x44] sm:$0x1]
      %v4713 = vsel %vm4676, %v4449, %v4712
      %4714 = vst [vmem:[%s403 + $0x44] sm:$0x1] %v4713
      %v4715 = vld [vmem:[%s403 + $0x48] sm:$0xf]
      %v4716 = vsel %vm4670, %v4456, %v4715
      %4717 = vst [vmem:[%s403 + $0x48] sm:$0xf] %v4716
      %4718 = vst [vmem:[%s403 + $0x4c] sm:$0xf] %v4465
      %v4719 = vld [vmem:[%s403 + $0x50] sm:$0x1]
      %v4720 = vsel %vm4676, %v4466, %v4719
      %4721 = vst [vmem:[%s403 + $0x50] sm:$0x1] %v4720
      %v4722 = vld [vmem:[%s403 + $0x54] sm:$0xf]
      %v4723 = vsel %vm4670, %v4473, %v4722
      %4724 = vst [vmem:[%s403 + $0x54] sm:$0xf] %v4723
      %4725 = vst [vmem:[%s403 + $0x58] sm:$0xf] %v4482
      %v4726 = vld [vmem:[%s403 + $0x5c] sm:$0x1]
      %v4727 = vsel %vm4676, %v4483, %v4726
      %4728 = vst [vmem:[%s403 + $0x5c] sm:$0x1] %v4727
      %v4729 = vld [vmem:[%s403 + $0x60] sm:$0xf]
      %v4730 = vsel %vm4670, %v4490, %v4729
      %4731 = vst [vmem:[%s403 + $0x60] sm:$0xf] %v4730
      %4732 = vst [vmem:[%s403 + $0x64] sm:$0xf] %v4499
      %v4733 = vld [vmem:[%s403 + $0x68] sm:$0x1]
      %v4734 = vsel %vm4676, %v4500, %v4733
      %4735 = vst [vmem:[%s403 + $0x68] sm:$0x1] %v4734
      %v4736 = vld [vmem:[%s403 + $0x6c] sm:$0xf]
      %v4737 = vsel %vm4670, %v4507, %v4736
      %4738 = vst [vmem:[%s403 + $0x6c] sm:$0xf] %v4737
      %4739 = vst [vmem:[%s403 + $0x70] sm:$0xf] %v4516
      %v4740 = vld [vmem:[%s403 + $0x74] sm:$0x1]
      %v4741 = vsel %vm4676, %v4517, %v4740
      %4742 = vst [vmem:[%s403 + $0x74] sm:$0x1] %v4741
      %v4743 = vld [vmem:[%s403 + $0x78] sm:$0xf]
      %v4744 = vsel %vm4670, %v4524, %v4743
      %4745 = vst [vmem:[%s403 + $0x78] sm:$0xf] %v4744
      %4746 = vst [vmem:[%s403 + $0x7c] sm:$0xf] %v4533
      %v4747 = vld [vmem:[%s403 + $0x80] sm:$0x1]
      %v4748 = vsel %vm4676, %v4534, %v4747
      %4749 = vst [vmem:[%s403 + $0x80] sm:$0x1] %v4748
      %v4750 = vld [vmem:[%s403 + $0x84] sm:$0xf]
      %v4751 = vsel %vm4670, %v4541, %v4750
      %4752 = vst [vmem:[%s403 + $0x84] sm:$0xf] %v4751
      %4753 = vst [vmem:[%s403 + $0x88] sm:$0xf] %v4550
      %v4754 = vld [vmem:[%s403 + $0x8c] sm:$0x1]
      %v4755 = vsel %vm4676, %v4551, %v4754
      %4756 = vst [vmem:[%s403 + $0x8c] sm:$0x1] %v4755
      %v4757 = vld [vmem:[%s403 + $0x90] sm:$0xf]
      %v4758 = vsel %vm4670, %v4558, %v4757
      %4759 = vst [vmem:[%s403 + $0x90] sm:$0xf] %v4758
      %4760 = vst [vmem:[%s403 + $0x94] sm:$0xf] %v4567
      %v4761 = vld [vmem:[%s403 + $0x98] sm:$0x1]
      %v4762 = vsel %vm4676, %v4568, %v4761
      %4763 = vst [vmem:[%s403 + $0x98] sm:$0x1] %v4762
      %v4764 = vld [vmem:[%s403 + $0x9c] sm:$0xf]
      %v4765 = vsel %vm4670, %v4575, %v4764
      %4766 = vst [vmem:[%s403 + $0x9c] sm:$0xf] %v4765
      %4767 = vst [vmem:[%s403 + $0xa0] sm:$0xf] %v4584
      %v4768 = vld [vmem:[%s403 + $0xa4] sm:$0x1]
      %v4769 = vsel %vm4676, %v4585, %v4768
      %4770 = vst [vmem:[%s403 + $0xa4] sm:$0x1] %v4769
      %v4771 = vld [vmem:[%s403 + $0xa8] sm:$0xf]
      %v4772 = vsel %vm4670, %v4592, %v4771
      %4773 = vst [vmem:[%s403 + $0xa8] sm:$0xf] %v4772
      %4774 = vst [vmem:[%s403 + $0xac] sm:$0xf] %v4601
      %v4775 = vld [vmem:[%s403 + $0xb0] sm:$0x1]
      %v4776 = vsel %vm4676, %v4602, %v4775
      %4777 = vst [vmem:[%s403 + $0xb0] sm:$0x1] %v4776
      %v4778 = vld [vmem:[%s403 + $0xb4] sm:$0xf]
      %v4779 = vsel %vm4670, %v4609, %v4778
      %4780 = vst [vmem:[%s403 + $0xb4] sm:$0xf] %v4779
      %4781 = vst [vmem:[%s403 + $0xb8] sm:$0xf] %v4618
      %v4782 = vld [vmem:[%s403 + $0xbc] sm:$0x1]
      %v4783 = vsel %vm4676, %v4619, %v4782
      %4784 = vst [vmem:[%s403 + $0xbc] sm:$0x1] %v4783
      %v4785 = vld [vmem:[%s403] sm:$0x1]
      %v4786 = vsel %vm4676, 0, %v4785
      %4787 = vst [vmem:[%s403] sm:$0x1] %v4786
      %v4788 = vld [vmem:[%s403 + $0xc] sm:$0x1]
      %v4789 = vsel %vm4676, 0, %v4788
      %4790 = vst [vmem:[%s403 + $0xc] sm:$0x1] %v4789
      %v4791 = vld [vmem:[%s403 + $0x18] sm:$0x1]
      %v4792 = vsel %vm4676, 0, %v4791
      %4793 = vst [vmem:[%s403 + $0x18] sm:$0x1] %v4792
      %v4794 = vld [vmem:[%s403 + $0x24] sm:$0x1]
      %v4795 = vsel %vm4676, 0, %v4794
      %4796 = vst [vmem:[%s403 + $0x24] sm:$0x1] %v4795
      %v4797 = vld [vmem:[%s403 + $0x30] sm:$0x1]
      %v4798 = vsel %vm4676, 0, %v4797
      %4799 = vst [vmem:[%s403 + $0x30] sm:$0x1] %v4798
      %v4800 = vld [vmem:[%s403 + $0x3c] sm:$0x1]
      %v4801 = vsel %vm4676, 0, %v4800
      %4802 = vst [vmem:[%s403 + $0x3c] sm:$0x1] %v4801
      %v4803 = vld [vmem:[%s403 + $0x48] sm:$0x1]
      %v4804 = vsel %vm4676, 0, %v4803
      %4805 = vst [vmem:[%s403 + $0x48] sm:$0x1] %v4804
      %v4806 = vld [vmem:[%s403 + $0x54] sm:$0x1]
      %v4807 = vsel %vm4676, 0, %v4806
      %4808 = vst [vmem:[%s403 + $0x54] sm:$0x1] %v4807
      %v4809 = vld [vmem:[%s403 + $0x60] sm:$0x1]
      %v4810 = vsel %vm4676, 0, %v4809
      %4811 = vst [vmem:[%s403 + $0x60] sm:$0x1] %v4810
      %v4812 = vld [vmem:[%s403 + $0x6c] sm:$0x1]
      %v4813 = vsel %vm4676, 0, %v4812
      %4814 = vst [vmem:[%s403 + $0x6c] sm:$0x1] %v4813
      %v4815 = vld [vmem:[%s403 + $0x78] sm:$0x1]
      %v4816 = vsel %vm4676, 0, %v4815
      %4817 = vst [vmem:[%s403 + $0x78] sm:$0x1] %v4816
      %v4818 = vld [vmem:[%s403 + $0x84] sm:$0x1]
      %v4819 = vsel %vm4676, 0, %v4818
      %4820 = vst [vmem:[%s403 + $0x84] sm:$0x1] %v4819
      %v4821 = vld [vmem:[%s403 + $0x90] sm:$0x1]
      %v4822 = vsel %vm4676, 0, %v4821
      %4823 = vst [vmem:[%s403 + $0x90] sm:$0x1] %v4822
      %v4824 = vld [vmem:[%s403 + $0x9c] sm:$0x1]
      %v4825 = vsel %vm4676, 0, %v4824
      %4826 = vst [vmem:[%s403 + $0x9c] sm:$0x1] %v4825
      %v4827 = vld [vmem:[%s403 + $0xa8] sm:$0x1]
      %v4828 = vsel %vm4676, 0, %v4827
      %4829 = vst [vmem:[%s403 + $0xa8] sm:$0x1] %v4828
      %v4830 = vld [vmem:[%s403 + $0xb4] sm:$0x1]
      %v4831 = vsel %vm4676, 0, %v4830
      %4832 = vst [vmem:[%s403 + $0xb4] sm:$0x1] %v4831
      %vm4833 = vmand %vm4675, %vm4669
      %v4834 = vld [vmem:[%s403 + $0x8] sm:$0x1]
      %v4835 = vsel %vm4833, 0, %v4834
      %4836 = vst [vmem:[%s403 + $0x8] sm:$0x1] %v4835
      %v4837 = vld [vmem:[%s403 + $0x14] sm:$0x1]
      %v4838 = vsel %vm4833, 0, %v4837
      %4839 = vst [vmem:[%s403 + $0x14] sm:$0x1] %v4838
      %v4840 = vld [vmem:[%s403 + $0x20] sm:$0x1]
      %v4841 = vsel %vm4833, 0, %v4840
      %4842 = vst [vmem:[%s403 + $0x20] sm:$0x1] %v4841
      %v4843 = vld [vmem:[%s403 + $0x2c] sm:$0x1]
      %v4844 = vsel %vm4833, 0, %v4843
      %4845 = vst [vmem:[%s403 + $0x2c] sm:$0x1] %v4844
      %v4846 = vld [vmem:[%s403 + $0x38] sm:$0x1]
      %v4847 = vsel %vm4833, 0, %v4846
      %4848 = vst [vmem:[%s403 + $0x38] sm:$0x1] %v4847
      %v4849 = vld [vmem:[%s403 + $0x44] sm:$0x1]
      %v4850 = vsel %vm4833, 0, %v4849
      %4851 = vst [vmem:[%s403 + $0x44] sm:$0x1] %v4850
      %v4852 = vld [vmem:[%s403 + $0x50] sm:$0x1]
      %v4853 = vsel %vm4833, 0, %v4852
      %4854 = vst [vmem:[%s403 + $0x50] sm:$0x1] %v4853
      %v4855 = vld [vmem:[%s403 + $0x5c] sm:$0x1]
      %v4856 = vsel %vm4833, 0, %v4855
      %4857 = vst [vmem:[%s403 + $0x5c] sm:$0x1] %v4856
      %v4858 = vld [vmem:[%s403 + $0x68] sm:$0x1]
      %v4859 = vsel %vm4833, 0, %v4858
      %4860 = vst [vmem:[%s403 + $0x68] sm:$0x1] %v4859
      %v4861 = vld [vmem:[%s403 + $0x74] sm:$0x1]
      %v4862 = vsel %vm4833, 0, %v4861
      %4863 = vst [vmem:[%s403 + $0x74] sm:$0x1] %v4862
      %v4864 = vld [vmem:[%s403 + $0x80] sm:$0x1]
      %v4865 = vsel %vm4833, 0, %v4864
      %4866 = vst [vmem:[%s403 + $0x80] sm:$0x1] %v4865
      %v4867 = vld [vmem:[%s403 + $0x8c] sm:$0x1]
      %v4868 = vsel %vm4833, 0, %v4867
      %4869 = vst [vmem:[%s403 + $0x8c] sm:$0x1] %v4868
      %v4870 = vld [vmem:[%s403 + $0x98] sm:$0x1]
      %v4871 = vsel %vm4833, 0, %v4870
      %4872 = vst [vmem:[%s403 + $0x98] sm:$0x1] %v4871
      %v4873 = vld [vmem:[%s403 + $0xa4] sm:$0x1]
      %v4874 = vsel %vm4833, 0, %v4873
      %4875 = vst [vmem:[%s403 + $0xa4] sm:$0x1] %v4874
      %v4876 = vld [vmem:[%s403 + $0xb0] sm:$0x1]
      %v4877 = vsel %vm4833, 0, %v4876
      %4878 = vst [vmem:[%s403 + $0xb0] sm:$0x1] %v4877
      %v4879 = vld [vmem:[%s403 + $0xbc] sm:$0x1]
      %v4880 = vsel %vm4833, 0, %v4879
      %4881 = vst [vmem:[%s403 + $0xbc] sm:$0x1] %v4880
      %v4882 = vadd.f32 %v4281, %v4282
      %v4883 = vadd.f32 %v4882, %v4283
      %v4884 = vadd.f32 %v4883, %v4284
      %v4885 = vadd.f32 %v4884, %v4285
      %v4886 = vadd.f32 %v4885, %v4286
      %v4887 = vadd.f32 %v4886, %v4287
      %v4888 = vadd.f32 %v4887, %v4288
      %v4889 = vadd.f32 %v4888, %v4289
      %v4890 = vadd.f32 %v4889, %v4290
      %v4891 = vadd.f32 %v4890, %v4291
      %v4892 = vadd.f32 %v4891, %v4292
      %v4893 = vadd.f32 %v4892, %v4293
      %v4894 = vadd.f32 %v4893, %v4294
      %v4895 = vadd.f32 %v4894, %v4295
      %v4896 = vadd.f32 %v4895, %v4296
      %v4897 = vadd.f32 %v4896, %v4297
      %v4898 = vadd.f32 %v4897, %v4298
      %v4899 = vadd.f32 %v4898, %v4299
      %v4900 = vadd.f32 %v4899, %v4300
      %v4901 = vadd.f32 %v4900, %v4301
      %v4902 = vadd.f32 %v4901, %v4302
      %v4903 = vadd.f32 %v4902, %v4303
      %v4904 = vadd.f32 %v4903, %v4304
      %v4905 = vadd.f32 %v4904, %v4305
      %v4906 = vadd.f32 %v4905, %v4306
      %v4907 = vadd.f32 %v4906, %v4307
      %v4908 = vadd.f32 %v4907, %v4308
      %v4909 = vadd.f32 %v4908, %v4309
      %v4910 = vadd.f32 %v4909, %v4310
      %v4911 = vadd.f32 %v4910, %v4311
      %v4912 = vadd.f32 %v4911, %v4312
      %v4913 = vrot.slane %v4912, 4
      %v4914 = vadd.f32 %v4912, %v4913
      %v4915 = vrot.slane %v4914, 2
      %v4916 = vadd.f32 %v4914, %v4915
      %v4917 = vrot.slane %v4916, 1
      %v4918 = vadd.f32 %v4916, %v4917
      %v4919 = vmul.f32 %v4281, %v4281
      %v4920 = vmul.f32 %v4282, %v4282
      %v4921 = vmul.f32 %v4283, %v4283
      %v4922 = vmul.f32 %v4284, %v4284
      %v4923 = vmul.f32 %v4285, %v4285
      %v4924 = vmul.f32 %v4286, %v4286
      %v4925 = vmul.f32 %v4287, %v4287
      %v4926 = vmul.f32 %v4288, %v4288
      %v4927 = vmul.f32 %v4289, %v4289
      %v4928 = vmul.f32 %v4290, %v4290
      %v4929 = vmul.f32 %v4291, %v4291
      %v4930 = vmul.f32 %v4292, %v4292
      %v4931 = vmul.f32 %v4293, %v4293
      %v4932 = vmul.f32 %v4294, %v4294
      %v4933 = vmul.f32 %v4295, %v4295
      %v4934 = vmul.f32 %v4296, %v4296
      %v4935 = vmul.f32 %v4297, %v4297
      %v4936 = vmul.f32 %v4298, %v4298
      %v4937 = vmul.f32 %v4299, %v4299
      %v4938 = vmul.f32 %v4300, %v4300
      %v4939 = vmul.f32 %v4301, %v4301
      %v4940 = vmul.f32 %v4302, %v4302
      %v4941 = vmul.f32 %v4303, %v4303
      %v4942 = vmul.f32 %v4304, %v4304
      %v4943 = vmul.f32 %v4305, %v4305
      %v4944 = vmul.f32 %v4306, %v4306
      %v4945 = vmul.f32 %v4307, %v4307
      %v4946 = vmul.f32 %v4308, %v4308
      %v4947 = vmul.f32 %v4309, %v4309
      %v4948 = vmul.f32 %v4310, %v4310
      %v4949 = vmul.f32 %v4311, %v4311
      %v4950 = vmul.f32 %v4312, %v4312
      %v4951 = vadd.f32 %v4919, %v4920
      %v4952 = vadd.f32 %v4951, %v4921
      %v4953 = vadd.f32 %v4952, %v4922
      %v4954 = vadd.f32 %v4953, %v4923
      %v4955 = vadd.f32 %v4954, %v4924
      %v4956 = vadd.f32 %v4955, %v4925
      %v4957 = vadd.f32 %v4956, %v4926
      %v4958 = vadd.f32 %v4957, %v4927
      %v4959 = vadd.f32 %v4958, %v4928
      %v4960 = vadd.f32 %v4959, %v4929
      %v4961 = vadd.f32 %v4960, %v4930
      %v4962 = vadd.f32 %v4961, %v4931
      %v4963 = vadd.f32 %v4962, %v4932
      %v4964 = vadd.f32 %v4963, %v4933
      %v4965 = vadd.f32 %v4964, %v4934
      %v4966 = vadd.f32 %v4965, %v4935
      %v4967 = vadd.f32 %v4966, %v4936
      %v4968 = vadd.f32 %v4967, %v4937
      %v4969 = vadd.f32 %v4968, %v4938
      %v4970 = vadd.f32 %v4969, %v4939
      %v4971 = vadd.f32 %v4970, %v4940
      %v4972 = vadd.f32 %v4971, %v4941
      %v4973 = vadd.f32 %v4972, %v4942
      %v4974 = vadd.f32 %v4973, %v4943
      %v4975 = vadd.f32 %v4974, %v4944
      %v4976 = vadd.f32 %v4975, %v4945
      %v4977 = vadd.f32 %v4976, %v4946
      %v4978 = vadd.f32 %v4977, %v4947
      %v4979 = vadd.f32 %v4978, %v4948
      %v4980 = vadd.f32 %v4979, %v4949
      %v4981 = vadd.f32 %v4980, %v4950
      %v4982 = vrot.slane %v4981, 4
      %v4983 = vadd.f32 %v4981, %v4982
      %v4984 = vrot.slane %v4983, 2
      %v4985 = vadd.f32 %v4983, %v4984
      %v4986 = vrot.slane %v4985, 1
      %v4987 = vadd.f32 %v4985, %v4986
      %vm4988 = vcmask 1040384
      %v4989 = vsel %vm4988, %v4918, %v4987
      %4990 = vst [vmem:[%s411] sm:$0x3] %v4989
      %s4991 = smul.u32 16, %s22
      %p4992 = scmp.lt.s32.totalorder %s21, 1
      %s4993 = scalar_select %p4992, %s21, 1
      %p4994 = scmp.lt.s32.totalorder %s4991, 15
      %s4995 = scalar_select %p4994, %s4991, 15
      %s4996 = smul.addr %s4995, 3
      %s4997 = smul.addr %s4993, 48
      %s4998 = sadd.s32 %s4996, %s4997
      %s4999 = smul.addr %s4998, 4
      %s5000 = scalar_lea.vmem %s4, %s4999
      %p5001 = scmp.lt.s32.totalorder %s21, 1
      %s5002 = scalar_select %p5001, %s21, 1
      %p5003 = scmp.lt.s32.totalorder %s22, 0
      %s5004 = scalar_select %p5003, %s22, 0
      %s5005 = sadd.s32 %s5004, %s5002
      %s5006 = smul.addr %s5005, 2
      %s5007 = scalar_lea.vmem %s5, %s5006
      // Predicated region
      $region53: #{double_conv.3} parent=35 // pred_check
        %p5008 = pneg %p170
      $region54: #{double_conv.3} parent=35 // pred_check_branch
        %5010 = sbr.rel (%p5008) target = $region56
      $region55: #{double_conv.3} parent=35 // pred_region
        %s5011 = smul.u32 16, %s22
      $region56: #{double_conv.3} parent=35 // pred_fallthru
        _
      // Predicated region
      $region57: #{double_conv.3} parent=35 // pred_check
        %p5012 = pneg %p198
      $region58: #{double_conv.3} parent=35 // pred_check_branch
        %5014 = sbr.rel (%p5012) target = $region60
      $region59: #{double_conv.3} parent=35 // pred_region
        _
      $region60: #{double_conv.3} parent=35 // pred_fallthru
        _
    $region36: #{double_conv.3} parent=5 // pred_fallthru
      _
    %p5015 = scmp.le.s32.totalorder 2, %s12
    // Predicated region
    $region61: #{double_conv.3} parent=5 // pred_check
      %p5016 = pneg %p5015
    $region62: #{double_conv.3} parent=5 // pred_check_branch
      %5018 = sbr.rel (%p5016) target = $region64
    $region63: #{double_conv.3} parent=5 // pred_region
      %s5019 = ssub.s32 %s12, 2
      // Predicated region
      $region65: #{double_conv.3} parent=63 // pred_check
        %p5020 = pneg %p176
      $region66: #{double_conv.3} parent=63 // pred_check_branch
        %5022 = sbr.rel (%p5020) target = $region68
      $region67: #{double_conv.3} parent=63 // pred_region
        %s5023 = smul.u32 16, %s24
        %p5024 = scmp.lt.s32.totalorder %s23, 1
        %s5025 = scalar_select %p5024, %s23, 1
        %p5026 = scmp.lt.s32.totalorder %s5023, 15
        %s5027 = scalar_select %p5026, %s5023, 15
        %s5028 = smul.addr %s5027, 3
        %s5029 = smul.addr %s5025, 48
        %s5030 = sadd.s32 %s5028, %s5029
        %s5031 = smul.addr %s5030, 4
        %s5032 = scalar_lea.vmem %s4, %s5031
      $region68: #{double_conv.3} parent=63 // pred_fallthru
        _
      // Predicated region
      $region69: #{double_conv.3} parent=63 // pred_check
        %p5033 = pneg %p204
      $region70: #{double_conv.3} parent=63 // pred_check_branch
        %5035 = sbr.rel (%p5033) target = $region72
      $region71: #{double_conv.3} parent=63 // pred_region
        %p5036 = scmp.lt.s32.totalorder %s23, 1
        %s5037 = scalar_select %p5036, %s23, 1
        %p5038 = scmp.lt.s32.totalorder %s24, 0
        %s5039 = scalar_select %p5038, %s24, 0
        %s5040 = sadd.s32 %s5039, %s5037
        %s5041 = smul.addr %s5040, 2
        %s5042 = scalar_lea.vmem %s5, %s5041
      $region72: #{double_conv.3} parent=63 // pred_fallthru
        _
    $region64: #{double_conv.3} parent=5 // pred_fallthru
      _
  $region6: #{double_conv.3} parent=0 // loop_footer
    %s16 = sadd.s32 1, %s12
  $region7: #{double_conv.3} parent=0 // loop_footer_branch
    %11 = sbr.rel target = $region3
  $region8: #{double_conv.3} parent=0 // loop_exit
    _

// kernel: double_conv.4
$region0: #{double_conv.4}
  #allocation0 [shape = 'u32[]', space=smem, size = 0x4, offset = 0x4, fixed_abs, tag = 'smem constant byte address 0x4 - core index']
  #allocation1 [shape = 'u32[72,128]{1,0:T(1,128)}', space=vmem, size = 0x9000, scoped, tag = 'internal scratch']
  #allocation2 [shape = 'bf16[18,18,128]{2,1,0:T(8,128)(2,1)}', space=vmem, size = 0x1b000, scoped, tag = 'scratch operand']
  %s0 = inlined_call_operand.vmem [shape: f32[1,128], index: 0, kind: input, shape index: {}]
  %s1 = inlined_call_operand.vmem [shape: f32[1,128], index: 1, kind: input, shape index: {}]
  %s2 = inlined_call_operand.vmem [shape: bf16[2,16,18,128], index: 2, kind: input, shape index: {}, may-alias: {2,3,4}]
  %s3 = inlined_call_operand.vmem [shape: bf16[2,16,18,128], index: 3, kind: input, shape index: {}, may-alias: {2,3,4}]
  %s4 = inlined_call_operand.vmem [shape: bf16[2,16,18,128], index: 4, kind: input, shape index: {}, may-alias: {2,3,4}]
  %s5 = inlined_call_operand.vmem [shape: bf16[1152,128], index: 5, kind: input, shape index: {}]
  %s6 = inlined_call_operand.vmem [shape: bf16[2,16,18,128], index: 6, kind: output, shape index: {0}]
  %s7 = inlined_call_operand.vmem [shape: f32[2,1,2,128], index: 7, kind: output, shape index: {1}]
  %8 = xla_tuple %s6, %s7
  %s9 = sld [smem:[#allocation0]]
  $region81: #{double_conv.4} parent=0
    _
  %s11 = ssub.s32 1, %s9
  %s12 = scalar_select 0, %s11, %s9
  loop: start=0, step=1, limit=4
  $region2: #{double_conv.4} parent=0 // loop_pre_header
    _
  $region3: #{double_conv.4} parent=0 // loop_header
    %s14 = sphi 0, %s18
    %p15 = scmp.ge.s32.totalorder %s14, 4
    %s21 = sphi 0, %s33
    %s22 = sphi 0, %s29
    %s23 = sphi 0, %s21
    %s24 = sphi 0, %s22
    %s25 = sphi 0, %s23
    %s26 = sphi 0, %s24
    %s34 = sphi 0, %s34
    %s36 = sphi 0, %s34
    %s37 = sphi 0, %s36
    %s51 = sphi 0, %s37
    %s55 = sphi 0, %s55
    %s57 = sphi 0, %s55
    %s58 = sphi 0, %s57
    %s72 = sphi 0, %s58
    %s88 = sphi 0, %s90
    %s91 = sphi 0, %s88
    %s92 = sphi 0, %s91
    %s108 = sphi 0, %s92
    %s116 = sphi 0, %s118
    %s119 = sphi 0, %s116
    %s120 = sphi 0, %s119
    %s136 = sphi 0, %s120
    %s152 = sphi 0, %s154
    %s155 = sphi 0, %s152
    %s156 = sphi 0, %s155
    %s172 = sphi 0, %s156
    %s176 = sphi 0, %s176
    %s178 = sphi 0, %s176
    %s179 = sphi 0, %s178
    %s193 = sphi 0, %s179
    %s201 = sphi 0, %s203
    %s204 = sphi 0, %s201
    %s205 = sphi 0, %s204
    %s221 = sphi 0, %s205
    %s229 = sphi 0, %s231
    %s232 = sphi 0, %s229
    %s233 = sphi 0, %s232
    %s249 = sphi 0, %s233
  $region4: #{double_conv.4} parent=0 // loop_header_branch
    %17 = sbr.rel (%p15) target = $region8
  $region5: #{double_conv.4} parent=0 // loop_body
    %s19 = ssub.s32 %s14, 1
    %s20 = ssub.s32 %s14, 2
    %s27 = sadd.s32 1, %s22
    %p28 = scmp.ge.s32.totalorder %s27, 1
    %s29 = scalar_select %p28, 0, %s27
    %s30 = sadd.s32 1, %s21
    %s31 = scalar_select %p28, %s30, %s21
    %p32 = scmp.ge.s32.totalorder %s31, 2
    %s33 = scalar_select %p32, 0, %s31
    %s35 = sadd.s32 %s34, 1
    %p38 = scmp.eq.s32.totalorder %s14, 1
    %p39 = scmp.ne.s32.totalorder %s34, %s36
    %p40 = scmp.eq.s32.totalorder %s14, 0
    %p41 = por %p39, %p40
    %p42 = scmp.ne.s32.totalorder %s34, %s36
    %p43 = scmp.eq.s32.totalorder %s19, 1
    %p44 = por %p42, %p43
    %p45 = scmp.ne.s32.totalorder %s36, %s37
    %p46 = scmp.eq.s32.totalorder %s19, 0
    %p47 = por %p45, %p46
    %p48 = scmp.ne.s32.totalorder %s36, %s37
    %p49 = scmp.eq.s32.totalorder %s20, 1
    %p50 = por %p48, %p49
    %p52 = scmp.ne.s32.totalorder %s37, %s51
    %p53 = scmp.eq.s32.totalorder %s20, 0
    %p54 = por %p52, %p53
    %s56 = sadd.s32 %s55, 1
    %p59 = scmp.eq.s32.totalorder %s14, 1
    %p60 = scmp.ne.s32.totalorder %s55, %s57
    %p61 = scmp.eq.s32.totalorder %s14, 0
    %p62 = por %p60, %p61
    %p63 = scmp.ne.s32.totalorder %s55, %s57
    %p64 = scmp.eq.s32.totalorder %s19, 1
    %p65 = por %p63, %p64
    %p66 = scmp.ne.s32.totalorder %s57, %s58
    %p67 = scmp.eq.s32.totalorder %s19, 0
    %p68 = por %p66, %p67
    %p69 = scmp.ne.s32.totalorder %s57, %s58
    %p70 = scmp.eq.s32.totalorder %s20, 1
    %p71 = por %p69, %p70
    %p73 = scmp.ne.s32.totalorder %s58, %s72
    %p74 = scmp.eq.s32.totalorder %s20, 0
    %p75 = por %p73, %p74
    %s76 = smul.u32 %s22, 16
    %s77 = ssub.s32 %s76, 1
    %p78 = scmp.gt.s32.totalorder %s77, 0
    %s79 = scalar_select %p78, %s77, 0
    %s80 = smul.u32 %s29, 16
    %s81 = ssub.s32 %s80, 1
    %p82 = scmp.gt.s32.totalorder %s81, 0
    %s83 = scalar_select %p82, %s81, 0
    %s84 = ssub.s32 %s21, %s33
    %s85 = ssub.s32 %s79, %s83
    %s86 = sor.u32 %s84, %s85
    %p87 = scmp.eq.s32.totalorder %s86, 0
    %s89 = sadd.s32 %s88, 1
    %s90 = scalar_select %p87, %s88, %s89
    %p93 = pneg %p87
    %p94 = scmp.eq.s32.totalorder %s14, 1
    %p95 = por %p93, %p94
    %p96 = scmp.ne.s32.totalorder %s88, %s91
    %p97 = scmp.eq.s32.totalorder %s14, 0
    %p98 = por %p96, %p97
    %p99 = scmp.ne.s32.totalorder %s88, %s91
    %p100 = scmp.eq.s32.totalorder %s19, 1
    %p101 = por %p99, %p100
    %p102 = scmp.ne.s32.totalorder %s91, %s92
    %p103 = scmp.eq.s32.totalorder %s19, 0
    %p104 = por %p102, %p103
    %p105 = scmp.ne.s32.totalorder %s91, %s92
    %p106 = scmp.eq.s32.totalorder %s20, 1
    %p107 = por %p105, %p106
    %p109 = scmp.ne.s32.totalorder %s92, %s108
    %p110 = scmp.eq.s32.totalorder %s20, 0
    %p111 = por %p109, %p110
    %s112 = ssub.s32 %s21, %s33
    %s113 = ssub.s32 %s22, %s29
    %s114 = sor.u32 %s112, %s113
    %p115 = scmp.eq.s32.totalorder %s114, 0
    %s117 = sadd.s32 %s116, 1
    %s118 = scalar_select %p115, %s116, %s117
    %p121 = pneg %p115
    %p122 = scmp.eq.s32.totalorder %s14, 1
    %p123 = por %p121, %p122
    %p124 = scmp.ne.s32.totalorder %s116, %s119
    %p125 = scmp.eq.s32.totalorder %s14, 0
    %p126 = por %p124, %p125
    %p127 = scmp.ne.s32.totalorder %s116, %s119
    %p128 = scmp.eq.s32.totalorder %s19, 1
    %p129 = por %p127, %p128
    %p130 = scmp.ne.s32.totalorder %s119, %s120
    %p131 = scmp.eq.s32.totalorder %s19, 0
    %p132 = por %p130, %p131
    %p133 = scmp.ne.s32.totalorder %s119, %s120
    %p134 = scmp.eq.s32.totalorder %s20, 1
    %p135 = por %p133, %p134
    %p137 = scmp.ne.s32.totalorder %s120, %s136
    %p138 = scmp.eq.s32.totalorder %s20, 0
    %p139 = por %p137, %p138
    %s140 = smul.u32 %s22, 16
    %s141 = sadd.s32 %s140, 16
    %p142 = scmp.lt.s32.totalorder %s141, 15
    %s143 = scalar_select %p142, %s141, 15
    %s144 = smul.u32 %s29, 16
    %s145 = sadd.s32 %s144, 16
    %p146 = scmp.lt.s32.totalorder %s145, 15
    %s147 = scalar_select %p146, %s145, 15
    %s148 = ssub.s32 %s21, %s33
    %s149 = ssub.s32 %s143, %s147
    %s150 = sor.u32 %s148, %s149
    %p151 = scmp.eq.s32.totalorder %s150, 0
    %s153 = sadd.s32 %s152, 1
    %s154 = scalar_select %p151, %s152, %s153
    %p157 = pneg %p151
    %p158 = scmp.eq.s32.totalorder %s14, 1
    %p159 = por %p157, %p158
    %p160 = scmp.ne.s32.totalorder %s152, %s155
    %p161 = scmp.eq.s32.totalorder %s14, 0
    %p162 = por %p160, %p161
    %p163 = scmp.ne.s32.totalorder %s152, %s155
    %p164 = scmp.eq.s32.totalorder %s19, 1
    %p165 = por %p163, %p164
    %p166 = scmp.ne.s32.totalorder %s155, %s156
    %p167 = scmp.eq.s32.totalorder %s19, 0
    %p168 = por %p166, %p167
    %p169 = scmp.ne.s32.totalorder %s155, %s156
    %p170 = scmp.eq.s32.totalorder %s20, 1
    %p171 = por %p169, %p170
    %p173 = scmp.ne.s32.totalorder %s156, %s172
    %p174 = scmp.eq.s32.totalorder %s20, 0
    %p175 = por %p173, %p174
    %s177 = sadd.s32 %s176, 1
    %p180 = scmp.eq.s32.totalorder %s14, 1
    %p181 = scmp.ne.s32.totalorder %s176, %s178
    %p182 = scmp.eq.s32.totalorder %s14, 0
    %p183 = por %p181, %p182
    %p184 = scmp.ne.s32.totalorder %s176, %s178
    %p185 = scmp.eq.s32.totalorder %s19, 1
    %p186 = por %p184, %p185
    %p187 = scmp.ne.s32.totalorder %s178, %s179
    %p188 = scmp.eq.s32.totalorder %s19, 0
    %p189 = por %p187, %p188
    %p190 = scmp.ne.s32.totalorder %s178, %s179
    %p191 = scmp.eq.s32.totalorder %s20, 1
    %p192 = por %p190, %p191
    %p194 = scmp.ne.s32.totalorder %s179, %s193
    %p195 = scmp.eq.s32.totalorder %s20, 0
    %p196 = por %p194, %p195
    %s197 = ssub.s32 %s21, %s33
    %s198 = ssub.s32 %s22, %s29
    %s199 = sor.u32 %s197, %s198
    %p200 = scmp.eq.s32.totalorder %s199, 0
    %s202 = sadd.s32 %s201, 1
    %s203 = scalar_select %p200, %s201, %s202
    %p206 = pneg %p200
    %p207 = scmp.eq.s32.totalorder %s14, 1
    %p208 = por %p206, %p207
    %p209 = scmp.ne.s32.totalorder %s201, %s204
    %p210 = scmp.eq.s32.totalorder %s14, 0
    %p211 = por %p209, %p210
    %p212 = scmp.ne.s32.totalorder %s201, %s204
    %p213 = scmp.eq.s32.totalorder %s19, 1
    %p214 = por %p212, %p213
    %p215 = scmp.ne.s32.totalorder %s204, %s205
    %p216 = scmp.eq.s32.totalorder %s19, 0
    %p217 = por %p215, %p216
    %p218 = scmp.ne.s32.totalorder %s204, %s205
    %p219 = scmp.eq.s32.totalorder %s20, 1
    %p220 = por %p218, %p219
    %p222 = scmp.ne.s32.totalorder %s205, %s221
    %p223 = scmp.eq.s32.totalorder %s20, 0
    %p224 = por %p222, %p223
    %s225 = ssub.s32 %s21, %s33
    %s226 = ssub.s32 %s22, %s29
    %s227 = sor.u32 %s225, %s226
    %p228 = scmp.eq.s32.totalorder %s227, 0
    %s230 = sadd.s32 %s229, 1
    %s231 = scalar_select %p228, %s229, %s230
    %p234 = pneg %p228
    %p235 = scmp.eq.s32.totalorder %s14, 1
    %p236 = por %p234, %p235
    %p237 = scmp.ne.s32.totalorder %s229, %s232
    %p238 = scmp.eq.s32.totalorder %s14, 0
    %p239 = por %p237, %p238
    %p240 = scmp.ne.s32.totalorder %s229, %s232
    %p241 = scmp.eq.s32.totalorder %s19, 1
    %p242 = por %p240, %p241
    %p243 = scmp.ne.s32.totalorder %s232, %s233
    %p244 = scmp.eq.s32.totalorder %s19, 0
    %p245 = por %p243, %p244
    %p246 = scmp.ne.s32.totalorder %s232, %s233
    %p247 = scmp.eq.s32.totalorder %s20, 1
    %p248 = por %p246, %p247
    %p250 = scmp.ne.s32.totalorder %s233, %s249
    %p251 = scmp.eq.s32.totalorder %s20, 0
    %p252 = por %p250, %p251
    %p253 = scmp.le.s32.totalorder 1, %s14
    %p254 = scmp.lt.s32.totalorder %s14, 3
    %p255 = pnand %p253, %p254
    %p256 = pneg %p255
    // Predicated region
    $region9: #{double_conv.4} parent=5 // pred_check
      _
    $region10: #{double_conv.4} parent=5 // pred_check_branch
      %258 = sbr.rel (%p255) target = $region12
    $region11: #{double_conv.4} parent=5 // pred_region
      %s259 = ssub.s32 %s14, 1
      // Predicated region
      $region13: #{double_conv.4} parent=11 // pred_check
        %p260 = pneg %p47
      $region14: #{double_conv.4} parent=11 // pred_check_branch
        %262 = sbr.rel (%p260) target = $region16
      $region15: #{double_conv.4} parent=11 // pred_region
        _
      $region16: #{double_conv.4} parent=11 // pred_fallthru
        _
      // Predicated region
      $region17: #{double_conv.4} parent=11 // pred_check
        %p263 = pneg %p68
      $region18: #{double_conv.4} parent=11 // pred_check_branch
        %265 = sbr.rel (%p263) target = $region20
      $region19: #{double_conv.4} parent=11 // pred_region
        _
      $region20: #{double_conv.4} parent=11 // pred_fallthru
        _
      // Predicated region
      $region21: #{double_conv.4} parent=11 // pred_check
        %p266 = pneg %p189
      $region22: #{double_conv.4} parent=11 // pred_check_branch
        %268 = sbr.rel (%p266) target = $region24
      $region23: #{double_conv.4} parent=11 // pred_region
        _
      $region24: #{double_conv.4} parent=11 // pred_fallthru
        _
    $region12: #{double_conv.4} parent=5 // pred_fallthru
      _
    %p269 = scmp.lt.s32.totalorder %s14, 2
    // Predicated region
    $region25: #{double_conv.4} parent=5 // pred_check
      %p270 = pneg %p269
    $region26: #{double_conv.4} parent=5 // pred_check_branch
      %272 = sbr.rel (%p270) target = $region28
    $region27: #{double_conv.4} parent=5 // pred_region
      // Predicated region
      $region29: #{double_conv.4} parent=27 // pred_check
        %p273 = pneg %p98
      $region30: #{double_conv.4} parent=27 // pred_check_branch
        %275 = sbr.rel (%p273) target = $region32
      $region31: #{double_conv.4} parent=27 // pred_region
        %s276 = smul.u32 %s22, 16
        %s277 = ssub.s32 %s276, 1
        %p278 = scmp.gt.s32.totalorder %s277, 0
        %s279 = scalar_select %p278, %s277, 0
        %p280 = scmp.lt.s32.totalorder %s21, 1
        %s281 = scalar_select %p280, %s21, 1
        %p282 = scmp.lt.s32.totalorder %s279, 15
        %s283 = scalar_select %p282, %s279, 15
        %s284 = smul.addr %s283, 3
        %s285 = smul.addr %s281, 48
        %s286 = sadd.s32 %s284, %s285
        %s287 = smul.addr %s286, 4
        %s288 = scalar_lea.vmem %s2, %s287
        %s289 = smul.u32 %s22, 16
        %s290 = ssub.s32 %s289, 1
        %p291 = scmp.gt.s32.totalorder %s290, 0
        %s292 = scalar_select %p291, %s290, 0
      $region32: #{double_conv.4} parent=27 // pred_fallthru
        _
      // Predicated region
      $region33: #{double_conv.4} parent=27 // pred_check
        %p293 = pneg %p126
      $region34: #{double_conv.4} parent=27 // pred_check_branch
        %295 = sbr.rel (%p293) target = $region36
      $region35: #{double_conv.4} parent=27 // pred_region
        %s296 = smul.u32 16, %s22
        %p297 = scmp.lt.s32.totalorder %s21, 1
        %s298 = scalar_select %p297, %s21, 1
        %p299 = scmp.lt.s32.totalorder %s296, 15
        %s300 = scalar_select %p299, %s296, 15
        %s301 = smul.addr %s300, 3
        %s302 = smul.addr %s298, 48
        %s303 = sadd.s32 %s301, %s302
        %s304 = smul.addr %s303, 4
        %s305 = scalar_lea.vmem %s3, %s304
        %s306 = smul.u32 16, %s22
      $region36: #{double_conv.4} parent=27 // pred_fallthru
        _
      // Predicated region
      $region37: #{double_conv.4} parent=27 // pred_check
        %p307 = pneg %p162
      $region38: #{double_conv.4} parent=27 // pred_check_branch
        %309 = sbr.rel (%p307) target = $region40
      $region39: #{double_conv.4} parent=27 // pred_region
        %s310 = smul.u32 %s22, 16
        %s311 = sadd.s32 %s310, 16
        %p312 = scmp.lt.s32.totalorder %s311, 15
        %s313 = scalar_select %p312, %s311, 15
        %p314 = scmp.lt.s32.totalorder %s21, 1
        %s315 = scalar_select %p314, %s21, 1
        %p316 = scmp.lt.s32.totalorder %s313, 15
        %s317 = scalar_select %p316, %s313, 15
        %s318 = smul.addr %s317, 3
        %s319 = smul.addr %s315, 48
        %s320 = sadd.s32 %s318, %s319
        %s321 = smul.addr %s320, 4
        %s322 = scalar_lea.vmem %s4, %s321
        %s323 = smul.u32 %s22, 16
        %s324 = sadd.s32 %s323, 16
        %p325 = scmp.lt.s32.totalorder %s324, 15
        %s326 = scalar_select %p325, %s324, 15
      $region40: #{double_conv.4} parent=27 // pred_fallthru
        _
    $region28: #{double_conv.4} parent=5 // pred_fallthru
      _
    %p327 = scmp.le.s32.totalorder 1, %s14
    %p328 = scmp.lt.s32.totalorder %s14, 3
    %p329 = pnand %p327, %p328
    %p330 = pneg %p329
    // Predicated region
    $region41: #{double_conv.4} parent=5 // pred_check
      _
    $region42: #{double_conv.4} parent=5 // pred_check_branch
      %332 = sbr.rel (%p329) target = $region44
    $region43: #{double_conv.4} parent=5 // pred_region
      %s333 = ssub.s32 %s14, 1
      %p334 = pneg %p47
      %p335 = pneg %p44
      %p336 = pneg %p68
      %p337 = pneg %p65
      %s338 = smul.u32 %s24, 16
      %s339 = ssub.s32 %s338, 1
      %p340 = scmp.gt.s32.totalorder %s339, 0
      %s341 = scalar_select %p340, %s339, 0
      %p342 = scmp.lt.s32.totalorder %s23, 1
      %s343 = scalar_select %p342, %s23, 1
      %p344 = scmp.lt.s32.totalorder %s341, 15
      %s345 = scalar_select %p344, %s341, 15
      %s346 = smul.addr %s345, 3
      %s347 = smul.addr %s343, 48
      %s348 = sadd.s32 %s346, %s347
      %s349 = smul.addr %s348, 4
      %s350 = scalar_lea.vmem %s2, %s349
      %p351 = pneg %p104
      %p352 = pneg %p101
      %s353 = smul.u32 16, %s24
      %p354 = scmp.lt.s32.totalorder %s23, 1
      %s355 = scalar_select %p354, %s23, 1
      %p356 = scmp.lt.s32.totalorder %s353, 15
      %s357 = scalar_select %p356, %s353, 15
      %s358 = smul.addr %s357, 3
      %s359 = smul.addr %s355, 48
      %s360 = sadd.s32 %s358, %s359
      %s361 = smul.addr %s360, 4
      %s362 = scalar_lea.vmem %s3, %s361
      %p363 = pneg %p132
      %p364 = pneg %p129
      %s365 = smul.u32 %s24, 16
      %s366 = sadd.s32 %s365, 16
      %p367 = scmp.lt.s32.totalorder %s366, 15
      %s368 = scalar_select %p367, %s366, 15
      %p369 = scmp.lt.s32.totalorder %s23, 1
      %s370 = scalar_select %p369, %s23, 1
      %p371 = scmp.lt.s32.totalorder %s368, 15
      %s372 = scalar_select %p371, %s368, 15
      %s373 = smul.addr %s372, 3
      %s374 = smul.addr %s370, 48
      %s375 = sadd.s32 %s373, %s374
      %s376 = smul.addr %s375, 4
      %s377 = scalar_lea.vmem %s4, %s376
      %p378 = pneg %p168
      %p379 = pneg %p165
      %p380 = pneg %p189
      %p381 = pneg %p186
      %p382 = pneg %p217
      %p383 = pneg %p214
      %s384 = smul.u32 16, %s24
      %p385 = scmp.lt.s32.totalorder %s23, 1
      %s386 = scalar_select %p385, %s23, 1
      %p387 = scmp.lt.s32.totalorder %s384, 15
      %s388 = scalar_select %p387, %s384, 15
      %s389 = smul.addr %s388, 3
      %s390 = smul.addr %s386, 48
      %s391 = sadd.s32 %s389, %s390
      %s392 = smul.addr %s391, 4
      %s393 = scalar_lea.vmem %s6, %s392
      %p394 = pneg %p245
      %p395 = pneg %p242
      %p396 = scmp.lt.s32.totalorder %s23, 1
      %s397 = scalar_select %p396, %s23, 1
      %p398 = scmp.lt.s32.totalorder %s24, 0
      %s399 = scalar_select %p398, %s24, 0
      %s400 = sadd.s32 %s399, %s397
      %s401 = smul.addr %s400, 2
      %s402 = scalar_lea.vmem %s7, %s401
      %s403 = smul.u32 %s24, 16
      %s404 = ssub.s32 %s403, 1
      %p405 = scmp.gt.s32.totalorder %s404, 0
      %s406 = scalar_select %p405, %s404, 0
      %p407 = scmp.lt.s32.totalorder %s23, 1
      %s408 = scalar_select %p407, %s23, 1
      %p409 = scmp.lt.s32.totalorder %s406, 15
      %s410 = scalar_select %p409, %s406, 15
      %s411 = smul.addr %s410, 3
      %s412 = smul.addr %s408, 48
      %s413 = sadd.s32 %s411, %s412
      %s414 = smul.addr %s413, 4
      %s415 = scalar_lea.vmem %s2, %s414
      %s416 = smul.u32 %s24, 16
      %s417 = ssub.s32 %s416, 1
      %p418 = scmp.gt.s32.totalorder %s417, 0
      %s419 = scalar_select %p418, %s417, 0
      %s420 = smul.u32 16, %s24
      %p421 = scmp.lt.s32.totalorder %s23, 1
      %s422 = scalar_select %p421, %s23, 1
      %p423 = scmp.lt.s32.totalorder %s420, 15
      %s424 = scalar_select %p423, %s420, 15
      %s425 = smul.addr %s424, 3
      %s426 = smul.addr %s422, 48
      %s427 = sadd.s32 %s425, %s426
      %s428 = smul.addr %s427, 4
      %s429 = scalar_lea.vmem %s3, %s428
      %s430 = smul.u32 16, %s24
      %s431 = smul.u32 %s24, 16
      %s432 = sadd.s32 %s431, 16
      %p433 = scmp.lt.s32.totalorder %s432, 15
      %s434 = scalar_select %p433, %s432, 15
      %p435 = scmp.lt.s32.totalorder %s23, 1
      %s436 = scalar_select %p435, %s23, 1
      %p437 = scmp.lt.s32.totalorder %s434, 15
      %s438 = scalar_select %p437, %s434, 15
      %s439 = smul.addr %s438, 3
      %s440 = smul.addr %s436, 48
      %s441 = sadd.s32 %s439, %s440
      %s442 = smul.addr %s441, 4
      %s443 = scalar_lea.vmem %s4, %s442
      %s444 = smul.u32 %s24, 16
      %s445 = sadd.s32 %s444, 16
      %p446 = scmp.lt.s32.totalorder %s445, 15
      %s447 = scalar_select %p446, %s445, 15
      %s448 = smul.u32 16, %s24
      %p449 = scmp.lt.s32.totalorder %s23, 1
      %s450 = scalar_select %p449, %s23, 1
      %p451 = scmp.lt.s32.totalorder %s448, 15
      %s452 = scalar_select %p451, %s448, 15
      %s453 = smul.addr %s452, 3
      %s454 = smul.addr %s450, 48
      %s455 = sadd.s32 %s453, %s454
      %s456 = smul.addr %s455, 4
      %s457 = scalar_lea.vmem %s6, %s456
      %s458 = smul.u32 16, %s24
      %p459 = scmp.lt.s32.totalorder %s23, 1
      %s460 = scalar_select %p459, %s23, 1
      %p461 = scmp.lt.s32.totalorder %s24, 0
      %s462 = scalar_select %p461, %s24, 0
      %s463 = sadd.s32 %s462, %s460
      %s464 = smul.addr %s463, 2
      %s465 = scalar_lea.vmem %s7, %s464
      %v467 = vld [vmem:[%s429] sm:$0xf]
      %v468 = vld [vmem:[%s429 + $0x4] sm:$0xf]
      %v469 = vld [vmem:[%s429 + $0x8] sm:$0x1]
      %v470 = vld [vmem:[%s429 + $0xc] sm:$0xf]
      %v471 = vld [vmem:[%s429 + $0x10] sm:$0xf]
      %v472 = vld [vmem:[%s429 + $0x14] sm:$0x1]
      %v473 = vld [vmem:[%s429 + $0x18] sm:$0xf]
      %v474 = vld [vmem:[%s429 + $0x1c] sm:$0xf]
      %v475 = vld [vmem:[%s429 + $0x20] sm:$0x1]
      %v476 = vld [vmem:[%s429 + $0x24] sm:$0xf]
      %v477 = vld [vmem:[%s429 + $0x28] sm:$0xf]
      %v478 = vld [vmem:[%s429 + $0x2c] sm:$0x1]
      %v479 = vld [vmem:[%s429 + $0x30] sm:$0xf]
      %v480 = vld [vmem:[%s429 + $0x34] sm:$0xf]
      %v481 = vld [vmem:[%s429 + $0x38] sm:$0x1]
      %v482 = vld [vmem:[%s429 + $0x3c] sm:$0xf]
      %v483 = vld [vmem:[%s429 + $0x40] sm:$0xf]
      %v484 = vld [vmem:[%s429 + $0x44] sm:$0x1]
      %v485 = vld [vmem:[%s429 + $0x48] sm:$0xf]
      %v486 = vld [vmem:[%s429 + $0x4c] sm:$0xf]
      %v487 = vld [vmem:[%s429 + $0x50] sm:$0x1]
      %v488 = vld [vmem:[%s429 + $0x54] sm:$0xf]
      %v489 = vld [vmem:[%s429 + $0x58] sm:$0xf]
      %v490 = vld [vmem:[%s429 + $0x5c] sm:$0x1]
      %v491 = vld [vmem:[%s429 + $0x60] sm:$0xf]
      %v492 = vld [vmem:[%s429 + $0x64] sm:$0xf]
      %v493 = vld [vmem:[%s429 + $0x68] sm:$0x1]
      %v494 = vld [vmem:[%s429 + $0x6c] sm:$0xf]
      %v495 = vld [vmem:[%s429 + $0x70] sm:$0xf]
      %v496 = vld [vmem:[%s429 + $0x74] sm:$0x1]
      %v497 = vld [vmem:[%s429 + $0x78] sm:$0xf]
      %v498 = vld [vmem:[%s429 + $0x7c] sm:$0xf]
      %v499 = vld [vmem:[%s429 + $0x80] sm:$0x1]
      %v500 = vld [vmem:[%s429 + $0x84] sm:$0xf]
      %v501 = vld [vmem:[%s429 + $0x88] sm:$0xf]
      %v502 = vld [vmem:[%s429 + $0x8c] sm:$0x1]
      %v503 = vld [vmem:[%s429 + $0x90] sm:$0xf]
      %v504 = vld [vmem:[%s429 + $0x94] sm:$0xf]
      %v505 = vld [vmem:[%s429 + $0x98] sm:$0x1]
      %v506 = vld [vmem:[%s429 + $0x9c] sm:$0xf]
      %v507 = vld [vmem:[%s429 + $0xa0] sm:$0xf]
      %v508 = vld [vmem:[%s429 + $0xa4] sm:$0x1]
      %v509 = vld [vmem:[%s429 + $0xa8] sm:$0xf]
      %v510 = vld [vmem:[%s429 + $0xac] sm:$0xf]
      %v511 = vld [vmem:[%s429 + $0xb0] sm:$0x1]
      %v512 = vld [vmem:[%s429 + $0xb4] sm:$0xf]
      %v513 = vld [vmem:[%s429 + $0xb8] sm:$0xf]
      %v514 = vld [vmem:[%s429 + $0xbc] sm:$0x1]
      %v515 = vunpack.c.l.bf16 %v467
      %v516 = vunpack.c.l.bf16 %v468
      %v517 = vunpack.c.l.bf16 %v469
      %v518 = vunpack.c.l.bf16 %v470
      %v519 = vunpack.c.l.bf16 %v471
      %v520 = vunpack.c.l.bf16 %v472
      %v521 = vunpack.c.l.bf16 %v473
      %v522 = vunpack.c.l.bf16 %v474
      %v523 = vunpack.c.l.bf16 %v475
      %v524 = vunpack.c.l.bf16 %v476
      %v525 = vunpack.c.l.bf16 %v477
      %v526 = vunpack.c.l.bf16 %v478
      %v527 = vunpack.c.l.bf16 %v479
      %v528 = vunpack.c.l.bf16 %v480
      %v529 = vunpack.c.l.bf16 %v481
      %v530 = vunpack.c.l.bf16 %v482
      %v531 = vunpack.c.l.bf16 %v483
      %v532 = vunpack.c.l.bf16 %v484
      %v533 = vunpack.c.l.bf16 %v485
      %v534 = vunpack.c.l.bf16 %v486
      %v535 = vunpack.c.l.bf16 %v487
      %v536 = vunpack.c.l.bf16 %v488
      %v537 = vunpack.c.l.bf16 %v489
      %v538 = vunpack.c.l.bf16 %v490
      %v539 = vunpack.c.l.bf16 %v491
      %v540 = vunpack.c.l.bf16 %v492
      %v541 = vunpack.c.l.bf16 %v493
      %v542 = vunpack.c.l.bf16 %v494
      %v543 = vunpack.c.l.bf16 %v495
      %v544 = vunpack.c.l.bf16 %v496
      %v545 = vunpack.c.l.bf16 %v497
      %v546 = vunpack.c.l.bf16 %v498
      %v547 = vunpack.c.l.bf16 %v499
      %v548 = vunpack.c.l.bf16 %v500
      %v549 = vunpack.c.l.bf16 %v501
      %v550 = vunpack.c.l.bf16 %v502
      %v551 = vunpack.c.l.bf16 %v503
      %v552 = vunpack.c.l.bf16 %v504
      %v553 = vunpack.c.l.bf16 %v505
      %v554 = vunpack.c.l.bf16 %v506
      %v555 = vunpack.c.l.bf16 %v507
      %v556 = vunpack.c.l.bf16 %v508
      %v557 = vunpack.c.l.bf16 %v509
      %v558 = vunpack.c.l.bf16 %v510
      %v559 = vunpack.c.l.bf16 %v511
      %v560 = vunpack.c.l.bf16 %v512
      %v561 = vunpack.c.l.bf16 %v513
      %v562 = vunpack.c.l.bf16 %v514
      %v563 = vld [vmem:[%s0] sm:$0x1]
      %v565 = vperm.slane %v563, 0
      %v567 = vmul.f32 %v515, %v565
      %v568 = vmul.f32 %v516, %v565
      %v569 = vmul.f32 %v517, %v565
      %v570 = vmul.f32 %v518, %v565
      %v571 = vmul.f32 %v519, %v565
      %v572 = vmul.f32 %v520, %v565
      %v573 = vmul.f32 %v521, %v565
      %v574 = vmul.f32 %v522, %v565
      %v575 = vmul.f32 %v523, %v565
      %v576 = vmul.f32 %v524, %v565
      %v577 = vmul.f32 %v525, %v565
      %v578 = vmul.f32 %v526, %v565
      %v579 = vmul.f32 %v527, %v565
      %v580 = vmul.f32 %v528, %v565
      %v581 = vmul.f32 %v529, %v565
      %v582 = vmul.f32 %v530, %v565
      %v583 = vmul.f32 %v531, %v565
      %v584 = vmul.f32 %v532, %v565
      %v585 = vmul.f32 %v533, %v565
      %v586 = vmul.f32 %v534, %v565
      %v587 = vmul.f32 %v535, %v565
      %v588 = vmul.f32 %v536, %v565
      %v589 = vmul.f32 %v537, %v565
      %v590 = vmul.f32 %v538, %v565
      %v591 = vmul.f32 %v539, %v565
      %v592 = vmul.f32 %v540, %v565
      %v593 = vmul.f32 %v541, %v565
      %v594 = vmul.f32 %v542, %v565
      %v595 = vmul.f32 %v543, %v565
      %v596 = vmul.f32 %v544, %v565
      %v597 = vmul.f32 %v545, %v565
      %v598 = vmul.f32 %v546, %v565
      %v599 = vmul.f32 %v547, %v565
      %v600 = vmul.f32 %v548, %v565
      %v601 = vmul.f32 %v549, %v565
      %v602 = vmul.f32 %v550, %v565
      %v603 = vmul.f32 %v551, %v565
      %v604 = vmul.f32 %v552, %v565
      %v605 = vmul.f32 %v553, %v565
      %v606 = vmul.f32 %v554, %v565
      %v607 = vmul.f32 %v555, %v565
      %v608 = vmul.f32 %v556, %v565
      %v609 = vmul.f32 %v557, %v565
      %v610 = vmul.f32 %v558, %v565
      %v611 = vmul.f32 %v559, %v565
      %v612 = vmul.f32 %v560, %v565
      %v613 = vmul.f32 %v561, %v565
      %v614 = vmul.f32 %v562, %v565
      %v615 = vld [vmem:[%s1] sm:$0x1]
      %v617 = vperm.slane %v615, 0
      %v619 = vadd.f32 %v567, %v617
      %v620 = vadd.f32 %v568, %v617
      %v621 = vadd.f32 %v569, %v617
      %v622 = vadd.f32 %v570, %v617
      %v623 = vadd.f32 %v571, %v617
      %v624 = vadd.f32 %v572, %v617
      %v625 = vadd.f32 %v573, %v617
      %v626 = vadd.f32 %v574, %v617
      %v627 = vadd.f32 %v575, %v617
      %v628 = vadd.f32 %v576, %v617
      %v629 = vadd.f32 %v577, %v617
      %v630 = vadd.f32 %v578, %v617
      %v631 = vadd.f32 %v579, %v617
      %v632 = vadd.f32 %v580, %v617
      %v633 = vadd.f32 %v581, %v617
      %v634 = vadd.f32 %v582, %v617
      %v635 = vadd.f32 %v583, %v617
      %v636 = vadd.f32 %v584, %v617
      %v637 = vadd.f32 %v585, %v617
      %v638 = vadd.f32 %v586, %v617
      %v639 = vadd.f32 %v587, %v617
      %v640 = vadd.f32 %v588, %v617
      %v641 = vadd.f32 %v589, %v617
      %v642 = vadd.f32 %v590, %v617
      %v643 = vadd.f32 %v591, %v617
      %v644 = vadd.f32 %v592, %v617
      %v645 = vadd.f32 %v593, %v617
      %v646 = vadd.f32 %v594, %v617
      %v647 = vadd.f32 %v595, %v617
      %v648 = vadd.f32 %v596, %v617
      %v649 = vadd.f32 %v597, %v617
      %v650 = vadd.f32 %v598, %v617
      %v651 = vadd.f32 %v599, %v617
      %v652 = vadd.f32 %v600, %v617
      %v653 = vadd.f32 %v601, %v617
      %v654 = vadd.f32 %v602, %v617
      %v655 = vadd.f32 %v603, %v617
      %v656 = vadd.f32 %v604, %v617
      %v657 = vadd.f32 %v605, %v617
      %v658 = vadd.f32 %v606, %v617
      %v659 = vadd.f32 %v607, %v617
      %v660 = vadd.f32 %v608, %v617
      %v661 = vadd.f32 %v609, %v617
      %v662 = vadd.f32 %v610, %v617
      %v663 = vadd.f32 %v611, %v617
      %v664 = vadd.f32 %v612, %v617
      %v665 = vadd.f32 %v613, %v617
      %v666 = vadd.f32 %v614, %v617
      %v667 = vmax.f32 %v619, 0.0
      %v668 = vmax.f32 %v620, 0.0
      %v669 = vmax.f32 %v621, 0.0
      %v670 = vmax.f32 %v622, 0.0
      %v671 = vmax.f32 %v623, 0.0
      %v672 = vmax.f32 %v624, 0.0
      %v673 = vmax.f32 %v625, 0.0
      %v674 = vmax.f32 %v626, 0.0
      %v675 = vmax.f32 %v627, 0.0
      %v676 = vmax.f32 %v628, 0.0
      %v677 = vmax.f32 %v629, 0.0
      %v678 = vmax.f32 %v630, 0.0
      %v679 = vmax.f32 %v631, 0.0
      %v680 = vmax.f32 %v632, 0.0
      %v681 = vmax.f32 %v633, 0.0
      %v682 = vmax.f32 %v634, 0.0
      %v683 = vmax.f32 %v635, 0.0
      %v684 = vmax.f32 %v636, 0.0
      %v685 = vmax.f32 %v637, 0.0
      %v686 = vmax.f32 %v638, 0.0
      %v687 = vmax.f32 %v639, 0.0
      %v688 = vmax.f32 %v640, 0.0
      %v689 = vmax.f32 %v641, 0.0
      %v690 = vmax.f32 %v642, 0.0
      %v691 = vmax.f32 %v643, 0.0
      %v692 = vmax.f32 %v644, 0.0
      %v693 = vmax.f32 %v645, 0.0
      %v694 = vmax.f32 %v646, 0.0
      %v695 = vmax.f32 %v647, 0.0
      %v696 = vmax.f32 %v648, 0.0
      %v697 = vmax.f32 %v649, 0.0
      %v698 = vmax.f32 %v650, 0.0
      %v699 = vmax.f32 %v651, 0.0
      %v700 = vmax.f32 %v652, 0.0
      %v701 = vmax.f32 %v653, 0.0
      %v702 = vmax.f32 %v654, 0.0
      %v703 = vmax.f32 %v655, 0.0
      %v704 = vmax.f32 %v656, 0.0
      %v705 = vmax.f32 %v657, 0.0
      %v706 = vmax.f32 %v658, 0.0
      %v707 = vmax.f32 %v659, 0.0
      %v708 = vmax.f32 %v660, 0.0
      %v709 = vmax.f32 %v661, 0.0
      %v710 = vmax.f32 %v662, 0.0
      %v711 = vmax.f32 %v663, 0.0
      %v712 = vmax.f32 %v664, 0.0
      %v713 = vmax.f32 %v665, 0.0
      %v714 = vmax.f32 %v666, 0.0
      %v715 = vpack.c.bf16 %v667, %v667
      %v716 = vpack.c.bf16 %v668, %v668
      %v717 = vpack.c.bf16 %v669, %v669
      %v718 = vpack.c.bf16 %v670, %v670
      %v719 = vpack.c.bf16 %v671, %v671
      %v720 = vpack.c.bf16 %v672, %v672
      %v721 = vpack.c.bf16 %v673, %v673
      %v722 = vpack.c.bf16 %v674, %v674
      %v723 = vpack.c.bf16 %v675, %v675
      %v724 = vpack.c.bf16 %v676, %v676
      %v725 = vpack.c.bf16 %v677, %v677
      %v726 = vpack.c.bf16 %v678, %v678
      %v727 = vpack.c.bf16 %v679, %v679
      %v728 = vpack.c.bf16 %v680, %v680
      %v729 = vpack.c.bf16 %v681, %v681
      %v730 = vpack.c.bf16 %v682, %v682
      %v731 = vpack.c.bf16 %v683, %v683
      %v732 = vpack.c.bf16 %v684, %v684
      %v733 = vpack.c.bf16 %v685, %v685
      %v734 = vpack.c.bf16 %v686, %v686
      %v735 = vpack.c.bf16 %v687, %v687
      %v736 = vpack.c.bf16 %v688, %v688
      %v737 = vpack.c.bf16 %v689, %v689
      %v738 = vpack.c.bf16 %v690, %v690
      %v739 = vpack.c.bf16 %v691, %v691
      %v740 = vpack.c.bf16 %v692, %v692
      %v741 = vpack.c.bf16 %v693, %v693
      %v742 = vpack.c.bf16 %v694, %v694
      %v743 = vpack.c.bf16 %v695, %v695
      %v744 = vpack.c.bf16 %v696, %v696
      %v745 = vpack.c.bf16 %v697, %v697
      %v746 = vpack.c.bf16 %v698, %v698
      %v747 = vpack.c.bf16 %v699, %v699
      %v748 = vpack.c.bf16 %v700, %v700
      %v749 = vpack.c.bf16 %v701, %v701
      %v750 = vpack.c.bf16 %v702, %v702
      %v751 = vpack.c.bf16 %v703, %v703
      %v752 = vpack.c.bf16 %v704, %v704
      %v753 = vpack.c.bf16 %v705, %v705
      %v754 = vpack.c.bf16 %v706, %v706
      %v755 = vpack.c.bf16 %v707, %v707
      %v756 = vpack.c.bf16 %v708, %v708
      %v757 = vpack.c.bf16 %v709, %v709
      %v758 = vpack.c.bf16 %v710, %v710
      %v759 = vpack.c.bf16 %v711, %v711
      %v760 = vpack.c.bf16 %v712, %v712
      %v761 = vpack.c.bf16 %v713, %v713
      %v762 = vpack.c.bf16 %v714, %v714
      %s763 = scalar_lea.vmem [#allocation2], 12
      %764 = vst [vmem:[%s763] sm:$0xf] %v715
      %765 = vst [vmem:[%s763 + $0x4] sm:$0xf] %v716
      %766 = vst [vmem:[%s763 + $0x8] sm:$0x1] %v717
      %767 = vst [vmem:[%s763 + $0xc] sm:$0xf] %v718
      %768 = vst [vmem:[%s763 + $0x10] sm:$0xf] %v719
      %769 = vst [vmem:[%s763 + $0x14] sm:$0x1] %v720
      %770 = vst [vmem:[%s763 + $0x18] sm:$0xf] %v721
      %771 = vst [vmem:[%s763 + $0x1c] sm:$0xf] %v722
      %772 = vst [vmem:[%s763 + $0x20] sm:$0x1] %v723
      %773 = vst [vmem:[%s763 + $0x24] sm:$0xf] %v724
      %774 = vst [vmem:[%s763 + $0x28] sm:$0xf] %v725
      %775 = vst [vmem:[%s763 + $0x2c] sm:$0x1] %v726
      %776 = vst [vmem:[%s763 + $0x30] sm:$0xf] %v727
      %777 = vst [vmem:[%s763 + $0x34] sm:$0xf] %v728
      %778 = vst [vmem:[%s763 + $0x38] sm:$0x1] %v729
      %779 = vst [vmem:[%s763 + $0x3c] sm:$0xf] %v730
      %780 = vst [vmem:[%s763 + $0x40] sm:$0xf] %v731
      %781 = vst [vmem:[%s763 + $0x44] sm:$0x1] %v732
      %782 = vst [vmem:[%s763 + $0x48] sm:$0xf] %v733
      %783 = vst [vmem:[%s763 + $0x4c] sm:$0xf] %v734
      %784 = vst [vmem:[%s763 + $0x50] sm:$0x1] %v735
      %785 = vst [vmem:[%s763 + $0x54] sm:$0xf] %v736
      %786 = vst [vmem:[%s763 + $0x58] sm:$0xf] %v737
      %787 = vst [vmem:[%s763 + $0x5c] sm:$0x1] %v738
      %788 = vst [vmem:[%s763 + $0x60] sm:$0xf] %v739
      %789 = vst [vmem:[%s763 + $0x64] sm:$0xf] %v740
      %790 = vst [vmem:[%s763 + $0x68] sm:$0x1] %v741
      %791 = vst [vmem:[%s763 + $0x6c] sm:$0xf] %v742
      %792 = vst [vmem:[%s763 + $0x70] sm:$0xf] %v743
      %793 = vst [vmem:[%s763 + $0x74] sm:$0x1] %v744
      %794 = vst [vmem:[%s763 + $0x78] sm:$0xf] %v745
      %795 = vst [vmem:[%s763 + $0x7c] sm:$0xf] %v746
      %796 = vst [vmem:[%s763 + $0x80] sm:$0x1] %v747
      %797 = vst [vmem:[%s763 + $0x84] sm:$0xf] %v748
      %798 = vst [vmem:[%s763 + $0x88] sm:$0xf] %v749
      %799 = vst [vmem:[%s763 + $0x8c] sm:$0x1] %v750
      %800 = vst [vmem:[%s763 + $0x90] sm:$0xf] %v751
      %801 = vst [vmem:[%s763 + $0x94] sm:$0xf] %v752
      %802 = vst [vmem:[%s763 + $0x98] sm:$0x1] %v753
      %803 = vst [vmem:[%s763 + $0x9c] sm:$0xf] %v754
      %804 = vst [vmem:[%s763 + $0xa0] sm:$0xf] %v755
      %805 = vst [vmem:[%s763 + $0xa4] sm:$0x1] %v756
      %806 = vst [vmem:[%s763 + $0xa8] sm:$0xf] %v757
      %807 = vst [vmem:[%s763 + $0xac] sm:$0xf] %v758
      %808 = vst [vmem:[%s763 + $0xb0] sm:$0x1] %v759
      %809 = vst [vmem:[%s763 + $0xb4] sm:$0xf] %v760
      %810 = vst [vmem:[%s763 + $0xb8] sm:$0xf] %v761
      %811 = vst [vmem:[%s763 + $0xbc] sm:$0x1] %v762
      %p812 = scmp.gt.s32.totalorder %s24, 0
      // Predicated region
      $region45: #{double_conv.4} parent=43 // pred_check
        %p813 = pneg %p812
      $region46: #{double_conv.4} parent=43 // pred_check_branch
        %815 = sbr.rel (%p813) target = $region48
      $region47: #{double_conv.4} parent=43 // pred_region
        %v816 = vld [vmem:[%s415] sm:$0xf]
        %v817 = vld [vmem:[%s415 + $0x4] sm:$0xf]
        %v818 = vld [vmem:[%s415 + $0x8] sm:$0x1]
        %v819 = vunpack.c.l.bf16 %v816
        %v820 = vunpack.c.l.bf16 %v817
        %v821 = vunpack.c.l.bf16 %v818
        %v822 = vld [vmem:[%s0] sm:$0x1]
        %v824 = vperm.slane %v822, 0
        %v826 = vmul.f32 %v819, %v824
        %v827 = vmul.f32 %v820, %v824
        %v828 = vmul.f32 %v821, %v824
        %v829 = vld [vmem:[%s1] sm:$0x1]
        %v831 = vperm.slane %v829, 0
        %v833 = vadd.f32 %v826, %v831
        %v834 = vadd.f32 %v827, %v831
        %v835 = vadd.f32 %v828, %v831
        %v836 = vmax.f32 %v833, 0.0
        %v837 = vmax.f32 %v834, 0.0
        %v838 = vmax.f32 %v835, 0.0
        %v839 = vpack.c.bf16 %v836, %v836
        %v840 = vpack.c.bf16 %v837, %v837
        %v841 = vpack.c.bf16 %v838, %v838
        %842 = vst [vmem:[#allocation2] sm:$0xf] %v839
        %843 = vst [vmem:[#allocation2 + $0x4] sm:$0xf] %v840
        %844 = vst [vmem:[#allocation2 + $0x8] sm:$0x1] %v841
      $region48: #{double_conv.4} parent=43 // pred_fallthru
        _
      %p845 = scmp.eq.s32.totalorder %s24, 0
      // Predicated region
      $region49: #{double_conv.4} parent=43 // pred_check
        %p846 = pneg %p845
      $region50: #{double_conv.4} parent=43 // pred_check_branch
        %848 = sbr.rel (%p846) target = $region52
      $region51: #{double_conv.4} parent=43 // pred_region
        %849 = vst [vmem:[#allocation2] sm:$0xf] 0
        %850 = vst [vmem:[#allocation2 + $0x4] sm:$0xf] 0
        %851 = vst [vmem:[#allocation2 + $0x8] sm:$0x1] 0
      $region52: #{double_conv.4} parent=43 // pred_fallthru
        _
      %p852 = scmp.lt.s32.totalorder %s24, 0
      // Predicated region
      $region53: #{double_conv.4} parent=43 // pred_check
        %p853 = pneg %p852
      $region54: #{double_conv.4} parent=43 // pred_check_branch
        %855 = sbr.rel (%p853) target = $region56
      $region55: #{double_conv.4} parent=43 // pred_region
        %v856 = vld [vmem:[%s443] sm:$0xf]
        %v857 = vld [vmem:[%s443 + $0x4] sm:$0xf]
        %v858 = vld [vmem:[%s443 + $0x8] sm:$0x1]
        %v859 = vunpack.c.l.bf16 %v856
        %v860 = vunpack.c.l.bf16 %v857
        %v861 = vunpack.c.l.bf16 %v858
        %v862 = vld [vmem:[%s0] sm:$0x1]
        %v864 = vperm.slane %v862, 0
        %v866 = vmul.f32 %v859, %v864
        %v867 = vmul.f32 %v860, %v864
        %v868 = vmul.f32 %v861, %v864
        %v869 = vld [vmem:[%s1] sm:$0x1]
        %v871 = vperm.slane %v869, 0
        %v873 = vadd.f32 %v866, %v871
        %v874 = vadd.f32 %v867, %v871
        %v875 = vadd.f32 %v868, %v871
        %v876 = vmax.f32 %v873, 0.0
        %v877 = vmax.f32 %v874, 0.0
        %v878 = vmax.f32 %v875, 0.0
        %v879 = vpack.c.bf16 %v876, %v876
        %v880 = vpack.c.bf16 %v877, %v877
        %v881 = vpack.c.bf16 %v878, %v878
        %s882 = scalar_lea.vmem [#allocation2], 204
        %883 = vst [vmem:[%s882] sm:$0xf] %v879
        %884 = vst [vmem:[%s882 + $0x4] sm:$0xf] %v880
        %885 = vst [vmem:[%s882 + $0x8] sm:$0x1] %v881
      $region56: #{double_conv.4} parent=43 // pred_fallthru
        _
      // Predicated region
      $region57: #{double_conv.4} parent=43 // pred_check
        %p886 = pneg %p845
      $region58: #{double_conv.4} parent=43 // pred_check_branch
        %888 = sbr.rel (%p886) target = $region60
      $region59: #{double_conv.4} parent=43 // pred_region
        %s889 = scalar_lea.vmem [#allocation2], 204
        %890 = vst [vmem:[%s889] sm:$0xf] 0
        %891 = vst [vmem:[%s889 + $0x4] sm:$0xf] 0
        %892 = vst [vmem:[%s889 + $0x8] sm:$0x1] 0
      $region60: #{double_conv.4} parent=43 // pred_fallthru
        _
      %vm893 = vcmask 1040384
      %vm894 = vsmask.f32 256
      %vm895 = vmand %vm893, %vm894
      %v896 = vld [vmem:[#allocation2] sm:$0x1]
      %v897 = vsel %vm895, 0, %v896
      %898 = vst [vmem:[#allocation2] sm:$0x1] %v897
      %v899 = vld [vmem:[#allocation2 + $0xc] sm:$0x1]
      %v900 = vsel %vm895, 0, %v899
      %901 = vst [vmem:[#allocation2 + $0xc] sm:$0x1] %v900
      %v902 = vld [vmem:[#allocation2 + $0x18] sm:$0x1]
      %v903 = vsel %vm895, 0, %v902
      %904 = vst [vmem:[#allocation2 + $0x18] sm:$0x1] %v903
      %v905 = vld [vmem:[#allocation2 + $0x24] sm:$0x1]
      %v906 = vsel %vm895, 0, %v905
      %907 = vst [vmem:[#allocation2 + $0x24] sm:$0x1] %v906
      %v908 = vld [vmem:[#allocation2 + $0x30] sm:$0x1]
      %v909 = vsel %vm895, 0, %v908
      %910 = vst [vmem:[#allocation2 + $0x30] sm:$0x1] %v909
      %v911 = vld [vmem:[#allocation2 + $0x3c] sm:$0x1]
      %v912 = vsel %vm895, 0, %v911
      %913 = vst [vmem:[#allocation2 + $0x3c] sm:$0x1] %v912
      %v914 = vld [vmem:[#allocation2 + $0x48] sm:$0x1]
      %v915 = vsel %vm895, 0, %v914
      %916 = vst [vmem:[#allocation2 + $0x48] sm:$0x1] %v915
      %v917 = vld [vmem:[#allocation2 + $0x54] sm:$0x1]
      %v918 = vsel %vm895, 0, %v917
      %919 = vst [vmem:[#allocation2 + $0x54] sm:$0x1] %v918
      %v920 = vld [vmem:[#allocation2 + $0x60] sm:$0x1]
      %v921 = vsel %vm895, 0, %v920
      %922 = vst [vmem:[#allocation2 + $0x60] sm:$0x1] %v921
      %v923 = vld [vmem:[#allocation2 + $0x6c] sm:$0x1]
      %v924 = vsel %vm895, 0, %v923
      %925 = vst [vmem:[#allocation2 + $0x6c] sm:$0x1] %v924
      %v926 = vld [vmem:[#allocation2 + $0x78] sm:$0x1]
      %v927 = vsel %vm895, 0, %v926
      %928 = vst [vmem:[#allocation2 + $0x78] sm:$0x1] %v927
      %v929 = vld [vmem:[#allocation2 + $0x84] sm:$0x1]
      %v930 = vsel %vm895, 0, %v929
      %931 = vst [vmem:[#allocation2 + $0x84] sm:$0x1] %v930
      %v932 = vld [vmem:[#allocation2 + $0x90] sm:$0x1]
      %v933 = vsel %vm895, 0, %v932
      %934 = vst [vmem:[#allocation2 + $0x90] sm:$0x1] %v933
      %v935 = vld [vmem:[#allocation2 + $0x9c] sm:$0x1]
      %v936 = vsel %vm895, 0, %v935
      %937 = vst [vmem:[#allocation2 + $0x9c] sm:$0x1] %v936
      %v938 = vld [vmem:[#allocation2 + $0xa8] sm:$0x1]
      %v939 = vsel %vm895, 0, %v938
      %940 = vst [vmem:[#allocation2 + $0xa8] sm:$0x1] %v939
      %v941 = vld [vmem:[#allocation2 + $0xb4] sm:$0x1]
      %v942 = vsel %vm895, 0, %v941
      %943 = vst [vmem:[#allocation2 + $0xb4] sm:$0x1] %v942
      %v944 = vld [vmem:[#allocation2 + $0xc0] sm:$0x1]
      %v945 = vsel %vm895, 0, %v944
      %946 = vst [vmem:[#allocation2 + $0xc0] sm:$0x1] %v945
      %v947 = vld [vmem:[#allocation2 + $0xcc] sm:$0x1]
      %v948 = vsel %vm895, 0, %v947
      %949 = vst [vmem:[#allocation2 + $0xcc] sm:$0x1] %v948
      %vm950 = vsmask.f32 7938
      %vm951 = vmand %vm893, %vm950
      %v952 = vld [vmem:[#allocation2 + $0x8] sm:$0x1]
      %v953 = vsel %vm951, 0, %v952
      %954 = vst [vmem:[#allocation2 + $0x8] sm:$0x1] %v953
      %v955 = vld [vmem:[#allocation2 + $0x14] sm:$0x1]
      %v956 = vsel %vm951, 0, %v955
      %957 = vst [vmem:[#allocation2 + $0x14] sm:$0x1] %v956
      %v958 = vld [vmem:[#allocation2 + $0x20] sm:$0x1]
      %v959 = vsel %vm951, 0, %v958
      %960 = vst [vmem:[#allocation2 + $0x20] sm:$0x1] %v959
      %v961 = vld [vmem:[#allocation2 + $0x2c] sm:$0x1]
      %v962 = vsel %vm951, 0, %v961
      %963 = vst [vmem:[#allocation2 + $0x2c] sm:$0x1] %v962
      %v964 = vld [vmem:[#allocation2 + $0x38] sm:$0x1]
      %v965 = vsel %vm951, 0, %v964
      %966 = vst [vmem:[#allocation2 + $0x38] sm:$0x1] %v965
      %v967 = vld [vmem:[#allocation2 + $0x44] sm:$0x1]
      %v968 = vsel %vm951, 0, %v967
      %969 = vst [vmem:[#allocation2 + $0x44] sm:$0x1] %v968
      %v970 = vld [vmem:[#allocation2 + $0x50] sm:$0x1]
      %v971 = vsel %vm951, 0, %v970
      %972 = vst [vmem:[#allocation2 + $0x50] sm:$0x1] %v971
      %v973 = vld [vmem:[#allocation2 + $0x5c] sm:$0x1]
      %v974 = vsel %vm951, 0, %v973
      %975 = vst [vmem:[#allocation2 + $0x5c] sm:$0x1] %v974
      %v976 = vld [vmem:[#allocation2 + $0x68] sm:$0x1]
      %v977 = vsel %vm951, 0, %v976
      %978 = vst [vmem:[#allocation2 + $0x68] sm:$0x1] %v977
      %v979 = vld [vmem:[#allocation2 + $0x74] sm:$0x1]
      %v980 = vsel %vm951, 0, %v979
      %981 = vst [vmem:[#allocation2 + $0x74] sm:$0x1] %v980
      %v982 = vld [vmem:[#allocation2 + $0x80] sm:$0x1]
      %v983 = vsel %vm951, 0, %v982
      %984 = vst [vmem:[#allocation2 + $0x80] sm:$0x1] %v983
      %v985 = vld [vmem:[#allocation2 + $0x8c] sm:$0x1]
      %v986 = vsel %vm951, 0, %v985
      %987 = vst [vmem:[#allocation2 + $0x8c] sm:$0x1] %v986
      %v988 = vld [vmem:[#allocation2 + $0x98] sm:$0x1]
      %v989 = vsel %vm951, 0, %v988
      %990 = vst [vmem:[#allocation2 + $0x98] sm:$0x1] %v989
      %v991 = vld [vmem:[#allocation2 + $0xa4] sm:$0x1]
      %v992 = vsel %vm951, 0, %v991
      %993 = vst [vmem:[#allocation2 + $0xa4] sm:$0x1] %v992
      %v994 = vld [vmem:[#allocation2 + $0xb0] sm:$0x1]
      %v995 = vsel %vm951, 0, %v994
      %996 = vst [vmem:[#allocation2 + $0xb0] sm:$0x1] %v995
      %v997 = vld [vmem:[#allocation2 + $0xbc] sm:$0x1]
      %v998 = vsel %vm951, 0, %v997
      %999 = vst [vmem:[#allocation2 + $0xbc] sm:$0x1] %v998
      %v1000 = vld [vmem:[#allocation2 + $0xc8] sm:$0x1]
      %v1001 = vsel %vm951, 0, %v1000
      %1002 = vst [vmem:[#allocation2 + $0xc8] sm:$0x1] %v1001
      %v1003 = vld [vmem:[#allocation2 + $0xd4] sm:$0x1]
      %v1004 = vsel %vm951, 0, %v1003
      %1005 = vst [vmem:[#allocation2 + $0xd4] sm:$0x1] %v1004
      %v1006 = vld [vmem:[#allocation2] sm:$0xf]
      %v1007 = vld [vmem:[#allocation2 + $0x4] sm:$0xf]
      %v1008 = vld [vmem:[#allocation2 + $0x8] sm:$0x1]
      %v1009 = vld [vmem:[#allocation2 + $0xc] sm:$0xf]
      %v1010 = vld [vmem:[#allocation2 + $0x10] sm:$0xf]
      %v1011 = vld [vmem:[#allocation2 + $0x14] sm:$0x1]
      %v1012 = vld [vmem:[#allocation2 + $0x18] sm:$0xf]
      %v1013 = vld [vmem:[#allocation2 + $0x1c] sm:$0xf]
      %v1014 = vld [vmem:[#allocation2 + $0x20] sm:$0x1]
      %v1015 = vld [vmem:[#allocation2 + $0x24] sm:$0xf]
      %v1016 = vld [vmem:[#allocation2 + $0x28] sm:$0xf]
      %v1017 = vld [vmem:[#allocation2 + $0x2c] sm:$0x1]
      %v1018 = vld [vmem:[#allocation2 + $0x30] sm:$0xf]
      %v1019 = vld [vmem:[#allocation2 + $0x34] sm:$0xf]
      %v1020 = vld [vmem:[#allocation2 + $0x38] sm:$0x1]
      %v1021 = vld [vmem:[#allocation2 + $0x3c] sm:$0xf]
      %v1022 = vld [vmem:[#allocation2 + $0x40] sm:$0xf]
      %v1023 = vld [vmem:[#allocation2 + $0x44] sm:$0x1]
      %v1024 = vld [vmem:[#allocation2 + $0x48] sm:$0xf]
      %v1025 = vld [vmem:[#allocation2 + $0x4c] sm:$0xf]
      %v1026 = vld [vmem:[#allocation2 + $0x50] sm:$0x1]
      %v1027 = vld [vmem:[#allocation2 + $0x54] sm:$0xf]
      %v1028 = vld [vmem:[#allocation2 + $0x58] sm:$0xf]
      %v1029 = vld [vmem:[#allocation2 + $0x5c] sm:$0x1]
      %v1030 = vld [vmem:[#allocation2 + $0x60] sm:$0xf]
      %v1031 = vld [vmem:[#allocation2 + $0x64] sm:$0xf]
      %v1032 = vld [vmem:[#allocation2 + $0x68] sm:$0x1]
      %v1033 = vld [vmem:[#allocation2 + $0x6c] sm:$0xf]
      %v1034 = vld [vmem:[#allocation2 + $0x70] sm:$0xf]
      %v1035 = vld [vmem:[#allocation2 + $0x74] sm:$0x1]
      %v1036 = vld [vmem:[#allocation2 + $0x78] sm:$0xf]
      %v1037 = vld [vmem:[#allocation2 + $0x7c] sm:$0xf]
      %v1038 = vld [vmem:[#allocation2 + $0x80] sm:$0x1]
      %v1039 = vld [vmem:[#allocation2 + $0x84] sm:$0xf]
      %v1040 = vld [vmem:[#allocation2 + $0x88] sm:$0xf]
      %v1041 = vld [vmem:[#allocation2 + $0x8c] sm:$0x1]
      %v1042 = vld [vmem:[#allocation2 + $0x90] sm:$0xf]
      %v1043 = vld [vmem:[#allocation2 + $0x94] sm:$0xf]
      %v1044 = vld [vmem:[#allocation2 + $0x98] sm:$0x1]
      %v1045 = vld [vmem:[#allocation2 + $0x9c] sm:$0xf]
      %v1046 = vld [vmem:[#allocation2 + $0xa0] sm:$0xf]
      %v1047 = vld [vmem:[#allocation2 + $0xa4] sm:$0x1]
      %v1048 = vld [vmem:[#allocation2 + $0xa8] sm:$0xf]
      %v1049 = vld [vmem:[#allocation2 + $0xac] sm:$0xf]
      %v1050 = vld [vmem:[#allocation2 + $0xb0] sm:$0x1]
      %v1051 = vld [vmem:[#allocation2 + $0xb4] sm:$0xf]
      %v1052 = vld [vmem:[#allocation2 + $0xb8] sm:$0xf]
      %v1053 = vld [vmem:[#allocation2 + $0xbc] sm:$0x1]
      %vm1054 = vsmask.f32 3328
      %vm1055 = vsmask.f32 7440
      %vm1056 = vmor %vm1054, %vm1055
      %v1058 = vshrl.u32 %v1006, 16
      %v1060 = vrot.slane %v1058, 4
      %v1061 = vshll.u32 %v1006, 16
      %v1063 = vrot.slane %v1061, 5
      %v1064 = vor.u32 %v1060, %v1063
      %v1065 = vrot.slane %v1064, 4
      %v1067 = vshll.u32 %v1007, 16
      %v1069 = vrot.slane %v1067, 5
      %v1070 = vsel %vm1056, %v1065, %v1069
      %v1071 = vshrl.u32 %v1007, 16
      %v1073 = vrot.slane %v1071, 4
      %v1074 = vor.u32 %v1073, %v1069
      %v1075 = vrot.slane %v1074, 4
      %v1077 = vshll.u32 %v1008, 16
      %v1079 = vrot.slane %v1077, 5
      %v1080 = vsel %vm1056, %v1075, %v1079
      %v1082 = vshrl.u32 %v1009, 16
      %v1084 = vrot.slane %v1082, 4
      %v1085 = vshll.u32 %v1009, 16
      %v1087 = vrot.slane %v1085, 5
      %v1088 = vor.u32 %v1084, %v1087
      %v1089 = vrot.slane %v1088, 4
      %v1091 = vshll.u32 %v1010, 16
      %v1093 = vrot.slane %v1091, 5
      %v1094 = vsel %vm1056, %v1089, %v1093
      %v1095 = vshrl.u32 %v1010, 16
      %v1097 = vrot.slane %v1095, 4
      %v1098 = vor.u32 %v1097, %v1093
      %v1099 = vrot.slane %v1098, 4
      %v1101 = vshll.u32 %v1011, 16
      %v1103 = vrot.slane %v1101, 5
      %v1104 = vsel %vm1056, %v1099, %v1103
      %v1106 = vshrl.u32 %v1012, 16
      %v1108 = vrot.slane %v1106, 4
      %v1109 = vshll.u32 %v1012, 16
      %v1111 = vrot.slane %v1109, 5
      %v1112 = vor.u32 %v1108, %v1111
      %v1113 = vrot.slane %v1112, 4
      %v1115 = vshll.u32 %v1013, 16
      %v1117 = vrot.slane %v1115, 5
      %v1118 = vsel %vm1056, %v1113, %v1117
      %v1119 = vshrl.u32 %v1013, 16
      %v1121 = vrot.slane %v1119, 4
      %v1122 = vor.u32 %v1121, %v1117
      %v1123 = vrot.slane %v1122, 4
      %v1125 = vshll.u32 %v1014, 16
      %v1127 = vrot.slane %v1125, 5
      %v1128 = vsel %vm1056, %v1123, %v1127
      %v1130 = vshrl.u32 %v1015, 16
      %v1132 = vrot.slane %v1130, 4
      %v1133 = vshll.u32 %v1015, 16
      %v1135 = vrot.slane %v1133, 5
      %v1136 = vor.u32 %v1132, %v1135
      %v1137 = vrot.slane %v1136, 4
      %v1139 = vshll.u32 %v1016, 16
      %v1141 = vrot.slane %v1139, 5
      %v1142 = vsel %vm1056, %v1137, %v1141
      %v1143 = vshrl.u32 %v1016, 16
      %v1145 = vrot.slane %v1143, 4
      %v1146 = vor.u32 %v1145, %v1141
      %v1147 = vrot.slane %v1146, 4
      %v1149 = vshll.u32 %v1017, 16
      %v1151 = vrot.slane %v1149, 5
      %v1152 = vsel %vm1056, %v1147, %v1151
      %v1154 = vshrl.u32 %v1018, 16
      %v1156 = vrot.slane %v1154, 4
      %v1157 = vshll.u32 %v1018, 16
      %v1159 = vrot.slane %v1157, 5
      %v1160 = vor.u32 %v1156, %v1159
      %v1161 = vrot.slane %v1160, 4
      %v1163 = vshll.u32 %v1019, 16
      %v1165 = vrot.slane %v1163, 5
      %v1166 = vsel %vm1056, %v1161, %v1165
      %v1167 = vshrl.u32 %v1019, 16
      %v1169 = vrot.slane %v1167, 4
      %v1170 = vor.u32 %v1169, %v1165
      %v1171 = vrot.slane %v1170, 4
      %v1173 = vshll.u32 %v1020, 16
      %v1175 = vrot.slane %v1173, 5
      %v1176 = vsel %vm1056, %v1171, %v1175
      %v1178 = vshrl.u32 %v1021, 16
      %v1180 = vrot.slane %v1178, 4
      %v1181 = vshll.u32 %v1021, 16
      %v1183 = vrot.slane %v1181, 5
      %v1184 = vor.u32 %v1180, %v1183
      %v1185 = vrot.slane %v1184, 4
      %v1187 = vshll.u32 %v1022, 16
      %v1189 = vrot.slane %v1187, 5
      %v1190 = vsel %vm1056, %v1185, %v1189
      %v1191 = vshrl.u32 %v1022, 16
      %v1193 = vrot.slane %v1191, 4
      %v1194 = vor.u32 %v1193, %v1189
      %v1195 = vrot.slane %v1194, 4
      %v1197 = vshll.u32 %v1023, 16
      %v1199 = vrot.slane %v1197, 5
      %v1200 = vsel %vm1056, %v1195, %v1199
      %v1202 = vshrl.u32 %v1024, 16
      %v1204 = vrot.slane %v1202, 4
      %v1205 = vshll.u32 %v1024, 16
      %v1207 = vrot.slane %v1205, 5
      %v1208 = vor.u32 %v1204, %v1207
      %v1209 = vrot.slane %v1208, 4
      %v1211 = vshll.u32 %v1025, 16
      %v1213 = vrot.slane %v1211, 5
      %v1214 = vsel %vm1056, %v1209, %v1213
      %v1215 = vshrl.u32 %v1025, 16
      %v1217 = vrot.slane %v1215, 4
      %v1218 = vor.u32 %v1217, %v1213
      %v1219 = vrot.slane %v1218, 4
      %v1221 = vshll.u32 %v1026, 16
      %v1223 = vrot.slane %v1221, 5
      %v1224 = vsel %vm1056, %v1219, %v1223
      %v1226 = vshrl.u32 %v1027, 16
      %v1228 = vrot.slane %v1226, 4
      %v1229 = vshll.u32 %v1027, 16
      %v1231 = vrot.slane %v1229, 5
      %v1232 = vor.u32 %v1228, %v1231
      %v1233 = vrot.slane %v1232, 4
      %v1235 = vshll.u32 %v1028, 16
      %v1237 = vrot.slane %v1235, 5
      %v1238 = vsel %vm1056, %v1233, %v1237
      %v1239 = vshrl.u32 %v1028, 16
      %v1241 = vrot.slane %v1239, 4
      %v1242 = vor.u32 %v1241, %v1237
      %v1243 = vrot.slane %v1242, 4
      %v1245 = vshll.u32 %v1029, 16
      %v1247 = vrot.slane %v1245, 5
      %v1248 = vsel %vm1056, %v1243, %v1247
      %v1250 = vshrl.u32 %v1030, 16
      %v1252 = vrot.slane %v1250, 4
      %v1253 = vshll.u32 %v1030, 16
      %v1255 = vrot.slane %v1253, 5
      %v1256 = vor.u32 %v1252, %v1255
      %v1257 = vrot.slane %v1256, 4
      %v1259 = vshll.u32 %v1031, 16
      %v1261 = vrot.slane %v1259, 5
      %v1262 = vsel %vm1056, %v1257, %v1261
      %v1263 = vshrl.u32 %v1031, 16
      %v1265 = vrot.slane %v1263, 4
      %v1266 = vor.u32 %v1265, %v1261
      %v1267 = vrot.slane %v1266, 4
      %v1269 = vshll.u32 %v1032, 16
      %v1271 = vrot.slane %v1269, 5
      %v1272 = vsel %vm1056, %v1267, %v1271
      %v1274 = vshrl.u32 %v1033, 16
      %v1276 = vrot.slane %v1274, 4
      %v1277 = vshll.u32 %v1033, 16
      %v1279 = vrot.slane %v1277, 5
      %v1280 = vor.u32 %v1276, %v1279
      %v1281 = vrot.slane %v1280, 4
      %v1283 = vshll.u32 %v1034, 16
      %v1285 = vrot.slane %v1283, 5
      %v1286 = vsel %vm1056, %v1281, %v1285
      %v1287 = vshrl.u32 %v1034, 16
      %v1289 = vrot.slane %v1287, 4
      %v1290 = vor.u32 %v1289, %v1285
      %v1291 = vrot.slane %v1290, 4
      %v1293 = vshll.u32 %v1035, 16
      %v1295 = vrot.slane %v1293, 5
      %v1296 = vsel %vm1056, %v1291, %v1295
      %v1298 = vshrl.u32 %v1036, 16
      %v1300 = vrot.slane %v1298, 4
      %v1301 = vshll.u32 %v1036, 16
      %v1303 = vrot.slane %v1301, 5
      %v1304 = vor.u32 %v1300, %v1303
      %v1305 = vrot.slane %v1304, 4
      %v1307 = vshll.u32 %v1037, 16
      %v1309 = vrot.slane %v1307, 5
      %v1310 = vsel %vm1056, %v1305, %v1309
      %v1311 = vshrl.u32 %v1037, 16
      %v1313 = vrot.slane %v1311, 4
      %v1314 = vor.u32 %v1313, %v1309
      %v1315 = vrot.slane %v1314, 4
      %v1317 = vshll.u32 %v1038, 16
      %v1319 = vrot.slane %v1317, 5
      %v1320 = vsel %vm1056, %v1315, %v1319
      %v1322 = vshrl.u32 %v1039, 16
      %v1324 = vrot.slane %v1322, 4
      %v1325 = vshll.u32 %v1039, 16
      %v1327 = vrot.slane %v1325, 5
      %v1328 = vor.u32 %v1324, %v1327
      %v1329 = vrot.slane %v1328, 4
      %v1331 = vshll.u32 %v1040, 16
      %v1333 = vrot.slane %v1331, 5
      %v1334 = vsel %vm1056, %v1329, %v1333
      %v1335 = vshrl.u32 %v1040, 16
      %v1337 = vrot.slane %v1335, 4
      %v1338 = vor.u32 %v1337, %v1333
      %v1339 = vrot.slane %v1338, 4
      %v1341 = vshll.u32 %v1041, 16
      %v1343 = vrot.slane %v1341, 5
      %v1344 = vsel %vm1056, %v1339, %v1343
      %v1346 = vshrl.u32 %v1042, 16
      %v1348 = vrot.slane %v1346, 4
      %v1349 = vshll.u32 %v1042, 16
      %v1351 = vrot.slane %v1349, 5
      %v1352 = vor.u32 %v1348, %v1351
      %v1353 = vrot.slane %v1352, 4
      %v1355 = vshll.u32 %v1043, 16
      %v1357 = vrot.slane %v1355, 5
      %v1358 = vsel %vm1056, %v1353, %v1357
      %v1359 = vshrl.u32 %v1043, 16
      %v1361 = vrot.slane %v1359, 4
      %v1362 = vor.u32 %v1361, %v1357
      %v1363 = vrot.slane %v1362, 4
      %v1365 = vshll.u32 %v1044, 16
      %v1367 = vrot.slane %v1365, 5
      %v1368 = vsel %vm1056, %v1363, %v1367
      %v1370 = vshrl.u32 %v1045, 16
      %v1372 = vrot.slane %v1370, 4
      %v1373 = vshll.u32 %v1045, 16
      %v1375 = vrot.slane %v1373, 5
      %v1376 = vor.u32 %v1372, %v1375
      %v1377 = vrot.slane %v1376, 4
      %v1379 = vshll.u32 %v1046, 16
      %v1381 = vrot.slane %v1379, 5
      %v1382 = vsel %vm1056, %v1377, %v1381
      %v1383 = vshrl.u32 %v1046, 16
      %v1385 = vrot.slane %v1383, 4
      %v1386 = vor.u32 %v1385, %v1381
      %v1387 = vrot.slane %v1386, 4
      %v1389 = vshll.u32 %v1047, 16
      %v1391 = vrot.slane %v1389, 5
      %v1392 = vsel %vm1056, %v1387, %v1391
      %v1394 = vshrl.u32 %v1048, 16
      %v1396 = vrot.slane %v1394, 4
      %v1397 = vshll.u32 %v1048, 16
      %v1399 = vrot.slane %v1397, 5
      %v1400 = vor.u32 %v1396, %v1399
      %v1401 = vrot.slane %v1400, 4
      %v1403 = vshll.u32 %v1049, 16
      %v1405 = vrot.slane %v1403, 5
      %v1406 = vsel %vm1056, %v1401, %v1405
      %v1407 = vshrl.u32 %v1049, 16
      %v1409 = vrot.slane %v1407, 4
      %v1410 = vor.u32 %v1409, %v1405
      %v1411 = vrot.slane %v1410, 4
      %v1413 = vshll.u32 %v1050, 16
      %v1415 = vrot.slane %v1413, 5
      %v1416 = vsel %vm1056, %v1411, %v1415
      %v1418 = vshrl.u32 %v1051, 16
      %v1420 = vrot.slane %v1418, 4
      %v1421 = vshll.u32 %v1051, 16
      %v1423 = vrot.slane %v1421, 5
      %v1424 = vor.u32 %v1420, %v1423
      %v1425 = vrot.slane %v1424, 4
      %v1427 = vshll.u32 %v1052, 16
      %v1429 = vrot.slane %v1427, 5
      %v1430 = vsel %vm1056, %v1425, %v1429
      %v1431 = vshrl.u32 %v1052, 16
      %v1433 = vrot.slane %v1431, 4
      %v1434 = vor.u32 %v1433, %v1429
      %v1435 = vrot.slane %v1434, 4
      %v1437 = vshll.u32 %v1053, 16
      %v1439 = vrot.slane %v1437, 5
      %v1440 = vsel %vm1056, %v1435, %v1439
      %vm1489 = vcmask 1042432
      %vm1490 = vcmask 1046532
      %vm1491 = vmor %vm1489, %vm1490
      %v1492 = vrot.slane %v1006, 5
      %v1493 = vrot.slane %v1492, 4
      %v1494 = vrot.slane %v1007, 5
      %v1495 = vsel %vm1491, %v1493, %v1494
      %v1496 = vrot.slane %v1494, 4
      %v1497 = vrot.slane %v1008, 5
      %v1498 = vsel %vm1491, %v1496, %v1497
      %v1499 = vrot.slane %v1009, 5
      %v1500 = vrot.slane %v1499, 4
      %v1501 = vrot.slane %v1010, 5
      %v1502 = vsel %vm1491, %v1500, %v1501
      %v1503 = vrot.slane %v1501, 4
      %v1504 = vrot.slane %v1011, 5
      %v1505 = vsel %vm1491, %v1503, %v1504
      %v1506 = vrot.slane %v1012, 5
      %v1507 = vrot.slane %v1506, 4
      %v1508 = vrot.slane %v1013, 5
      %v1509 = vsel %vm1491, %v1507, %v1508
      %v1510 = vrot.slane %v1508, 4
      %v1511 = vrot.slane %v1014, 5
      %v1512 = vsel %vm1491, %v1510, %v1511
      %v1513 = vrot.slane %v1015, 5
      %v1514 = vrot.slane %v1513, 4
      %v1515 = vrot.slane %v1016, 5
      %v1516 = vsel %vm1491, %v1514, %v1515
      %v1517 = vrot.slane %v1515, 4
      %v1518 = vrot.slane %v1017, 5
      %v1519 = vsel %vm1491, %v1517, %v1518
      %v1520 = vrot.slane %v1018, 5
      %v1521 = vrot.slane %v1520, 4
      %v1522 = vrot.slane %v1019, 5
      %v1523 = vsel %vm1491, %v1521, %v1522
      %v1524 = vrot.slane %v1522, 4
      %v1525 = vrot.slane %v1020, 5
      %v1526 = vsel %vm1491, %v1524, %v1525
      %v1527 = vrot.slane %v1021, 5
      %v1528 = vrot.slane %v1527, 4
      %v1529 = vrot.slane %v1022, 5
      %v1530 = vsel %vm1491, %v1528, %v1529
      %v1531 = vrot.slane %v1529, 4
      %v1532 = vrot.slane %v1023, 5
      %v1533 = vsel %vm1491, %v1531, %v1532
      %v1534 = vrot.slane %v1024, 5
      %v1535 = vrot.slane %v1534, 4
      %v1536 = vrot.slane %v1025, 5
      %v1537 = vsel %vm1491, %v1535, %v1536
      %v1538 = vrot.slane %v1536, 4
      %v1539 = vrot.slane %v1026, 5
      %v1540 = vsel %vm1491, %v1538, %v1539
      %v1541 = vrot.slane %v1027, 5
      %v1542 = vrot.slane %v1541, 4
      %v1543 = vrot.slane %v1028, 5
      %v1544 = vsel %vm1491, %v1542, %v1543
      %v1545 = vrot.slane %v1543, 4
      %v1546 = vrot.slane %v1029, 5
      %v1547 = vsel %vm1491, %v1545, %v1546
      %v1548 = vrot.slane %v1030, 5
      %v1549 = vrot.slane %v1548, 4
      %v1550 = vrot.slane %v1031, 5
      %v1551 = vsel %vm1491, %v1549, %v1550
      %v1552 = vrot.slane %v1550, 4
      %v1553 = vrot.slane %v1032, 5
      %v1554 = vsel %vm1491, %v1552, %v1553
      %v1555 = vrot.slane %v1033, 5
      %v1556 = vrot.slane %v1555, 4
      %v1557 = vrot.slane %v1034, 5
      %v1558 = vsel %vm1491, %v1556, %v1557
      %v1559 = vrot.slane %v1557, 4
      %v1560 = vrot.slane %v1035, 5
      %v1561 = vsel %vm1491, %v1559, %v1560
      %v1562 = vrot.slane %v1036, 5
      %v1563 = vrot.slane %v1562, 4
      %v1564 = vrot.slane %v1037, 5
      %v1565 = vsel %vm1491, %v1563, %v1564
      %v1566 = vrot.slane %v1564, 4
      %v1567 = vrot.slane %v1038, 5
      %v1568 = vsel %vm1491, %v1566, %v1567
      %v1569 = vrot.slane %v1039, 5
      %v1570 = vrot.slane %v1569, 4
      %v1571 = vrot.slane %v1040, 5
      %v1572 = vsel %vm1491, %v1570, %v1571
      %v1573 = vrot.slane %v1571, 4
      %v1574 = vrot.slane %v1041, 5
      %v1575 = vsel %vm1491, %v1573, %v1574
      %v1576 = vrot.slane %v1042, 5
      %v1577 = vrot.slane %v1576, 4
      %v1578 = vrot.slane %v1043, 5
      %v1579 = vsel %vm1491, %v1577, %v1578
      %v1580 = vrot.slane %v1578, 4
      %v1581 = vrot.slane %v1044, 5
      %v1582 = vsel %vm1491, %v1580, %v1581
      %v1583 = vrot.slane %v1045, 5
      %v1584 = vrot.slane %v1583, 4
      %v1585 = vrot.slane %v1046, 5
      %v1586 = vsel %vm1491, %v1584, %v1585
      %v1587 = vrot.slane %v1585, 4
      %v1588 = vrot.slane %v1047, 5
      %v1589 = vsel %vm1491, %v1587, %v1588
      %v1590 = vrot.slane %v1048, 5
      %v1591 = vrot.slane %v1590, 4
      %v1592 = vrot.slane %v1049, 5
      %v1593 = vsel %vm1491, %v1591, %v1592
      %v1594 = vrot.slane %v1592, 4
      %v1595 = vrot.slane %v1050, 5
      %v1596 = vsel %vm1491, %v1594, %v1595
      %v1597 = vrot.slane %v1051, 5
      %v1598 = vrot.slane %v1597, 4
      %v1599 = vrot.slane %v1052, 5
      %v1600 = vsel %vm1491, %v1598, %v1599
      %v1601 = vrot.slane %v1599, 4
      %v1602 = vrot.slane %v1053, 5
      %v1603 = vsel %vm1491, %v1601, %v1602
      %v1604 = vunpack.c.l.b16 %v1006
      %v1605 = vunpack.c.l.b16 %v1007
      %v1606 = vunpack.c.l.b16 %v1009
      %v1607 = vunpack.c.l.b16 %v1010
      %v1608 = vunpack.c.l.b16 %v1012
      %v1609 = vunpack.c.l.b16 %v1013
      %v1610 = vunpack.c.l.b16 %v1015
      %v1611 = vunpack.c.l.b16 %v1016
      %v1612 = vunpack.c.l.b16 %v1018
      %v1613 = vunpack.c.l.b16 %v1019
      %v1614 = vunpack.c.l.b16 %v1021
      %v1615 = vunpack.c.l.b16 %v1022
      %v1616 = vunpack.c.l.b16 %v1024
      %v1617 = vunpack.c.l.b16 %v1025
      %v1618 = vunpack.c.l.b16 %v1027
      %v1619 = vunpack.c.l.b16 %v1028
      %v1620 = vunpack.c.l.b16 %v1030
      %v1621 = vunpack.c.l.b16 %v1031
      %v1622 = vunpack.c.l.b16 %v1033
      %v1623 = vunpack.c.l.b16 %v1034
      %v1624 = vunpack.c.l.b16 %v1036
      %v1625 = vunpack.c.l.b16 %v1037
      %v1626 = vunpack.c.l.b16 %v1039
      %v1627 = vunpack.c.l.b16 %v1040
      %v1628 = vunpack.c.l.b16 %v1042
      %v1629 = vunpack.c.l.b16 %v1043
      %v1630 = vunpack.c.l.b16 %v1045
      %v1631 = vunpack.c.l.b16 %v1046
      %v1632 = vunpack.c.l.b16 %v1048
      %v1633 = vunpack.c.l.b16 %v1049
      %v1634 = vunpack.c.l.b16 %v1051
      %v1635 = vunpack.c.l.b16 %v1052
      %v1636 = vpack.c.b16 %v1605, %v1604
      %v1637 = vpack.c.b16 %v1607, %v1606
      %v1638 = vpack.c.b16 %v1609, %v1608
      %v1639 = vpack.c.b16 %v1611, %v1610
      %v1640 = vpack.c.b16 %v1613, %v1612
      %v1641 = vpack.c.b16 %v1615, %v1614
      %v1642 = vpack.c.b16 %v1617, %v1616
      %v1643 = vpack.c.b16 %v1619, %v1618
      %v1644 = vpack.c.b16 %v1621, %v1620
      %v1645 = vpack.c.b16 %v1623, %v1622
      %v1646 = vpack.c.b16 %v1625, %v1624
      %v1647 = vpack.c.b16 %v1627, %v1626
      %v1648 = vpack.c.b16 %v1629, %v1628
      %v1649 = vpack.c.b16 %v1631, %v1630
      %v1650 = vpack.c.b16 %v1633, %v1632
      %v1651 = vpack.c.b16 %v1635, %v1634
      %v1668 = vunpack.c.l.b16 %v1070
      %v1669 = vunpack.c.l.b16 %v1080
      %v1670 = vunpack.c.l.b16 %v1094
      %v1671 = vunpack.c.l.b16 %v1104
      %v1672 = vunpack.c.l.b16 %v1118
      %v1673 = vunpack.c.l.b16 %v1128
      %v1674 = vunpack.c.l.b16 %v1142
      %v1675 = vunpack.c.l.b16 %v1152
      %v1676 = vunpack.c.l.b16 %v1166
      %v1677 = vunpack.c.l.b16 %v1176
      %v1678 = vunpack.c.l.b16 %v1190
      %v1679 = vunpack.c.l.b16 %v1200
      %v1680 = vunpack.c.l.b16 %v1214
      %v1681 = vunpack.c.l.b16 %v1224
      %v1682 = vunpack.c.l.b16 %v1238
      %v1683 = vunpack.c.l.b16 %v1248
      %v1684 = vunpack.c.l.b16 %v1262
      %v1685 = vunpack.c.l.b16 %v1272
      %v1686 = vunpack.c.l.b16 %v1286
      %v1687 = vunpack.c.l.b16 %v1296
      %v1688 = vunpack.c.l.b16 %v1310
      %v1689 = vunpack.c.l.b16 %v1320
      %v1690 = vunpack.c.l.b16 %v1334
      %v1691 = vunpack.c.l.b16 %v1344
      %v1692 = vunpack.c.l.b16 %v1358
      %v1693 = vunpack.c.l.b16 %v1368
      %v1694 = vunpack.c.l.b16 %v1382
      %v1695 = vunpack.c.l.b16 %v1392
      %v1696 = vunpack.c.l.b16 %v1406
      %v1697 = vunpack.c.l.b16 %v1416
      %v1698 = vunpack.c.l.b16 %v1430
      %v1699 = vunpack.c.l.b16 %v1440
      %v1700 = vpack.c.b16 %v1669, %v1668
      %v1701 = vpack.c.b16 %v1671, %v1670
      %v1702 = vpack.c.b16 %v1673, %v1672
      %v1703 = vpack.c.b16 %v1675, %v1674
      %v1704 = vpack.c.b16 %v1677, %v1676
      %v1705 = vpack.c.b16 %v1679, %v1678
      %v1706 = vpack.c.b16 %v1681, %v1680
      %v1707 = vpack.c.b16 %v1683, %v1682
      %v1708 = vpack.c.b16 %v1685, %v1684
      %v1709 = vpack.c.b16 %v1687, %v1686
      %v1710 = vpack.c.b16 %v1689, %v1688
      %v1711 = vpack.c.b16 %v1691, %v1690
      %v1712 = vpack.c.b16 %v1693, %v1692
      %v1713 = vpack.c.b16 %v1695, %v1694
      %v1714 = vpack.c.b16 %v1697, %v1696
      %v1715 = vpack.c.b16 %v1699, %v1698
      %v1732 = vunpack.c.l.b16 %v1495
      %v1733 = vunpack.c.l.b16 %v1498
      %v1734 = vunpack.c.l.b16 %v1502
      %v1735 = vunpack.c.l.b16 %v1505
      %v1736 = vunpack.c.l.b16 %v1509
      %v1737 = vunpack.c.l.b16 %v1512
      %v1738 = vunpack.c.l.b16 %v1516
      %v1739 = vunpack.c.l.b16 %v1519
      %v1740 = vunpack.c.l.b16 %v1523
      %v1741 = vunpack.c.l.b16 %v1526
      %v1742 = vunpack.c.l.b16 %v1530
      %v1743 = vunpack.c.l.b16 %v1533
      %v1744 = vunpack.c.l.b16 %v1537
      %v1745 = vunpack.c.l.b16 %v1540
      %v1746 = vunpack.c.l.b16 %v1544
      %v1747 = vunpack.c.l.b16 %v1547
      %v1748 = vunpack.c.l.b16 %v1551
      %v1749 = vunpack.c.l.b16 %v1554
      %v1750 = vunpack.c.l.b16 %v1558
      %v1751 = vunpack.c.l.b16 %v1561
      %v1752 = vunpack.c.l.b16 %v1565
      %v1753 = vunpack.c.l.b16 %v1568
      %v1754 = vunpack.c.l.b16 %v1572
      %v1755 = vunpack.c.l.b16 %v1575
      %v1756 = vunpack.c.l.b16 %v1579
      %v1757 = vunpack.c.l.b16 %v1582
      %v1758 = vunpack.c.l.b16 %v1586
      %v1759 = vunpack.c.l.b16 %v1589
      %v1760 = vunpack.c.l.b16 %v1593
      %v1761 = vunpack.c.l.b16 %v1596
      %v1762 = vunpack.c.l.b16 %v1600
      %v1763 = vunpack.c.l.b16 %v1603
      %v1764 = vpack.c.b16 %v1733, %v1732
      %v1765 = vpack.c.b16 %v1735, %v1734
      %v1766 = vpack.c.b16 %v1737, %v1736
      %v1767 = vpack.c.b16 %v1739, %v1738
      %v1768 = vpack.c.b16 %v1741, %v1740
      %v1769 = vpack.c.b16 %v1743, %v1742
      %v1770 = vpack.c.b16 %v1745, %v1744
      %v1771 = vpack.c.b16 %v1747, %v1746
      %v1772 = vpack.c.b16 %v1749, %v1748
      %v1773 = vpack.c.b16 %v1751, %v1750
      %v1774 = vpack.c.b16 %v1753, %v1752
      %v1775 = vpack.c.b16 %v1755, %v1754
      %v1776 = vpack.c.b16 %v1757, %v1756
      %v1777 = vpack.c.b16 %v1759, %v1758
      %v1778 = vpack.c.b16 %v1761, %v1760
      %v1779 = vpack.c.b16 %v1763, %v1762
      %v1796 = vld [vmem:[%s5] sm:$0xf]
      %v1797 = vld [vmem:[%s5 + $0x4] sm:$0xf]
      %v1798 = vld [vmem:[%s5 + $0x8] sm:$0xf]
      %v1799 = vld [vmem:[%s5 + $0xc] sm:$0xf]
      %v1800 = vld [vmem:[%s5 + $0x10] sm:$0xf]
      %v1801 = vld [vmem:[%s5 + $0x14] sm:$0xf]
      %v1802 = vld [vmem:[%s5 + $0x18] sm:$0xf]
      %v1803 = vld [vmem:[%s5 + $0x1c] sm:$0xf]
      %v1804 = vld [vmem:[%s5 + $0x20] sm:$0xf]
      %v1805 = vld [vmem:[%s5 + $0x24] sm:$0xf]
      %v1806 = vld [vmem:[%s5 + $0x28] sm:$0xf]
      %v1807 = vld [vmem:[%s5 + $0x2c] sm:$0xf]
      %v1808 = vld [vmem:[%s5 + $0x30] sm:$0xf]
      %v1809 = vld [vmem:[%s5 + $0x34] sm:$0xf]
      %v1810 = vld [vmem:[%s5 + $0x38] sm:$0xf]
      %v1811 = vld [vmem:[%s5 + $0x3c] sm:$0xf]
      %v1812 = vld [vmem:[%s5 + $0x40] sm:$0xf]
      %v1813 = vld [vmem:[%s5 + $0x44] sm:$0xf]
      %v1814 = vld [vmem:[%s5 + $0x48] sm:$0xf]
      %v1815 = vld [vmem:[%s5 + $0x4c] sm:$0xf]
      %v1816 = vld [vmem:[%s5 + $0x50] sm:$0xf]
      %v1817 = vld [vmem:[%s5 + $0x54] sm:$0xf]
      %v1818 = vld [vmem:[%s5 + $0x58] sm:$0xf]
      %v1819 = vld [vmem:[%s5 + $0x5c] sm:$0xf]
      %v1820 = vld [vmem:[%s5 + $0x60] sm:$0xf]
      %v1821 = vld [vmem:[%s5 + $0x64] sm:$0xf]
      %v1822 = vld [vmem:[%s5 + $0x68] sm:$0xf]
      %v1823 = vld [vmem:[%s5 + $0x6c] sm:$0xf]
      %v1824 = vld [vmem:[%s5 + $0x70] sm:$0xf]
      %v1825 = vld [vmem:[%s5 + $0x74] sm:$0xf]
      %v1826 = vld [vmem:[%s5 + $0x78] sm:$0xf]
      %v1827 = vld [vmem:[%s5 + $0x7c] sm:$0xf]
      %v1828 = vld [vmem:[%s5 + $0x80] sm:$0xf]
      %v1829 = vld [vmem:[%s5 + $0x84] sm:$0xf]
      %v1830 = vld [vmem:[%s5 + $0x88] sm:$0xf]
      %v1831 = vld [vmem:[%s5 + $0x8c] sm:$0xf]
      %v1832 = vld [vmem:[%s5 + $0x90] sm:$0xf]
      %v1833 = vld [vmem:[%s5 + $0x94] sm:$0xf]
      %v1834 = vld [vmem:[%s5 + $0x98] sm:$0xf]
      %v1835 = vld [vmem:[%s5 + $0x9c] sm:$0xf]
      %v1836 = vld [vmem:[%s5 + $0xa0] sm:$0xf]
      %v1837 = vld [vmem:[%s5 + $0xa4] sm:$0xf]
      %v1838 = vld [vmem:[%s5 + $0xa8] sm:$0xf]
      %v1839 = vld [vmem:[%s5 + $0xac] sm:$0xf]
      %v1840 = vld [vmem:[%s5 + $0xb0] sm:$0xf]
      %v1841 = vld [vmem:[%s5 + $0xb4] sm:$0xf]
      %v1842 = vld [vmem:[%s5 + $0xb8] sm:$0xf]
      %v1843 = vld [vmem:[%s5 + $0xbc] sm:$0xf]
      %v1844 = vld [vmem:[%s763] sm:$0xf]
      %v1845 = vld [vmem:[%s763 + $0x4] sm:$0xf]
      %v1846 = vld [vmem:[%s763 + $0x8] sm:$0x1]
      %v1847 = vld [vmem:[%s763 + $0xc] sm:$0xf]
      %v1848 = vld [vmem:[%s763 + $0x10] sm:$0xf]
      %v1849 = vld [vmem:[%s763 + $0x14] sm:$0x1]
      %v1850 = vld [vmem:[%s763 + $0x18] sm:$0xf]
      %v1851 = vld [vmem:[%s763 + $0x1c] sm:$0xf]
      %v1852 = vld [vmem:[%s763 + $0x20] sm:$0x1]
      %v1853 = vld [vmem:[%s763 + $0x24] sm:$0xf]
      %v1854 = vld [vmem:[%s763 + $0x28] sm:$0xf]
      %v1855 = vld [vmem:[%s763 + $0x2c] sm:$0x1]
      %v1856 = vld [vmem:[%s763 + $0x30] sm:$0xf]
      %v1857 = vld [vmem:[%s763 + $0x34] sm:$0xf]
      %v1858 = vld [vmem:[%s763 + $0x38] sm:$0x1]
      %v1859 = vld [vmem:[%s763 + $0x3c] sm:$0xf]
      %v1860 = vld [vmem:[%s763 + $0x40] sm:$0xf]
      %v1861 = vld [vmem:[%s763 + $0x44] sm:$0x1]
      %v1862 = vld [vmem:[%s763 + $0x48] sm:$0xf]
      %v1863 = vld [vmem:[%s763 + $0x4c] sm:$0xf]
      %v1864 = vld [vmem:[%s763 + $0x50] sm:$0x1]
      %v1865 = vld [vmem:[%s763 + $0x54] sm:$0xf]
      %v1866 = vld [vmem:[%s763 + $0x58] sm:$0xf]
      %v1867 = vld [vmem:[%s763 + $0x5c] sm:$0x1]
      %v1868 = vld [vmem:[%s763 + $0x60] sm:$0xf]
      %v1869 = vld [vmem:[%s763 + $0x64] sm:$0xf]
      %v1870 = vld [vmem:[%s763 + $0x68] sm:$0x1]
      %v1871 = vld [vmem:[%s763 + $0x6c] sm:$0xf]
      %v1872 = vld [vmem:[%s763 + $0x70] sm:$0xf]
      %v1873 = vld [vmem:[%s763 + $0x74] sm:$0x1]
      %v1874 = vld [vmem:[%s763 + $0x78] sm:$0xf]
      %v1875 = vld [vmem:[%s763 + $0x7c] sm:$0xf]
      %v1876 = vld [vmem:[%s763 + $0x80] sm:$0x1]
      %v1877 = vld [vmem:[%s763 + $0x84] sm:$0xf]
      %v1878 = vld [vmem:[%s763 + $0x88] sm:$0xf]
      %v1879 = vld [vmem:[%s763 + $0x8c] sm:$0x1]
      %v1880 = vld [vmem:[%s763 + $0x90] sm:$0xf]
      %v1881 = vld [vmem:[%s763 + $0x94] sm:$0xf]
      %v1882 = vld [vmem:[%s763 + $0x98] sm:$0x1]
      %v1883 = vld [vmem:[%s763 + $0x9c] sm:$0xf]
      %v1884 = vld [vmem:[%s763 + $0xa0] sm:$0xf]
      %v1885 = vld [vmem:[%s763 + $0xa4] sm:$0x1]
      %v1886 = vld [vmem:[%s763 + $0xa8] sm:$0xf]
      %v1887 = vld [vmem:[%s763 + $0xac] sm:$0xf]
      %v1888 = vld [vmem:[%s763 + $0xb0] sm:$0x1]
      %v1889 = vld [vmem:[%s763 + $0xb4] sm:$0xf]
      %v1890 = vld [vmem:[%s763 + $0xb8] sm:$0xf]
      %v1891 = vld [vmem:[%s763 + $0xbc] sm:$0x1]
      %v1893 = vshrl.u32 %v1844, 16
      %v1895 = vrot.slane %v1893, 4
      %v1896 = vshll.u32 %v1844, 16
      %v1898 = vrot.slane %v1896, 5
      %v1899 = vor.u32 %v1895, %v1898
      %v1900 = vrot.slane %v1899, 4
      %v1902 = vshll.u32 %v1845, 16
      %v1904 = vrot.slane %v1902, 5
      %v1905 = vsel %vm1056, %v1900, %v1904
      %v1906 = vshrl.u32 %v1845, 16
      %v1908 = vrot.slane %v1906, 4
      %v1909 = vor.u32 %v1908, %v1904
      %v1910 = vrot.slane %v1909, 4
      %v1912 = vshll.u32 %v1846, 16
      %v1914 = vrot.slane %v1912, 5
      %v1915 = vsel %vm1056, %v1910, %v1914
      %v1917 = vshrl.u32 %v1847, 16
      %v1919 = vrot.slane %v1917, 4
      %v1920 = vshll.u32 %v1847, 16
      %v1922 = vrot.slane %v1920, 5
      %v1923 = vor.u32 %v1919, %v1922
      %v1924 = vrot.slane %v1923, 4
      %v1926 = vshll.u32 %v1848, 16
      %v1928 = vrot.slane %v1926, 5
      %v1929 = vsel %vm1056, %v1924, %v1928
      %v1930 = vshrl.u32 %v1848, 16
      %v1932 = vrot.slane %v1930, 4
      %v1933 = vor.u32 %v1932, %v1928
      %v1934 = vrot.slane %v1933, 4
      %v1936 = vshll.u32 %v1849, 16
      %v1938 = vrot.slane %v1936, 5
      %v1939 = vsel %vm1056, %v1934, %v1938
      %v1941 = vshrl.u32 %v1850, 16
      %v1943 = vrot.slane %v1941, 4
      %v1944 = vshll.u32 %v1850, 16
      %v1946 = vrot.slane %v1944, 5
      %v1947 = vor.u32 %v1943, %v1946
      %v1948 = vrot.slane %v1947, 4
      %v1950 = vshll.u32 %v1851, 16
      %v1952 = vrot.slane %v1950, 5
      %v1953 = vsel %vm1056, %v1948, %v1952
      %v1954 = vshrl.u32 %v1851, 16
      %v1956 = vrot.slane %v1954, 4
      %v1957 = vor.u32 %v1956, %v1952
      %v1958 = vrot.slane %v1957, 4
      %v1960 = vshll.u32 %v1852, 16
      %v1962 = vrot.slane %v1960, 5
      %v1963 = vsel %vm1056, %v1958, %v1962
      %v1965 = vshrl.u32 %v1853, 16
      %v1967 = vrot.slane %v1965, 4
      %v1968 = vshll.u32 %v1853, 16
      %v1970 = vrot.slane %v1968, 5
      %v1971 = vor.u32 %v1967, %v1970
      %v1972 = vrot.slane %v1971, 4
      %v1974 = vshll.u32 %v1854, 16
      %v1976 = vrot.slane %v1974, 5
      %v1977 = vsel %vm1056, %v1972, %v1976
      %v1978 = vshrl.u32 %v1854, 16
      %v1980 = vrot.slane %v1978, 4
      %v1981 = vor.u32 %v1980, %v1976
      %v1982 = vrot.slane %v1981, 4
      %v1984 = vshll.u32 %v1855, 16
      %v1986 = vrot.slane %v1984, 5
      %v1987 = vsel %vm1056, %v1982, %v1986
      %v1989 = vshrl.u32 %v1856, 16
      %v1991 = vrot.slane %v1989, 4
      %v1992 = vshll.u32 %v1856, 16
      %v1994 = vrot.slane %v1992, 5
      %v1995 = vor.u32 %v1991, %v1994
      %v1996 = vrot.slane %v1995, 4
      %v1998 = vshll.u32 %v1857, 16
      %v2000 = vrot.slane %v1998, 5
      %v2001 = vsel %vm1056, %v1996, %v2000
      %v2002 = vshrl.u32 %v1857, 16
      %v2004 = vrot.slane %v2002, 4
      %v2005 = vor.u32 %v2004, %v2000
      %v2006 = vrot.slane %v2005, 4
      %v2008 = vshll.u32 %v1858, 16
      %v2010 = vrot.slane %v2008, 5
      %v2011 = vsel %vm1056, %v2006, %v2010
      %v2013 = vshrl.u32 %v1859, 16
      %v2015 = vrot.slane %v2013, 4
      %v2016 = vshll.u32 %v1859, 16
      %v2018 = vrot.slane %v2016, 5
      %v2019 = vor.u32 %v2015, %v2018
      %v2020 = vrot.slane %v2019, 4
      %v2022 = vshll.u32 %v1860, 16
      %v2024 = vrot.slane %v2022, 5
      %v2025 = vsel %vm1056, %v2020, %v2024
      %v2026 = vshrl.u32 %v1860, 16
      %v2028 = vrot.slane %v2026, 4
      %v2029 = vor.u32 %v2028, %v2024
      %v2030 = vrot.slane %v2029, 4
      %v2032 = vshll.u32 %v1861, 16
      %v2034 = vrot.slane %v2032, 5
      %v2035 = vsel %vm1056, %v2030, %v2034
      %v2037 = vshrl.u32 %v1862, 16
      %v2039 = vrot.slane %v2037, 4
      %v2040 = vshll.u32 %v1862, 16
      %v2042 = vrot.slane %v2040, 5
      %v2043 = vor.u32 %v2039, %v2042
      %v2044 = vrot.slane %v2043, 4
      %v2046 = vshll.u32 %v1863, 16
      %v2048 = vrot.slane %v2046, 5
      %v2049 = vsel %vm1056, %v2044, %v2048
      %v2050 = vshrl.u32 %v1863, 16
      %v2052 = vrot.slane %v2050, 4
      %v2053 = vor.u32 %v2052, %v2048
      %v2054 = vrot.slane %v2053, 4
      %v2056 = vshll.u32 %v1864, 16
      %v2058 = vrot.slane %v2056, 5
      %v2059 = vsel %vm1056, %v2054, %v2058
      %v2061 = vshrl.u32 %v1865, 16
      %v2063 = vrot.slane %v2061, 4
      %v2064 = vshll.u32 %v1865, 16
      %v2066 = vrot.slane %v2064, 5
      %v2067 = vor.u32 %v2063, %v2066
      %v2068 = vrot.slane %v2067, 4
      %v2070 = vshll.u32 %v1866, 16
      %v2072 = vrot.slane %v2070, 5
      %v2073 = vsel %vm1056, %v2068, %v2072
      %v2074 = vshrl.u32 %v1866, 16
      %v2076 = vrot.slane %v2074, 4
      %v2077 = vor.u32 %v2076, %v2072
      %v2078 = vrot.slane %v2077, 4
      %v2080 = vshll.u32 %v1867, 16
      %v2082 = vrot.slane %v2080, 5
      %v2083 = vsel %vm1056, %v2078, %v2082
      %v2085 = vshrl.u32 %v1868, 16
      %v2087 = vrot.slane %v2085, 4
      %v2088 = vshll.u32 %v1868, 16
      %v2090 = vrot.slane %v2088, 5
      %v2091 = vor.u32 %v2087, %v2090
      %v2092 = vrot.slane %v2091, 4
      %v2094 = vshll.u32 %v1869, 16
      %v2096 = vrot.slane %v2094, 5
      %v2097 = vsel %vm1056, %v2092, %v2096
      %v2098 = vshrl.u32 %v1869, 16
      %v2100 = vrot.slane %v2098, 4
      %v2101 = vor.u32 %v2100, %v2096
      %v2102 = vrot.slane %v2101, 4
      %v2104 = vshll.u32 %v1870, 16
      %v2106 = vrot.slane %v2104, 5
      %v2107 = vsel %vm1056, %v2102, %v2106
      %v2109 = vshrl.u32 %v1871, 16
      %v2111 = vrot.slane %v2109, 4
      %v2112 = vshll.u32 %v1871, 16
      %v2114 = vrot.slane %v2112, 5
      %v2115 = vor.u32 %v2111, %v2114
      %v2116 = vrot.slane %v2115, 4
      %v2118 = vshll.u32 %v1872, 16
      %v2120 = vrot.slane %v2118, 5
      %v2121 = vsel %vm1056, %v2116, %v2120
      %v2122 = vshrl.u32 %v1872, 16
      %v2124 = vrot.slane %v2122, 4
      %v2125 = vor.u32 %v2124, %v2120
      %v2126 = vrot.slane %v2125, 4
      %v2128 = vshll.u32 %v1873, 16
      %v2130 = vrot.slane %v2128, 5
      %v2131 = vsel %vm1056, %v2126, %v2130
      %v2133 = vshrl.u32 %v1874, 16
      %v2135 = vrot.slane %v2133, 4
      %v2136 = vshll.u32 %v1874, 16
      %v2138 = vrot.slane %v2136, 5
      %v2139 = vor.u32 %v2135, %v2138
      %v2140 = vrot.slane %v2139, 4
      %v2142 = vshll.u32 %v1875, 16
      %v2144 = vrot.slane %v2142, 5
      %v2145 = vsel %vm1056, %v2140, %v2144
      %v2146 = vshrl.u32 %v1875, 16
      %v2148 = vrot.slane %v2146, 4
      %v2149 = vor.u32 %v2148, %v2144
      %v2150 = vrot.slane %v2149, 4
      %v2152 = vshll.u32 %v1876, 16
      %v2154 = vrot.slane %v2152, 5
      %v2155 = vsel %vm1056, %v2150, %v2154
      %v2157 = vshrl.u32 %v1877, 16
      %v2159 = vrot.slane %v2157, 4
      %v2160 = vshll.u32 %v1877, 16
      %v2162 = vrot.slane %v2160, 5
      %v2163 = vor.u32 %v2159, %v2162
      %v2164 = vrot.slane %v2163, 4
      %v2166 = vshll.u32 %v1878, 16
      %v2168 = vrot.slane %v2166, 5
      %v2169 = vsel %vm1056, %v2164, %v2168
      %v2170 = vshrl.u32 %v1878, 16
      %v2172 = vrot.slane %v2170, 4
      %v2173 = vor.u32 %v2172, %v2168
      %v2174 = vrot.slane %v2173, 4
      %v2176 = vshll.u32 %v1879, 16
      %v2178 = vrot.slane %v2176, 5
      %v2179 = vsel %vm1056, %v2174, %v2178
      %v2181 = vshrl.u32 %v1880, 16
      %v2183 = vrot.slane %v2181, 4
      %v2184 = vshll.u32 %v1880, 16
      %v2186 = vrot.slane %v2184, 5
      %v2187 = vor.u32 %v2183, %v2186
      %v2188 = vrot.slane %v2187, 4
      %v2190 = vshll.u32 %v1881, 16
      %v2192 = vrot.slane %v2190, 5
      %v2193 = vsel %vm1056, %v2188, %v2192
      %v2194 = vshrl.u32 %v1881, 16
      %v2196 = vrot.slane %v2194, 4
      %v2197 = vor.u32 %v2196, %v2192
      %v2198 = vrot.slane %v2197, 4
      %v2200 = vshll.u32 %v1882, 16
      %v2202 = vrot.slane %v2200, 5
      %v2203 = vsel %vm1056, %v2198, %v2202
      %v2205 = vshrl.u32 %v1883, 16
      %v2207 = vrot.slane %v2205, 4
      %v2208 = vshll.u32 %v1883, 16
      %v2210 = vrot.slane %v2208, 5
      %v2211 = vor.u32 %v2207, %v2210
      %v2212 = vrot.slane %v2211, 4
      %v2214 = vshll.u32 %v1884, 16
      %v2216 = vrot.slane %v2214, 5
      %v2217 = vsel %vm1056, %v2212, %v2216
      %v2218 = vshrl.u32 %v1884, 16
      %v2220 = vrot.slane %v2218, 4
      %v2221 = vor.u32 %v2220, %v2216
      %v2222 = vrot.slane %v2221, 4
      %v2224 = vshll.u32 %v1885, 16
      %v2226 = vrot.slane %v2224, 5
      %v2227 = vsel %vm1056, %v2222, %v2226
      %v2229 = vshrl.u32 %v1886, 16
      %v2231 = vrot.slane %v2229, 4
      %v2232 = vshll.u32 %v1886, 16
      %v2234 = vrot.slane %v2232, 5
      %v2235 = vor.u32 %v2231, %v2234
      %v2236 = vrot.slane %v2235, 4
      %v2238 = vshll.u32 %v1887, 16
      %v2240 = vrot.slane %v2238, 5
      %v2241 = vsel %vm1056, %v2236, %v2240
      %v2242 = vshrl.u32 %v1887, 16
      %v2244 = vrot.slane %v2242, 4
      %v2245 = vor.u32 %v2244, %v2240
      %v2246 = vrot.slane %v2245, 4
      %v2248 = vshll.u32 %v1888, 16
      %v2250 = vrot.slane %v2248, 5
      %v2251 = vsel %vm1056, %v2246, %v2250
      %v2253 = vshrl.u32 %v1889, 16
      %v2255 = vrot.slane %v2253, 4
      %v2256 = vshll.u32 %v1889, 16
      %v2258 = vrot.slane %v2256, 5
      %v2259 = vor.u32 %v2255, %v2258
      %v2260 = vrot.slane %v2259, 4
      %v2262 = vshll.u32 %v1890, 16
      %v2264 = vrot.slane %v2262, 5
      %v2265 = vsel %vm1056, %v2260, %v2264
      %v2266 = vshrl.u32 %v1890, 16
      %v2268 = vrot.slane %v2266, 4
      %v2269 = vor.u32 %v2268, %v2264
      %v2270 = vrot.slane %v2269, 4
      %v2272 = vshll.u32 %v1891, 16
      %v2274 = vrot.slane %v2272, 5
      %v2275 = vsel %vm1056, %v2270, %v2274
      %v2324 = vrot.slane %v1844, 5
      %v2325 = vrot.slane %v2324, 4
      %v2326 = vrot.slane %v1845, 5
      %v2327 = vsel %vm1491, %v2325, %v2326
      %v2328 = vrot.slane %v2326, 4
      %v2329 = vrot.slane %v1846, 5
      %v2330 = vsel %vm1491, %v2328, %v2329
      %v2331 = vrot.slane %v1847, 5
      %v2332 = vrot.slane %v2331, 4
      %v2333 = vrot.slane %v1848, 5
      %v2334 = vsel %vm1491, %v2332, %v2333
      %v2335 = vrot.slane %v2333, 4
      %v2336 = vrot.slane %v1849, 5
      %v2337 = vsel %vm1491, %v2335, %v2336
      %v2338 = vrot.slane %v1850, 5
      %v2339 = vrot.slane %v2338, 4
      %v2340 = vrot.slane %v1851, 5
      %v2341 = vsel %vm1491, %v2339, %v2340
      %v2342 = vrot.slane %v2340, 4
      %v2343 = vrot.slane %v1852, 5
      %v2344 = vsel %vm1491, %v2342, %v2343
      %v2345 = vrot.slane %v1853, 5
      %v2346 = vrot.slane %v2345, 4
      %v2347 = vrot.slane %v1854, 5
      %v2348 = vsel %vm1491, %v2346, %v2347
      %v2349 = vrot.slane %v2347, 4
      %v2350 = vrot.slane %v1855, 5
      %v2351 = vsel %vm1491, %v2349, %v2350
      %v2352 = vrot.slane %v1856, 5
      %v2353 = vrot.slane %v2352, 4
      %v2354 = vrot.slane %v1857, 5
      %v2355 = vsel %vm1491, %v2353, %v2354
      %v2356 = vrot.slane %v2354, 4
      %v2357 = vrot.slane %v1858, 5
      %v2358 = vsel %vm1491, %v2356, %v2357
      %v2359 = vrot.slane %v1859, 5
      %v2360 = vrot.slane %v2359, 4
      %v2361 = vrot.slane %v1860, 5
      %v2362 = vsel %vm1491, %v2360, %v2361
      %v2363 = vrot.slane %v2361, 4
      %v2364 = vrot.slane %v1861, 5
      %v2365 = vsel %vm1491, %v2363, %v2364
      %v2366 = vrot.slane %v1862, 5
      %v2367 = vrot.slane %v2366, 4
      %v2368 = vrot.slane %v1863, 5
      %v2369 = vsel %vm1491, %v2367, %v2368
      %v2370 = vrot.slane %v2368, 4
      %v2371 = vrot.slane %v1864, 5
      %v2372 = vsel %vm1491, %v2370, %v2371
      %v2373 = vrot.slane %v1865, 5
      %v2374 = vrot.slane %v2373, 4
      %v2375 = vrot.slane %v1866, 5
      %v2376 = vsel %vm1491, %v2374, %v2375
      %v2377 = vrot.slane %v2375, 4
      %v2378 = vrot.slane %v1867, 5
      %v2379 = vsel %vm1491, %v2377, %v2378
      %v2380 = vrot.slane %v1868, 5
      %v2381 = vrot.slane %v2380, 4
      %v2382 = vrot.slane %v1869, 5
      %v2383 = vsel %vm1491, %v2381, %v2382
      %v2384 = vrot.slane %v2382, 4
      %v2385 = vrot.slane %v1870, 5
      %v2386 = vsel %vm1491, %v2384, %v2385
      %v2387 = vrot.slane %v1871, 5
      %v2388 = vrot.slane %v2387, 4
      %v2389 = vrot.slane %v1872, 5
      %v2390 = vsel %vm1491, %v2388, %v2389
      %v2391 = vrot.slane %v2389, 4
      %v2392 = vrot.slane %v1873, 5
      %v2393 = vsel %vm1491, %v2391, %v2392
      %v2394 = vrot.slane %v1874, 5
      %v2395 = vrot.slane %v2394, 4
      %v2396 = vrot.slane %v1875, 5
      %v2397 = vsel %vm1491, %v2395, %v2396
      %v2398 = vrot.slane %v2396, 4
      %v2399 = vrot.slane %v1876, 5
      %v2400 = vsel %vm1491, %v2398, %v2399
      %v2401 = vrot.slane %v1877, 5
      %v2402 = vrot.slane %v2401, 4
      %v2403 = vrot.slane %v1878, 5
      %v2404 = vsel %vm1491, %v2402, %v2403
      %v2405 = vrot.slane %v2403, 4
      %v2406 = vrot.slane %v1879, 5
      %v2407 = vsel %vm1491, %v2405, %v2406
      %v2408 = vrot.slane %v1880, 5
      %v2409 = vrot.slane %v2408, 4
      %v2410 = vrot.slane %v1881, 5
      %v2411 = vsel %vm1491, %v2409, %v2410
      %v2412 = vrot.slane %v2410, 4
      %v2413 = vrot.slane %v1882, 5
      %v2414 = vsel %vm1491, %v2412, %v2413
      %v2415 = vrot.slane %v1883, 5
      %v2416 = vrot.slane %v2415, 4
      %v2417 = vrot.slane %v1884, 5
      %v2418 = vsel %vm1491, %v2416, %v2417
      %v2419 = vrot.slane %v2417, 4
      %v2420 = vrot.slane %v1885, 5
      %v2421 = vsel %vm1491, %v2419, %v2420
      %v2422 = vrot.slane %v1886, 5
      %v2423 = vrot.slane %v2422, 4
      %v2424 = vrot.slane %v1887, 5
      %v2425 = vsel %vm1491, %v2423, %v2424
      %v2426 = vrot.slane %v2424, 4
      %v2427 = vrot.slane %v1888, 5
      %v2428 = vsel %vm1491, %v2426, %v2427
      %v2429 = vrot.slane %v1889, 5
      %v2430 = vrot.slane %v2429, 4
      %v2431 = vrot.slane %v1890, 5
      %v2432 = vsel %vm1491, %v2430, %v2431
      %v2433 = vrot.slane %v2431, 4
      %v2434 = vrot.slane %v1891, 5
      %v2435 = vsel %vm1491, %v2433, %v2434
      %v2436 = vunpack.c.l.b16 %v1844
      %v2437 = vunpack.c.l.b16 %v1845
      %v2438 = vunpack.c.l.b16 %v1847
      %v2439 = vunpack.c.l.b16 %v1848
      %v2440 = vunpack.c.l.b16 %v1850
      %v2441 = vunpack.c.l.b16 %v1851
      %v2442 = vunpack.c.l.b16 %v1853
      %v2443 = vunpack.c.l.b16 %v1854
      %v2444 = vunpack.c.l.b16 %v1856
      %v2445 = vunpack.c.l.b16 %v1857
      %v2446 = vunpack.c.l.b16 %v1859
      %v2447 = vunpack.c.l.b16 %v1860
      %v2448 = vunpack.c.l.b16 %v1862
      %v2449 = vunpack.c.l.b16 %v1863
      %v2450 = vunpack.c.l.b16 %v1865
      %v2451 = vunpack.c.l.b16 %v1866
      %v2452 = vunpack.c.l.b16 %v1868
      %v2453 = vunpack.c.l.b16 %v1869
      %v2454 = vunpack.c.l.b16 %v1871
      %v2455 = vunpack.c.l.b16 %v1872
      %v2456 = vunpack.c.l.b16 %v1874
      %v2457 = vunpack.c.l.b16 %v1875
      %v2458 = vunpack.c.l.b16 %v1877
      %v2459 = vunpack.c.l.b16 %v1878
      %v2460 = vunpack.c.l.b16 %v1880
      %v2461 = vunpack.c.l.b16 %v1881
      %v2462 = vunpack.c.l.b16 %v1883
      %v2463 = vunpack.c.l.b16 %v1884
      %v2464 = vunpack.c.l.b16 %v1886
      %v2465 = vunpack.c.l.b16 %v1887
      %v2466 = vunpack.c.l.b16 %v1889
      %v2467 = vunpack.c.l.b16 %v1890
      %v2468 = vpack.c.b16 %v2437, %v2436
      %v2469 = vpack.c.b16 %v2439, %v2438
      %v2470 = vpack.c.b16 %v2441, %v2440
      %v2471 = vpack.c.b16 %v2443, %v2442
      %v2472 = vpack.c.b16 %v2445, %v2444
      %v2473 = vpack.c.b16 %v2447, %v2446
      %v2474 = vpack.c.b16 %v2449, %v2448
      %v2475 = vpack.c.b16 %v2451, %v2450
      %v2476 = vpack.c.b16 %v2453, %v2452
      %v2477 = vpack.c.b16 %v2455, %v2454
      %v2478 = vpack.c.b16 %v2457, %v2456
      %v2479 = vpack.c.b16 %v2459, %v2458
      %v2480 = vpack.c.b16 %v2461, %v2460
      %v2481 = vpack.c.b16 %v2463, %v2462
      %v2482 = vpack.c.b16 %v2465, %v2464
      %v2483 = vpack.c.b16 %v2467, %v2466
      %v2500 = vunpack.c.l.b16 %v1905
      %v2501 = vunpack.c.l.b16 %v1915
      %v2502 = vunpack.c.l.b16 %v1929
      %v2503 = vunpack.c.l.b16 %v1939
      %v2504 = vunpack.c.l.b16 %v1953
      %v2505 = vunpack.c.l.b16 %v1963
      %v2506 = vunpack.c.l.b16 %v1977
      %v2507 = vunpack.c.l.b16 %v1987
      %v2508 = vunpack.c.l.b16 %v2001
      %v2509 = vunpack.c.l.b16 %v2011
      %v2510 = vunpack.c.l.b16 %v2025
      %v2511 = vunpack.c.l.b16 %v2035
      %v2512 = vunpack.c.l.b16 %v2049
      %v2513 = vunpack.c.l.b16 %v2059
      %v2514 = vunpack.c.l.b16 %v2073
      %v2515 = vunpack.c.l.b16 %v2083
      %v2516 = vunpack.c.l.b16 %v2097
      %v2517 = vunpack.c.l.b16 %v2107
      %v2518 = vunpack.c.l.b16 %v2121
      %v2519 = vunpack.c.l.b16 %v2131
      %v2520 = vunpack.c.l.b16 %v2145
      %v2521 = vunpack.c.l.b16 %v2155
      %v2522 = vunpack.c.l.b16 %v2169
      %v2523 = vunpack.c.l.b16 %v2179
      %v2524 = vunpack.c.l.b16 %v2193
      %v2525 = vunpack.c.l.b16 %v2203
      %v2526 = vunpack.c.l.b16 %v2217
      %v2527 = vunpack.c.l.b16 %v2227
      %v2528 = vunpack.c.l.b16 %v2241
      %v2529 = vunpack.c.l.b16 %v2251
      %v2530 = vunpack.c.l.b16 %v2265
      %v2531 = vunpack.c.l.b16 %v2275
      %v2532 = vpack.c.b16 %v2501, %v2500
      %v2533 = vpack.c.b16 %v2503, %v2502
      %v2534 = vpack.c.b16 %v2505, %v2504
      %v2535 = vpack.c.b16 %v2507, %v2506
      %v2536 = vpack.c.b16 %v2509, %v2508
      %v2537 = vpack.c.b16 %v2511, %v2510
      %v2538 = vpack.c.b16 %v2513, %v2512
      %v2539 = vpack.c.b16 %v2515, %v2514
      %v2540 = vpack.c.b16 %v2517, %v2516
      %v2541 = vpack.c.b16 %v2519, %v2518
      %v2542 = vpack.c.b16 %v2521, %v2520
      %v2543 = vpack.c.b16 %v2523, %v2522
      %v2544 = vpack.c.b16 %v2525, %v2524
      %v2545 = vpack.c.b16 %v2527, %v2526
      %v2546 = vpack.c.b16 %v2529, %v2528
      %v2547 = vpack.c.b16 %v2531, %v2530
      %v2564 = vunpack.c.l.b16 %v2327
      %v2565 = vunpack.c.l.b16 %v2330
      %v2566 = vunpack.c.l.b16 %v2334
      %v2567 = vunpack.c.l.b16 %v2337
      %v2568 = vunpack.c.l.b16 %v2341
      %v2569 = vunpack.c.l.b16 %v2344
      %v2570 = vunpack.c.l.b16 %v2348
      %v2571 = vunpack.c.l.b16 %v2351
      %v2572 = vunpack.c.l.b16 %v2355
      %v2573 = vunpack.c.l.b16 %v2358
      %v2574 = vunpack.c.l.b16 %v2362
      %v2575 = vunpack.c.l.b16 %v2365
      %v2576 = vunpack.c.l.b16 %v2369
      %v2577 = vunpack.c.l.b16 %v2372
      %v2578 = vunpack.c.l.b16 %v2376
      %v2579 = vunpack.c.l.b16 %v2379
      %v2580 = vunpack.c.l.b16 %v2383
      %v2581 = vunpack.c.l.b16 %v2386
      %v2582 = vunpack.c.l.b16 %v2390
      %v2583 = vunpack.c.l.b16 %v2393
      %v2584 = vunpack.c.l.b16 %v2397
      %v2585 = vunpack.c.l.b16 %v2400
      %v2586 = vunpack.c.l.b16 %v2404
      %v2587 = vunpack.c.l.b16 %v2407
      %v2588 = vunpack.c.l.b16 %v2411
      %v2589 = vunpack.c.l.b16 %v2414
      %v2590 = vunpack.c.l.b16 %v2418
      %v2591 = vunpack.c.l.b16 %v2421
      %v2592 = vunpack.c.l.b16 %v2425
      %v2593 = vunpack.c.l.b16 %v2428
      %v2594 = vunpack.c.l.b16 %v2432
      %v2595 = vunpack.c.l.b16 %v2435
      %v2596 = vpack.c.b16 %v2565, %v2564
      %v2597 = vpack.c.b16 %v2567, %v2566
      %v2598 = vpack.c.b16 %v2569, %v2568
      %v2599 = vpack.c.b16 %v2571, %v2570
      %v2600 = vpack.c.b16 %v2573, %v2572
      %v2601 = vpack.c.b16 %v2575, %v2574
      %v2602 = vpack.c.b16 %v2577, %v2576
      %v2603 = vpack.c.b16 %v2579, %v2578
      %v2604 = vpack.c.b16 %v2581, %v2580
      %v2605 = vpack.c.b16 %v2583, %v2582
      %v2606 = vpack.c.b16 %v2585, %v2584
      %v2607 = vpack.c.b16 %v2587, %v2586
      %v2608 = vpack.c.b16 %v2589, %v2588
      %v2609 = vpack.c.b16 %v2591, %v2590
      %v2610 = vpack.c.b16 %v2593, %v2592
      %v2611 = vpack.c.b16 %v2595, %v2594
      %v2628 = vld [vmem:[%s5 + $0xc0] sm:$0xf]
      %v2629 = vld [vmem:[%s5 + $0xc4] sm:$0xf]
      %v2630 = vld [vmem:[%s5 + $0xc8] sm:$0xf]
      %v2631 = vld [vmem:[%s5 + $0xcc] sm:$0xf]
      %v2632 = vld [vmem:[%s5 + $0xd0] sm:$0xf]
      %v2633 = vld [vmem:[%s5 + $0xd4] sm:$0xf]
      %v2634 = vld [vmem:[%s5 + $0xd8] sm:$0xf]
      %v2635 = vld [vmem:[%s5 + $0xdc] sm:$0xf]
      %v2636 = vld [vmem:[%s5 + $0xe0] sm:$0xf]
      %v2637 = vld [vmem:[%s5 + $0xe4] sm:$0xf]
      %v2638 = vld [vmem:[%s5 + $0xe8] sm:$0xf]
      %v2639 = vld [vmem:[%s5 + $0xec] sm:$0xf]
      %v2640 = vld [vmem:[%s5 + $0xf0] sm:$0xf]
      %v2641 = vld [vmem:[%s5 + $0xf4] sm:$0xf]
      %v2642 = vld [vmem:[%s5 + $0xf8] sm:$0xf]
      %v2643 = vld [vmem:[%s5 + $0xfc] sm:$0xf]
      %v2644 = vld [vmem:[%s5 + $0x100] sm:$0xf]
      %v2645 = vld [vmem:[%s5 + $0x104] sm:$0xf]
      %v2646 = vld [vmem:[%s5 + $0x108] sm:$0xf]
      %v2647 = vld [vmem:[%s5 + $0x10c] sm:$0xf]
      %v2648 = vld [vmem:[%s5 + $0x110] sm:$0xf]
      %v2649 = vld [vmem:[%s5 + $0x114] sm:$0xf]
      %v2650 = vld [vmem:[%s5 + $0x118] sm:$0xf]
      %v2651 = vld [vmem:[%s5 + $0x11c] sm:$0xf]
      %v2652 = vld [vmem:[%s5 + $0x120] sm:$0xf]
      %v2653 = vld [vmem:[%s5 + $0x124] sm:$0xf]
      %v2654 = vld [vmem:[%s5 + $0x128] sm:$0xf]
      %v2655 = vld [vmem:[%s5 + $0x12c] sm:$0xf]
      %v2656 = vld [vmem:[%s5 + $0x130] sm:$0xf]
      %v2657 = vld [vmem:[%s5 + $0x134] sm:$0xf]
      %v2658 = vld [vmem:[%s5 + $0x138] sm:$0xf]
      %v2659 = vld [vmem:[%s5 + $0x13c] sm:$0xf]
      %v2660 = vld [vmem:[%s5 + $0x140] sm:$0xf]
      %v2661 = vld [vmem:[%s5 + $0x144] sm:$0xf]
      %v2662 = vld [vmem:[%s5 + $0x148] sm:$0xf]
      %v2663 = vld [vmem:[%s5 + $0x14c] sm:$0xf]
      %v2664 = vld [vmem:[%s5 + $0x150] sm:$0xf]
      %v2665 = vld [vmem:[%s5 + $0x154] sm:$0xf]
      %v2666 = vld [vmem:[%s5 + $0x158] sm:$0xf]
      %v2667 = vld [vmem:[%s5 + $0x15c] sm:$0xf]
      %v2668 = vld [vmem:[%s5 + $0x160] sm:$0xf]
      %v2669 = vld [vmem:[%s5 + $0x164] sm:$0xf]
      %v2670 = vld [vmem:[%s5 + $0x168] sm:$0xf]
      %v2671 = vld [vmem:[%s5 + $0x16c] sm:$0xf]
      %v2672 = vld [vmem:[%s5 + $0x170] sm:$0xf]
      %v2673 = vld [vmem:[%s5 + $0x174] sm:$0xf]
      %v2674 = vld [vmem:[%s5 + $0x178] sm:$0xf]
      %v2675 = vld [vmem:[%s5 + $0x17c] sm:$0xf]
      %v2724 = vunpack.c.l.b16 %v2628
      %v2725 = vunpack.c.l.b16 %v2629
      %v2726 = vunpack.c.l.b16 %v2630
      %v2727 = vunpack.c.l.b16 %v2631
      %v2728 = vunpack.c.l.b16 %v2632
      %v2729 = vunpack.c.l.b16 %v2633
      %v2730 = vunpack.c.l.b16 %v2634
      %v2731 = vunpack.c.l.b16 %v2635
      %v2732 = vunpack.c.l.b16 %v2636
      %v2733 = vunpack.c.l.b16 %v2637
      %v2734 = vunpack.c.l.b16 %v2638
      %v2735 = vunpack.c.l.b16 %v2639
      %v2736 = vunpack.c.l.b16 %v2640
      %v2737 = vunpack.c.l.b16 %v2641
      %v2738 = vunpack.c.l.b16 %v2642
      %v2739 = vunpack.c.l.b16 %v2643
      %v2740 = vunpack.c.l.b16 %v2644
      %v2741 = vunpack.c.l.b16 %v2645
      %v2742 = vunpack.c.l.b16 %v2646
      %v2743 = vunpack.c.l.b16 %v2647
      %v2744 = vunpack.c.l.b16 %v2648
      %v2745 = vunpack.c.l.b16 %v2649
      %v2746 = vunpack.c.l.b16 %v2650
      %v2747 = vunpack.c.l.b16 %v2651
      %v2748 = vunpack.c.l.b16 %v2652
      %v2749 = vunpack.c.l.b16 %v2653
      %v2750 = vunpack.c.l.b16 %v2654
      %v2751 = vunpack.c.l.b16 %v2655
      %v2752 = vunpack.c.l.b16 %v2656
      %v2753 = vunpack.c.l.b16 %v2657
      %v2754 = vunpack.c.l.b16 %v2658
      %v2755 = vunpack.c.l.b16 %v2659
      %v2756 = vunpack.c.l.b16 %v2660
      %v2757 = vunpack.c.l.b16 %v2661
      %v2758 = vunpack.c.l.b16 %v2662
      %v2759 = vunpack.c.l.b16 %v2663
      %v2760 = vunpack.c.l.b16 %v2664
      %v2761 = vunpack.c.l.b16 %v2665
      %v2762 = vunpack.c.l.b16 %v2666
      %v2763 = vunpack.c.l.b16 %v2667
      %v2764 = vunpack.c.l.b16 %v2668
      %v2765 = vunpack.c.l.b16 %v2669
      %v2766 = vunpack.c.l.b16 %v2670
      %v2767 = vunpack.c.l.b16 %v2671
      %v2768 = vunpack.c.l.b16 %v2672
      %v2769 = vunpack.c.l.b16 %v2673
      %v2770 = vunpack.c.l.b16 %v2674
      %v2771 = vunpack.c.l.b16 %v2675
      %v2772 = vpack.c.b16 %v2725, %v2724
      %v2773 = vpack.c.b16 %v2727, %v2726
      %v2774 = vpack.c.b16 %v2729, %v2728
      %v2775 = vpack.c.b16 %v2731, %v2730
      %v2776 = vpack.c.b16 %v2733, %v2732
      %v2777 = vpack.c.b16 %v2735, %v2734
      %v2778 = vpack.c.b16 %v2737, %v2736
      %v2779 = vpack.c.b16 %v2739, %v2738
      %v2780 = vpack.c.b16 %v2741, %v2740
      %v2781 = vpack.c.b16 %v2743, %v2742
      %v2782 = vpack.c.b16 %v2745, %v2744
      %v2783 = vpack.c.b16 %v2747, %v2746
      %v2784 = vpack.c.b16 %v2749, %v2748
      %v2785 = vpack.c.b16 %v2751, %v2750
      %v2786 = vpack.c.b16 %v2753, %v2752
      %v2787 = vpack.c.b16 %v2755, %v2754
      %v2788 = vpack.c.b16 %v2757, %v2756
      %v2789 = vpack.c.b16 %v2759, %v2758
      %v2790 = vpack.c.b16 %v2761, %v2760
      %v2791 = vpack.c.b16 %v2763, %v2762
      %v2792 = vpack.c.b16 %v2765, %v2764
      %v2793 = vpack.c.b16 %v2767, %v2766
      %v2794 = vpack.c.b16 %v2769, %v2768
      %v2795 = vpack.c.b16 %v2771, %v2770
      %2820 = vmatpush.bf16.msra.mxu0 %v2779
      %2821 = vmatpush.bf16.msra.mxu0 %v2778
      %2822 = vmatpush.bf16.msra.mxu0 %v2777
      %2823 = vmatpush.bf16.msra.mxu0 %v2776
      %2824 = vmatpush.bf16.msra.mxu0 %v2775
      %2825 = vmatpush.bf16.msra.mxu0 %v2774
      %2826 = vmatpush.bf16.msra.mxu0 %v2773
      %2827 = vmatpush.bf16.msra.mxu0 %v2772
      %2828 = vmatmul.bf16.gmra.mxu0 %v2468
      %v2829 = vpop.f32.mrf.mxu0
      %v2830 = vadd.f32 0.0, %v2829
      %v2831 = vpop.f32.mrf.mxu0
      %v2832 = vadd.f32 0.0, %v2831
      %2833 = vmatmul.bf16.gmra.mxu0 %v2469
      %v2834 = vpop.f32.mrf.mxu0
      %v2835 = vadd.f32 0.0, %v2834
      %v2836 = vpop.f32.mrf.mxu0
      %v2837 = vadd.f32 0.0, %v2836
      %2838 = vmatmul.bf16.gmra.mxu0 %v2470
      %v2839 = vpop.f32.mrf.mxu0
      %v2840 = vadd.f32 0.0, %v2839
      %v2841 = vpop.f32.mrf.mxu0
      %v2842 = vadd.f32 0.0, %v2841
      %2843 = vmatmul.bf16.gmra.mxu0 %v2471
      %v2844 = vpop.f32.mrf.mxu0
      %v2845 = vadd.f32 0.0, %v2844
      %v2846 = vpop.f32.mrf.mxu0
      %v2847 = vadd.f32 0.0, %v2846
      %2848 = vmatmul.bf16.gmra.mxu0 %v2472
      %v2849 = vpop.f32.mrf.mxu0
      %v2850 = vadd.f32 0.0, %v2849
      %v2851 = vpop.f32.mrf.mxu0
      %v2852 = vadd.f32 0.0, %v2851
      %2853 = vmatmul.bf16.gmra.mxu0 %v2473
      %v2854 = vpop.f32.mrf.mxu0
      %v2855 = vadd.f32 0.0, %v2854
      %v2856 = vpop.f32.mrf.mxu0
      %v2857 = vadd.f32 0.0, %v2856
      %2858 = vmatmul.bf16.gmra.mxu0 %v2474
      %v2859 = vpop.f32.mrf.mxu0
      %v2860 = vadd.f32 0.0, %v2859
      %v2861 = vpop.f32.mrf.mxu0
      %v2862 = vadd.f32 0.0, %v2861
      %2863 = vmatmul.bf16.gmra.mxu0 %v2475
      %v2864 = vpop.f32.mrf.mxu0
      %v2865 = vadd.f32 0.0, %v2864
      %v2866 = vpop.f32.mrf.mxu0
      %v2867 = vadd.f32 0.0, %v2866
      %2868 = vmatmul.bf16.gmra.mxu0 %v2476
      %v2869 = vpop.f32.mrf.mxu0
      %v2870 = vadd.f32 0.0, %v2869
      %v2871 = vpop.f32.mrf.mxu0
      %v2872 = vadd.f32 0.0, %v2871
      %2873 = vmatmul.bf16.gmra.mxu0 %v2477
      %v2874 = vpop.f32.mrf.mxu0
      %v2875 = vadd.f32 0.0, %v2874
      %v2876 = vpop.f32.mrf.mxu0
      %v2877 = vadd.f32 0.0, %v2876
      %2878 = vmatmul.bf16.gmra.mxu0 %v2478
      %v2879 = vpop.f32.mrf.mxu0
      %v2880 = vadd.f32 0.0, %v2879
      %v2881 = vpop.f32.mrf.mxu0
      %v2882 = vadd.f32 0.0, %v2881
      %2883 = vmatmul.bf16.gmra.mxu0 %v2479
      %v2884 = vpop.f32.mrf.mxu0
      %v2885 = vadd.f32 0.0, %v2884
      %v2886 = vpop.f32.mrf.mxu0
      %v2887 = vadd.f32 0.0, %v2886
      %2888 = vmatmul.bf16.gmra.mxu0 %v2480
      %v2889 = vpop.f32.mrf.mxu0
      %v2890 = vadd.f32 0.0, %v2889
      %v2891 = vpop.f32.mrf.mxu0
      %v2892 = vadd.f32 0.0, %v2891
      %2893 = vmatmul.bf16.gmra.mxu0 %v2481
      %v2894 = vpop.f32.mrf.mxu0
      %v2895 = vadd.f32 0.0, %v2894
      %v2896 = vpop.f32.mrf.mxu0
      %v2897 = vadd.f32 0.0, %v2896
      %2898 = vmatmul.bf16.gmra.mxu0 %v2482
      %v2899 = vpop.f32.mrf.mxu0
      %v2900 = vadd.f32 0.0, %v2899
      %v2901 = vpop.f32.mrf.mxu0
      %v2902 = vadd.f32 0.0, %v2901
      %2903 = vmatmul.bf16.gmra.mxu0 %v2483
      %v2904 = vpop.f32.mrf.mxu0
      %v2905 = vadd.f32 0.0, %v2904
      %v2906 = vpop.f32.mrf.mxu0
      %v2907 = vadd.f32 0.0, %v2906
      %2908 = vdwg.mxu0
      %2909 = vmatpush.bf16.msra.mxu0 %v2787
      %2910 = vmatpush.bf16.msra.mxu0 %v2786
      %2911 = vmatpush.bf16.msra.mxu0 %v2785
      %2912 = vmatpush.bf16.msra.mxu0 %v2784
      %2913 = vmatpush.bf16.msra.mxu0 %v2783
      %2914 = vmatpush.bf16.msra.mxu0 %v2782
      %2915 = vmatpush.bf16.msra.mxu0 %v2781
      %2916 = vmatpush.bf16.msra.mxu0 %v2780
      %2917 = vmatmul.bf16.gmra.mxu0 %v2532
      %v2918 = vpop.f32.mrf.mxu0
      %v2919 = vadd.f32 %v2830, %v2918
      %v2920 = vpop.f32.mrf.mxu0
      %v2921 = vadd.f32 %v2832, %v2920
      %2922 = vmatmul.bf16.gmra.mxu0 %v2533
      %v2923 = vpop.f32.mrf.mxu0
      %v2924 = vadd.f32 %v2835, %v2923
      %v2925 = vpop.f32.mrf.mxu0
      %v2926 = vadd.f32 %v2837, %v2925
      %2927 = vmatmul.bf16.gmra.mxu0 %v2534
      %v2928 = vpop.f32.mrf.mxu0
      %v2929 = vadd.f32 %v2840, %v2928
      %v2930 = vpop.f32.mrf.mxu0
      %v2931 = vadd.f32 %v2842, %v2930
      %2932 = vmatmul.bf16.gmra.mxu0 %v2535
      %v2933 = vpop.f32.mrf.mxu0
      %v2934 = vadd.f32 %v2845, %v2933
      %v2935 = vpop.f32.mrf.mxu0
      %v2936 = vadd.f32 %v2847, %v2935
      %2937 = vmatmul.bf16.gmra.mxu0 %v2536
      %v2938 = vpop.f32.mrf.mxu0
      %v2939 = vadd.f32 %v2850, %v2938
      %v2940 = vpop.f32.mrf.mxu0
      %v2941 = vadd.f32 %v2852, %v2940
      %2942 = vmatmul.bf16.gmra.mxu0 %v2537
      %v2943 = vpop.f32.mrf.mxu0
      %v2944 = vadd.f32 %v2855, %v2943
      %v2945 = vpop.f32.mrf.mxu0
      %v2946 = vadd.f32 %v2857, %v2945
      %2947 = vmatmul.bf16.gmra.mxu0 %v2538
      %v2948 = vpop.f32.mrf.mxu0
      %v2949 = vadd.f32 %v2860, %v2948
      %v2950 = vpop.f32.mrf.mxu0
      %v2951 = vadd.f32 %v2862, %v2950
      %2952 = vmatmul.bf16.gmra.mxu0 %v2539
      %v2953 = vpop.f32.mrf.mxu0
      %v2954 = vadd.f32 %v2865, %v2953
      %v2955 = vpop.f32.mrf.mxu0
      %v2956 = vadd.f32 %v2867, %v2955
      %2957 = vmatmul.bf16.gmra.mxu0 %v2540
      %v2958 = vpop.f32.mrf.mxu0
      %v2959 = vadd.f32 %v2870, %v2958
      %v2960 = vpop.f32.mrf.mxu0
      %v2961 = vadd.f32 %v2872, %v2960
      %2962 = vmatmul.bf16.gmra.mxu0 %v2541
      %v2963 = vpop.f32.mrf.mxu0
      %v2964 = vadd.f32 %v2875, %v2963
      %v2965 = vpop.f32.mrf.mxu0
      %v2966 = vadd.f32 %v2877, %v2965
      %2967 = vmatmul.bf16.gmra.mxu0 %v2542
      %v2968 = vpop.f32.mrf.mxu0
      %v2969 = vadd.f32 %v2880, %v2968
      %v2970 = vpop.f32.mrf.mxu0
      %v2971 = vadd.f32 %v2882, %v2970
      %2972 = vmatmul.bf16.gmra.mxu0 %v2543
      %v2973 = vpop.f32.mrf.mxu0
      %v2974 = vadd.f32 %v2885, %v2973
      %v2975 = vpop.f32.mrf.mxu0
      %v2976 = vadd.f32 %v2887, %v2975
      %2977 = vmatmul.bf16.gmra.mxu0 %v2544
      %v2978 = vpop.f32.mrf.mxu0
      %v2979 = vadd.f32 %v2890, %v2978
      %v2980 = vpop.f32.mrf.mxu0
      %v2981 = vadd.f32 %v2892, %v2980
      %2982 = vmatmul.bf16.gmra.mxu0 %v2545
      %v2983 = vpop.f32.mrf.mxu0
      %v2984 = vadd.f32 %v2895, %v2983
      %v2985 = vpop.f32.mrf.mxu0
      %v2986 = vadd.f32 %v2897, %v2985
      %2987 = vmatmul.bf16.gmra.mxu0 %v2546
      %v2988 = vpop.f32.mrf.mxu0
      %v2989 = vadd.f32 %v2900, %v2988
      %v2990 = vpop.f32.mrf.mxu0
      %v2991 = vadd.f32 %v2902, %v2990
      %2992 = vmatmul.bf16.gmra.mxu0 %v2547
      %v2993 = vpop.f32.mrf.mxu0
      %v2994 = vadd.f32 %v2905, %v2993
      %v2995 = vpop.f32.mrf.mxu0
      %v2996 = vadd.f32 %v2907, %v2995
      %2997 = vdwg.mxu0
      %2998 = vmatpush.bf16.msra.mxu0 %v2795
      %2999 = vmatpush.bf16.msra.mxu0 %v2794
      %3000 = vmatpush.bf16.msra.mxu0 %v2793
      %3001 = vmatpush.bf16.msra.mxu0 %v2792
      %3002 = vmatpush.bf16.msra.mxu0 %v2791
      %3003 = vmatpush.bf16.msra.mxu0 %v2790
      %3004 = vmatpush.bf16.msra.mxu0 %v2789
      %3005 = vmatpush.bf16.msra.mxu0 %v2788
      %3006 = vmatmul.bf16.gmra.mxu0 %v2596
      %v3007 = vpop.f32.mrf.mxu0
      %v3008 = vadd.f32 %v2919, %v3007
      %v3009 = vpop.f32.mrf.mxu0
      %v3010 = vadd.f32 %v2921, %v3009
      %3011 = vmatmul.bf16.gmra.mxu0 %v2597
      %v3012 = vpop.f32.mrf.mxu0
      %v3013 = vadd.f32 %v2924, %v3012
      %v3014 = vpop.f32.mrf.mxu0
      %v3015 = vadd.f32 %v2926, %v3014
      %3016 = vmatmul.bf16.gmra.mxu0 %v2598
      %v3017 = vpop.f32.mrf.mxu0
      %v3018 = vadd.f32 %v2929, %v3017
      %v3019 = vpop.f32.mrf.mxu0
      %v3020 = vadd.f32 %v2931, %v3019
      %3021 = vmatmul.bf16.gmra.mxu0 %v2599
      %v3022 = vpop.f32.mrf.mxu0
      %v3023 = vadd.f32 %v2934, %v3022
      %v3024 = vpop.f32.mrf.mxu0
      %v3025 = vadd.f32 %v2936, %v3024
      %3026 = vmatmul.bf16.gmra.mxu0 %v2600
      %v3027 = vpop.f32.mrf.mxu0
      %v3028 = vadd.f32 %v2939, %v3027
      %v3029 = vpop.f32.mrf.mxu0
      %v3030 = vadd.f32 %v2941, %v3029
      %3031 = vmatmul.bf16.gmra.mxu0 %v2601
      %v3032 = vpop.f32.mrf.mxu0
      %v3033 = vadd.f32 %v2944, %v3032
      %v3034 = vpop.f32.mrf.mxu0
      %v3035 = vadd.f32 %v2946, %v3034
      %3036 = vmatmul.bf16.gmra.mxu0 %v2602
      %v3037 = vpop.f32.mrf.mxu0
      %v3038 = vadd.f32 %v2949, %v3037
      %v3039 = vpop.f32.mrf.mxu0
      %v3040 = vadd.f32 %v2951, %v3039
      %3041 = vmatmul.bf16.gmra.mxu0 %v2603
      %v3042 = vpop.f32.mrf.mxu0
      %v3043 = vadd.f32 %v2954, %v3042
      %v3044 = vpop.f32.mrf.mxu0
      %v3045 = vadd.f32 %v2956, %v3044
      %3046 = vmatmul.bf16.gmra.mxu0 %v2604
      %v3047 = vpop.f32.mrf.mxu0
      %v3048 = vadd.f32 %v2959, %v3047
      %v3049 = vpop.f32.mrf.mxu0
      %v3050 = vadd.f32 %v2961, %v3049
      %3051 = vmatmul.bf16.gmra.mxu0 %v2605
      %v3052 = vpop.f32.mrf.mxu0
      %v3053 = vadd.f32 %v2964, %v3052
      %v3054 = vpop.f32.mrf.mxu0
      %v3055 = vadd.f32 %v2966, %v3054
      %3056 = vmatmul.bf16.gmra.mxu0 %v2606
      %v3057 = vpop.f32.mrf.mxu0
      %v3058 = vadd.f32 %v2969, %v3057
      %v3059 = vpop.f32.mrf.mxu0
      %v3060 = vadd.f32 %v2971, %v3059
      %3061 = vmatmul.bf16.gmra.mxu0 %v2607
      %v3062 = vpop.f32.mrf.mxu0
      %v3063 = vadd.f32 %v2974, %v3062
      %v3064 = vpop.f32.mrf.mxu0
      %v3065 = vadd.f32 %v2976, %v3064
      %3066 = vmatmul.bf16.gmra.mxu0 %v2608
      %v3067 = vpop.f32.mrf.mxu0
      %v3068 = vadd.f32 %v2979, %v3067
      %v3069 = vpop.f32.mrf.mxu0
      %v3070 = vadd.f32 %v2981, %v3069
      %3071 = vmatmul.bf16.gmra.mxu0 %v2609
      %v3072 = vpop.f32.mrf.mxu0
      %v3073 = vadd.f32 %v2984, %v3072
      %v3074 = vpop.f32.mrf.mxu0
      %v3075 = vadd.f32 %v2986, %v3074
      %3076 = vmatmul.bf16.gmra.mxu0 %v2610
      %v3077 = vpop.f32.mrf.mxu0
      %v3078 = vadd.f32 %v2989, %v3077
      %v3079 = vpop.f32.mrf.mxu0
      %v3080 = vadd.f32 %v2991, %v3079
      %3081 = vmatmul.bf16.gmra.mxu0 %v2611
      %v3082 = vpop.f32.mrf.mxu0
      %v3083 = vadd.f32 %v2994, %v3082
      %v3084 = vpop.f32.mrf.mxu0
      %v3085 = vadd.f32 %v2996, %v3084
      %3086 = vdwg.mxu0
      %v3135 = vunpack.c.l.b16 %v1796
      %v3136 = vunpack.c.l.b16 %v1797
      %v3137 = vunpack.c.l.b16 %v1798
      %v3138 = vunpack.c.l.b16 %v1799
      %v3139 = vunpack.c.l.b16 %v1800
      %v3140 = vunpack.c.l.b16 %v1801
      %v3141 = vunpack.c.l.b16 %v1802
      %v3142 = vunpack.c.l.b16 %v1803
      %v3143 = vunpack.c.l.b16 %v1804
      %v3144 = vunpack.c.l.b16 %v1805
      %v3145 = vunpack.c.l.b16 %v1806
      %v3146 = vunpack.c.l.b16 %v1807
      %v3147 = vunpack.c.l.b16 %v1808
      %v3148 = vunpack.c.l.b16 %v1809
      %v3149 = vunpack.c.l.b16 %v1810
      %v3150 = vunpack.c.l.b16 %v1811
      %v3151 = vunpack.c.l.b16 %v1812
      %v3152 = vunpack.c.l.b16 %v1813
      %v3153 = vunpack.c.l.b16 %v1814
      %v3154 = vunpack.c.l.b16 %v1815
      %v3155 = vunpack.c.l.b16 %v1816
      %v3156 = vunpack.c.l.b16 %v1817
      %v3157 = vunpack.c.l.b16 %v1818
      %v3158 = vunpack.c.l.b16 %v1819
      %v3159 = vunpack.c.l.b16 %v1820
      %v3160 = vunpack.c.l.b16 %v1821
      %v3161 = vunpack.c.l.b16 %v1822
      %v3162 = vunpack.c.l.b16 %v1823
      %v3163 = vunpack.c.l.b16 %v1824
      %v3164 = vunpack.c.l.b16 %v1825
      %v3165 = vunpack.c.l.b16 %v1826
      %v3166 = vunpack.c.l.b16 %v1827
      %v3167 = vunpack.c.l.b16 %v1828
      %v3168 = vunpack.c.l.b16 %v1829
      %v3169 = vunpack.c.l.b16 %v1830
      %v3170 = vunpack.c.l.b16 %v1831
      %v3171 = vunpack.c.l.b16 %v1832
      %v3172 = vunpack.c.l.b16 %v1833
      %v3173 = vunpack.c.l.b16 %v1834
      %v3174 = vunpack.c.l.b16 %v1835
      %v3175 = vunpack.c.l.b16 %v1836
      %v3176 = vunpack.c.l.b16 %v1837
      %v3177 = vunpack.c.l.b16 %v1838
      %v3178 = vunpack.c.l.b16 %v1839
      %v3179 = vunpack.c.l.b16 %v1840
      %v3180 = vunpack.c.l.b16 %v1841
      %v3181 = vunpack.c.l.b16 %v1842
      %v3182 = vunpack.c.l.b16 %v1843
      %v3183 = vpack.c.b16 %v3136, %v3135
      %v3184 = vpack.c.b16 %v3138, %v3137
      %v3185 = vpack.c.b16 %v3140, %v3139
      %v3186 = vpack.c.b16 %v3142, %v3141
      %v3187 = vpack.c.b16 %v3144, %v3143
      %v3188 = vpack.c.b16 %v3146, %v3145
      %v3189 = vpack.c.b16 %v3148, %v3147
      %v3190 = vpack.c.b16 %v3150, %v3149
      %v3191 = vpack.c.b16 %v3152, %v3151
      %v3192 = vpack.c.b16 %v3154, %v3153
      %v3193 = vpack.c.b16 %v3156, %v3155
      %v3194 = vpack.c.b16 %v3158, %v3157
      %v3195 = vpack.c.b16 %v3160, %v3159
      %v3196 = vpack.c.b16 %v3162, %v3161
      %v3197 = vpack.c.b16 %v3164, %v3163
      %v3198 = vpack.c.b16 %v3166, %v3165
      %v3199 = vpack.c.b16 %v3168, %v3167
      %v3200 = vpack.c.b16 %v3170, %v3169
      %v3201 = vpack.c.b16 %v3172, %v3171
      %v3202 = vpack.c.b16 %v3174, %v3173
      %v3203 = vpack.c.b16 %v3176, %v3175
      %v3204 = vpack.c.b16 %v3178, %v3177
      %v3205 = vpack.c.b16 %v3180, %v3179
      %v3206 = vpack.c.b16 %v3182, %v3181
      %3231 = vmatpush.bf16.msra.mxu0 %v3190
      %3232 = vmatpush.bf16.msra.mxu0 %v3189
      %3233 = vmatpush.bf16.msra.mxu0 %v3188
      %3234 = vmatpush.bf16.msra.mxu0 %v3187
      %3235 = vmatpush.bf16.msra.mxu0 %v3186
      %3236 = vmatpush.bf16.msra.mxu0 %v3185
      %3237 = vmatpush.bf16.msra.mxu0 %v3184
      %3238 = vmatpush.bf16.msra.mxu0 %v3183
      %3239 = vmatmul.bf16.gmra.mxu0 %v1636
      %v3240 = vpop.f32.mrf.mxu0
      %v3241 = vadd.f32 %v3008, %v3240
      %v3242 = vpop.f32.mrf.mxu0
      %v3243 = vadd.f32 %v3010, %v3242
      %3244 = vmatmul.bf16.gmra.mxu0 %v1637
      %v3245 = vpop.f32.mrf.mxu0
      %v3246 = vadd.f32 %v3013, %v3245
      %v3247 = vpop.f32.mrf.mxu0
      %v3248 = vadd.f32 %v3015, %v3247
      %3249 = vmatmul.bf16.gmra.mxu0 %v1638
      %v3250 = vpop.f32.mrf.mxu0
      %v3251 = vadd.f32 %v3018, %v3250
      %v3252 = vpop.f32.mrf.mxu0
      %v3253 = vadd.f32 %v3020, %v3252
      %3254 = vmatmul.bf16.gmra.mxu0 %v1639
      %v3255 = vpop.f32.mrf.mxu0
      %v3256 = vadd.f32 %v3023, %v3255
      %v3257 = vpop.f32.mrf.mxu0
      %v3258 = vadd.f32 %v3025, %v3257
      %3259 = vmatmul.bf16.gmra.mxu0 %v1640
      %v3260 = vpop.f32.mrf.mxu0
      %v3261 = vadd.f32 %v3028, %v3260
      %v3262 = vpop.f32.mrf.mxu0
      %v3263 = vadd.f32 %v3030, %v3262
      %3264 = vmatmul.bf16.gmra.mxu0 %v1641
      %v3265 = vpop.f32.mrf.mxu0
      %v3266 = vadd.f32 %v3033, %v3265
      %v3267 = vpop.f32.mrf.mxu0
      %v3268 = vadd.f32 %v3035, %v3267
      %3269 = vmatmul.bf16.gmra.mxu0 %v1642
      %v3270 = vpop.f32.mrf.mxu0
      %v3271 = vadd.f32 %v3038, %v3270
      %v3272 = vpop.f32.mrf.mxu0
      %v3273 = vadd.f32 %v3040, %v3272
      %3274 = vmatmul.bf16.gmra.mxu0 %v1643
      %v3275 = vpop.f32.mrf.mxu0
      %v3276 = vadd.f32 %v3043, %v3275
      %v3277 = vpop.f32.mrf.mxu0
      %v3278 = vadd.f32 %v3045, %v3277
      %3279 = vmatmul.bf16.gmra.mxu0 %v1644
      %v3280 = vpop.f32.mrf.mxu0
      %v3281 = vadd.f32 %v3048, %v3280
      %v3282 = vpop.f32.mrf.mxu0
      %v3283 = vadd.f32 %v3050, %v3282
      %3284 = vmatmul.bf16.gmra.mxu0 %v1645
      %v3285 = vpop.f32.mrf.mxu0
      %v3286 = vadd.f32 %v3053, %v3285
      %v3287 = vpop.f32.mrf.mxu0
      %v3288 = vadd.f32 %v3055, %v3287
      %3289 = vmatmul.bf16.gmra.mxu0 %v1646
      %v3290 = vpop.f32.mrf.mxu0
      %v3291 = vadd.f32 %v3058, %v3290
      %v3292 = vpop.f32.mrf.mxu0
      %v3293 = vadd.f32 %v3060, %v3292
      %3294 = vmatmul.bf16.gmra.mxu0 %v1647
      %v3295 = vpop.f32.mrf.mxu0
      %v3296 = vadd.f32 %v3063, %v3295
      %v3297 = vpop.f32.mrf.mxu0
      %v3298 = vadd.f32 %v3065, %v3297
      %3299 = vmatmul.bf16.gmra.mxu0 %v1648
      %v3300 = vpop.f32.mrf.mxu0
      %v3301 = vadd.f32 %v3068, %v3300
      %v3302 = vpop.f32.mrf.mxu0
      %v3303 = vadd.f32 %v3070, %v3302
      %3304 = vmatmul.bf16.gmra.mxu0 %v1649
      %v3305 = vpop.f32.mrf.mxu0
      %v3306 = vadd.f32 %v3073, %v3305
      %v3307 = vpop.f32.mrf.mxu0
      %v3308 = vadd.f32 %v3075, %v3307
      %3309 = vmatmul.bf16.gmra.mxu0 %v1650
      %v3310 = vpop.f32.mrf.mxu0
      %v3311 = vadd.f32 %v3078, %v3310
      %v3312 = vpop.f32.mrf.mxu0
      %v3313 = vadd.f32 %v3080, %v3312
      %3314 = vmatmul.bf16.gmra.mxu0 %v1651
      %v3315 = vpop.f32.mrf.mxu0
      %v3316 = vadd.f32 %v3083, %v3315
      %v3317 = vpop.f32.mrf.mxu0
      %v3318 = vadd.f32 %v3085, %v3317
      %3319 = vdwg.mxu0
      %3320 = vmatpush.bf16.msra.mxu0 %v3198
      %3321 = vmatpush.bf16.msra.mxu0 %v3197
      %3322 = vmatpush.bf16.msra.mxu0 %v3196
      %3323 = vmatpush.bf16.msra.mxu0 %v3195
      %3324 = vmatpush.bf16.msra.mxu0 %v3194
      %3325 = vmatpush.bf16.msra.mxu0 %v3193
      %3326 = vmatpush.bf16.msra.mxu0 %v3192
      %3327 = vmatpush.bf16.msra.mxu0 %v3191
      %3328 = vmatmul.bf16.gmra.mxu0 %v1700
      %v3329 = vpop.f32.mrf.mxu0
      %v3330 = vadd.f32 %v3241, %v3329
      %v3331 = vpop.f32.mrf.mxu0
      %v3332 = vadd.f32 %v3243, %v3331
      %3333 = vmatmul.bf16.gmra.mxu0 %v1701
      %v3334 = vpop.f32.mrf.mxu0
      %v3335 = vadd.f32 %v3246, %v3334
      %v3336 = vpop.f32.mrf.mxu0
      %v3337 = vadd.f32 %v3248, %v3336
      %3338 = vmatmul.bf16.gmra.mxu0 %v1702
      %v3339 = vpop.f32.mrf.mxu0
      %v3340 = vadd.f32 %v3251, %v3339
      %v3341 = vpop.f32.mrf.mxu0
      %v3342 = vadd.f32 %v3253, %v3341
      %3343 = vmatmul.bf16.gmra.mxu0 %v1703
      %v3344 = vpop.f32.mrf.mxu0
      %v3345 = vadd.f32 %v3256, %v3344
      %v3346 = vpop.f32.mrf.mxu0
      %v3347 = vadd.f32 %v3258, %v3346
      %3348 = vmatmul.bf16.gmra.mxu0 %v1704
      %v3349 = vpop.f32.mrf.mxu0
      %v3350 = vadd.f32 %v3261, %v3349
      %v3351 = vpop.f32.mrf.mxu0
      %v3352 = vadd.f32 %v3263, %v3351
      %3353 = vmatmul.bf16.gmra.mxu0 %v1705
      %v3354 = vpop.f32.mrf.mxu0
      %v3355 = vadd.f32 %v3266, %v3354
      %v3356 = vpop.f32.mrf.mxu0
      %v3357 = vadd.f32 %v3268, %v3356
      %3358 = vmatmul.bf16.gmra.mxu0 %v1706
      %v3359 = vpop.f32.mrf.mxu0
      %v3360 = vadd.f32 %v3271, %v3359
      %v3361 = vpop.f32.mrf.mxu0
      %v3362 = vadd.f32 %v3273, %v3361
      %3363 = vmatmul.bf16.gmra.mxu0 %v1707
      %v3364 = vpop.f32.mrf.mxu0
      %v3365 = vadd.f32 %v3276, %v3364
      %v3366 = vpop.f32.mrf.mxu0
      %v3367 = vadd.f32 %v3278, %v3366
      %3368 = vmatmul.bf16.gmra.mxu0 %v1708
      %v3369 = vpop.f32.mrf.mxu0
      %v3370 = vadd.f32 %v3281, %v3369
      %v3371 = vpop.f32.mrf.mxu0
      %v3372 = vadd.f32 %v3283, %v3371
      %3373 = vmatmul.bf16.gmra.mxu0 %v1709
      %v3374 = vpop.f32.mrf.mxu0
      %v3375 = vadd.f32 %v3286, %v3374
      %v3376 = vpop.f32.mrf.mxu0
      %v3377 = vadd.f32 %v3288, %v3376
      %3378 = vmatmul.bf16.gmra.mxu0 %v1710
      %v3379 = vpop.f32.mrf.mxu0
      %v3380 = vadd.f32 %v3291, %v3379
      %v3381 = vpop.f32.mrf.mxu0
      %v3382 = vadd.f32 %v3293, %v3381
      %3383 = vmatmul.bf16.gmra.mxu0 %v1711
      %v3384 = vpop.f32.mrf.mxu0
      %v3385 = vadd.f32 %v3296, %v3384
      %v3386 = vpop.f32.mrf.mxu0
      %v3387 = vadd.f32 %v3298, %v3386
      %3388 = vmatmul.bf16.gmra.mxu0 %v1712
      %v3389 = vpop.f32.mrf.mxu0
      %v3390 = vadd.f32 %v3301, %v3389
      %v3391 = vpop.f32.mrf.mxu0
      %v3392 = vadd.f32 %v3303, %v3391
      %3393 = vmatmul.bf16.gmra.mxu0 %v1713
      %v3394 = vpop.f32.mrf.mxu0
      %v3395 = vadd.f32 %v3306, %v3394
      %v3396 = vpop.f32.mrf.mxu0
      %v3397 = vadd.f32 %v3308, %v3396
      %3398 = vmatmul.bf16.gmra.mxu0 %v1714
      %v3399 = vpop.f32.mrf.mxu0
      %v3400 = vadd.f32 %v3311, %v3399
      %v3401 = vpop.f32.mrf.mxu0
      %v3402 = vadd.f32 %v3313, %v3401
      %3403 = vmatmul.bf16.gmra.mxu0 %v1715
      %v3404 = vpop.f32.mrf.mxu0
      %v3405 = vadd.f32 %v3316, %v3404
      %v3406 = vpop.f32.mrf.mxu0
      %v3407 = vadd.f32 %v3318, %v3406
      %3408 = vdwg.mxu0
      %3409 = vmatpush.bf16.msra.mxu0 %v3206
      %3410 = vmatpush.bf16.msra.mxu0 %v3205
      %3411 = vmatpush.bf16.msra.mxu0 %v3204
      %3412 = vmatpush.bf16.msra.mxu0 %v3203
      %3413 = vmatpush.bf16.msra.mxu0 %v3202
      %3414 = vmatpush.bf16.msra.mxu0 %v3201
      %3415 = vmatpush.bf16.msra.mxu0 %v3200
      %3416 = vmatpush.bf16.msra.mxu0 %v3199
      %3417 = vmatmul.bf16.gmra.mxu0 %v1764
      %v3418 = vpop.f32.mrf.mxu0
      %v3419 = vadd.f32 %v3330, %v3418
      %v3420 = vpop.f32.mrf.mxu0
      %v3421 = vadd.f32 %v3332, %v3420
      %3422 = vmatmul.bf16.gmra.mxu0 %v1765
      %v3423 = vpop.f32.mrf.mxu0
      %v3424 = vadd.f32 %v3335, %v3423
      %v3425 = vpop.f32.mrf.mxu0
      %v3426 = vadd.f32 %v3337, %v3425
      %3427 = vmatmul.bf16.gmra.mxu0 %v1766
      %v3428 = vpop.f32.mrf.mxu0
      %v3429 = vadd.f32 %v3340, %v3428
      %v3430 = vpop.f32.mrf.mxu0
      %v3431 = vadd.f32 %v3342, %v3430
      %3432 = vmatmul.bf16.gmra.mxu0 %v1767
      %v3433 = vpop.f32.mrf.mxu0
      %v3434 = vadd.f32 %v3345, %v3433
      %v3435 = vpop.f32.mrf.mxu0
      %v3436 = vadd.f32 %v3347, %v3435
      %3437 = vmatmul.bf16.gmra.mxu0 %v1768
      %v3438 = vpop.f32.mrf.mxu0
      %v3439 = vadd.f32 %v3350, %v3438
      %v3440 = vpop.f32.mrf.mxu0
      %v3441 = vadd.f32 %v3352, %v3440
      %3442 = vmatmul.bf16.gmra.mxu0 %v1769
      %v3443 = vpop.f32.mrf.mxu0
      %v3444 = vadd.f32 %v3355, %v3443
      %v3445 = vpop.f32.mrf.mxu0
      %v3446 = vadd.f32 %v3357, %v3445
      %3447 = vmatmul.bf16.gmra.mxu0 %v1770
      %v3448 = vpop.f32.mrf.mxu0
      %v3449 = vadd.f32 %v3360, %v3448
      %v3450 = vpop.f32.mrf.mxu0
      %v3451 = vadd.f32 %v3362, %v3450
      %3452 = vmatmul.bf16.gmra.mxu0 %v1771
      %v3453 = vpop.f32.mrf.mxu0
      %v3454 = vadd.f32 %v3365, %v3453
      %v3455 = vpop.f32.mrf.mxu0
      %v3456 = vadd.f32 %v3367, %v3455
      %3457 = vmatmul.bf16.gmra.mxu0 %v1772
      %v3458 = vpop.f32.mrf.mxu0
      %v3459 = vadd.f32 %v3370, %v3458
      %v3460 = vpop.f32.mrf.mxu0
      %v3461 = vadd.f32 %v3372, %v3460
      %3462 = vmatmul.bf16.gmra.mxu0 %v1773
      %v3463 = vpop.f32.mrf.mxu0
      %v3464 = vadd.f32 %v3375, %v3463
      %v3465 = vpop.f32.mrf.mxu0
      %v3466 = vadd.f32 %v3377, %v3465
      %3467 = vmatmul.bf16.gmra.mxu0 %v1774
      %v3468 = vpop.f32.mrf.mxu0
      %v3469 = vadd.f32 %v3380, %v3468
      %v3470 = vpop.f32.mrf.mxu0
      %v3471 = vadd.f32 %v3382, %v3470
      %3472 = vmatmul.bf16.gmra.mxu0 %v1775
      %v3473 = vpop.f32.mrf.mxu0
      %v3474 = vadd.f32 %v3385, %v3473
      %v3475 = vpop.f32.mrf.mxu0
      %v3476 = vadd.f32 %v3387, %v3475
      %3477 = vmatmul.bf16.gmra.mxu0 %v1776
      %v3478 = vpop.f32.mrf.mxu0
      %v3479 = vadd.f32 %v3390, %v3478
      %v3480 = vpop.f32.mrf.mxu0
      %v3481 = vadd.f32 %v3392, %v3480
      %3482 = vmatmul.bf16.gmra.mxu0 %v1777
      %v3483 = vpop.f32.mrf.mxu0
      %v3484 = vadd.f32 %v3395, %v3483
      %v3485 = vpop.f32.mrf.mxu0
      %v3486 = vadd.f32 %v3397, %v3485
      %3487 = vmatmul.bf16.gmra.mxu0 %v1778
      %v3488 = vpop.f32.mrf.mxu0
      %v3489 = vadd.f32 %v3400, %v3488
      %v3490 = vpop.f32.mrf.mxu0
      %v3491 = vadd.f32 %v3402, %v3490
      %3492 = vmatmul.bf16.gmra.mxu0 %v1779
      %v3493 = vpop.f32.mrf.mxu0
      %v3494 = vadd.f32 %v3405, %v3493
      %v3495 = vpop.f32.mrf.mxu0
      %v3496 = vadd.f32 %v3407, %v3495
      %3497 = vdwg.mxu0
      %s3498 = scalar_lea.vmem [#allocation2], 24
      %v3499 = vld [vmem:[%s3498] sm:$0xf]
      %v3500 = vld [vmem:[%s3498 + $0x4] sm:$0xf]
      %v3501 = vld [vmem:[%s3498 + $0x8] sm:$0x1]
      %v3502 = vld [vmem:[%s3498 + $0xc] sm:$0xf]
      %v3503 = vld [vmem:[%s3498 + $0x10] sm:$0xf]
      %v3504 = vld [vmem:[%s3498 + $0x14] sm:$0x1]
      %v3505 = vld [vmem:[%s3498 + $0x18] sm:$0xf]
      %v3506 = vld [vmem:[%s3498 + $0x1c] sm:$0xf]
      %v3507 = vld [vmem:[%s3498 + $0x20] sm:$0x1]
      %v3508 = vld [vmem:[%s3498 + $0x24] sm:$0xf]
      %v3509 = vld [vmem:[%s3498 + $0x28] sm:$0xf]
      %v3510 = vld [vmem:[%s3498 + $0x2c] sm:$0x1]
      %v3511 = vld [vmem:[%s3498 + $0x30] sm:$0xf]
      %v3512 = vld [vmem:[%s3498 + $0x34] sm:$0xf]
      %v3513 = vld [vmem:[%s3498 + $0x38] sm:$0x1]
      %v3514 = vld [vmem:[%s3498 + $0x3c] sm:$0xf]
      %v3515 = vld [vmem:[%s3498 + $0x40] sm:$0xf]
      %v3516 = vld [vmem:[%s3498 + $0x44] sm:$0x1]
      %v3517 = vld [vmem:[%s3498 + $0x48] sm:$0xf]
      %v3518 = vld [vmem:[%s3498 + $0x4c] sm:$0xf]
      %v3519 = vld [vmem:[%s3498 + $0x50] sm:$0x1]
      %v3520 = vld [vmem:[%s3498 + $0x54] sm:$0xf]
      %v3521 = vld [vmem:[%s3498 + $0x58] sm:$0xf]
      %v3522 = vld [vmem:[%s3498 + $0x5c] sm:$0x1]
      %v3523 = vld [vmem:[%s3498 + $0x60] sm:$0xf]
      %v3524 = vld [vmem:[%s3498 + $0x64] sm:$0xf]
      %v3525 = vld [vmem:[%s3498 + $0x68] sm:$0x1]
      %v3526 = vld [vmem:[%s3498 + $0x6c] sm:$0xf]
      %v3527 = vld [vmem:[%s3498 + $0x70] sm:$0xf]
      %v3528 = vld [vmem:[%s3498 + $0x74] sm:$0x1]
      %v3529 = vld [vmem:[%s3498 + $0x78] sm:$0xf]
      %v3530 = vld [vmem:[%s3498 + $0x7c] sm:$0xf]
      %v3531 = vld [vmem:[%s3498 + $0x80] sm:$0x1]
      %v3532 = vld [vmem:[%s3498 + $0x84] sm:$0xf]
      %v3533 = vld [vmem:[%s3498 + $0x88] sm:$0xf]
      %v3534 = vld [vmem:[%s3498 + $0x8c] sm:$0x1]
      %v3535 = vld [vmem:[%s3498 + $0x90] sm:$0xf]
      %v3536 = vld [vmem:[%s3498 + $0x94] sm:$0xf]
      %v3537 = vld [vmem:[%s3498 + $0x98] sm:$0x1]
      %v3538 = vld [vmem:[%s3498 + $0x9c] sm:$0xf]
      %v3539 = vld [vmem:[%s3498 + $0xa0] sm:$0xf]
      %v3540 = vld [vmem:[%s3498 + $0xa4] sm:$0x1]
      %v3541 = vld [vmem:[%s3498 + $0xa8] sm:$0xf]
      %v3542 = vld [vmem:[%s3498 + $0xac] sm:$0xf]
      %v3543 = vld [vmem:[%s3498 + $0xb0] sm:$0x1]
      %v3544 = vld [vmem:[%s3498 + $0xb4] sm:$0xf]
      %v3545 = vld [vmem:[%s3498 + $0xb8] sm:$0xf]
      %v3546 = vld [vmem:[%s3498 + $0xbc] sm:$0x1]
      %v3548 = vshrl.u32 %v3499, 16
      %v3550 = vrot.slane %v3548, 4
      %v3551 = vshll.u32 %v3499, 16
      %v3553 = vrot.slane %v3551, 5
      %v3554 = vor.u32 %v3550, %v3553
      %v3555 = vrot.slane %v3554, 4
      %v3557 = vshll.u32 %v3500, 16
      %v3559 = vrot.slane %v3557, 5
      %v3560 = vsel %vm1056, %v3555, %v3559
      %v3561 = vshrl.u32 %v3500, 16
      %v3563 = vrot.slane %v3561, 4
      %v3564 = vor.u32 %v3563, %v3559
      %v3565 = vrot.slane %v3564, 4
      %v3567 = vshll.u32 %v3501, 16
      %v3569 = vrot.slane %v3567, 5
      %v3570 = vsel %vm1056, %v3565, %v3569
      %v3572 = vshrl.u32 %v3502, 16
      %v3574 = vrot.slane %v3572, 4
      %v3575 = vshll.u32 %v3502, 16
      %v3577 = vrot.slane %v3575, 5
      %v3578 = vor.u32 %v3574, %v3577
      %v3579 = vrot.slane %v3578, 4
      %v3581 = vshll.u32 %v3503, 16
      %v3583 = vrot.slane %v3581, 5
      %v3584 = vsel %vm1056, %v3579, %v3583
      %v3585 = vshrl.u32 %v3503, 16
      %v3587 = vrot.slane %v3585, 4
      %v3588 = vor.u32 %v3587, %v3583
      %v3589 = vrot.slane %v3588, 4
      %v3591 = vshll.u32 %v3504, 16
      %v3593 = vrot.slane %v3591, 5
      %v3594 = vsel %vm1056, %v3589, %v3593
      %v3596 = vshrl.u32 %v3505, 16
      %v3598 = vrot.slane %v3596, 4
      %v3599 = vshll.u32 %v3505, 16
      %v3601 = vrot.slane %v3599, 5
      %v3602 = vor.u32 %v3598, %v3601
      %v3603 = vrot.slane %v3602, 4
      %v3605 = vshll.u32 %v3506, 16
      %v3607 = vrot.slane %v3605, 5
      %v3608 = vsel %vm1056, %v3603, %v3607
      %v3609 = vshrl.u32 %v3506, 16
      %v3611 = vrot.slane %v3609, 4
      %v3612 = vor.u32 %v3611, %v3607
      %v3613 = vrot.slane %v3612, 4
      %v3615 = vshll.u32 %v3507, 16
      %v3617 = vrot.slane %v3615, 5
      %v3618 = vsel %vm1056, %v3613, %v3617
      %v3620 = vshrl.u32 %v3508, 16
      %v3622 = vrot.slane %v3620, 4
      %v3623 = vshll.u32 %v3508, 16
      %v3625 = vrot.slane %v3623, 5
      %v3626 = vor.u32 %v3622, %v3625
      %v3627 = vrot.slane %v3626, 4
      %v3629 = vshll.u32 %v3509, 16
      %v3631 = vrot.slane %v3629, 5
      %v3632 = vsel %vm1056, %v3627, %v3631
      %v3633 = vshrl.u32 %v3509, 16
      %v3635 = vrot.slane %v3633, 4
      %v3636 = vor.u32 %v3635, %v3631
      %v3637 = vrot.slane %v3636, 4
      %v3639 = vshll.u32 %v3510, 16
      %v3641 = vrot.slane %v3639, 5
      %v3642 = vsel %vm1056, %v3637, %v3641
      %v3644 = vshrl.u32 %v3511, 16
      %v3646 = vrot.slane %v3644, 4
      %v3647 = vshll.u32 %v3511, 16
      %v3649 = vrot.slane %v3647, 5
      %v3650 = vor.u32 %v3646, %v3649
      %v3651 = vrot.slane %v3650, 4
      %v3653 = vshll.u32 %v3512, 16
      %v3655 = vrot.slane %v3653, 5
      %v3656 = vsel %vm1056, %v3651, %v3655
      %v3657 = vshrl.u32 %v3512, 16
      %v3659 = vrot.slane %v3657, 4
      %v3660 = vor.u32 %v3659, %v3655
      %v3661 = vrot.slane %v3660, 4
      %v3663 = vshll.u32 %v3513, 16
      %v3665 = vrot.slane %v3663, 5
      %v3666 = vsel %vm1056, %v3661, %v3665
      %v3668 = vshrl.u32 %v3514, 16
      %v3670 = vrot.slane %v3668, 4
      %v3671 = vshll.u32 %v3514, 16
      %v3673 = vrot.slane %v3671, 5
      %v3674 = vor.u32 %v3670, %v3673
      %v3675 = vrot.slane %v3674, 4
      %v3677 = vshll.u32 %v3515, 16
      %v3679 = vrot.slane %v3677, 5
      %v3680 = vsel %vm1056, %v3675, %v3679
      %v3681 = vshrl.u32 %v3515, 16
      %v3683 = vrot.slane %v3681, 4
      %v3684 = vor.u32 %v3683, %v3679
      %v3685 = vrot.slane %v3684, 4
      %v3687 = vshll.u32 %v3516, 16
      %v3689 = vrot.slane %v3687, 5
      %v3690 = vsel %vm1056, %v3685, %v3689
      %v3692 = vshrl.u32 %v3517, 16
      %v3694 = vrot.slane %v3692, 4
      %v3695 = vshll.u32 %v3517, 16
      %v3697 = vrot.slane %v3695, 5
      %v3698 = vor.u32 %v3694, %v3697
      %v3699 = vrot.slane %v3698, 4
      %v3701 = vshll.u32 %v3518, 16
      %v3703 = vrot.slane %v3701, 5
      %v3704 = vsel %vm1056, %v3699, %v3703
      %v3705 = vshrl.u32 %v3518, 16
      %v3707 = vrot.slane %v3705, 4
      %v3708 = vor.u32 %v3707, %v3703
      %v3709 = vrot.slane %v3708, 4
      %v3711 = vshll.u32 %v3519, 16
      %v3713 = vrot.slane %v3711, 5
      %v3714 = vsel %vm1056, %v3709, %v3713
      %v3716 = vshrl.u32 %v3520, 16
      %v3718 = vrot.slane %v3716, 4
      %v3719 = vshll.u32 %v3520, 16
      %v3721 = vrot.slane %v3719, 5
      %v3722 = vor.u32 %v3718, %v3721
      %v3723 = vrot.slane %v3722, 4
      %v3725 = vshll.u32 %v3521, 16
      %v3727 = vrot.slane %v3725, 5
      %v3728 = vsel %vm1056, %v3723, %v3727
      %v3729 = vshrl.u32 %v3521, 16
      %v3731 = vrot.slane %v3729, 4
      %v3732 = vor.u32 %v3731, %v3727
      %v3733 = vrot.slane %v3732, 4
      %v3735 = vshll.u32 %v3522, 16
      %v3737 = vrot.slane %v3735, 5
      %v3738 = vsel %vm1056, %v3733, %v3737
      %v3740 = vshrl.u32 %v3523, 16
      %v3742 = vrot.slane %v3740, 4
      %v3743 = vshll.u32 %v3523, 16
      %v3745 = vrot.slane %v3743, 5
      %v3746 = vor.u32 %v3742, %v3745
      %v3747 = vrot.slane %v3746, 4
      %v3749 = vshll.u32 %v3524, 16
      %v3751 = vrot.slane %v3749, 5
      %v3752 = vsel %vm1056, %v3747, %v3751
      %v3753 = vshrl.u32 %v3524, 16
      %v3755 = vrot.slane %v3753, 4
      %v3756 = vor.u32 %v3755, %v3751
      %v3757 = vrot.slane %v3756, 4
      %v3759 = vshll.u32 %v3525, 16
      %v3761 = vrot.slane %v3759, 5
      %v3762 = vsel %vm1056, %v3757, %v3761
      %v3764 = vshrl.u32 %v3526, 16
      %v3766 = vrot.slane %v3764, 4
      %v3767 = vshll.u32 %v3526, 16
      %v3769 = vrot.slane %v3767, 5
      %v3770 = vor.u32 %v3766, %v3769
      %v3771 = vrot.slane %v3770, 4
      %v3773 = vshll.u32 %v3527, 16
      %v3775 = vrot.slane %v3773, 5
      %v3776 = vsel %vm1056, %v3771, %v3775
      %v3777 = vshrl.u32 %v3527, 16
      %v3779 = vrot.slane %v3777, 4
      %v3780 = vor.u32 %v3779, %v3775
      %v3781 = vrot.slane %v3780, 4
      %v3783 = vshll.u32 %v3528, 16
      %v3785 = vrot.slane %v3783, 5
      %v3786 = vsel %vm1056, %v3781, %v3785
      %v3788 = vshrl.u32 %v3529, 16
      %v3790 = vrot.slane %v3788, 4
      %v3791 = vshll.u32 %v3529, 16
      %v3793 = vrot.slane %v3791, 5
      %v3794 = vor.u32 %v3790, %v3793
      %v3795 = vrot.slane %v3794, 4
      %v3797 = vshll.u32 %v3530, 16
      %v3799 = vrot.slane %v3797, 5
      %v3800 = vsel %vm1056, %v3795, %v3799
      %v3801 = vshrl.u32 %v3530, 16
      %v3803 = vrot.slane %v3801, 4
      %v3804 = vor.u32 %v3803, %v3799
      %v3805 = vrot.slane %v3804, 4
      %v3807 = vshll.u32 %v3531, 16
      %v3809 = vrot.slane %v3807, 5
      %v3810 = vsel %vm1056, %v3805, %v3809
      %v3812 = vshrl.u32 %v3532, 16
      %v3814 = vrot.slane %v3812, 4
      %v3815 = vshll.u32 %v3532, 16
      %v3817 = vrot.slane %v3815, 5
      %v3818 = vor.u32 %v3814, %v3817
      %v3819 = vrot.slane %v3818, 4
      %v3821 = vshll.u32 %v3533, 16
      %v3823 = vrot.slane %v3821, 5
      %v3824 = vsel %vm1056, %v3819, %v3823
      %v3825 = vshrl.u32 %v3533, 16
      %v3827 = vrot.slane %v3825, 4
      %v3828 = vor.u32 %v3827, %v3823
      %v3829 = vrot.slane %v3828, 4
      %v3831 = vshll.u32 %v3534, 16
      %v3833 = vrot.slane %v3831, 5
      %v3834 = vsel %vm1056, %v3829, %v3833
      %v3836 = vshrl.u32 %v3535, 16
      %v3838 = vrot.slane %v3836, 4
      %v3839 = vshll.u32 %v3535, 16
      %v3841 = vrot.slane %v3839, 5
      %v3842 = vor.u32 %v3838, %v3841
      %v3843 = vrot.slane %v3842, 4
      %v3845 = vshll.u32 %v3536, 16
      %v3847 = vrot.slane %v3845, 5
      %v3848 = vsel %vm1056, %v3843, %v3847
      %v3849 = vshrl.u32 %v3536, 16
      %v3851 = vrot.slane %v3849, 4
      %v3852 = vor.u32 %v3851, %v3847
      %v3853 = vrot.slane %v3852, 4
      %v3855 = vshll.u32 %v3537, 16
      %v3857 = vrot.slane %v3855, 5
      %v3858 = vsel %vm1056, %v3853, %v3857
      %v3860 = vshrl.u32 %v3538, 16
      %v3862 = vrot.slane %v3860, 4
      %v3863 = vshll.u32 %v3538, 16
      %v3865 = vrot.slane %v3863, 5
      %v3866 = vor.u32 %v3862, %v3865
      %v3867 = vrot.slane %v3866, 4
      %v3869 = vshll.u32 %v3539, 16
      %v3871 = vrot.slane %v3869, 5
      %v3872 = vsel %vm1056, %v3867, %v3871
      %v3873 = vshrl.u32 %v3539, 16
      %v3875 = vrot.slane %v3873, 4
      %v3876 = vor.u32 %v3875, %v3871
      %v3877 = vrot.slane %v3876, 4
      %v3879 = vshll.u32 %v3540, 16
      %v3881 = vrot.slane %v3879, 5
      %v3882 = vsel %vm1056, %v3877, %v3881
      %v3884 = vshrl.u32 %v3541, 16
      %v3886 = vrot.slane %v3884, 4
      %v3887 = vshll.u32 %v3541, 16
      %v3889 = vrot.slane %v3887, 5
      %v3890 = vor.u32 %v3886, %v3889
      %v3891 = vrot.slane %v3890, 4
      %v3893 = vshll.u32 %v3542, 16
      %v3895 = vrot.slane %v3893, 5
      %v3896 = vsel %vm1056, %v3891, %v3895
      %v3897 = vshrl.u32 %v3542, 16
      %v3899 = vrot.slane %v3897, 4
      %v3900 = vor.u32 %v3899, %v3895
      %v3901 = vrot.slane %v3900, 4
      %v3903 = vshll.u32 %v3543, 16
      %v3905 = vrot.slane %v3903, 5
      %v3906 = vsel %vm1056, %v3901, %v3905
      %v3908 = vshrl.u32 %v3544, 16
      %v3910 = vrot.slane %v3908, 4
      %v3911 = vshll.u32 %v3544, 16
      %v3913 = vrot.slane %v3911, 5
      %v3914 = vor.u32 %v3910, %v3913
      %v3915 = vrot.slane %v3914, 4
      %v3917 = vshll.u32 %v3545, 16
      %v3919 = vrot.slane %v3917, 5
      %v3920 = vsel %vm1056, %v3915, %v3919
      %v3921 = vshrl.u32 %v3545, 16
      %v3923 = vrot.slane %v3921, 4
      %v3924 = vor.u32 %v3923, %v3919
      %v3925 = vrot.slane %v3924, 4
      %v3927 = vshll.u32 %v3546, 16
      %v3929 = vrot.slane %v3927, 5
      %v3930 = vsel %vm1056, %v3925, %v3929
      %v3979 = vrot.slane %v3499, 5
      %v3980 = vrot.slane %v3979, 4
      %v3981 = vrot.slane %v3500, 5
      %v3982 = vsel %vm1491, %v3980, %v3981
      %v3983 = vrot.slane %v3981, 4
      %v3984 = vrot.slane %v3501, 5
      %v3985 = vsel %vm1491, %v3983, %v3984
      %v3986 = vrot.slane %v3502, 5
      %v3987 = vrot.slane %v3986, 4
      %v3988 = vrot.slane %v3503, 5
      %v3989 = vsel %vm1491, %v3987, %v3988
      %v3990 = vrot.slane %v3988, 4
      %v3991 = vrot.slane %v3504, 5
      %v3992 = vsel %vm1491, %v3990, %v3991
      %v3993 = vrot.slane %v3505, 5
      %v3994 = vrot.slane %v3993, 4
      %v3995 = vrot.slane %v3506, 5
      %v3996 = vsel %vm1491, %v3994, %v3995
      %v3997 = vrot.slane %v3995, 4
      %v3998 = vrot.slane %v3507, 5
      %v3999 = vsel %vm1491, %v3997, %v3998
      %v4000 = vrot.slane %v3508, 5
      %v4001 = vrot.slane %v4000, 4
      %v4002 = vrot.slane %v3509, 5
      %v4003 = vsel %vm1491, %v4001, %v4002
      %v4004 = vrot.slane %v4002, 4
      %v4005 = vrot.slane %v3510, 5
      %v4006 = vsel %vm1491, %v4004, %v4005
      %v4007 = vrot.slane %v3511, 5
      %v4008 = vrot.slane %v4007, 4
      %v4009 = vrot.slane %v3512, 5
      %v4010 = vsel %vm1491, %v4008, %v4009
      %v4011 = vrot.slane %v4009, 4
      %v4012 = vrot.slane %v3513, 5
      %v4013 = vsel %vm1491, %v4011, %v4012
      %v4014 = vrot.slane %v3514, 5
      %v4015 = vrot.slane %v4014, 4
      %v4016 = vrot.slane %v3515, 5
      %v4017 = vsel %vm1491, %v4015, %v4016
      %v4018 = vrot.slane %v4016, 4
      %v4019 = vrot.slane %v3516, 5
      %v4020 = vsel %vm1491, %v4018, %v4019
      %v4021 = vrot.slane %v3517, 5
      %v4022 = vrot.slane %v4021, 4
      %v4023 = vrot.slane %v3518, 5
      %v4024 = vsel %vm1491, %v4022, %v4023
      %v4025 = vrot.slane %v4023, 4
      %v4026 = vrot.slane %v3519, 5
      %v4027 = vsel %vm1491, %v4025, %v4026
      %v4028 = vrot.slane %v3520, 5
      %v4029 = vrot.slane %v4028, 4
      %v4030 = vrot.slane %v3521, 5
      %v4031 = vsel %vm1491, %v4029, %v4030
      %v4032 = vrot.slane %v4030, 4
      %v4033 = vrot.slane %v3522, 5
      %v4034 = vsel %vm1491, %v4032, %v4033
      %v4035 = vrot.slane %v3523, 5
      %v4036 = vrot.slane %v4035, 4
      %v4037 = vrot.slane %v3524, 5
      %v4038 = vsel %vm1491, %v4036, %v4037
      %v4039 = vrot.slane %v4037, 4
      %v4040 = vrot.slane %v3525, 5
      %v4041 = vsel %vm1491, %v4039, %v4040
      %v4042 = vrot.slane %v3526, 5
      %v4043 = vrot.slane %v4042, 4
      %v4044 = vrot.slane %v3527, 5
      %v4045 = vsel %vm1491, %v4043, %v4044
      %v4046 = vrot.slane %v4044, 4
      %v4047 = vrot.slane %v3528, 5
      %v4048 = vsel %vm1491, %v4046, %v4047
      %v4049 = vrot.slane %v3529, 5
      %v4050 = vrot.slane %v4049, 4
      %v4051 = vrot.slane %v3530, 5
      %v4052 = vsel %vm1491, %v4050, %v4051
      %v4053 = vrot.slane %v4051, 4
      %v4054 = vrot.slane %v3531, 5
      %v4055 = vsel %vm1491, %v4053, %v4054
      %v4056 = vrot.slane %v3532, 5
      %v4057 = vrot.slane %v4056, 4
      %v4058 = vrot.slane %v3533, 5
      %v4059 = vsel %vm1491, %v4057, %v4058
      %v4060 = vrot.slane %v4058, 4
      %v4061 = vrot.slane %v3534, 5
      %v4062 = vsel %vm1491, %v4060, %v4061
      %v4063 = vrot.slane %v3535, 5
      %v4064 = vrot.slane %v4063, 4
      %v4065 = vrot.slane %v3536, 5
      %v4066 = vsel %vm1491, %v4064, %v4065
      %v4067 = vrot.slane %v4065, 4
      %v4068 = vrot.slane %v3537, 5
      %v4069 = vsel %vm1491, %v4067, %v4068
      %v4070 = vrot.slane %v3538, 5
      %v4071 = vrot.slane %v4070, 4
      %v4072 = vrot.slane %v3539, 5
      %v4073 = vsel %vm1491, %v4071, %v4072
      %v4074 = vrot.slane %v4072, 4
      %v4075 = vrot.slane %v3540, 5
      %v4076 = vsel %vm1491, %v4074, %v4075
      %v4077 = vrot.slane %v3541, 5
      %v4078 = vrot.slane %v4077, 4
      %v4079 = vrot.slane %v3542, 5
      %v4080 = vsel %vm1491, %v4078, %v4079
      %v4081 = vrot.slane %v4079, 4
      %v4082 = vrot.slane %v3543, 5
      %v4083 = vsel %vm1491, %v4081, %v4082
      %v4084 = vrot.slane %v3544, 5
      %v4085 = vrot.slane %v4084, 4
      %v4086 = vrot.slane %v3545, 5
      %v4087 = vsel %vm1491, %v4085, %v4086
      %v4088 = vrot.slane %v4086, 4
      %v4089 = vrot.slane %v3546, 5
      %v4090 = vsel %vm1491, %v4088, %v4089
      %v4091 = vunpack.c.l.b16 %v3499
      %v4092 = vunpack.c.l.b16 %v3500
      %v4093 = vunpack.c.l.b16 %v3502
      %v4094 = vunpack.c.l.b16 %v3503
      %v4095 = vunpack.c.l.b16 %v3505
      %v4096 = vunpack.c.l.b16 %v3506
      %v4097 = vunpack.c.l.b16 %v3508
      %v4098 = vunpack.c.l.b16 %v3509
      %v4099 = vunpack.c.l.b16 %v3511
      %v4100 = vunpack.c.l.b16 %v3512
      %v4101 = vunpack.c.l.b16 %v3514
      %v4102 = vunpack.c.l.b16 %v3515
      %v4103 = vunpack.c.l.b16 %v3517
      %v4104 = vunpack.c.l.b16 %v3518
      %v4105 = vunpack.c.l.b16 %v3520
      %v4106 = vunpack.c.l.b16 %v3521
      %v4107 = vunpack.c.l.b16 %v3523
      %v4108 = vunpack.c.l.b16 %v3524
      %v4109 = vunpack.c.l.b16 %v3526
      %v4110 = vunpack.c.l.b16 %v3527
      %v4111 = vunpack.c.l.b16 %v3529
      %v4112 = vunpack.c.l.b16 %v3530
      %v4113 = vunpack.c.l.b16 %v3532
      %v4114 = vunpack.c.l.b16 %v3533
      %v4115 = vunpack.c.l.b16 %v3535
      %v4116 = vunpack.c.l.b16 %v3536
      %v4117 = vunpack.c.l.b16 %v3538
      %v4118 = vunpack.c.l.b16 %v3539
      %v4119 = vunpack.c.l.b16 %v3541
      %v4120 = vunpack.c.l.b16 %v3542
      %v4121 = vunpack.c.l.b16 %v3544
      %v4122 = vunpack.c.l.b16 %v3545
      %v4123 = vpack.c.b16 %v4092, %v4091
      %v4124 = vpack.c.b16 %v4094, %v4093
      %v4125 = vpack.c.b16 %v4096, %v4095
      %v4126 = vpack.c.b16 %v4098, %v4097
      %v4127 = vpack.c.b16 %v4100, %v4099
      %v4128 = vpack.c.b16 %v4102, %v4101
      %v4129 = vpack.c.b16 %v4104, %v4103
      %v4130 = vpack.c.b16 %v4106, %v4105
      %v4131 = vpack.c.b16 %v4108, %v4107
      %v4132 = vpack.c.b16 %v4110, %v4109
      %v4133 = vpack.c.b16 %v4112, %v4111
      %v4134 = vpack.c.b16 %v4114, %v4113
      %v4135 = vpack.c.b16 %v4116, %v4115
      %v4136 = vpack.c.b16 %v4118, %v4117
      %v4137 = vpack.c.b16 %v4120, %v4119
      %v4138 = vpack.c.b16 %v4122, %v4121
      %v4155 = vunpack.c.l.b16 %v3560
      %v4156 = vunpack.c.l.b16 %v3570
      %v4157 = vunpack.c.l.b16 %v3584
      %v4158 = vunpack.c.l.b16 %v3594
      %v4159 = vunpack.c.l.b16 %v3608
      %v4160 = vunpack.c.l.b16 %v3618
      %v4161 = vunpack.c.l.b16 %v3632
      %v4162 = vunpack.c.l.b16 %v3642
      %v4163 = vunpack.c.l.b16 %v3656
      %v4164 = vunpack.c.l.b16 %v3666
      %v4165 = vunpack.c.l.b16 %v3680
      %v4166 = vunpack.c.l.b16 %v3690
      %v4167 = vunpack.c.l.b16 %v3704
      %v4168 = vunpack.c.l.b16 %v3714
      %v4169 = vunpack.c.l.b16 %v3728
      %v4170 = vunpack.c.l.b16 %v3738
      %v4171 = vunpack.c.l.b16 %v3752
      %v4172 = vunpack.c.l.b16 %v3762
      %v4173 = vunpack.c.l.b16 %v3776
      %v4174 = vunpack.c.l.b16 %v3786
      %v4175 = vunpack.c.l.b16 %v3800
      %v4176 = vunpack.c.l.b16 %v3810
      %v4177 = vunpack.c.l.b16 %v3824
      %v4178 = vunpack.c.l.b16 %v3834
      %v4179 = vunpack.c.l.b16 %v3848
      %v4180 = vunpack.c.l.b16 %v3858
      %v4181 = vunpack.c.l.b16 %v3872
      %v4182 = vunpack.c.l.b16 %v3882
      %v4183 = vunpack.c.l.b16 %v3896
      %v4184 = vunpack.c.l.b16 %v3906
      %v4185 = vunpack.c.l.b16 %v3920
      %v4186 = vunpack.c.l.b16 %v3930
      %v4187 = vpack.c.b16 %v4156, %v4155
      %v4188 = vpack.c.b16 %v4158, %v4157
      %v4189 = vpack.c.b16 %v4160, %v4159
      %v4190 = vpack.c.b16 %v4162, %v4161
      %v4191 = vpack.c.b16 %v4164, %v4163
      %v4192 = vpack.c.b16 %v4166, %v4165
      %v4193 = vpack.c.b16 %v4168, %v4167
      %v4194 = vpack.c.b16 %v4170, %v4169
      %v4195 = vpack.c.b16 %v4172, %v4171
      %v4196 = vpack.c.b16 %v4174, %v4173
      %v4197 = vpack.c.b16 %v4176, %v4175
      %v4198 = vpack.c.b16 %v4178, %v4177
      %v4199 = vpack.c.b16 %v4180, %v4179
      %v4200 = vpack.c.b16 %v4182, %v4181
      %v4201 = vpack.c.b16 %v4184, %v4183
      %v4202 = vpack.c.b16 %v4186, %v4185
      %v4219 = vunpack.c.l.b16 %v3982
      %v4220 = vunpack.c.l.b16 %v3985
      %v4221 = vunpack.c.l.b16 %v3989
      %v4222 = vunpack.c.l.b16 %v3992
      %v4223 = vunpack.c.l.b16 %v3996
      %v4224 = vunpack.c.l.b16 %v3999
      %v4225 = vunpack.c.l.b16 %v4003
      %v4226 = vunpack.c.l.b16 %v4006
      %v4227 = vunpack.c.l.b16 %v4010
      %v4228 = vunpack.c.l.b16 %v4013
      %v4229 = vunpack.c.l.b16 %v4017
      %v4230 = vunpack.c.l.b16 %v4020
      %v4231 = vunpack.c.l.b16 %v4024
      %v4232 = vunpack.c.l.b16 %v4027
      %v4233 = vunpack.c.l.b16 %v4031
      %v4234 = vunpack.c.l.b16 %v4034
      %v4235 = vunpack.c.l.b16 %v4038
      %v4236 = vunpack.c.l.b16 %v4041
      %v4237 = vunpack.c.l.b16 %v4045
      %v4238 = vunpack.c.l.b16 %v4048
      %v4239 = vunpack.c.l.b16 %v4052
      %v4240 = vunpack.c.l.b16 %v4055
      %v4241 = vunpack.c.l.b16 %v4059
      %v4242 = vunpack.c.l.b16 %v4062
      %v4243 = vunpack.c.l.b16 %v4066
      %v4244 = vunpack.c.l.b16 %v4069
      %v4245 = vunpack.c.l.b16 %v4073
      %v4246 = vunpack.c.l.b16 %v4076
      %v4247 = vunpack.c.l.b16 %v4080
      %v4248 = vunpack.c.l.b16 %v4083
      %v4249 = vunpack.c.l.b16 %v4087
      %v4250 = vunpack.c.l.b16 %v4090
      %v4251 = vpack.c.b16 %v4220, %v4219
      %v4252 = vpack.c.b16 %v4222, %v4221
      %v4253 = vpack.c.b16 %v4224, %v4223
      %v4254 = vpack.c.b16 %v4226, %v4225
      %v4255 = vpack.c.b16 %v4228, %v4227
      %v4256 = vpack.c.b16 %v4230, %v4229
      %v4257 = vpack.c.b16 %v4232, %v4231
      %v4258 = vpack.c.b16 %v4234, %v4233
      %v4259 = vpack.c.b16 %v4236, %v4235
      %v4260 = vpack.c.b16 %v4238, %v4237
      %v4261 = vpack.c.b16 %v4240, %v4239
      %v4262 = vpack.c.b16 %v4242, %v4241
      %v4263 = vpack.c.b16 %v4244, %v4243
      %v4264 = vpack.c.b16 %v4246, %v4245
      %v4265 = vpack.c.b16 %v4248, %v4247
      %v4266 = vpack.c.b16 %v4250, %v4249
      %v4283 = vld [vmem:[%s5 + $0x180] sm:$0xf]
      %v4284 = vld [vmem:[%s5 + $0x184] sm:$0xf]
      %v4285 = vld [vmem:[%s5 + $0x188] sm:$0xf]
      %v4286 = vld [vmem:[%s5 + $0x18c] sm:$0xf]
      %v4287 = vld [vmem:[%s5 + $0x190] sm:$0xf]
      %v4288 = vld [vmem:[%s5 + $0x194] sm:$0xf]
      %v4289 = vld [vmem:[%s5 + $0x198] sm:$0xf]
      %v4290 = vld [vmem:[%s5 + $0x19c] sm:$0xf]
      %v4291 = vld [vmem:[%s5 + $0x1a0] sm:$0xf]
      %v4292 = vld [vmem:[%s5 + $0x1a4] sm:$0xf]
      %v4293 = vld [vmem:[%s5 + $0x1a8] sm:$0xf]
      %v4294 = vld [vmem:[%s5 + $0x1ac] sm:$0xf]
      %v4295 = vld [vmem:[%s5 + $0x1b0] sm:$0xf]
      %v4296 = vld [vmem:[%s5 + $0x1b4] sm:$0xf]
      %v4297 = vld [vmem:[%s5 + $0x1b8] sm:$0xf]
      %v4298 = vld [vmem:[%s5 + $0x1bc] sm:$0xf]
      %v4299 = vld [vmem:[%s5 + $0x1c0] sm:$0xf]
      %v4300 = vld [vmem:[%s5 + $0x1c4] sm:$0xf]
      %v4301 = vld [vmem:[%s5 + $0x1c8] sm:$0xf]
      %v4302 = vld [vmem:[%s5 + $0x1cc] sm:$0xf]
      %v4303 = vld [vmem:[%s5 + $0x1d0] sm:$0xf]
      %v4304 = vld [vmem:[%s5 + $0x1d4] sm:$0xf]
      %v4305 = vld [vmem:[%s5 + $0x1d8] sm:$0xf]
      %v4306 = vld [vmem:[%s5 + $0x1dc] sm:$0xf]
      %v4307 = vld [vmem:[%s5 + $0x1e0] sm:$0xf]
      %v4308 = vld [vmem:[%s5 + $0x1e4] sm:$0xf]
      %v4309 = vld [vmem:[%s5 + $0x1e8] sm:$0xf]
      %v4310 = vld [vmem:[%s5 + $0x1ec] sm:$0xf]
      %v4311 = vld [vmem:[%s5 + $0x1f0] sm:$0xf]
      %v4312 = vld [vmem:[%s5 + $0x1f4] sm:$0xf]
      %v4313 = vld [vmem:[%s5 + $0x1f8] sm:$0xf]
      %v4314 = vld [vmem:[%s5 + $0x1fc] sm:$0xf]
      %v4315 = vld [vmem:[%s5 + $0x200] sm:$0xf]
      %v4316 = vld [vmem:[%s5 + $0x204] sm:$0xf]
      %v4317 = vld [vmem:[%s5 + $0x208] sm:$0xf]
      %v4318 = vld [vmem:[%s5 + $0x20c] sm:$0xf]
      %v4319 = vld [vmem:[%s5 + $0x210] sm:$0xf]
      %v4320 = vld [vmem:[%s5 + $0x214] sm:$0xf]
      %v4321 = vld [vmem:[%s5 + $0x218] sm:$0xf]
      %v4322 = vld [vmem:[%s5 + $0x21c] sm:$0xf]
      %v4323 = vld [vmem:[%s5 + $0x220] sm:$0xf]
      %v4324 = vld [vmem:[%s5 + $0x224] sm:$0xf]
      %v4325 = vld [vmem:[%s5 + $0x228] sm:$0xf]
      %v4326 = vld [vmem:[%s5 + $0x22c] sm:$0xf]
      %v4327 = vld [vmem:[%s5 + $0x230] sm:$0xf]
      %v4328 = vld [vmem:[%s5 + $0x234] sm:$0xf]
      %v4329 = vld [vmem:[%s5 + $0x238] sm:$0xf]
      %v4330 = vld [vmem:[%s5 + $0x23c] sm:$0xf]
      %v4379 = vunpack.c.l.b16 %v4283
      %v4380 = vunpack.c.l.b16 %v4284
      %v4381 = vunpack.c.l.b16 %v4285
      %v4382 = vunpack.c.l.b16 %v4286
      %v4383 = vunpack.c.l.b16 %v4287
      %v4384 = vunpack.c.l.b16 %v4288
      %v4385 = vunpack.c.l.b16 %v4289
      %v4386 = vunpack.c.l.b16 %v4290
      %v4387 = vunpack.c.l.b16 %v4291
      %v4388 = vunpack.c.l.b16 %v4292
      %v4389 = vunpack.c.l.b16 %v4293
      %v4390 = vunpack.c.l.b16 %v4294
      %v4391 = vunpack.c.l.b16 %v4295
      %v4392 = vunpack.c.l.b16 %v4296
      %v4393 = vunpack.c.l.b16 %v4297
      %v4394 = vunpack.c.l.b16 %v4298
      %v4395 = vunpack.c.l.b16 %v4299
      %v4396 = vunpack.c.l.b16 %v4300
      %v4397 = vunpack.c.l.b16 %v4301
      %v4398 = vunpack.c.l.b16 %v4302
      %v4399 = vunpack.c.l.b16 %v4303
      %v4400 = vunpack.c.l.b16 %v4304
      %v4401 = vunpack.c.l.b16 %v4305
      %v4402 = vunpack.c.l.b16 %v4306
      %v4403 = vunpack.c.l.b16 %v4307
      %v4404 = vunpack.c.l.b16 %v4308
      %v4405 = vunpack.c.l.b16 %v4309
      %v4406 = vunpack.c.l.b16 %v4310
      %v4407 = vunpack.c.l.b16 %v4311
      %v4408 = vunpack.c.l.b16 %v4312
      %v4409 = vunpack.c.l.b16 %v4313
      %v4410 = vunpack.c.l.b16 %v4314
      %v4411 = vunpack.c.l.b16 %v4315
      %v4412 = vunpack.c.l.b16 %v4316
      %v4413 = vunpack.c.l.b16 %v4317
      %v4414 = vunpack.c.l.b16 %v4318
      %v4415 = vunpack.c.l.b16 %v4319
      %v4416 = vunpack.c.l.b16 %v4320
      %v4417 = vunpack.c.l.b16 %v4321
      %v4418 = vunpack.c.l.b16 %v4322
      %v4419 = vunpack.c.l.b16 %v4323
      %v4420 = vunpack.c.l.b16 %v4324
      %v4421 = vunpack.c.l.b16 %v4325
      %v4422 = vunpack.c.l.b16 %v4326
      %v4423 = vunpack.c.l.b16 %v4327
      %v4424 = vunpack.c.l.b16 %v4328
      %v4425 = vunpack.c.l.b16 %v4329
      %v4426 = vunpack.c.l.b16 %v4330
      %v4427 = vpack.c.b16 %v4380, %v4379
      %v4428 = vpack.c.b16 %v4382, %v4381
      %v4429 = vpack.c.b16 %v4384, %v4383
      %v4430 = vpack.c.b16 %v4386, %v4385
      %v4431 = vpack.c.b16 %v4388, %v4387
      %v4432 = vpack.c.b16 %v4390, %v4389
      %v4433 = vpack.c.b16 %v4392, %v4391
      %v4434 = vpack.c.b16 %v4394, %v4393
      %v4435 = vpack.c.b16 %v4396, %v4395
      %v4436 = vpack.c.b16 %v4398, %v4397
      %v4437 = vpack.c.b16 %v4400, %v4399
      %v4438 = vpack.c.b16 %v4402, %v4401
      %v4439 = vpack.c.b16 %v4404, %v4403
      %v4440 = vpack.c.b16 %v4406, %v4405
      %v4441 = vpack.c.b16 %v4408, %v4407
      %v4442 = vpack.c.b16 %v4410, %v4409
      %v4443 = vpack.c.b16 %v4412, %v4411
      %v4444 = vpack.c.b16 %v4414, %v4413
      %v4445 = vpack.c.b16 %v4416, %v4415
      %v4446 = vpack.c.b16 %v4418, %v4417
      %v4447 = vpack.c.b16 %v4420, %v4419
      %v4448 = vpack.c.b16 %v4422, %v4421
      %v4449 = vpack.c.b16 %v4424, %v4423
      %v4450 = vpack.c.b16 %v4426, %v4425
      %4475 = vmatpush.bf16.msra.mxu0 %v4434
      %4476 = vmatpush.bf16.msra.mxu0 %v4433
      %4477 = vmatpush.bf16.msra.mxu0 %v4432
      %4478 = vmatpush.bf16.msra.mxu0 %v4431
      %4479 = vmatpush.bf16.msra.mxu0 %v4430
      %4480 = vmatpush.bf16.msra.mxu0 %v4429
      %4481 = vmatpush.bf16.msra.mxu0 %v4428
      %4482 = vmatpush.bf16.msra.mxu0 %v4427
      %4483 = vmatmul.bf16.gmra.mxu0 %v4123
      %v4484 = vpop.f32.mrf.mxu0
      %v4485 = vadd.f32 0.0, %v4484
      %v4486 = vpop.f32.mrf.mxu0
      %v4487 = vadd.f32 0.0, %v4486
      %4488 = vmatmul.bf16.gmra.mxu0 %v4124
      %v4489 = vpop.f32.mrf.mxu0
      %v4490 = vadd.f32 0.0, %v4489
      %v4491 = vpop.f32.mrf.mxu0
      %v4492 = vadd.f32 0.0, %v4491
      %4493 = vmatmul.bf16.gmra.mxu0 %v4125
      %v4494 = vpop.f32.mrf.mxu0
      %v4495 = vadd.f32 0.0, %v4494
      %v4496 = vpop.f32.mrf.mxu0
      %v4497 = vadd.f32 0.0, %v4496
      %4498 = vmatmul.bf16.gmra.mxu0 %v4126
      %v4499 = vpop.f32.mrf.mxu0
      %v4500 = vadd.f32 0.0, %v4499
      %v4501 = vpop.f32.mrf.mxu0
      %v4502 = vadd.f32 0.0, %v4501
      %4503 = vmatmul.bf16.gmra.mxu0 %v4127
      %v4504 = vpop.f32.mrf.mxu0
      %v4505 = vadd.f32 0.0, %v4504
      %v4506 = vpop.f32.mrf.mxu0
      %v4507 = vadd.f32 0.0, %v4506
      %4508 = vmatmul.bf16.gmra.mxu0 %v4128
      %v4509 = vpop.f32.mrf.mxu0
      %v4510 = vadd.f32 0.0, %v4509
      %v4511 = vpop.f32.mrf.mxu0
      %v4512 = vadd.f32 0.0, %v4511
      %4513 = vmatmul.bf16.gmra.mxu0 %v4129
      %v4514 = vpop.f32.mrf.mxu0
      %v4515 = vadd.f32 0.0, %v4514
      %v4516 = vpop.f32.mrf.mxu0
      %v4517 = vadd.f32 0.0, %v4516
      %4518 = vmatmul.bf16.gmra.mxu0 %v4130
      %v4519 = vpop.f32.mrf.mxu0
      %v4520 = vadd.f32 0.0, %v4519
      %v4521 = vpop.f32.mrf.mxu0
      %v4522 = vadd.f32 0.0, %v4521
      %4523 = vmatmul.bf16.gmra.mxu0 %v4131
      %v4524 = vpop.f32.mrf.mxu0
      %v4525 = vadd.f32 0.0, %v4524
      %v4526 = vpop.f32.mrf.mxu0
      %v4527 = vadd.f32 0.0, %v4526
      %4528 = vmatmul.bf16.gmra.mxu0 %v4132
      %v4529 = vpop.f32.mrf.mxu0
      %v4530 = vadd.f32 0.0, %v4529
      %v4531 = vpop.f32.mrf.mxu0
      %v4532 = vadd.f32 0.0, %v4531
      %4533 = vmatmul.bf16.gmra.mxu0 %v4133
      %v4534 = vpop.f32.mrf.mxu0
      %v4535 = vadd.f32 0.0, %v4534
      %v4536 = vpop.f32.mrf.mxu0
      %v4537 = vadd.f32 0.0, %v4536
      %4538 = vmatmul.bf16.gmra.mxu0 %v4134
      %v4539 = vpop.f32.mrf.mxu0
      %v4540 = vadd.f32 0.0, %v4539
      %v4541 = vpop.f32.mrf.mxu0
      %v4542 = vadd.f32 0.0, %v4541
      %4543 = vmatmul.bf16.gmra.mxu0 %v4135
      %v4544 = vpop.f32.mrf.mxu0
      %v4545 = vadd.f32 0.0, %v4544
      %v4546 = vpop.f32.mrf.mxu0
      %v4547 = vadd.f32 0.0, %v4546
      %4548 = vmatmul.bf16.gmra.mxu0 %v4136
      %v4549 = vpop.f32.mrf.mxu0
      %v4550 = vadd.f32 0.0, %v4549
      %v4551 = vpop.f32.mrf.mxu0
      %v4552 = vadd.f32 0.0, %v4551
      %4553 = vmatmul.bf16.gmra.mxu0 %v4137
      %v4554 = vpop.f32.mrf.mxu0
      %v4555 = vadd.f32 0.0, %v4554
      %v4556 = vpop.f32.mrf.mxu0
      %v4557 = vadd.f32 0.0, %v4556
      %4558 = vmatmul.bf16.gmra.mxu0 %v4138
      %v4559 = vpop.f32.mrf.mxu0
      %v4560 = vadd.f32 0.0, %v4559
      %v4561 = vpop.f32.mrf.mxu0
      %v4562 = vadd.f32 0.0, %v4561
      %4563 = vdwg.mxu0
      %4564 = vmatpush.bf16.msra.mxu0 %v4442
      %4565 = vmatpush.bf16.msra.mxu0 %v4441
      %4566 = vmatpush.bf16.msra.mxu0 %v4440
      %4567 = vmatpush.bf16.msra.mxu0 %v4439
      %4568 = vmatpush.bf16.msra.mxu0 %v4438
      %4569 = vmatpush.bf16.msra.mxu0 %v4437
      %4570 = vmatpush.bf16.msra.mxu0 %v4436
      %4571 = vmatpush.bf16.msra.mxu0 %v4435
      %4572 = vmatmul.bf16.gmra.mxu0 %v4187
      %v4573 = vpop.f32.mrf.mxu0
      %v4574 = vadd.f32 %v4485, %v4573
      %v4575 = vpop.f32.mrf.mxu0
      %v4576 = vadd.f32 %v4487, %v4575
      %4577 = vmatmul.bf16.gmra.mxu0 %v4188
      %v4578 = vpop.f32.mrf.mxu0
      %v4579 = vadd.f32 %v4490, %v4578
      %v4580 = vpop.f32.mrf.mxu0
      %v4581 = vadd.f32 %v4492, %v4580
      %4582 = vmatmul.bf16.gmra.mxu0 %v4189
      %v4583 = vpop.f32.mrf.mxu0
      %v4584 = vadd.f32 %v4495, %v4583
      %v4585 = vpop.f32.mrf.mxu0
      %v4586 = vadd.f32 %v4497, %v4585
      %4587 = vmatmul.bf16.gmra.mxu0 %v4190
      %v4588 = vpop.f32.mrf.mxu0
      %v4589 = vadd.f32 %v4500, %v4588
      %v4590 = vpop.f32.mrf.mxu0
      %v4591 = vadd.f32 %v4502, %v4590
      %4592 = vmatmul.bf16.gmra.mxu0 %v4191
      %v4593 = vpop.f32.mrf.mxu0
      %v4594 = vadd.f32 %v4505, %v4593
      %v4595 = vpop.f32.mrf.mxu0
      %v4596 = vadd.f32 %v4507, %v4595
      %4597 = vmatmul.bf16.gmra.mxu0 %v4192
      %v4598 = vpop.f32.mrf.mxu0
      %v4599 = vadd.f32 %v4510, %v4598
      %v4600 = vpop.f32.mrf.mxu0
      %v4601 = vadd.f32 %v4512, %v4600
      %4602 = vmatmul.bf16.gmra.mxu0 %v4193
      %v4603 = vpop.f32.mrf.mxu0
      %v4604 = vadd.f32 %v4515, %v4603
      %v4605 = vpop.f32.mrf.mxu0
      %v4606 = vadd.f32 %v4517, %v4605
      %4607 = vmatmul.bf16.gmra.mxu0 %v4194
      %v4608 = vpop.f32.mrf.mxu0
      %v4609 = vadd.f32 %v4520, %v4608
      %v4610 = vpop.f32.mrf.mxu0
      %v4611 = vadd.f32 %v4522, %v4610
      %4612 = vmatmul.bf16.gmra.mxu0 %v4195
      %v4613 = vpop.f32.mrf.mxu0
      %v4614 = vadd.f32 %v4525, %v4613
      %v4615 = vpop.f32.mrf.mxu0
      %v4616 = vadd.f32 %v4527, %v4615
      %4617 = vmatmul.bf16.gmra.mxu0 %v4196
      %v4618 = vpop.f32.mrf.mxu0
      %v4619 = vadd.f32 %v4530, %v4618
      %v4620 = vpop.f32.mrf.mxu0
      %v4621 = vadd.f32 %v4532, %v4620
      %4622 = vmatmul.bf16.gmra.mxu0 %v4197
      %v4623 = vpop.f32.mrf.mxu0
      %v4624 = vadd.f32 %v4535, %v4623
      %v4625 = vpop.f32.mrf.mxu0
      %v4626 = vadd.f32 %v4537, %v4625
      %4627 = vmatmul.bf16.gmra.mxu0 %v4198
      %v4628 = vpop.f32.mrf.mxu0
      %v4629 = vadd.f32 %v4540, %v4628
      %v4630 = vpop.f32.mrf.mxu0
      %v4631 = vadd.f32 %v4542, %v4630
      %4632 = vmatmul.bf16.gmra.mxu0 %v4199
      %v4633 = vpop.f32.mrf.mxu0
      %v4634 = vadd.f32 %v4545, %v4633
      %v4635 = vpop.f32.mrf.mxu0
      %v4636 = vadd.f32 %v4547, %v4635
      %4637 = vmatmul.bf16.gmra.mxu0 %v4200
      %v4638 = vpop.f32.mrf.mxu0
      %v4639 = vadd.f32 %v4550, %v4638
      %v4640 = vpop.f32.mrf.mxu0
      %v4641 = vadd.f32 %v4552, %v4640
      %4642 = vmatmul.bf16.gmra.mxu0 %v4201
      %v4643 = vpop.f32.mrf.mxu0
      %v4644 = vadd.f32 %v4555, %v4643
      %v4645 = vpop.f32.mrf.mxu0
      %v4646 = vadd.f32 %v4557, %v4645
      %4647 = vmatmul.bf16.gmra.mxu0 %v4202
      %v4648 = vpop.f32.mrf.mxu0
      %v4649 = vadd.f32 %v4560, %v4648
      %v4650 = vpop.f32.mrf.mxu0
      %v4651 = vadd.f32 %v4562, %v4650
      %4652 = vdwg.mxu0
      %4653 = vmatpush.bf16.msra.mxu0 %v4450
      %4654 = vmatpush.bf16.msra.mxu0 %v4449
      %4655 = vmatpush.bf16.msra.mxu0 %v4448
      %4656 = vmatpush.bf16.msra.mxu0 %v4447
      %4657 = vmatpush.bf16.msra.mxu0 %v4446
      %4658 = vmatpush.bf16.msra.mxu0 %v4445
      %4659 = vmatpush.bf16.msra.mxu0 %v4444
      %4660 = vmatpush.bf16.msra.mxu0 %v4443
      %4661 = vmatmul.bf16.gmra.mxu0 %v4251
      %v4662 = vpop.f32.mrf.mxu0
      %v4663 = vadd.f32 %v4574, %v4662
      %v4664 = vpop.f32.mrf.mxu0
      %v4665 = vadd.f32 %v4576, %v4664
      %4666 = vmatmul.bf16.gmra.mxu0 %v4252
      %v4667 = vpop.f32.mrf.mxu0
      %v4668 = vadd.f32 %v4579, %v4667
      %v4669 = vpop.f32.mrf.mxu0
      %v4670 = vadd.f32 %v4581, %v4669
      %4671 = vmatmul.bf16.gmra.mxu0 %v4253
      %v4672 = vpop.f32.mrf.mxu0
      %v4673 = vadd.f32 %v4584, %v4672
      %v4674 = vpop.f32.mrf.mxu0
      %v4675 = vadd.f32 %v4586, %v4674
      %4676 = vmatmul.bf16.gmra.mxu0 %v4254
      %v4677 = vpop.f32.mrf.mxu0
      %v4678 = vadd.f32 %v4589, %v4677
      %v4679 = vpop.f32.mrf.mxu0
      %v4680 = vadd.f32 %v4591, %v4679
      %4681 = vmatmul.bf16.gmra.mxu0 %v4255
      %v4682 = vpop.f32.mrf.mxu0
      %v4683 = vadd.f32 %v4594, %v4682
      %v4684 = vpop.f32.mrf.mxu0
      %v4685 = vadd.f32 %v4596, %v4684
      %4686 = vmatmul.bf16.gmra.mxu0 %v4256
      %v4687 = vpop.f32.mrf.mxu0
      %v4688 = vadd.f32 %v4599, %v4687
      %v4689 = vpop.f32.mrf.mxu0
      %v4690 = vadd.f32 %v4601, %v4689
      %4691 = vmatmul.bf16.gmra.mxu0 %v4257
      %v4692 = vpop.f32.mrf.mxu0
      %v4693 = vadd.f32 %v4604, %v4692
      %v4694 = vpop.f32.mrf.mxu0
      %v4695 = vadd.f32 %v4606, %v4694
      %4696 = vmatmul.bf16.gmra.mxu0 %v4258
      %v4697 = vpop.f32.mrf.mxu0
      %v4698 = vadd.f32 %v4609, %v4697
      %v4699 = vpop.f32.mrf.mxu0
      %v4700 = vadd.f32 %v4611, %v4699
      %4701 = vmatmul.bf16.gmra.mxu0 %v4259
      %v4702 = vpop.f32.mrf.mxu0
      %v4703 = vadd.f32 %v4614, %v4702
      %v4704 = vpop.f32.mrf.mxu0
      %v4705 = vadd.f32 %v4616, %v4704
      %4706 = vmatmul.bf16.gmra.mxu0 %v4260
      %v4707 = vpop.f32.mrf.mxu0
      %v4708 = vadd.f32 %v4619, %v4707
      %v4709 = vpop.f32.mrf.mxu0
      %v4710 = vadd.f32 %v4621, %v4709
      %4711 = vmatmul.bf16.gmra.mxu0 %v4261
      %v4712 = vpop.f32.mrf.mxu0
      %v4713 = vadd.f32 %v4624, %v4712
      %v4714 = vpop.f32.mrf.mxu0
      %v4715 = vadd.f32 %v4626, %v4714
      %4716 = vmatmul.bf16.gmra.mxu0 %v4262
      %v4717 = vpop.f32.mrf.mxu0
      %v4718 = vadd.f32 %v4629, %v4717
      %v4719 = vpop.f32.mrf.mxu0
      %v4720 = vadd.f32 %v4631, %v4719
      %4721 = vmatmul.bf16.gmra.mxu0 %v4263
      %v4722 = vpop.f32.mrf.mxu0
      %v4723 = vadd.f32 %v4634, %v4722
      %v4724 = vpop.f32.mrf.mxu0
      %v4725 = vadd.f32 %v4636, %v4724
      %4726 = vmatmul.bf16.gmra.mxu0 %v4264
      %v4727 = vpop.f32.mrf.mxu0
      %v4728 = vadd.f32 %v4639, %v4727
      %v4729 = vpop.f32.mrf.mxu0
      %v4730 = vadd.f32 %v4641, %v4729
      %4731 = vmatmul.bf16.gmra.mxu0 %v4265
      %v4732 = vpop.f32.mrf.mxu0
      %v4733 = vadd.f32 %v4644, %v4732
      %v4734 = vpop.f32.mrf.mxu0
      %v4735 = vadd.f32 %v4646, %v4734
      %4736 = vmatmul.bf16.gmra.mxu0 %v4266
      %v4737 = vpop.f32.mrf.mxu0
      %v4738 = vadd.f32 %v4649, %v4737
      %v4739 = vpop.f32.mrf.mxu0
      %v4740 = vadd.f32 %v4651, %v4739
      %4741 = vdwg.mxu0
      %v4742 = vadd.f32 %v3419, %v4663
      %v4743 = vadd.f32 %v3421, %v4665
      %v4744 = vadd.f32 %v3424, %v4668
      %v4745 = vadd.f32 %v3426, %v4670
      %v4746 = vadd.f32 %v3429, %v4673
      %v4747 = vadd.f32 %v3431, %v4675
      %v4748 = vadd.f32 %v3434, %v4678
      %v4749 = vadd.f32 %v3436, %v4680
      %v4750 = vadd.f32 %v3439, %v4683
      %v4751 = vadd.f32 %v3441, %v4685
      %v4752 = vadd.f32 %v3444, %v4688
      %v4753 = vadd.f32 %v3446, %v4690
      %v4754 = vadd.f32 %v3449, %v4693
      %v4755 = vadd.f32 %v3451, %v4695
      %v4756 = vadd.f32 %v3454, %v4698
      %v4757 = vadd.f32 %v3456, %v4700
      %v4758 = vadd.f32 %v3459, %v4703
      %v4759 = vadd.f32 %v3461, %v4705
      %v4760 = vadd.f32 %v3464, %v4708
      %v4761 = vadd.f32 %v3466, %v4710
      %v4762 = vadd.f32 %v3469, %v4713
      %v4763 = vadd.f32 %v3471, %v4715
      %v4764 = vadd.f32 %v3474, %v4718
      %v4765 = vadd.f32 %v3476, %v4720
      %v4766 = vadd.f32 %v3479, %v4723
      %v4767 = vadd.f32 %v3481, %v4725
      %v4768 = vadd.f32 %v3484, %v4728
      %v4769 = vadd.f32 %v3486, %v4730
      %v4770 = vadd.f32 %v3489, %v4733
      %v4771 = vadd.f32 %v3491, %v4735
      %v4772 = vadd.f32 %v3494, %v4738
      %v4773 = vadd.f32 %v3496, %v4740
      %v4774 = vpack.c.bf16 %v4742, %v4742
      %v4775 = vpack.c.bf16 %v4743, %v4743
      %v4776 = vpack.c.bf16 %v4744, %v4744
      %v4777 = vpack.c.bf16 %v4745, %v4745
      %v4778 = vpack.c.bf16 %v4746, %v4746
      %v4779 = vpack.c.bf16 %v4747, %v4747
      %v4780 = vpack.c.bf16 %v4748, %v4748
      %v4781 = vpack.c.bf16 %v4749, %v4749
      %v4782 = vpack.c.bf16 %v4750, %v4750
      %v4783 = vpack.c.bf16 %v4751, %v4751
      %v4784 = vpack.c.bf16 %v4752, %v4752
      %v4785 = vpack.c.bf16 %v4753, %v4753
      %v4786 = vpack.c.bf16 %v4754, %v4754
      %v4787 = vpack.c.bf16 %v4755, %v4755
      %v4788 = vpack.c.bf16 %v4756, %v4756
      %v4789 = vpack.c.bf16 %v4757, %v4757
      %v4790 = vpack.c.bf16 %v4758, %v4758
      %v4791 = vpack.c.bf16 %v4759, %v4759
      %v4792 = vpack.c.bf16 %v4760, %v4760
      %v4793 = vpack.c.bf16 %v4761, %v4761
      %v4794 = vpack.c.bf16 %v4762, %v4762
      %v4795 = vpack.c.bf16 %v4763, %v4763
      %v4796 = vpack.c.bf16 %v4764, %v4764
      %v4797 = vpack.c.bf16 %v4765, %v4765
      %v4798 = vpack.c.bf16 %v4766, %v4766
      %v4799 = vpack.c.bf16 %v4767, %v4767
      %v4800 = vpack.c.bf16 %v4768, %v4768
      %v4801 = vpack.c.bf16 %v4769, %v4769
      %v4802 = vpack.c.bf16 %v4770, %v4770
      %v4803 = vpack.c.bf16 %v4771, %v4771
      %v4804 = vpack.c.bf16 %v4772, %v4772
      %v4805 = vpack.c.bf16 %v4773, %v4773
      %vm4806 = vsmask.f32 4368
      %vm4807 = vmor %vm894, %vm4806
      %v4809 = vshrl.u32 %v4774, 16
      %v4811 = vrot.slane %v4809, 7
      %v4812 = vshll.u32 %v4774, 16
      %v4814 = vor.u32 %v4811, %v4812
      %v4815 = vrot.slane %v4811, 4
      %v4817 = vshrl.u32 %v4775, 16
      %v4819 = vrot.slane %v4817, 7
      %v4820 = vshll.u32 %v4775, 16
      %v4822 = vor.u32 %v4819, %v4820
      %v4823 = vsel %vm4807, %v4815, %v4822
      %v4824 = vrot.slane %v4819, 4
      %v4826 = vshrl.u32 %v4776, 16
      %v4828 = vrot.slane %v4826, 7
      %v4829 = vshll.u32 %v4776, 16
      %v4831 = vor.u32 %v4828, %v4829
      %v4832 = vrot.slane %v4828, 4
      %v4834 = vshrl.u32 %v4777, 16
      %v4836 = vrot.slane %v4834, 7
      %v4837 = vshll.u32 %v4777, 16
      %v4839 = vor.u32 %v4836, %v4837
      %v4840 = vsel %vm4807, %v4832, %v4839
      %v4841 = vrot.slane %v4836, 4
      %v4843 = vshrl.u32 %v4778, 16
      %v4845 = vrot.slane %v4843, 7
      %v4846 = vshll.u32 %v4778, 16
      %v4848 = vor.u32 %v4845, %v4846
      %v4849 = vrot.slane %v4845, 4
      %v4851 = vshrl.u32 %v4779, 16
      %v4853 = vrot.slane %v4851, 7
      %v4854 = vshll.u32 %v4779, 16
      %v4856 = vor.u32 %v4853, %v4854
      %v4857 = vsel %vm4807, %v4849, %v4856
      %v4858 = vrot.slane %v4853, 4
      %v4860 = vshrl.u32 %v4780, 16
      %v4862 = vrot.slane %v4860, 7
      %v4863 = vshll.u32 %v4780, 16
      %v4865 = vor.u32 %v4862, %v4863
      %v4866 = vrot.slane %v4862, 4
      %v4868 = vshrl.u32 %v4781, 16
      %v4870 = vrot.slane %v4868, 7
      %v4871 = vshll.u32 %v4781, 16
      %v4873 = vor.u32 %v4870, %v4871
      %v4874 = vsel %vm4807, %v4866, %v4873
      %v4875 = vrot.slane %v4870, 4
      %v4877 = vshrl.u32 %v4782, 16
      %v4879 = vrot.slane %v4877, 7
      %v4880 = vshll.u32 %v4782, 16
      %v4882 = vor.u32 %v4879, %v4880
      %v4883 = vrot.slane %v4879, 4
      %v4885 = vshrl.u32 %v4783, 16
      %v4887 = vrot.slane %v4885, 7
      %v4888 = vshll.u32 %v4783, 16
      %v4890 = vor.u32 %v4887, %v4888
      %v4891 = vsel %vm4807, %v4883, %v4890
      %v4892 = vrot.slane %v4887, 4
      %v4894 = vshrl.u32 %v4784, 16
      %v4896 = vrot.slane %v4894, 7
      %v4897 = vshll.u32 %v4784, 16
      %v4899 = vor.u32 %v4896, %v4897
      %v4900 = vrot.slane %v4896, 4
      %v4902 = vshrl.u32 %v4785, 16
      %v4904 = vrot.slane %v4902, 7
      %v4905 = vshll.u32 %v4785, 16
      %v4907 = vor.u32 %v4904, %v4905
      %v4908 = vsel %vm4807, %v4900, %v4907
      %v4909 = vrot.slane %v4904, 4
      %v4911 = vshrl.u32 %v4786, 16
      %v4913 = vrot.slane %v4911, 7
      %v4914 = vshll.u32 %v4786, 16
      %v4916 = vor.u32 %v4913, %v4914
      %v4917 = vrot.slane %v4913, 4
      %v4919 = vshrl.u32 %v4787, 16
      %v4921 = vrot.slane %v4919, 7
      %v4922 = vshll.u32 %v4787, 16
      %v4924 = vor.u32 %v4921, %v4922
      %v4925 = vsel %vm4807, %v4917, %v4924
      %v4926 = vrot.slane %v4921, 4
      %v4928 = vshrl.u32 %v4788, 16
      %v4930 = vrot.slane %v4928, 7
      %v4931 = vshll.u32 %v4788, 16
      %v4933 = vor.u32 %v4930, %v4931
      %v4934 = vrot.slane %v4930, 4
      %v4936 = vshrl.u32 %v4789, 16
      %v4938 = vrot.slane %v4936, 7
      %v4939 = vshll.u32 %v4789, 16
      %v4941 = vor.u32 %v4938, %v4939
      %v4942 = vsel %vm4807, %v4934, %v4941
      %v4943 = vrot.slane %v4938, 4
      %v4945 = vshrl.u32 %v4790, 16
      %v4947 = vrot.slane %v4945, 7
      %v4948 = vshll.u32 %v4790, 16
      %v4950 = vor.u32 %v4947, %v4948
      %v4951 = vrot.slane %v4947, 4
      %v4953 = vshrl.u32 %v4791, 16
      %v4955 = vrot.slane %v4953, 7
      %v4956 = vshll.u32 %v4791, 16
      %v4958 = vor.u32 %v4955, %v4956
      %v4959 = vsel %vm4807, %v4951, %v4958
      %v4960 = vrot.slane %v4955, 4
      %v4962 = vshrl.u32 %v4792, 16
      %v4964 = vrot.slane %v4962, 7
      %v4965 = vshll.u32 %v4792, 16
      %v4967 = vor.u32 %v4964, %v4965
      %v4968 = vrot.slane %v4964, 4
      %v4970 = vshrl.u32 %v4793, 16
      %v4972 = vrot.slane %v4970, 7
      %v4973 = vshll.u32 %v4793, 16
      %v4975 = vor.u32 %v4972, %v4973
      %v4976 = vsel %vm4807, %v4968, %v4975
      %v4977 = vrot.slane %v4972, 4
      %v4979 = vshrl.u32 %v4794, 16
      %v4981 = vrot.slane %v4979, 7
      %v4982 = vshll.u32 %v4794, 16
      %v4984 = vor.u32 %v4981, %v4982
      %v4985 = vrot.slane %v4981, 4
      %v4987 = vshrl.u32 %v4795, 16
      %v4989 = vrot.slane %v4987, 7
      %v4990 = vshll.u32 %v4795, 16
      %v4992 = vor.u32 %v4989, %v4990
      %v4993 = vsel %vm4807, %v4985, %v4992
      %v4994 = vrot.slane %v4989, 4
      %v4996 = vshrl.u32 %v4796, 16
      %v4998 = vrot.slane %v4996, 7
      %v4999 = vshll.u32 %v4796, 16
      %v5001 = vor.u32 %v4998, %v4999
      %v5002 = vrot.slane %v4998, 4
      %v5004 = vshrl.u32 %v4797, 16
      %v5006 = vrot.slane %v5004, 7
      %v5007 = vshll.u32 %v4797, 16
      %v5009 = vor.u32 %v5006, %v5007
      %v5010 = vsel %vm4807, %v5002, %v5009
      %v5011 = vrot.slane %v5006, 4
      %v5013 = vshrl.u32 %v4798, 16
      %v5015 = vrot.slane %v5013, 7
      %v5016 = vshll.u32 %v4798, 16
      %v5018 = vor.u32 %v5015, %v5016
      %v5019 = vrot.slane %v5015, 4
      %v5021 = vshrl.u32 %v4799, 16
      %v5023 = vrot.slane %v5021, 7
      %v5024 = vshll.u32 %v4799, 16
      %v5026 = vor.u32 %v5023, %v5024
      %v5027 = vsel %vm4807, %v5019, %v5026
      %v5028 = vrot.slane %v5023, 4
      %v5030 = vshrl.u32 %v4800, 16
      %v5032 = vrot.slane %v5030, 7
      %v5033 = vshll.u32 %v4800, 16
      %v5035 = vor.u32 %v5032, %v5033
      %v5036 = vrot.slane %v5032, 4
      %v5038 = vshrl.u32 %v4801, 16
      %v5040 = vrot.slane %v5038, 7
      %v5041 = vshll.u32 %v4801, 16
      %v5043 = vor.u32 %v5040, %v5041
      %v5044 = vsel %vm4807, %v5036, %v5043
      %v5045 = vrot.slane %v5040, 4
      %v5047 = vshrl.u32 %v4802, 16
      %v5049 = vrot.slane %v5047, 7
      %v5050 = vshll.u32 %v4802, 16
      %v5052 = vor.u32 %v5049, %v5050
      %v5053 = vrot.slane %v5049, 4
      %v5055 = vshrl.u32 %v4803, 16
      %v5057 = vrot.slane %v5055, 7
      %v5058 = vshll.u32 %v4803, 16
      %v5060 = vor.u32 %v5057, %v5058
      %v5061 = vsel %vm4807, %v5053, %v5060
      %v5062 = vrot.slane %v5057, 4
      %v5064 = vshrl.u32 %v4804, 16
      %v5066 = vrot.slane %v5064, 7
      %v5067 = vshll.u32 %v4804, 16
      %v5069 = vor.u32 %v5066, %v5067
      %v5070 = vrot.slane %v5066, 4
      %v5072 = vshrl.u32 %v4805, 16
      %v5074 = vrot.slane %v5072, 7
      %v5075 = vshll.u32 %v4805, 16
      %v5077 = vor.u32 %v5074, %v5075
      %v5078 = vsel %vm4807, %v5070, %v5077
      %v5079 = vrot.slane %v5074, 4
      %vm5128 = vcmask 1043456
      %vm5129 = vmand %vm5128, %vm950
      %v5130 = vld [vmem:[%s457] sm:$0xf]
      %v5131 = vsel %vm5129, %v4814, %v5130
      %5132 = vst [vmem:[%s457] sm:$0xf] %v5131
      %5133 = vst [vmem:[%s457 + $0x4] sm:$0xf] %v4823
      %v5134 = vld [vmem:[%s457 + $0x8] sm:$0x1]
      %v5135 = vsel %vm895, %v4824, %v5134
      %5136 = vst [vmem:[%s457 + $0x8] sm:$0x1] %v5135
      %v5137 = vld [vmem:[%s457 + $0xc] sm:$0xf]
      %v5138 = vsel %vm5129, %v4831, %v5137
      %5139 = vst [vmem:[%s457 + $0xc] sm:$0xf] %v5138
      %5140 = vst [vmem:[%s457 + $0x10] sm:$0xf] %v4840
      %v5141 = vld [vmem:[%s457 + $0x14] sm:$0x1]
      %v5142 = vsel %vm895, %v4841, %v5141
      %5143 = vst [vmem:[%s457 + $0x14] sm:$0x1] %v5142
      %v5144 = vld [vmem:[%s457 + $0x18] sm:$0xf]
      %v5145 = vsel %vm5129, %v4848, %v5144
      %5146 = vst [vmem:[%s457 + $0x18] sm:$0xf] %v5145
      %5147 = vst [vmem:[%s457 + $0x1c] sm:$0xf] %v4857
      %v5148 = vld [vmem:[%s457 + $0x20] sm:$0x1]
      %v5149 = vsel %vm895, %v4858, %v5148
      %5150 = vst [vmem:[%s457 + $0x20] sm:$0x1] %v5149
      %v5151 = vld [vmem:[%s457 + $0x24] sm:$0xf]
      %v5152 = vsel %vm5129, %v4865, %v5151
      %5153 = vst [vmem:[%s457 + $0x24] sm:$0xf] %v5152
      %5154 = vst [vmem:[%s457 + $0x28] sm:$0xf] %v4874
      %v5155 = vld [vmem:[%s457 + $0x2c] sm:$0x1]
      %v5156 = vsel %vm895, %v4875, %v5155
      %5157 = vst [vmem:[%s457 + $0x2c] sm:$0x1] %v5156
      %v5158 = vld [vmem:[%s457 + $0x30] sm:$0xf]
      %v5159 = vsel %vm5129, %v4882, %v5158
      %5160 = vst [vmem:[%s457 + $0x30] sm:$0xf] %v5159
      %5161 = vst [vmem:[%s457 + $0x34] sm:$0xf] %v4891
      %v5162 = vld [vmem:[%s457 + $0x38] sm:$0x1]
      %v5163 = vsel %vm895, %v4892, %v5162
      %5164 = vst [vmem:[%s457 + $0x38] sm:$0x1] %v5163
      %v5165 = vld [vmem:[%s457 + $0x3c] sm:$0xf]
      %v5166 = vsel %vm5129, %v4899, %v5165
      %5167 = vst [vmem:[%s457 + $0x3c] sm:$0xf] %v5166
      %5168 = vst [vmem:[%s457 + $0x40] sm:$0xf] %v4908
      %v5169 = vld [vmem:[%s457 + $0x44] sm:$0x1]
      %v5170 = vsel %vm895, %v4909, %v5169
      %5171 = vst [vmem:[%s457 + $0x44] sm:$0x1] %v5170
      %v5172 = vld [vmem:[%s457 + $0x48] sm:$0xf]
      %v5173 = vsel %vm5129, %v4916, %v5172
      %5174 = vst [vmem:[%s457 + $0x48] sm:$0xf] %v5173
      %5175 = vst [vmem:[%s457 + $0x4c] sm:$0xf] %v4925
      %v5176 = vld [vmem:[%s457 + $0x50] sm:$0x1]
      %v5177 = vsel %vm895, %v4926, %v5176
      %5178 = vst [vmem:[%s457 + $0x50] sm:$0x1] %v5177
      %v5179 = vld [vmem:[%s457 + $0x54] sm:$0xf]
      %v5180 = vsel %vm5129, %v4933, %v5179
      %5181 = vst [vmem:[%s457 + $0x54] sm:$0xf] %v5180
      %5182 = vst [vmem:[%s457 + $0x58] sm:$0xf] %v4942
      %v5183 = vld [vmem:[%s457 + $0x5c] sm:$0x1]
      %v5184 = vsel %vm895, %v4943, %v5183
      %5185 = vst [vmem:[%s457 + $0x5c] sm:$0x1] %v5184
      %v5186 = vld [vmem:[%s457 + $0x60] sm:$0xf]
      %v5187 = vsel %vm5129, %v4950, %v5186
      %5188 = vst [vmem:[%s457 + $0x60] sm:$0xf] %v5187
      %5189 = vst [vmem:[%s457 + $0x64] sm:$0xf] %v4959
      %v5190 = vld [vmem:[%s457 + $0x68] sm:$0x1]
      %v5191 = vsel %vm895, %v4960, %v5190
      %5192 = vst [vmem:[%s457 + $0x68] sm:$0x1] %v5191
      %v5193 = vld [vmem:[%s457 + $0x6c] sm:$0xf]
      %v5194 = vsel %vm5129, %v4967, %v5193
      %5195 = vst [vmem:[%s457 + $0x6c] sm:$0xf] %v5194
      %5196 = vst [vmem:[%s457 + $0x70] sm:$0xf] %v4976
      %v5197 = vld [vmem:[%s457 + $0x74] sm:$0x1]
      %v5198 = vsel %vm895, %v4977, %v5197
      %5199 = vst [vmem:[%s457 + $0x74] sm:$0x1] %v5198
      %v5200 = vld [vmem:[%s457 + $0x78] sm:$0xf]
      %v5201 = vsel %vm5129, %v4984, %v5200
      %5202 = vst [vmem:[%s457 + $0x78] sm:$0xf] %v5201
      %5203 = vst [vmem:[%s457 + $0x7c] sm:$0xf] %v4993
      %v5204 = vld [vmem:[%s457 + $0x80] sm:$0x1]
      %v5205 = vsel %vm895, %v4994, %v5204
      %5206 = vst [vmem:[%s457 + $0x80] sm:$0x1] %v5205
      %v5207 = vld [vmem:[%s457 + $0x84] sm:$0xf]
      %v5208 = vsel %vm5129, %v5001, %v5207
      %5209 = vst [vmem:[%s457 + $0x84] sm:$0xf] %v5208
      %5210 = vst [vmem:[%s457 + $0x88] sm:$0xf] %v5010
      %v5211 = vld [vmem:[%s457 + $0x8c] sm:$0x1]
      %v5212 = vsel %vm895, %v5011, %v5211
      %5213 = vst [vmem:[%s457 + $0x8c] sm:$0x1] %v5212
      %v5214 = vld [vmem:[%s457 + $0x90] sm:$0xf]
      %v5215 = vsel %vm5129, %v5018, %v5214
      %5216 = vst [vmem:[%s457 + $0x90] sm:$0xf] %v5215
      %5217 = vst [vmem:[%s457 + $0x94] sm:$0xf] %v5027
      %v5218 = vld [vmem:[%s457 + $0x98] sm:$0x1]
      %v5219 = vsel %vm895, %v5028, %v5218
      %5220 = vst [vmem:[%s457 + $0x98] sm:$0x1] %v5219
      %v5221 = vld [vmem:[%s457 + $0x9c] sm:$0xf]
      %v5222 = vsel %vm5129, %v5035, %v5221
      %5223 = vst [vmem:[%s457 + $0x9c] sm:$0xf] %v5222
      %5224 = vst [vmem:[%s457 + $0xa0] sm:$0xf] %v5044
      %v5225 = vld [vmem:[%s457 + $0xa4] sm:$0x1]
      %v5226 = vsel %vm895, %v5045, %v5225
      %5227 = vst [vmem:[%s457 + $0xa4] sm:$0x1] %v5226
      %v5228 = vld [vmem:[%s457 + $0xa8] sm:$0xf]
      %v5229 = vsel %vm5129, %v5052, %v5228
      %5230 = vst [vmem:[%s457 + $0xa8] sm:$0xf] %v5229
      %5231 = vst [vmem:[%s457 + $0xac] sm:$0xf] %v5061
      %v5232 = vld [vmem:[%s457 + $0xb0] sm:$0x1]
      %v5233 = vsel %vm895, %v5062, %v5232
      %5234 = vst [vmem:[%s457 + $0xb0] sm:$0x1] %v5233
      %v5235 = vld [vmem:[%s457 + $0xb4] sm:$0xf]
      %v5236 = vsel %vm5129, %v5069, %v5235
      %5237 = vst [vmem:[%s457 + $0xb4] sm:$0xf] %v5236
      %5238 = vst [vmem:[%s457 + $0xb8] sm:$0xf] %v5078
      %v5239 = vld [vmem:[%s457 + $0xbc] sm:$0x1]
      %v5240 = vsel %vm895, %v5079, %v5239
      %5241 = vst [vmem:[%s457 + $0xbc] sm:$0x1] %v5240
      %v5242 = vld [vmem:[%s457] sm:$0x1]
      %v5243 = vsel %vm895, 0, %v5242
      %5244 = vst [vmem:[%s457] sm:$0x1] %v5243
      %v5245 = vld [vmem:[%s457 + $0xc] sm:$0x1]
      %v5246 = vsel %vm895, 0, %v5245
      %5247 = vst [vmem:[%s457 + $0xc] sm:$0x1] %v5246
      %v5248 = vld [vmem:[%s457 + $0x18] sm:$0x1]
      %v5249 = vsel %vm895, 0, %v5248
      %5250 = vst [vmem:[%s457 + $0x18] sm:$0x1] %v5249
      %v5251 = vld [vmem:[%s457 + $0x24] sm:$0x1]
      %v5252 = vsel %vm895, 0, %v5251
      %5253 = vst [vmem:[%s457 + $0x24] sm:$0x1] %v5252
      %v5254 = vld [vmem:[%s457 + $0x30] sm:$0x1]
      %v5255 = vsel %vm895, 0, %v5254
      %5256 = vst [vmem:[%s457 + $0x30] sm:$0x1] %v5255
      %v5257 = vld [vmem:[%s457 + $0x3c] sm:$0x1]
      %v5258 = vsel %vm895, 0, %v5257
      %5259 = vst [vmem:[%s457 + $0x3c] sm:$0x1] %v5258
      %v5260 = vld [vmem:[%s457 + $0x48] sm:$0x1]
      %v5261 = vsel %vm895, 0, %v5260
      %5262 = vst [vmem:[%s457 + $0x48] sm:$0x1] %v5261
      %v5263 = vld [vmem:[%s457 + $0x54] sm:$0x1]
      %v5264 = vsel %vm895, 0, %v5263
      %5265 = vst [vmem:[%s457 + $0x54] sm:$0x1] %v5264
      %v5266 = vld [vmem:[%s457 + $0x60] sm:$0x1]
      %v5267 = vsel %vm895, 0, %v5266
      %5268 = vst [vmem:[%s457 + $0x60] sm:$0x1] %v5267
      %v5269 = vld [vmem:[%s457 + $0x6c] sm:$0x1]
      %v5270 = vsel %vm895, 0, %v5269
      %5271 = vst [vmem:[%s457 + $0x6c] sm:$0x1] %v5270
      %v5272 = vld [vmem:[%s457 + $0x78] sm:$0x1]
      %v5273 = vsel %vm895, 0, %v5272
      %5274 = vst [vmem:[%s457 + $0x78] sm:$0x1] %v5273
      %v5275 = vld [vmem:[%s457 + $0x84] sm:$0x1]
      %v5276 = vsel %vm895, 0, %v5275
      %5277 = vst [vmem:[%s457 + $0x84] sm:$0x1] %v5276
      %v5278 = vld [vmem:[%s457 + $0x90] sm:$0x1]
      %v5279 = vsel %vm895, 0, %v5278
      %5280 = vst [vmem:[%s457 + $0x90] sm:$0x1] %v5279
      %v5281 = vld [vmem:[%s457 + $0x9c] sm:$0x1]
      %v5282 = vsel %vm895, 0, %v5281
      %5283 = vst [vmem:[%s457 + $0x9c] sm:$0x1] %v5282
      %v5284 = vld [vmem:[%s457 + $0xa8] sm:$0x1]
      %v5285 = vsel %vm895, 0, %v5284
      %5286 = vst [vmem:[%s457 + $0xa8] sm:$0x1] %v5285
      %v5287 = vld [vmem:[%s457 + $0xb4] sm:$0x1]
      %v5288 = vsel %vm895, 0, %v5287
      %5289 = vst [vmem:[%s457 + $0xb4] sm:$0x1] %v5288
      %v5290 = vld [vmem:[%s457 + $0x8] sm:$0x1]
      %v5291 = vsel %vm951, 0, %v5290
      %5292 = vst [vmem:[%s457 + $0x8] sm:$0x1] %v5291
      %v5293 = vld [vmem:[%s457 + $0x14] sm:$0x1]
      %v5294 = vsel %vm951, 0, %v5293
      %5295 = vst [vmem:[%s457 + $0x14] sm:$0x1] %v5294
      %v5296 = vld [vmem:[%s457 + $0x20] sm:$0x1]
      %v5297 = vsel %vm951, 0, %v5296
      %5298 = vst [vmem:[%s457 + $0x20] sm:$0x1] %v5297
      %v5299 = vld [vmem:[%s457 + $0x2c] sm:$0x1]
      %v5300 = vsel %vm951, 0, %v5299
      %5301 = vst [vmem:[%s457 + $0x2c] sm:$0x1] %v5300
      %v5302 = vld [vmem:[%s457 + $0x38] sm:$0x1]
      %v5303 = vsel %vm951, 0, %v5302
      %5304 = vst [vmem:[%s457 + $0x38] sm:$0x1] %v5303
      %v5305 = vld [vmem:[%s457 + $0x44] sm:$0x1]
      %v5306 = vsel %vm951, 0, %v5305
      %5307 = vst [vmem:[%s457 + $0x44] sm:$0x1] %v5306
      %v5308 = vld [vmem:[%s457 + $0x50] sm:$0x1]
      %v5309 = vsel %vm951, 0, %v5308
      %5310 = vst [vmem:[%s457 + $0x50] sm:$0x1] %v5309
      %v5311 = vld [vmem:[%s457 + $0x5c] sm:$0x1]
      %v5312 = vsel %vm951, 0, %v5311
      %5313 = vst [vmem:[%s457 + $0x5c] sm:$0x1] %v5312
      %v5314 = vld [vmem:[%s457 + $0x68] sm:$0x1]
      %v5315 = vsel %vm951, 0, %v5314
      %5316 = vst [vmem:[%s457 + $0x68] sm:$0x1] %v5315
      %v5317 = vld [vmem:[%s457 + $0x74] sm:$0x1]
      %v5318 = vsel %vm951, 0, %v5317
      %5319 = vst [vmem:[%s457 + $0x74] sm:$0x1] %v5318
      %v5320 = vld [vmem:[%s457 + $0x80] sm:$0x1]
      %v5321 = vsel %vm951, 0, %v5320
      %5322 = vst [vmem:[%s457 + $0x80] sm:$0x1] %v5321
      %v5323 = vld [vmem:[%s457 + $0x8c] sm:$0x1]
      %v5324 = vsel %vm951, 0, %v5323
      %5325 = vst [vmem:[%s457 + $0x8c] sm:$0x1] %v5324
      %v5326 = vld [vmem:[%s457 + $0x98] sm:$0x1]
      %v5327 = vsel %vm951, 0, %v5326
      %5328 = vst [vmem:[%s457 + $0x98] sm:$0x1] %v5327
      %v5329 = vld [vmem:[%s457 + $0xa4] sm:$0x1]
      %v5330 = vsel %vm951, 0, %v5329
      %5331 = vst [vmem:[%s457 + $0xa4] sm:$0x1] %v5330
      %v5332 = vld [vmem:[%s457 + $0xb0] sm:$0x1]
      %v5333 = vsel %vm951, 0, %v5332
      %5334 = vst [vmem:[%s457 + $0xb0] sm:$0x1] %v5333
      %v5335 = vld [vmem:[%s457 + $0xbc] sm:$0x1]
      %v5336 = vsel %vm951, 0, %v5335
      %5337 = vst [vmem:[%s457 + $0xbc] sm:$0x1] %v5336
      %v5338 = vadd.f32 %v4742, %v4743
      %v5339 = vadd.f32 %v5338, %v4744
      %v5340 = vadd.f32 %v5339, %v4745
      %v5341 = vadd.f32 %v5340, %v4746
      %v5342 = vadd.f32 %v5341, %v4747
      %v5343 = vadd.f32 %v5342, %v4748
      %v5344 = vadd.f32 %v5343, %v4749
      %v5345 = vadd.f32 %v5344, %v4750
      %v5346 = vadd.f32 %v5345, %v4751
      %v5347 = vadd.f32 %v5346, %v4752
      %v5348 = vadd.f32 %v5347, %v4753
      %v5349 = vadd.f32 %v5348, %v4754
      %v5350 = vadd.f32 %v5349, %v4755
      %v5351 = vadd.f32 %v5350, %v4756
      %v5352 = vadd.f32 %v5351, %v4757
      %v5353 = vadd.f32 %v5352, %v4758
      %v5354 = vadd.f32 %v5353, %v4759
      %v5355 = vadd.f32 %v5354, %v4760
      %v5356 = vadd.f32 %v5355, %v4761
      %v5357 = vadd.f32 %v5356, %v4762
      %v5358 = vadd.f32 %v5357, %v4763
      %v5359 = vadd.f32 %v5358, %v4764
      %v5360 = vadd.f32 %v5359, %v4765
      %v5361 = vadd.f32 %v5360, %v4766
      %v5362 = vadd.f32 %v5361, %v4767
      %v5363 = vadd.f32 %v5362, %v4768
      %v5364 = vadd.f32 %v5363, %v4769
      %v5365 = vadd.f32 %v5364, %v4770
      %v5366 = vadd.f32 %v5365, %v4771
      %v5367 = vadd.f32 %v5366, %v4772
      %v5368 = vadd.f32 %v5367, %v4773
      %v5369 = vrot.slane %v5368, 4
      %v5370 = vadd.f32 %v5368, %v5369
      %v5371 = vrot.slane %v5370, 2
      %v5372 = vadd.f32 %v5370, %v5371
      %v5373 = vrot.slane %v5372, 1
      %v5374 = vadd.f32 %v5372, %v5373
      %v5375 = vmul.f32 %v4742, %v4742
      %v5376 = vmul.f32 %v4743, %v4743
      %v5377 = vmul.f32 %v4744, %v4744
      %v5378 = vmul.f32 %v4745, %v4745
      %v5379 = vmul.f32 %v4746, %v4746
      %v5380 = vmul.f32 %v4747, %v4747
      %v5381 = vmul.f32 %v4748, %v4748
      %v5382 = vmul.f32 %v4749, %v4749
      %v5383 = vmul.f32 %v4750, %v4750
      %v5384 = vmul.f32 %v4751, %v4751
      %v5385 = vmul.f32 %v4752, %v4752
      %v5386 = vmul.f32 %v4753, %v4753
      %v5387 = vmul.f32 %v4754, %v4754
      %v5388 = vmul.f32 %v4755, %v4755
      %v5389 = vmul.f32 %v4756, %v4756
      %v5390 = vmul.f32 %v4757, %v4757
      %v5391 = vmul.f32 %v4758, %v4758
      %v5392 = vmul.f32 %v4759, %v4759
      %v5393 = vmul.f32 %v4760, %v4760
      %v5394 = vmul.f32 %v4761, %v4761
      %v5395 = vmul.f32 %v4762, %v4762
      %v5396 = vmul.f32 %v4763, %v4763
      %v5397 = vmul.f32 %v4764, %v4764
      %v5398 = vmul.f32 %v4765, %v4765
      %v5399 = vmul.f32 %v4766, %v4766
      %v5400 = vmul.f32 %v4767, %v4767
      %v5401 = vmul.f32 %v4768, %v4768
      %v5402 = vmul.f32 %v4769, %v4769
      %v5403 = vmul.f32 %v4770, %v4770
      %v5404 = vmul.f32 %v4771, %v4771
      %v5405 = vmul.f32 %v4772, %v4772
      %v5406 = vmul.f32 %v4773, %v4773
      %v5407 = vadd.f32 %v5375, %v5376
      %v5408 = vadd.f32 %v5407, %v5377
      %v5409 = vadd.f32 %v5408, %v5378
      %v5410 = vadd.f32 %v5409, %v5379
      %v5411 = vadd.f32 %v5410, %v5380
      %v5412 = vadd.f32 %v5411, %v5381
      %v5413 = vadd.f32 %v5412, %v5382
      %v5414 = vadd.f32 %v5413, %v5383
      %v5415 = vadd.f32 %v5414, %v5384
      %v5416 = vadd.f32 %v5415, %v5385
      %v5417 = vadd.f32 %v5416, %v5386
      %v5418 = vadd.f32 %v5417, %v5387
      %v5419 = vadd.f32 %v5418, %v5388
      %v5420 = vadd.f32 %v5419, %v5389
      %v5421 = vadd.f32 %v5420, %v5390
      %v5422 = vadd.f32 %v5421, %v5391
      %v5423 = vadd.f32 %v5422, %v5392
      %v5424 = vadd.f32 %v5423, %v5393
      %v5425 = vadd.f32 %v5424, %v5394
      %v5426 = vadd.f32 %v5425, %v5395
      %v5427 = vadd.f32 %v5426, %v5396
      %v5428 = vadd.f32 %v5427, %v5397
      %v5429 = vadd.f32 %v5428, %v5398
      %v5430 = vadd.f32 %v5429, %v5399
      %v5431 = vadd.f32 %v5430, %v5400
      %v5432 = vadd.f32 %v5431, %v5401
      %v5433 = vadd.f32 %v5432, %v5402
      %v5434 = vadd.f32 %v5433, %v5403
      %v5435 = vadd.f32 %v5434, %v5404
      %v5436 = vadd.f32 %v5435, %v5405
      %v5437 = vadd.f32 %v5436, %v5406
      %v5438 = vrot.slane %v5437, 4
      %v5439 = vadd.f32 %v5437, %v5438
      %v5440 = vrot.slane %v5439, 2
      %v5441 = vadd.f32 %v5439, %v5440
      %v5442 = vrot.slane %v5441, 1
      %v5443 = vadd.f32 %v5441, %v5442
      %vm5444 = vcmask 1040384
      %v5445 = vsel %vm5444, %v5374, %v5443
      %5446 = vst [vmem:[%s465] sm:$0x3] %v5445
      %s5447 = smul.u32 16, %s24
      %p5448 = scmp.lt.s32.totalorder %s23, 1
      %s5449 = scalar_select %p5448, %s23, 1
      %p5450 = scmp.lt.s32.totalorder %s5447, 15
      %s5451 = scalar_select %p5450, %s5447, 15
      %s5452 = smul.addr %s5451, 3
      %s5453 = smul.addr %s5449, 48
      %s5454 = sadd.s32 %s5452, %s5453
      %s5455 = smul.addr %s5454, 4
      %s5456 = scalar_lea.vmem %s6, %s5455
      %p5457 = scmp.lt.s32.totalorder %s23, 1
      %s5458 = scalar_select %p5457, %s23, 1
      %p5459 = scmp.lt.s32.totalorder %s24, 0
      %s5460 = scalar_select %p5459, %s24, 0
      %s5461 = sadd.s32 %s5460, %s5458
      %s5462 = smul.addr %s5461, 2
      %s5463 = scalar_lea.vmem %s7, %s5462
      // Predicated region
      $region61: #{double_conv.4} parent=43 // pred_check
        %p5464 = pneg %p214
      $region62: #{double_conv.4} parent=43 // pred_check_branch
        %5466 = sbr.rel (%p5464) target = $region64
      $region63: #{double_conv.4} parent=43 // pred_region
        %s5467 = smul.u32 16, %s24
      $region64: #{double_conv.4} parent=43 // pred_fallthru
        _
      // Predicated region
      $region65: #{double_conv.4} parent=43 // pred_check
        %p5468 = pneg %p242
      $region66: #{double_conv.4} parent=43 // pred_check_branch
        %5470 = sbr.rel (%p5468) target = $region68
      $region67: #{double_conv.4} parent=43 // pred_region
        _
      $region68: #{double_conv.4} parent=43 // pred_fallthru
        _
    $region44: #{double_conv.4} parent=5 // pred_fallthru
      _
    %p5471 = scmp.le.s32.totalorder 2, %s14
    // Predicated region
    $region69: #{double_conv.4} parent=5 // pred_check
      %p5472 = pneg %p5471
    $region70: #{double_conv.4} parent=5 // pred_check_branch
      %5474 = sbr.rel (%p5472) target = $region72
    $region71: #{double_conv.4} parent=5 // pred_region
      %s5475 = ssub.s32 %s14, 2
      // Predicated region
      $region73: #{double_conv.4} parent=71 // pred_check
        %p5476 = pneg %p220
      $region74: #{double_conv.4} parent=71 // pred_check_branch
        %5478 = sbr.rel (%p5476) target = $region76
      $region75: #{double_conv.4} parent=71 // pred_region
        %s5479 = smul.u32 16, %s26
        %p5480 = scmp.lt.s32.totalorder %s25, 1
        %s5481 = scalar_select %p5480, %s25, 1
        %p5482 = scmp.lt.s32.totalorder %s5479, 15
        %s5483 = scalar_select %p5482, %s5479, 15
        %s5484 = smul.addr %s5483, 3
        %s5485 = smul.addr %s5481, 48
        %s5486 = sadd.s32 %s5484, %s5485
        %s5487 = smul.addr %s5486, 4
        %s5488 = scalar_lea.vmem %s6, %s5487
      $region76: #{double_conv.4} parent=71 // pred_fallthru
        _
      // Predicated region
      $region77: #{double_conv.4} parent=71 // pred_check
        %p5489 = pneg %p248
      $region78: #{double_conv.4} parent=71 // pred_check_branch
        %5491 = sbr.rel (%p5489) target = $region80
      $region79: #{double_conv.4} parent=71 // pred_region
        %p5492 = scmp.lt.s32.totalorder %s25, 1
        %s5493 = scalar_select %p5492, %s25, 1
        %p5494 = scmp.lt.s32.totalorder %s26, 0
        %s5495 = scalar_select %p5494, %s26, 0
        %s5496 = sadd.s32 %s5495, %s5493
        %s5497 = smul.addr %s5496, 2
        %s5498 = scalar_lea.vmem %s7, %s5497
      $region80: #{double_conv.4} parent=71 // pred_fallthru
        _
    $region72: #{double_conv.4} parent=5 // pred_fallthru
      _
  $region6: #{double_conv.4} parent=0 // loop_footer
    %s18 = sadd.s32 1, %s14
  $region7: #{double_conv.4} parent=0 // loop_footer_branch
    %13 = sbr.rel target = $region3
  $region8: #{double_conv.4} parent=0 // loop_exit
    _

</llo_original>
